<compile_context>
chip_gen: v7x
topology: tpu7x:2x2x1
jax: 0.10.0
libtpu: 0.0.40
codegen_flags: <defaults>
</compile_context>

<pallas_src>
import jax
import jax.numpy as jnp
from jax import lax
from jax.experimental import pallas as pl
from jax.experimental.pallas import tpu as pltpu


# ----------------------------------------------------------------------------
# Fused kernel: one image per grid step.
#   x_ref  : (1, H, W, Cin)        bf16   NHWC input
#   w1_ref : (9, Cin, Cinter)      bf16   conv weights, tap index = kh*3+kw
#   b1_ref : (1, Cinter)           f32
#   w2_ref : (9, Cinter, Cout)     bf16   deconv weights (PyTorch (in,out,kh,kw) order, no flip)
#   b2_ref : (1, Cout)             f32
#   o_ref  : (1, 2, 2, Cout, H*W)  f32    o[0,a,b,c,m*W+n] = out[c, 2m+a, 2n+b]
#   xp_s   : VMEM (H+2, W+2, Cin)  bf16   zero-padded input (pad=1 each side)
#   h1p_s  : VMEM (H+1, W+1, Cinter) bf16 h1 with one zero row/col on bottom/right
# ----------------------------------------------------------------------------
def _unet_decoder_fused_kernel(x_ref, w1_ref, b1_ref, w2_ref, b2_ref, o_ref,
                               xp_s, h1p_s):
    _, H, W, Cin = x_ref.shape
    Cinter = h1p_s.shape[-1]
    Cout = o_ref.shape[3]
    HW = H * W

    # ---- stage 1: Conv2d(k=3, pad=1) + bias + ReLU (padding done in VMEM) ----
    xp_s[...] = jnp.zeros_like(xp_s)
    xp_s[1:H + 1, 1:W + 1, :] = x_ref[0]

    acc1 = jnp.broadcast_to(b1_ref[...], (HW, Cinter)).astype(jnp.float32)
    for kh in range(3):
        for kw in range(3):
            patch = xp_s[kh:kh + H, kw:kw + W, :].reshape(HW, Cin)       # bf16
            acc1 = acc1 + jnp.dot(patch, w1_ref[kh * 3 + kw],
                                  preferred_element_type=jnp.float32)
    h1 = jnp.maximum(acc1, 0.0).astype(h1p_s.dtype)                      # (HW, Cinter) bf16

    # stash h1 with one zero row/col of bottom/right padding for the sub-pixel taps
    h1p_s[...] = jnp.zeros_like(h1p_s)
    h1p_s[0:H, 0:W, :] = h1.reshape(H, W, Cinter)

    # ---- stage 2: ConvTranspose2d(k=3, s=2, p=1) via sub-pixel decomposition ----
    # out[2m+a, 2n+b] only receives taps whose kernel offsets match the parity (a, b):
    #   ee: W[1,1]            eo: W[1,0], W[1,2]
    #   oe: W[0,1], W[2,1]    oo: W[0,0], W[0,2], W[2,0], W[2,2]
    A00 = h1p_s[0:H, 0:W, :].reshape(HW, Cinter)          # h1[m,   n  ]
    A01 = h1p_s[0:H, 1:W + 1, :].reshape(HW, Cinter)      # h1[m,   n+1] (0 at n=W-1)
    A10 = h1p_s[1:H + 1, 0:W, :].reshape(HW, Cinter)      # h1[m+1, n  ] (0 at m=H-1)
    A11 = h1p_s[1:H + 1, 1:W + 1, :].reshape(HW, Cinter)  # h1[m+1, n+1]

    def tap(kh, kw):
        return w2_ref[kh * 3 + kw]                        # (Cinter, Cout) bf16

    def mm(a, w):
        return jnp.dot(a, w, preferred_element_type=jnp.float32)

    b2 = jnp.broadcast_to(b2_ref[...], (HW, Cout)).astype(jnp.float32)
    y_ee = b2 + mm(A00, tap(1, 1))
    y_eo = b2 + mm(A01, tap(1, 0)) + mm(A00, tap(1, 2))
    y_oe = b2 + mm(A10, tap(0, 1)) + mm(A00, tap(2, 1))
    y_oo = (b2 + mm(A11, tap(0, 0)) + mm(A10, tap(0, 2))
               + mm(A01, tap(2, 0)) + mm(A00, tap(2, 2)))

    # ReLU epilogue in f32; store channel-major so the minor dim is H*W (lane-dense).
    o_ref[0, 0, 0, :, :] = jnp.maximum(y_ee, 0.0).T
    o_ref[0, 0, 1, :, :] = jnp.maximum(y_eo, 0.0).T
    o_ref[0, 1, 0, :, :] = jnp.maximum(y_oe, 0.0).T
    o_ref[0, 1, 1, :, :] = jnp.maximum(y_oo, 0.0).T


# ----------------------------------------------------------------------------
# UnetDecoder forward (NCHW in / NCHW out, matching the PyTorch module)
# ----------------------------------------------------------------------------
def unet_decoder_forward(x_nchw, params, output_size):
    """params: PyTorch-shaped tensors:
         conv_w   (inter, in, 3, 3),  conv_b   (inter,)
         deconv_w (inter, out, 3, 3), deconv_b (out,)
       output_size: (Ho, Wo) requested from the transposed conv (static)."""
    conv_w, conv_b = params["conv_w"], params["conv_b"]
    deconv_w, deconv_b = params["deconv_w"], params["deconv_b"]
    n, cin, h, w = x_nchw.shape
    cinter = conv_w.shape[0]
    cout = deconv_w.shape[1]
    ho, wo = output_size
    op_h = ho - (2 * h - 1)
    op_w = wo - (2 * w - 1)
    assert 0 <= op_h <= 1 and 0 <= op_w <= 1, "output_size incompatible with k=3, s=2, p=1"

    # NCHW -> NHWC + bf16 cast (one fused pass over the small input).
    x_nhwc = jnp.transpose(x_nchw, (0, 2, 3, 1)).astype(jnp.bfloat16)

    # Weights: OIHW -> (tap, Cin, Cinter); ConvTranspose (in,out,kh,kw) -> (tap, Cinter, Cout).
    w1 = jnp.transpose(conv_w, (2, 3, 1, 0)).reshape(9, cin, cinter).astype(jnp.bfloat16)
    b1 = conv_b.reshape(1, cinter).astype(jnp.float32)
    w2 = jnp.transpose(deconv_w, (2, 3, 0, 1)).reshape(9, cinter, cout).astype(jnp.bfloat16)
    b2 = deconv_b.reshape(1, cout).astype(jnp.float32)

    hw = h * w
    # NOTE(perf): for large images (or N==1) tile the H axis with a 1-row halo and make it the
    # "parallel" grid axis so both v7x TensorCores are used and blocks fit 64 MiB VMEM.
    out = pl.pallas_call(
        _unet_decoder_fused_kernel,
        out_shape=jax.ShapeDtypeStruct((n, 2, 2, cout, hw), jnp.float32),
        grid=(n,),
        in_specs=[
            pl.BlockSpec((1, h, w, cin), lambda i: (i, 0, 0, 0)),
            pl.BlockSpec((9, cin, cinter), lambda i: (0, 0, 0)),
            pl.BlockSpec((1, cinter), lambda i: (0, 0)),
            pl.BlockSpec((9, cinter, cout), lambda i: (0, 0, 0)),
            pl.BlockSpec((1, cout), lambda i: (0, 0)),
        ],
        out_specs=pl.BlockSpec((1, 2, 2, cout, hw), lambda i: (i, 0, 0, 0, 0)),
        scratch_shapes=[
            pltpu.VMEM((h + 2, w + 2, cin), jnp.bfloat16),
            pltpu.VMEM((h + 1, w + 1, cinter), jnp.bfloat16),
        ],
        compiler_params=pltpu.CompilerParams(dimension_semantics=("parallel",)),
    )(x_nhwc, w1, b1, w2, b2)

    # Pixel-shuffle + channel-major reassembly in a single XLA transpose pass.
    out = out.reshape(n, 2, 2, cout, h, w)
    out = jnp.transpose(out, (0, 3, 4, 1, 5, 2)).reshape(n, cout, 2 * h, 2 * w)
    return out[:, :, :ho, :wo]


# ----------------------------------------------------------------------------
# Pure-XLA reference (correctness check against the Pallas path)
# ----------------------------------------------------------------------------
def unet_decoder_reference(x, params, output_size):
    conv_w, conv_b = params["conv_w"], params["conv_b"]
    deconv_w, deconv_b = params["deconv_w"], params["deconv_b"]
    y = lax.conv_general_dilated(
        x, conv_w, (1, 1), ((1, 1), (1, 1)),
        dimension_numbers=("NCHW", "OIHW", "NCHW"))
    y = jnp.maximum(y + conv_b[None, :, None, None], 0.0)
    h, w = y.shape[2], y.shape[3]
    ho, wo = output_size
    op_h = ho - (2 * h - 1)
    op_w = wo - (2 * w - 1)
    w2 = jnp.transpose(deconv_w[:, :, ::-1, ::-1], (1, 0, 2, 3))  # -> OIHW, flipped
    z = lax.conv_general_dilated(
        y, w2, (1, 1),
        ((1, 1 + op_h), (1, 1 + op_w)), lhs_dilation=(2, 2),
        dimension_numbers=("NCHW", "OIHW", "NCHW"))
    return jnp.maximum(z + deconv_b[None, :, None, None], 0.0)


if __name__ == "__main__":
    key = jax.random.PRNGKey(0)
    k_x, k_w1, k_b1, k_w2, k_b2 = jax.random.split(key, 5)

    # Small shapes consistent with the module: in=4, inter=8, out=6.
    N, C_IN, C_INTER, C_OUT = 2, 4, 8, 6
    H = W = 16
    output_size = (2 * H, 2 * W)  # -> output_padding = 1

    x = jax.random.normal(k_x, (N, C_IN, H, W), jnp.float32)
    params = {
        "conv_w":   0.1 * jax.random.normal(k_w1, (C_INTER, C_IN, 3, 3), jnp.float32),
        "conv_b":   0.1 * jax.random.normal(k_b1, (C_INTER,), jnp.float32),
        "deconv_w": 0.1 * jax.random.normal(k_w2, (C_INTER, C_OUT, 3, 3), jnp.float32),
        "deconv_b": 0.1 * jax.random.normal(k_b2, (C_OUT,), jnp.float32),
    }

    fwd = jax.jit(unet_decoder_forward, static_argnums=(2,))
    out = jax.block_until_ready(fwd(x, params, output_size))
    assert out.shape == (N, C_OUT, output_size[0], output_size[1]), out.shape

    ref = jax.block_until_ready(unet_decoder_reference(x, params, output_size))
    # bf16 operands with f32 accumulation -> loose-ish tolerance vs the f32 reference.
    assert jnp.allclose(out, ref, atol=5e-2, rtol=5e-2), float(jnp.max(jnp.abs(out - ref)))

    print("KERNEL_OK")
</pallas_src>

<mosaic_0001>
module attributes {stable_mosaic.version = 11 : i64} {
  func.func @_unet_decoder_fused_kernel(%arg0: i32, %arg1: memref<1x16x16x4xbf16, #tpu.memory_space<vmem>>, %arg2: memref<9x4x8xbf16, #tpu.memory_space<vmem>>, %arg3: memref<1x8xf32, #tpu.memory_space<vmem>>, %arg4: memref<9x8x6xbf16, #tpu.memory_space<vmem>>, %arg5: memref<1x6xf32, #tpu.memory_space<vmem>>, %arg6: memref<1x2x2x6x256xf32, #tpu.memory_space<vmem>>, %arg7: memref<18x18x4xbf16, #tpu.memory_space<vmem>>, %arg8: memref<17x17x8xbf16, #tpu.memory_space<vmem>>) attributes {dimension_semantics = [#tpu.dimension_semantics<parallel>], iteration_bounds = array<i64: 2>, scalar_prefetch = 0 : i64, scratch_operands = 2 : i64, tpu.core_type = #tpu.core_type<tc>, window_params = [{transform_indices = @transform_0, window_bounds = array<i64: 1, 16, 16, 4>}, {pipeline_mode = #tpu.pipeline_mode<synchronous>, transform_indices = @transform_1, window_bounds = array<i64: 9, 4, 8>}, {pipeline_mode = #tpu.pipeline_mode<synchronous>, transform_indices = @transform_2, window_bounds = array<i64: 1, 8>}, {pipeline_mode = #tpu.pipeline_mode<synchronous>, transform_indices = @transform_3, window_bounds = array<i64: 9, 8, 6>}, {pipeline_mode = #tpu.pipeline_mode<synchronous>, transform_indices = @transform_4, window_bounds = array<i64: 1, 6>}, {transform_indices = @transform_5, window_bounds = array<i64: 1, 2, 2, 6, 256>}]} {
    %cst = arith.constant 0.000000e+00 : bf16
    %0 = vector.broadcast %cst : bf16 to vector<18x18x4xbf16>
    %c0 = arith.constant 0 : index
    %c0_0 = arith.constant 0 : index
    %c0_1 = arith.constant 0 : index
    %1 = vector.load %arg7[%c0, %c0_0, %c0_1] : memref<18x18x4xbf16, #tpu.memory_space<vmem>>, vector<18x18x4xbf16>
    tpu.vector_store %arg7[%c0, %c0_0, %c0_1], %0 {strides = array<i32>} : memref<18x18x4xbf16, #tpu.memory_space<vmem>>, vector<18x18x4xbf16>,
    %c0_2 = arith.constant 0 : index
    %c0_3 = arith.constant 0 : index
    %c0_4 = arith.constant 0 : index
    %c0_5 = arith.constant 0 : index
    %2 = vector.load %arg1[%c0_2, %c0_3, %c0_4, %c0_5] : memref<1x16x16x4xbf16, #tpu.memory_space<vmem>>, vector<1x16x16x4xbf16>
    %3 = vector.shape_cast %2 : vector<1x16x16x4xbf16> to vector<16x16x4xbf16>
    %c1 = arith.constant 1 : index
    %c1_6 = arith.constant 1 : index
    %c0_7 = arith.constant 0 : index
    %4 = vector.load %arg7[%c1, %c1_6, %c0_7] : memref<18x18x4xbf16, #tpu.memory_space<vmem>>, vector<16x16x4xbf16>
    tpu.vector_store %arg7[%c1, %c1_6, %c0_7], %3 {strides = array<i32>} : memref<18x18x4xbf16, #tpu.memory_space<vmem>>, vector<16x16x4xbf16>,
    %c0_8 = arith.constant 0 : index
    %c0_9 = arith.constant 0 : index
    %5 = vector.load %arg3[%c0_8, %c0_9] : memref<1x8xf32, #tpu.memory_space<vmem>>, vector<1x8xf32>
    %6 = vector.shape_cast %5 : vector<1x8xf32> to vector<1x8xf32>
    %7 = vector.broadcast %6 : vector<1x8xf32> to vector<256x8xf32>
    %c0_10 = arith.constant 0 : index
    %c0_11 = arith.constant 0 : index
    %c0_12 = arith.constant 0 : index
    %8 = vector.load %arg7[%c0_10, %c0_11, %c0_12] : memref<18x18x4xbf16, #tpu.memory_space<vmem>>, vector<16x16x4xbf16>
    %9 = vector.shape_cast %8 : vector<16x16x4xbf16> to vector<256x4xbf16>
    %c0_13 = arith.constant 0 : index
    %c0_14 = arith.constant 0 : index
    %c0_15 = arith.constant 0 : index
    %10 = vector.load %arg2[%c0_13, %c0_14, %c0_15] : memref<9x4x8xbf16, #tpu.memory_space<vmem>>, vector<1x4x8xbf16>
    %11 = vector.shape_cast %10 : vector<1x4x8xbf16> to vector<4x8xbf16>
    %cst_16 = arith.constant dense<0.000000e+00> : vector<256x8xf32>
    %12 = tpu.matmul %9, %11, %cst_16 {dimension_numbers = #tpu.dot_dimension_numbers<[1], [0], [0], [1], [0, 0, 1, 1], [], []>} : vector<256x4xbf16>, vector<4x8xbf16>, vector<256x8xf32> -> vector<256x8xf32>
    %13 = arith.addf %7, %12 : vector<256x8xf32>
    %c0_17 = arith.constant 0 : index
    %c1_18 = arith.constant 1 : index
    %c0_19 = arith.constant 0 : index
    %14 = vector.load %arg7[%c0_17, %c1_18, %c0_19] : memref<18x18x4xbf16, #tpu.memory_space<vmem>>, vector<16x16x4xbf16>
    %15 = vector.shape_cast %14 : vector<16x16x4xbf16> to vector<256x4xbf16>
    %c1_20 = arith.constant 1 : index
    %c0_21 = arith.constant 0 : index
    %c0_22 = arith.constant 0 : index
    %16 = vector.load %arg2[%c1_20, %c0_21, %c0_22] : memref<9x4x8xbf16, #tpu.memory_space<vmem>>, vector<1x4x8xbf16>
    %17 = vector.shape_cast %16 : vector<1x4x8xbf16> to vector<4x8xbf16>
    %cst_23 = arith.constant dense<0.000000e+00> : vector<256x8xf32>
    %18 = tpu.matmul %15, %17, %cst_23 {dimension_numbers = #tpu.dot_dimension_numbers<[1], [0], [0], [1], [0, 0, 1, 1], [], []>} : vector<256x4xbf16>, vector<4x8xbf16>, vector<256x8xf32> -> vector<256x8xf32>
    %19 = arith.addf %13, %18 : vector<256x8xf32>
    %c0_24 = arith.constant 0 : index
    %c2 = arith.constant 2 : index
    %c0_25 = arith.constant 0 : index
    %20 = vector.load %arg7[%c0_24, %c2, %c0_25] : memref<18x18x4xbf16, #tpu.memory_space<vmem>>, vector<16x16x4xbf16>
    %21 = vector.shape_cast %20 : vector<16x16x4xbf16> to vector<256x4xbf16>
    %c2_26 = arith.constant 2 : index
    %c0_27 = arith.constant 0 : index
    %c0_28 = arith.constant 0 : index
    %22 = vector.load %arg2[%c2_26, %c0_27, %c0_28] : memref<9x4x8xbf16, #tpu.memory_space<vmem>>, vector<1x4x8xbf16>
    %23 = vector.shape_cast %22 : vector<1x4x8xbf16> to vector<4x8xbf16>
    %cst_29 = arith.constant dense<0.000000e+00> : vector<256x8xf32>
    %24 = tpu.matmul %21, %23, %cst_29 {dimension_numbers = #tpu.dot_dimension_numbers<[1], [0], [0], [1], [0, 0, 1, 1], [], []>} : vector<256x4xbf16>, vector<4x8xbf16>, vector<256x8xf32> -> vector<256x8xf32>
    %25 = arith.addf %19, %24 : vector<256x8xf32>
    %c1_30 = arith.constant 1 : index
    %c0_31 = arith.constant 0 : index
    %c0_32 = arith.constant 0 : index
    %26 = vector.load %arg7[%c1_30, %c0_31, %c0_32] : memref<18x18x4xbf16, #tpu.memory_space<vmem>>, vector<16x16x4xbf16>
    %27 = vector.shape_cast %26 : vector<16x16x4xbf16> to vector<256x4xbf16>
    %c3 = arith.constant 3 : index
    %c0_33 = arith.constant 0 : index
    %c0_34 = arith.constant 0 : index
    %28 = vector.load %arg2[%c3, %c0_33, %c0_34] : memref<9x4x8xbf16, #tpu.memory_space<vmem>>, vector<1x4x8xbf16>
    %29 = vector.shape_cast %28 : vector<1x4x8xbf16> to vector<4x8xbf16>
    %cst_35 = arith.constant dense<0.000000e+00> : vector<256x8xf32>
    %30 = tpu.matmul %27, %29, %cst_35 {dimension_numbers = #tpu.dot_dimension_numbers<[1], [0], [0], [1], [0, 0, 1, 1], [], []>} : vector<256x4xbf16>, vector<4x8xbf16>, vector<256x8xf32> -> vector<256x8xf32>
    %31 = arith.addf %25, %30 : vector<256x8xf32>
    %c1_36 = arith.constant 1 : index
    %c1_37 = arith.constant 1 : index
    %c0_38 = arith.constant 0 : index
    %32 = vector.load %arg7[%c1_36, %c1_37, %c0_38] : memref<18x18x4xbf16, #tpu.memory_space<vmem>>, vector<16x16x4xbf16>
    %33 = vector.shape_cast %32 : vector<16x16x4xbf16> to vector<256x4xbf16>
    %c4 = arith.constant 4 : index
    %c0_39 = arith.constant 0 : index
    %c0_40 = arith.constant 0 : index
    %34 = vector.load %arg2[%c4, %c0_39, %c0_40] : memref<9x4x8xbf16, #tpu.memory_space<vmem>>, vector<1x4x8xbf16>
    %35 = vector.shape_cast %34 : vector<1x4x8xbf16> to vector<4x8xbf16>
    %cst_41 = arith.constant dense<0.000000e+00> : vector<256x8xf32>
    %36 = tpu.matmul %33, %35, %cst_41 {dimension_numbers = #tpu.dot_dimension_numbers<[1], [0], [0], [1], [0, 0, 1, 1], [], []>} : vector<256x4xbf16>, vector<4x8xbf16>, vector<256x8xf32> -> vector<256x8xf32>
    %37 = arith.addf %31, %36 : vector<256x8xf32>
    %c1_42 = arith.constant 1 : index
    %c2_43 = arith.constant 2 : index
    %c0_44 = arith.constant 0 : index
    %38 = vector.load %arg7[%c1_42, %c2_43, %c0_44] : memref<18x18x4xbf16, #tpu.memory_space<vmem>>, vector<16x16x4xbf16>
    %39 = vector.shape_cast %38 : vector<16x16x4xbf16> to vector<256x4xbf16>
    %c5 = arith.constant 5 : index
    %c0_45 = arith.constant 0 : index
    %c0_46 = arith.constant 0 : index
    %40 = vector.load %arg2[%c5, %c0_45, %c0_46] : memref<9x4x8xbf16, #tpu.memory_space<vmem>>, vector<1x4x8xbf16>
    %41 = vector.shape_cast %40 : vector<1x4x8xbf16> to vector<4x8xbf16>
    %cst_47 = arith.constant dense<0.000000e+00> : vector<256x8xf32>
    %42 = tpu.matmul %39, %41, %cst_47 {dimension_numbers = #tpu.dot_dimension_numbers<[1], [0], [0], [1], [0, 0, 1, 1], [], []>} : vector<256x4xbf16>, vector<4x8xbf16>, vector<256x8xf32> -> vector<256x8xf32>
    %43 = arith.addf %37, %42 : vector<256x8xf32>
    %c2_48 = arith.constant 2 : index
    %c0_49 = arith.constant 0 : index
    %c0_50 = arith.constant 0 : index
    %44 = vector.load %arg7[%c2_48, %c0_49, %c0_50] : memref<18x18x4xbf16, #tpu.memory_space<vmem>>, vector<16x16x4xbf16>
    %45 = vector.shape_cast %44 : vector<16x16x4xbf16> to vector<256x4xbf16>
    %c6 = arith.constant 6 : index
    %c0_51 = arith.constant 0 : index
    %c0_52 = arith.constant 0 : index
    %46 = vector.load %arg2[%c6, %c0_51, %c0_52] : memref<9x4x8xbf16, #tpu.memory_space<vmem>>, vector<1x4x8xbf16>
    %47 = vector.shape_cast %46 : vector<1x4x8xbf16> to vector<4x8xbf16>
    %cst_53 = arith.constant dense<0.000000e+00> : vector<256x8xf32>
    %48 = tpu.matmul %45, %47, %cst_53 {dimension_numbers = #tpu.dot_dimension_numbers<[1], [0], [0], [1], [0, 0, 1, 1], [], []>} : vector<256x4xbf16>, vector<4x8xbf16>, vector<256x8xf32> -> vector<256x8xf32>
    %49 = arith.addf %43, %48 : vector<256x8xf32>
    %c2_54 = arith.constant 2 : index
    %c1_55 = arith.constant 1 : index
    %c0_56 = arith.constant 0 : index
    %50 = vector.load %arg7[%c2_54, %c1_55, %c0_56] : memref<18x18x4xbf16, #tpu.memory_space<vmem>>, vector<16x16x4xbf16>
    %51 = vector.shape_cast %50 : vector<16x16x4xbf16> to vector<256x4xbf16>
    %c7 = arith.constant 7 : index
    %c0_57 = arith.constant 0 : index
    %c0_58 = arith.constant 0 : index
    %52 = vector.load %arg2[%c7, %c0_57, %c0_58] : memref<9x4x8xbf16, #tpu.memory_space<vmem>>, vector<1x4x8xbf16>
    %53 = vector.shape_cast %52 : vector<1x4x8xbf16> to vector<4x8xbf16>
    %cst_59 = arith.constant dense<0.000000e+00> : vector<256x8xf32>
    %54 = tpu.matmul %51, %53, %cst_59 {dimension_numbers = #tpu.dot_dimension_numbers<[1], [0], [0], [1], [0, 0, 1, 1], [], []>} : vector<256x4xbf16>, vector<4x8xbf16>, vector<256x8xf32> -> vector<256x8xf32>
    %55 = arith.addf %49, %54 : vector<256x8xf32>
    %c2_60 = arith.constant 2 : index
    %c2_61 = arith.constant 2 : index
    %c0_62 = arith.constant 0 : index
    %56 = vector.load %arg7[%c2_60, %c2_61, %c0_62] : memref<18x18x4xbf16, #tpu.memory_space<vmem>>, vector<16x16x4xbf16>
    %57 = vector.shape_cast %56 : vector<16x16x4xbf16> to vector<256x4xbf16>
    %c8 = arith.constant 8 : index
    %c0_63 = arith.constant 0 : index
    %c0_64 = arith.constant 0 : index
    %58 = vector.load %arg2[%c8, %c0_63, %c0_64] : memref<9x4x8xbf16, #tpu.memory_space<vmem>>, vector<1x4x8xbf16>
    %59 = vector.shape_cast %58 : vector<1x4x8xbf16> to vector<4x8xbf16>
    %cst_65 = arith.constant dense<0.000000e+00> : vector<256x8xf32>
    %60 = tpu.matmul %57, %59, %cst_65 {dimension_numbers = #tpu.dot_dimension_numbers<[1], [0], [0], [1], [0, 0, 1, 1], [], []>} : vector<256x4xbf16>, vector<4x8xbf16>, vector<256x8xf32> -> vector<256x8xf32>
    %61 = arith.addf %55, %60 : vector<256x8xf32>
    %cst_66 = arith.constant 0.000000e+00 : f32
    %62 = vector.broadcast %cst_66 : f32 to vector<256x8xf32>
    %63 = arith.maximumf %61, %62 : vector<256x8xf32>
    %64 = arith.truncf %63 : vector<256x8xf32> to vector<256x8xbf16>
    %cst_67 = arith.constant 0.000000e+00 : bf16
    %65 = vector.broadcast %cst_67 : bf16 to vector<17x17x8xbf16>
    %c0_68 = arith.constant 0 : index
    %c0_69 = arith.constant 0 : index
    %c0_70 = arith.constant 0 : index
    %66 = vector.load %arg8[%c0_68, %c0_69, %c0_70] : memref<17x17x8xbf16, #tpu.memory_space<vmem>>, vector<17x17x8xbf16>
    tpu.vector_store %arg8[%c0_68, %c0_69, %c0_70], %65 {strides = array<i32>} : memref<17x17x8xbf16, #tpu.memory_space<vmem>>, vector<17x17x8xbf16>,
    %67 = vector.shape_cast %64 : vector<256x8xbf16> to vector<16x16x8xbf16>
    %c0_71 = arith.constant 0 : index
    %c0_72 = arith.constant 0 : index
    %c0_73 = arith.constant 0 : index
    %68 = vector.load %arg8[%c0_71, %c0_72, %c0_73] : memref<17x17x8xbf16, #tpu.memory_space<vmem>>, vector<16x16x8xbf16>
    tpu.vector_store %arg8[%c0_71, %c0_72, %c0_73], %67 {strides = array<i32>} : memref<17x17x8xbf16, #tpu.memory_space<vmem>>, vector<16x16x8xbf16>,
    %c0_74 = arith.constant 0 : index
    %c0_75 = arith.constant 0 : index
    %c0_76 = arith.constant 0 : index
    %69 = vector.load %arg8[%c0_74, %c0_75, %c0_76] : memref<17x17x8xbf16, #tpu.memory_space<vmem>>, vector<16x16x8xbf16>
    %70 = vector.shape_cast %69 : vector<16x16x8xbf16> to vector<256x8xbf16>
    %c0_77 = arith.constant 0 : index
    %c1_78 = arith.constant 1 : index
    %c0_79 = arith.constant 0 : index
    %71 = vector.load %arg8[%c0_77, %c1_78, %c0_79] : memref<17x17x8xbf16, #tpu.memory_space<vmem>>, vector<16x16x8xbf16>
    %72 = vector.shape_cast %71 : vector<16x16x8xbf16> to vector<256x8xbf16>
    %c1_80 = arith.constant 1 : index
    %c0_81 = arith.constant 0 : index
    %c0_82 = arith.constant 0 : index
    %73 = vector.load %arg8[%c1_80, %c0_81, %c0_82] : memref<17x17x8xbf16, #tpu.memory_space<vmem>>, vector<16x16x8xbf16>
    %74 = vector.shape_cast %73 : vector<16x16x8xbf16> to vector<256x8xbf16>
    %c1_83 = arith.constant 1 : index
    %c1_84 = arith.constant 1 : index
    %c0_85 = arith.constant 0 : index
    %75 = vector.load %arg8[%c1_83, %c1_84, %c0_85] : memref<17x17x8xbf16, #tpu.memory_space<vmem>>, vector<16x16x8xbf16>
    %76 = vector.shape_cast %75 : vector<16x16x8xbf16> to vector<256x8xbf16>
    %c0_86 = arith.constant 0 : index
    %c0_87 = arith.constant 0 : index
    %77 = vector.load %arg5[%c0_86, %c0_87] : memref<1x6xf32, #tpu.memory_space<vmem>>, vector<1x6xf32>
    %78 = vector.shape_cast %77 : vector<1x6xf32> to vector<1x6xf32>
    %79 = vector.broadcast %78 : vector<1x6xf32> to vector<256x6xf32>
    %c4_88 = arith.constant 4 : index
    %c0_89 = arith.constant 0 : index
    %c0_90 = arith.constant 0 : index
    %80 = vector.load %arg4[%c4_88, %c0_89, %c0_90] : memref<9x8x6xbf16, #tpu.memory_space<vmem>>, vector<1x8x6xbf16>
    %81 = vector.shape_cast %80 : vector<1x8x6xbf16> to vector<8x6xbf16>
    %cst_91 = arith.constant dense<0.000000e+00> : vector<256x6xf32>
    %82 = tpu.matmul %70, %81, %cst_91 {dimension_numbers = #tpu.dot_dimension_numbers<[1], [0], [0], [1], [0, 0, 1, 1], [], []>} : vector<256x8xbf16>, vector<8x6xbf16>, vector<256x6xf32> -> vector<256x6xf32>
    %83 = arith.addf %79, %82 : vector<256x6xf32>
    %c3_92 = arith.constant 3 : index
    %c0_93 = arith.constant 0 : index
    %c0_94 = arith.constant 0 : index
    %84 = vector.load %arg4[%c3_92, %c0_93, %c0_94] : memref<9x8x6xbf16, #tpu.memory_space<vmem>>, vector<1x8x6xbf16>
    %85 = vector.shape_cast %84 : vector<1x8x6xbf16> to vector<8x6xbf16>
    %cst_95 = arith.constant dense<0.000000e+00> : vector<256x6xf32>
    %86 = tpu.matmul %72, %85, %cst_95 {dimension_numbers = #tpu.dot_dimension_numbers<[1], [0], [0], [1], [0, 0, 1, 1], [], []>} : vector<256x8xbf16>, vector<8x6xbf16>, vector<256x6xf32> -> vector<256x6xf32>
    %87 = arith.addf %79, %86 : vector<256x6xf32>
    %c5_96 = arith.constant 5 : index
    %c0_97 = arith.constant 0 : index
    %c0_98 = arith.constant 0 : index
    %88 = vector.load %arg4[%c5_96, %c0_97, %c0_98] : memref<9x8x6xbf16, #tpu.memory_space<vmem>>, vector<1x8x6xbf16>
    %89 = vector.shape_cast %88 : vector<1x8x6xbf16> to vector<8x6xbf16>
    %cst_99 = arith.constant dense<0.000000e+00> : vector<256x6xf32>
    %90 = tpu.matmul %70, %89, %cst_99 {dimension_numbers = #tpu.dot_dimension_numbers<[1], [0], [0], [1], [0, 0, 1, 1], [], []>} : vector<256x8xbf16>, vector<8x6xbf16>, vector<256x6xf32> -> vector<256x6xf32>
    %91 = arith.addf %87, %90 : vector<256x6xf32>
    %c1_100 = arith.constant 1 : index
    %c0_101 = arith.constant 0 : index
    %c0_102 = arith.constant 0 : index
    %92 = vector.load %arg4[%c1_100, %c0_101, %c0_102] : memref<9x8x6xbf16, #tpu.memory_space<vmem>>, vector<1x8x6xbf16>
    %93 = vector.shape_cast %92 : vector<1x8x6xbf16> to vector<8x6xbf16>
    %cst_103 = arith.constant dense<0.000000e+00> : vector<256x6xf32>
    %94 = tpu.matmul %74, %93, %cst_103 {dimension_numbers = #tpu.dot_dimension_numbers<[1], [0], [0], [1], [0, 0, 1, 1], [], []>} : vector<256x8xbf16>, vector<8x6xbf16>, vector<256x6xf32> -> vector<256x6xf32>
    %95 = arith.addf %79, %94 : vector<256x6xf32>
    %c7_104 = arith.constant 7 : index
    %c0_105 = arith.constant 0 : index
    %c0_106 = arith.constant 0 : index
    %96 = vector.load %arg4[%c7_104, %c0_105, %c0_106] : memref<9x8x6xbf16, #tpu.memory_space<vmem>>, vector<1x8x6xbf16>
    %97 = vector.shape_cast %96 : vector<1x8x6xbf16> to vector<8x6xbf16>
    %cst_107 = arith.constant dense<0.000000e+00> : vector<256x6xf32>
    %98 = tpu.matmul %70, %97, %cst_107 {dimension_numbers = #tpu.dot_dimension_numbers<[1], [0], [0], [1], [0, 0, 1, 1], [], []>} : vector<256x8xbf16>, vector<8x6xbf16>, vector<256x6xf32> -> vector<256x6xf32>
    %99 = arith.addf %95, %98 : vector<256x6xf32>
    %c0_108 = arith.constant 0 : index
    %c0_109 = arith.constant 0 : index
    %c0_110 = arith.constant 0 : index
    %100 = vector.load %arg4[%c0_108, %c0_109, %c0_110] : memref<9x8x6xbf16, #tpu.memory_space<vmem>>, vector<1x8x6xbf16>
    %101 = vector.shape_cast %100 : vector<1x8x6xbf16> to vector<8x6xbf16>
    %cst_111 = arith.constant dense<0.000000e+00> : vector<256x6xf32>
    %102 = tpu.matmul %76, %101, %cst_111 {dimension_numbers = #tpu.dot_dimension_numbers<[1], [0], [0], [1], [0, 0, 1, 1], [], []>} : vector<256x8xbf16>, vector<8x6xbf16>, vector<256x6xf32> -> vector<256x6xf32>
    %103 = arith.addf %79, %102 : vector<256x6xf32>
    %c2_112 = arith.constant 2 : index
    %c0_113 = arith.constant 0 : index
    %c0_114 = arith.constant 0 : index
    %104 = vector.load %arg4[%c2_112, %c0_113, %c0_114] : memref<9x8x6xbf16, #tpu.memory_space<vmem>>, vector<1x8x6xbf16>
    %105 = vector.shape_cast %104 : vector<1x8x6xbf16> to vector<8x6xbf16>
    %cst_115 = arith.constant dense<0.000000e+00> : vector<256x6xf32>
    %106 = tpu.matmul %74, %105, %cst_115 {dimension_numbers = #tpu.dot_dimension_numbers<[1], [0], [0], [1], [0, 0, 1, 1], [], []>} : vector<256x8xbf16>, vector<8x6xbf16>, vector<256x6xf32> -> vector<256x6xf32>
    %107 = arith.addf %103, %106 : vector<256x6xf32>
    %c6_116 = arith.constant 6 : index
    %c0_117 = arith.constant 0 : index
    %c0_118 = arith.constant 0 : index
    %108 = vector.load %arg4[%c6_116, %c0_117, %c0_118] : memref<9x8x6xbf16, #tpu.memory_space<vmem>>, vector<1x8x6xbf16>
    %109 = vector.shape_cast %108 : vector<1x8x6xbf16> to vector<8x6xbf16>
    %cst_119 = arith.constant dense<0.000000e+00> : vector<256x6xf32>
    %110 = tpu.matmul %72, %109, %cst_119 {dimension_numbers = #tpu.dot_dimension_numbers<[1], [0], [0], [1], [0, 0, 1, 1], [], []>} : vector<256x8xbf16>, vector<8x6xbf16>, vector<256x6xf32> -> vector<256x6xf32>
    %111 = arith.addf %107, %110 : vector<256x6xf32>
    %c8_120 = arith.constant 8 : index
    %c0_121 = arith.constant 0 : index
    %c0_122 = arith.constant 0 : index
    %112 = vector.load %arg4[%c8_120, %c0_121, %c0_122] : memref<9x8x6xbf16, #tpu.memory_space<vmem>>, vector<1x8x6xbf16>
    %113 = vector.shape_cast %112 : vector<1x8x6xbf16> to vector<8x6xbf16>
    %cst_123 = arith.constant dense<0.000000e+00> : vector<256x6xf32>
    %114 = tpu.matmul %70, %113, %cst_123 {dimension_numbers = #tpu.dot_dimension_numbers<[1], [0], [0], [1], [0, 0, 1, 1], [], []>} : vector<256x8xbf16>, vector<8x6xbf16>, vector<256x6xf32> -> vector<256x6xf32>
    %115 = arith.addf %111, %114 : vector<256x6xf32>
    %cst_124 = arith.constant 0.000000e+00 : f32
    %116 = vector.broadcast %cst_124 : f32 to vector<256x6xf32>
    %117 = arith.maximumf %83, %116 : vector<256x6xf32>
    %118 = tpu.transpose %117, [1, 0] : vector<256x6xf32> -> vector<6x256xf32>
    %c0_125 = arith.constant 0 : index
    %c0_126 = arith.constant 0 : index
    %c0_127 = arith.constant 0 : index
    %c0_128 = arith.constant 0 : index
    %c0_129 = arith.constant 0 : index
    %119 = vector.load %arg6[%c0_125, %c0_126, %c0_127, %c0_128, %c0_129] : memref<1x2x2x6x256xf32, #tpu.memory_space<vmem>>, vector<1x1x1x6x256xf32>
    %120 = vector.shape_cast %119 : vector<1x1x1x6x256xf32> to vector<6x256xf32>
    %121 = vector.shape_cast %118 : vector<6x256xf32> to vector<1x1x1x6x256xf32>
    tpu.vector_store %arg6[%c0_125, %c0_126, %c0_127, %c0_128, %c0_129], %121 {strides = array<i32>} : memref<1x2x2x6x256xf32, #tpu.memory_space<vmem>>, vector<1x1x1x6x256xf32>,
    %cst_130 = arith.constant 0.000000e+00 : f32
    %122 = vector.broadcast %cst_130 : f32 to vector<256x6xf32>
    %123 = arith.maximumf %91, %122 : vector<256x6xf32>
    %124 = tpu.transpose %123, [1, 0] : vector<256x6xf32> -> vector<6x256xf32>
    %c0_131 = arith.constant 0 : index
    %c0_132 = arith.constant 0 : index
    %c1_133 = arith.constant 1 : index
    %c0_134 = arith.constant 0 : index
    %c0_135 = arith.constant 0 : index
    %125 = vector.load %arg6[%c0_131, %c0_132, %c1_133, %c0_134, %c0_135] : memref<1x2x2x6x256xf32, #tpu.memory_space<vmem>>, vector<1x1x1x6x256xf32>
    %126 = vector.shape_cast %125 : vector<1x1x1x6x256xf32> to vector<6x256xf32>
    %127 = vector.shape_cast %124 : vector<6x256xf32> to vector<1x1x1x6x256xf32>
    tpu.vector_store %arg6[%c0_131, %c0_132, %c1_133, %c0_134, %c0_135], %127 {strides = array<i32>} : memref<1x2x2x6x256xf32, #tpu.memory_space<vmem>>, vector<1x1x1x6x256xf32>,
    %cst_136 = arith.constant 0.000000e+00 : f32
    %128 = vector.broadcast %cst_136 : f32 to vector<256x6xf32>
    %129 = arith.maximumf %99, %128 : vector<256x6xf32>
    %130 = tpu.transpose %129, [1, 0] : vector<256x6xf32> -> vector<6x256xf32>
    %c0_137 = arith.constant 0 : index
    %c1_138 = arith.constant 1 : index
    %c0_139 = arith.constant 0 : index
    %c0_140 = arith.constant 0 : index
    %c0_141 = arith.constant 0 : index
    %131 = vector.load %arg6[%c0_137, %c1_138, %c0_139, %c0_140, %c0_141] : memref<1x2x2x6x256xf32, #tpu.memory_space<vmem>>, vector<1x1x1x6x256xf32>
    %132 = vector.shape_cast %131 : vector<1x1x1x6x256xf32> to vector<6x256xf32>
    %133 = vector.shape_cast %130 : vector<6x256xf32> to vector<1x1x1x6x256xf32>
    tpu.vector_store %arg6[%c0_137, %c1_138, %c0_139, %c0_140, %c0_141], %133 {strides = array<i32>} : memref<1x2x2x6x256xf32, #tpu.memory_space<vmem>>, vector<1x1x1x6x256xf32>,
    %cst_142 = arith.constant 0.000000e+00 : f32
    %134 = vector.broadcast %cst_142 : f32 to vector<256x6xf32>
    %135 = arith.maximumf %115, %134 : vector<256x6xf32>
    %136 = tpu.transpose %135, [1, 0] : vector<256x6xf32> -> vector<6x256xf32>
    %c0_143 = arith.constant 0 : index
    %c1_144 = arith.constant 1 : index
    %c1_145 = arith.constant 1 : index
    %c0_146 = arith.constant 0 : index
    %c0_147 = arith.constant 0 : index
    %137 = vector.load %arg6[%c0_143, %c1_144, %c1_145, %c0_146, %c0_147] : memref<1x2x2x6x256xf32, #tpu.memory_space<vmem>>, vector<1x1x1x6x256xf32>
    %138 = vector.shape_cast %137 : vector<1x1x1x6x256xf32> to vector<6x256xf32>
    %139 = vector.shape_cast %136 : vector<6x256xf32> to vector<1x1x1x6x256xf32>
    tpu.vector_store %arg6[%c0_143, %c1_144, %c1_145, %c0_146, %c0_147], %139 {strides = array<i32>} : memref<1x2x2x6x256xf32, #tpu.memory_space<vmem>>, vector<1x1x1x6x256xf32>,
    return
  }
  func.func @transform_0(%arg0: i32) -> (i32, i32, i32, i32) {
    %c0_i32 = arith.constant 0 : i32
    %c0_i32_0 = arith.constant 0 : i32
    %c0_i32_1 = arith.constant 0 : i32
    %c0_i32_2 = arith.constant 0 : i32
    return %arg0, %c0_i32, %c0_i32_0, %c0_i32_1 : i32, i32, i32, i32
  }
  func.func @transform_1(%arg0: i32) -> (i32, i32, i32) {
    %c0_i32 = arith.constant 0 : i32
    %c0_i32_0 = arith.constant 0 : i32
    %c0_i32_1 = arith.constant 0 : i32
    %c0_i32_2 = arith.constant 0 : i32
    return %c0_i32, %c0_i32_0, %c0_i32_1 : i32, i32, i32
  }
  func.func @transform_2(%arg0: i32) -> (i32, i32) {
    %c0_i32 = arith.constant 0 : i32
    %c0_i32_0 = arith.constant 0 : i32
    %c0_i32_1 = arith.constant 0 : i32
    return %c0_i32, %c0_i32_0 : i32, i32
  }
  func.func @transform_3(%arg0: i32) -> (i32, i32, i32) {
    %c0_i32 = arith.constant 0 : i32
    %c0_i32_0 = arith.constant 0 : i32
    %c0_i32_1 = arith.constant 0 : i32
    %c0_i32_2 = arith.constant 0 : i32
    return %c0_i32, %c0_i32_0, %c0_i32_1 : i32, i32, i32
  }
  func.func @transform_4(%arg0: i32) -> (i32, i32) {
    %c0_i32 = arith.constant 0 : i32
    %c0_i32_0 = arith.constant 0 : i32
    %c0_i32_1 = arith.constant 0 : i32
    return %c0_i32, %c0_i32_0 : i32, i32
  }
  func.func @transform_5(%arg0: i32) -> (i32, i32, i32, i32, i32) {
    %c0_i32 = arith.constant 0 : i32
    %c0_i32_0 = arith.constant 0 : i32
    %c0_i32_1 = arith.constant 0 : i32
    %c0_i32_2 = arith.constant 0 : i32
    %c0_i32_3 = arith.constant 0 : i32
    return %arg0, %c0_i32, %c0_i32_0, %c0_i32_1, %c0_i32_2 : i32, i32, i32, i32, i32
  }
}

</mosaic_0001>

<llo_original>
// kernel: unet_decoder_forward.1
$region0: #{unet_decoder_forward.1}
  #allocation0 [shape = 'u32[]', space=smem, size = 0x4, offset = 0x4, fixed_abs, tag = 'smem constant byte address 0x4 - core index']
  #allocation1 [shape = 'u32[144,128]{1,0:T(1,128)}', space=vmem, size = 0x12000, scoped, tag = 'internal scratch']
  #allocation2 [shape = 'bf16[18,18,4]{2,1,0:T(8,128)(2,1)}', space=vmem, size = 0x1b000, scoped, tag = 'scratch operand']
  #allocation3 [shape = 'bf16[17,17,8]{2,1,0:T(8,128)(2,1)}', space=vmem, size = 0x19800, scoped, tag = 'scratch operand']
  %s0 = inlined_call_operand.vmem [shape: bf16[2,16,16,4], index: 0, kind: input, shape index: {}]
  %s1 = inlined_call_operand.vmem [shape: bf16[9,4,8], index: 1, kind: input, shape index: {}]
  %s2 = inlined_call_operand.vmem [shape: f32[1,8], index: 2, kind: input, shape index: {}]
  %s3 = inlined_call_operand.vmem [shape: bf16[9,8,6], index: 3, kind: input, shape index: {}]
  %s4 = inlined_call_operand.vmem [shape: f32[1,6], index: 4, kind: input, shape index: {}]
  %s5 = inlined_call_operand.vmem [shape: f32[2,2,2,6,256], index: 5, kind: output, shape index: {}]
  %s6 = sld [smem:[#allocation0]]
  $region53: #{unet_decoder_forward.1} parent=0
    _
  %s8 = ssub.s32 1, %s6
  %s9 = scalar_select 0, %s8, %s6
  loop: start=0, step=1, limit=4
  $region2: #{unet_decoder_forward.1} parent=0 // loop_pre_header
    _
  $region3: #{unet_decoder_forward.1} parent=0 // loop_header
    %s11 = sphi 0, %s15
    %p12 = scmp.ge.s32.totalorder %s11, 4
    %s21 = sphi 0, %s23
    %s24 = sphi 0, %s21
    %s25 = sphi 0, %s24
    %s41 = sphi 0, %s25
    %s45 = sphi 0, %s45
    %s47 = sphi 0, %s45
    %s48 = sphi 0, %s47
    %s62 = sphi 0, %s48
    %s66 = sphi 0, %s66
    %s68 = sphi 0, %s66
    %s69 = sphi 0, %s68
    %s83 = sphi 0, %s69
    %s87 = sphi 0, %s87
    %s89 = sphi 0, %s87
    %s90 = sphi 0, %s89
    %s104 = sphi 0, %s90
    %s108 = sphi 0, %s108
    %s110 = sphi 0, %s108
    %s111 = sphi 0, %s110
    %s125 = sphi 0, %s111
    %s131 = sphi 0, %s133
    %s134 = sphi 0, %s131
    %s135 = sphi 0, %s134
    %s151 = sphi 0, %s135
  $region4: #{unet_decoder_forward.1} parent=0 // loop_header_branch
    %14 = sbr.rel (%p12) target = $region8
  $region5: #{unet_decoder_forward.1} parent=0 // loop_body
    %s16 = ssub.s32 %s11, 1
    %s17 = ssub.s32 %s11, 2
    %s18 = sadd.s32 %s11, 1
    %s19 = ssub.s32 %s11, %s18
    %p20 = scmp.eq.s32.totalorder %s19, 0
    %s22 = sadd.s32 %s21, 1
    %s23 = scalar_select %p20, %s21, %s22
    %p26 = pneg %p20
    %p27 = scmp.eq.s32.totalorder %s11, 1
    %p28 = por %p26, %p27
    %p29 = scmp.ne.s32.totalorder %s21, %s24
    %p30 = scmp.eq.s32.totalorder %s11, 0
    %p31 = por %p29, %p30
    %p32 = scmp.ne.s32.totalorder %s21, %s24
    %p33 = scmp.eq.s32.totalorder %s16, 1
    %p34 = por %p32, %p33
    %p35 = scmp.ne.s32.totalorder %s24, %s25
    %p36 = scmp.eq.s32.totalorder %s16, 0
    %p37 = por %p35, %p36
    %p38 = scmp.ne.s32.totalorder %s24, %s25
    %p39 = scmp.eq.s32.totalorder %s17, 1
    %p40 = por %p38, %p39
    %p42 = scmp.ne.s32.totalorder %s25, %s41
    %p43 = scmp.eq.s32.totalorder %s17, 0
    %p44 = por %p42, %p43
    %s46 = sadd.s32 %s45, 1
    %p49 = scmp.eq.s32.totalorder %s11, 1
    %p50 = scmp.ne.s32.totalorder %s45, %s47
    %p51 = scmp.eq.s32.totalorder %s11, 0
    %p52 = por %p50, %p51
    %p53 = scmp.ne.s32.totalorder %s45, %s47
    %p54 = scmp.eq.s32.totalorder %s16, 1
    %p55 = por %p53, %p54
    %p56 = scmp.ne.s32.totalorder %s47, %s48
    %p57 = scmp.eq.s32.totalorder %s16, 0
    %p58 = por %p56, %p57
    %p59 = scmp.ne.s32.totalorder %s47, %s48
    %p60 = scmp.eq.s32.totalorder %s17, 1
    %p61 = por %p59, %p60
    %p63 = scmp.ne.s32.totalorder %s48, %s62
    %p64 = scmp.eq.s32.totalorder %s17, 0
    %p65 = por %p63, %p64
    %s67 = sadd.s32 %s66, 1
    %p70 = scmp.eq.s32.totalorder %s11, 1
    %p71 = scmp.ne.s32.totalorder %s66, %s68
    %p72 = scmp.eq.s32.totalorder %s11, 0
    %p73 = por %p71, %p72
    %p74 = scmp.ne.s32.totalorder %s66, %s68
    %p75 = scmp.eq.s32.totalorder %s16, 1
    %p76 = por %p74, %p75
    %p77 = scmp.ne.s32.totalorder %s68, %s69
    %p78 = scmp.eq.s32.totalorder %s16, 0
    %p79 = por %p77, %p78
    %p80 = scmp.ne.s32.totalorder %s68, %s69
    %p81 = scmp.eq.s32.totalorder %s17, 1
    %p82 = por %p80, %p81
    %p84 = scmp.ne.s32.totalorder %s69, %s83
    %p85 = scmp.eq.s32.totalorder %s17, 0
    %p86 = por %p84, %p85
    %s88 = sadd.s32 %s87, 1
    %p91 = scmp.eq.s32.totalorder %s11, 1
    %p92 = scmp.ne.s32.totalorder %s87, %s89
    %p93 = scmp.eq.s32.totalorder %s11, 0
    %p94 = por %p92, %p93
    %p95 = scmp.ne.s32.totalorder %s87, %s89
    %p96 = scmp.eq.s32.totalorder %s16, 1
    %p97 = por %p95, %p96
    %p98 = scmp.ne.s32.totalorder %s89, %s90
    %p99 = scmp.eq.s32.totalorder %s16, 0
    %p100 = por %p98, %p99
    %p101 = scmp.ne.s32.totalorder %s89, %s90
    %p102 = scmp.eq.s32.totalorder %s17, 1
    %p103 = por %p101, %p102
    %p105 = scmp.ne.s32.totalorder %s90, %s104
    %p106 = scmp.eq.s32.totalorder %s17, 0
    %p107 = por %p105, %p106
    %s109 = sadd.s32 %s108, 1
    %p112 = scmp.eq.s32.totalorder %s11, 1
    %p113 = scmp.ne.s32.totalorder %s108, %s110
    %p114 = scmp.eq.s32.totalorder %s11, 0
    %p115 = por %p113, %p114
    %p116 = scmp.ne.s32.totalorder %s108, %s110
    %p117 = scmp.eq.s32.totalorder %s16, 1
    %p118 = por %p116, %p117
    %p119 = scmp.ne.s32.totalorder %s110, %s111
    %p120 = scmp.eq.s32.totalorder %s16, 0
    %p121 = por %p119, %p120
    %p122 = scmp.ne.s32.totalorder %s110, %s111
    %p123 = scmp.eq.s32.totalorder %s17, 1
    %p124 = por %p122, %p123
    %p126 = scmp.ne.s32.totalorder %s111, %s125
    %p127 = scmp.eq.s32.totalorder %s17, 0
    %p128 = por %p126, %p127
    %s129 = ssub.s32 %s11, %s18
    %p130 = scmp.eq.s32.totalorder %s129, 0
    %s132 = sadd.s32 %s131, 1
    %s133 = scalar_select %p130, %s131, %s132
    %p136 = pneg %p130
    %p137 = scmp.eq.s32.totalorder %s11, 1
    %p138 = por %p136, %p137
    %p139 = scmp.ne.s32.totalorder %s131, %s134
    %p140 = scmp.eq.s32.totalorder %s11, 0
    %p141 = por %p139, %p140
    %p142 = scmp.ne.s32.totalorder %s131, %s134
    %p143 = scmp.eq.s32.totalorder %s16, 1
    %p144 = por %p142, %p143
    %p145 = scmp.ne.s32.totalorder %s134, %s135
    %p146 = scmp.eq.s32.totalorder %s16, 0
    %p147 = por %p145, %p146
    %p148 = scmp.ne.s32.totalorder %s134, %s135
    %p149 = scmp.eq.s32.totalorder %s17, 1
    %p150 = por %p148, %p149
    %p152 = scmp.ne.s32.totalorder %s135, %s151
    %p153 = scmp.eq.s32.totalorder %s17, 0
    %p154 = por %p152, %p153
    %p155 = scmp.le.s32.totalorder 1, %s11
    %p156 = scmp.lt.s32.totalorder %s11, 3
    %p157 = pnand %p155, %p156
    %p158 = pneg %p157
    // Predicated region
    $region9: #{unet_decoder_forward.1} parent=5 // pred_check
      _
    $region10: #{unet_decoder_forward.1} parent=5 // pred_check_branch
      %160 = sbr.rel (%p157) target = $region12
    $region11: #{unet_decoder_forward.1} parent=5 // pred_region
      %s161 = ssub.s32 %s11, 1
      // Predicated region
      $region13: #{unet_decoder_forward.1} parent=11 // pred_check
        %p162 = pneg %p58
      $region14: #{unet_decoder_forward.1} parent=11 // pred_check_branch
        %164 = sbr.rel (%p162) target = $region16
      $region15: #{unet_decoder_forward.1} parent=11 // pred_region
        _
      $region16: #{unet_decoder_forward.1} parent=11 // pred_fallthru
        _
      // Predicated region
      $region17: #{unet_decoder_forward.1} parent=11 // pred_check
        %p165 = pneg %p79
      $region18: #{unet_decoder_forward.1} parent=11 // pred_check_branch
        %167 = sbr.rel (%p165) target = $region20
      $region19: #{unet_decoder_forward.1} parent=11 // pred_region
        _
      $region20: #{unet_decoder_forward.1} parent=11 // pred_fallthru
        _
      // Predicated region
      $region21: #{unet_decoder_forward.1} parent=11 // pred_check
        %p168 = pneg %p100
      $region22: #{unet_decoder_forward.1} parent=11 // pred_check_branch
        %170 = sbr.rel (%p168) target = $region24
      $region23: #{unet_decoder_forward.1} parent=11 // pred_region
        _
      $region24: #{unet_decoder_forward.1} parent=11 // pred_fallthru
        _
      // Predicated region
      $region25: #{unet_decoder_forward.1} parent=11 // pred_check
        %p171 = pneg %p121
      $region26: #{unet_decoder_forward.1} parent=11 // pred_check_branch
        %173 = sbr.rel (%p171) target = $region28
      $region27: #{unet_decoder_forward.1} parent=11 // pred_region
        _
      $region28: #{unet_decoder_forward.1} parent=11 // pred_fallthru
        _
    $region12: #{unet_decoder_forward.1} parent=5 // pred_fallthru
      _
    %p174 = scmp.lt.s32.totalorder %s11, 2
    // Predicated region
    $region29: #{unet_decoder_forward.1} parent=5 // pred_check
      %p175 = pneg %p174
    $region30: #{unet_decoder_forward.1} parent=5 // pred_check_branch
      %177 = sbr.rel (%p175) target = $region32
    $region31: #{unet_decoder_forward.1} parent=5 // pred_region
      // Predicated region
      $region33: #{unet_decoder_forward.1} parent=31 // pred_check
        %p178 = pneg %p31
      $region34: #{unet_decoder_forward.1} parent=31 // pred_check_branch
        %180 = sbr.rel (%p178) target = $region36
      $region35: #{unet_decoder_forward.1} parent=31 // pred_region
        %p181 = scmp.lt.s32.totalorder %s11, 1
        %s182 = scalar_select %p181, %s11, 1
        %s183 = smul.addr %s182, 32
        %s184 = smul.addr %s183, 4
        %s185 = scalar_lea.vmem %s0, %s184
      $region36: #{unet_decoder_forward.1} parent=31 // pred_fallthru
        _
    $region32: #{unet_decoder_forward.1} parent=5 // pred_fallthru
      _
    %p186 = scmp.le.s32.totalorder 1, %s11
    %p187 = scmp.lt.s32.totalorder %s11, 3
    %p188 = pnand %p186, %p187
    %p189 = pneg %p188
    // Predicated region
    $region37: #{unet_decoder_forward.1} parent=5 // pred_check
      _
    $region38: #{unet_decoder_forward.1} parent=5 // pred_check_branch
      %191 = sbr.rel (%p188) target = $region40
    $region39: #{unet_decoder_forward.1} parent=5 // pred_region
      %s192 = ssub.s32 %s11, 1
      %p193 = scmp.lt.s32.totalorder %s16, 1
      %s194 = scalar_select %p193, %s16, 1
      %s195 = smul.addr %s194, 32
      %s196 = smul.addr %s195, 4
      %s197 = scalar_lea.vmem %s0, %s196
      %p198 = pneg %p37
      %p199 = pneg %p34
      %p200 = pneg %p58
      %p201 = pneg %p55
      %p202 = pneg %p79
      %p203 = pneg %p76
      %p204 = pneg %p100
      %p205 = pneg %p97
      %p206 = pneg %p121
      %p207 = pneg %p118
      %p208 = pneg %p147
      %p209 = pneg %p144
      %p210 = scmp.lt.s32.totalorder %s16, 1
      %s211 = scalar_select %p210, %s16, 1
      %s212 = smul.addr %s211, 8
      %s213 = smul.addr %s212, 8
      %s214 = scalar_lea.vmem %s5, %s213
      %p215 = scmp.lt.s32.totalorder %s16, 1
      %s216 = scalar_select %p215, %s16, 1
      %s217 = smul.addr %s216, 32
      %s218 = smul.addr %s217, 4
      %s219 = scalar_lea.vmem %s0, %s218
      %p220 = scmp.lt.s32.totalorder %s16, 1
      %s221 = scalar_select %p220, %s16, 1
      %s222 = smul.addr %s221, 8
      %s223 = smul.addr %s222, 8
      %s224 = scalar_lea.vmem %s5, %s223
      %vm226 = vcmask 27648
      %227 = vst.msk [vmem:[#allocation2] sm:$0xf] %vm226, 0
      %228 = vst.msk [vmem:[#allocation2 + $0x4] sm:$0xf] %vm226, 0
      %vm229 = vcmask 24576
      %230 = vst.msk [vmem:[#allocation2 + $0x8] sm:$0x1] %vm229, 0
      %231 = vst.msk [vmem:[#allocation2 + $0xc] sm:$0xf] %vm226, 0
      %232 = vst.msk [vmem:[#allocation2 + $0x10] sm:$0xf] %vm226, 0
      %233 = vst.msk [vmem:[#allocation2 + $0x14] sm:$0x1] %vm229, 0
      %234 = vst.msk [vmem:[#allocation2 + $0x18] sm:$0xf] %vm226, 0
      %235 = vst.msk [vmem:[#allocation2 + $0x1c] sm:$0xf] %vm226, 0
      %236 = vst.msk [vmem:[#allocation2 + $0x20] sm:$0x1] %vm229, 0
      %237 = vst.msk [vmem:[#allocation2 + $0x24] sm:$0xf] %vm226, 0
      %238 = vst.msk [vmem:[#allocation2 + $0x28] sm:$0xf] %vm226, 0
      %239 = vst.msk [vmem:[#allocation2 + $0x2c] sm:$0x1] %vm229, 0
      %240 = vst.msk [vmem:[#allocation2 + $0x30] sm:$0xf] %vm226, 0
      %241 = vst.msk [vmem:[#allocation2 + $0x34] sm:$0xf] %vm226, 0
      %242 = vst.msk [vmem:[#allocation2 + $0x38] sm:$0x1] %vm229, 0
      %243 = vst.msk [vmem:[#allocation2 + $0x3c] sm:$0xf] %vm226, 0
      %244 = vst.msk [vmem:[#allocation2 + $0x40] sm:$0xf] %vm226, 0
      %245 = vst.msk [vmem:[#allocation2 + $0x44] sm:$0x1] %vm229, 0
      %246 = vst.msk [vmem:[#allocation2 + $0x48] sm:$0xf] %vm226, 0
      %247 = vst.msk [vmem:[#allocation2 + $0x4c] sm:$0xf] %vm226, 0
      %248 = vst.msk [vmem:[#allocation2 + $0x50] sm:$0x1] %vm229, 0
      %249 = vst.msk [vmem:[#allocation2 + $0x54] sm:$0xf] %vm226, 0
      %250 = vst.msk [vmem:[#allocation2 + $0x58] sm:$0xf] %vm226, 0
      %251 = vst.msk [vmem:[#allocation2 + $0x5c] sm:$0x1] %vm229, 0
      %252 = vst.msk [vmem:[#allocation2 + $0x60] sm:$0xf] %vm226, 0
      %253 = vst.msk [vmem:[#allocation2 + $0x64] sm:$0xf] %vm226, 0
      %254 = vst.msk [vmem:[#allocation2 + $0x68] sm:$0x1] %vm229, 0
      %255 = vst.msk [vmem:[#allocation2 + $0x6c] sm:$0xf] %vm226, 0
      %256 = vst.msk [vmem:[#allocation2 + $0x70] sm:$0xf] %vm226, 0
      %257 = vst.msk [vmem:[#allocation2 + $0x74] sm:$0x1] %vm229, 0
      %258 = vst.msk [vmem:[#allocation2 + $0x78] sm:$0xf] %vm226, 0
      %259 = vst.msk [vmem:[#allocation2 + $0x7c] sm:$0xf] %vm226, 0
      %260 = vst.msk [vmem:[#allocation2 + $0x80] sm:$0x1] %vm229, 0
      %261 = vst.msk [vmem:[#allocation2 + $0x84] sm:$0xf] %vm226, 0
      %262 = vst.msk [vmem:[#allocation2 + $0x88] sm:$0xf] %vm226, 0
      %263 = vst.msk [vmem:[#allocation2 + $0x8c] sm:$0x1] %vm229, 0
      %264 = vst.msk [vmem:[#allocation2 + $0x90] sm:$0xf] %vm226, 0
      %265 = vst.msk [vmem:[#allocation2 + $0x94] sm:$0xf] %vm226, 0
      %266 = vst.msk [vmem:[#allocation2 + $0x98] sm:$0x1] %vm229, 0
      %267 = vst.msk [vmem:[#allocation2 + $0x9c] sm:$0xf] %vm226, 0
      %268 = vst.msk [vmem:[#allocation2 + $0xa0] sm:$0xf] %vm226, 0
      %269 = vst.msk [vmem:[#allocation2 + $0xa4] sm:$0x1] %vm229, 0
      %270 = vst.msk [vmem:[#allocation2 + $0xa8] sm:$0xf] %vm226, 0
      %271 = vst.msk [vmem:[#allocation2 + $0xac] sm:$0xf] %vm226, 0
      %272 = vst.msk [vmem:[#allocation2 + $0xb0] sm:$0x1] %vm229, 0
      %273 = vst.msk [vmem:[#allocation2 + $0xb4] sm:$0xf] %vm226, 0
      %274 = vst.msk [vmem:[#allocation2 + $0xb8] sm:$0xf] %vm226, 0
      %275 = vst.msk [vmem:[#allocation2 + $0xbc] sm:$0x1] %vm229, 0
      %276 = vst.msk [vmem:[#allocation2 + $0xc0] sm:$0xf] %vm226, 0
      %277 = vst.msk [vmem:[#allocation2 + $0xc4] sm:$0xf] %vm226, 0
      %278 = vst.msk [vmem:[#allocation2 + $0xc8] sm:$0x1] %vm229, 0
      %279 = vst.msk [vmem:[#allocation2 + $0xcc] sm:$0xf] %vm226, 0
      %280 = vst.msk [vmem:[#allocation2 + $0xd0] sm:$0xf] %vm226, 0
      %281 = vst.msk [vmem:[#allocation2 + $0xd4] sm:$0x1] %vm229, 0
      %v282 = vld [vmem:[%s219] sm:$0xf]
      %v283 = vld [vmem:[%s219 + $0x4] sm:$0xf]
      %v284 = vld [vmem:[%s219 + $0x8] sm:$0xf]
      %v285 = vld [vmem:[%s219 + $0xc] sm:$0xf]
      %v286 = vld [vmem:[%s219 + $0x10] sm:$0xf]
      %v287 = vld [vmem:[%s219 + $0x14] sm:$0xf]
      %v288 = vld [vmem:[%s219 + $0x18] sm:$0xf]
      %v289 = vld [vmem:[%s219 + $0x1c] sm:$0xf]
      %v290 = vld [vmem:[%s219 + $0x20] sm:$0xf]
      %v291 = vld [vmem:[%s219 + $0x24] sm:$0xf]
      %v292 = vld [vmem:[%s219 + $0x28] sm:$0xf]
      %v293 = vld [vmem:[%s219 + $0x2c] sm:$0xf]
      %v294 = vld [vmem:[%s219 + $0x30] sm:$0xf]
      %v295 = vld [vmem:[%s219 + $0x34] sm:$0xf]
      %v296 = vld [vmem:[%s219 + $0x38] sm:$0xf]
      %v297 = vld [vmem:[%s219 + $0x3c] sm:$0xf]
      %v298 = vld [vmem:[%s219 + $0x40] sm:$0xf]
      %v299 = vld [vmem:[%s219 + $0x44] sm:$0xf]
      %v300 = vld [vmem:[%s219 + $0x48] sm:$0xf]
      %v301 = vld [vmem:[%s219 + $0x4c] sm:$0xf]
      %v302 = vld [vmem:[%s219 + $0x50] sm:$0xf]
      %v303 = vld [vmem:[%s219 + $0x54] sm:$0xf]
      %v304 = vld [vmem:[%s219 + $0x58] sm:$0xf]
      %v305 = vld [vmem:[%s219 + $0x5c] sm:$0xf]
      %v306 = vld [vmem:[%s219 + $0x60] sm:$0xf]
      %v307 = vld [vmem:[%s219 + $0x64] sm:$0xf]
      %v308 = vld [vmem:[%s219 + $0x68] sm:$0xf]
      %v309 = vld [vmem:[%s219 + $0x6c] sm:$0xf]
      %v310 = vld [vmem:[%s219 + $0x70] sm:$0xf]
      %v311 = vld [vmem:[%s219 + $0x74] sm:$0xf]
      %v312 = vld [vmem:[%s219 + $0x78] sm:$0xf]
      %v313 = vld [vmem:[%s219 + $0x7c] sm:$0xf]
      %vm314 = vsmask.f32 256
      %vm315 = vsmask.f32 4368
      %vm316 = vmor %vm314, %vm315
      %v318 = vshrl.u32 %v282, 16
      %v320 = vrot.slane %v318, 7
      %v321 = vshll.u32 %v282, 16
      %v323 = vor.u32 %v320, %v321
      %v324 = vrot.slane %v320, 4
      %v326 = vshrl.u32 %v283, 16
      %v328 = vrot.slane %v326, 7
      %v329 = vshll.u32 %v283, 16
      %v331 = vor.u32 %v328, %v329
      %v332 = vsel %vm316, %v324, %v331
      %v333 = vrot.slane %v328, 4
      %v335 = vshrl.u32 %v284, 16
      %v337 = vrot.slane %v335, 7
      %v338 = vshll.u32 %v284, 16
      %v340 = vor.u32 %v337, %v338
      %v341 = vrot.slane %v337, 4
      %v343 = vshrl.u32 %v285, 16
      %v345 = vrot.slane %v343, 7
      %v346 = vshll.u32 %v285, 16
      %v348 = vor.u32 %v345, %v346
      %v349 = vsel %vm316, %v341, %v348
      %v350 = vrot.slane %v345, 4
      %v352 = vshrl.u32 %v286, 16
      %v354 = vrot.slane %v352, 7
      %v355 = vshll.u32 %v286, 16
      %v357 = vor.u32 %v354, %v355
      %v358 = vrot.slane %v354, 4
      %v360 = vshrl.u32 %v287, 16
      %v362 = vrot.slane %v360, 7
      %v363 = vshll.u32 %v287, 16
      %v365 = vor.u32 %v362, %v363
      %v366 = vsel %vm316, %v358, %v365
      %v367 = vrot.slane %v362, 4
      %v369 = vshrl.u32 %v288, 16
      %v371 = vrot.slane %v369, 7
      %v372 = vshll.u32 %v288, 16
      %v374 = vor.u32 %v371, %v372
      %v375 = vrot.slane %v371, 4
      %v377 = vshrl.u32 %v289, 16
      %v379 = vrot.slane %v377, 7
      %v380 = vshll.u32 %v289, 16
      %v382 = vor.u32 %v379, %v380
      %v383 = vsel %vm316, %v375, %v382
      %v384 = vrot.slane %v379, 4
      %v386 = vshrl.u32 %v290, 16
      %v388 = vrot.slane %v386, 7
      %v389 = vshll.u32 %v290, 16
      %v391 = vor.u32 %v388, %v389
      %v392 = vrot.slane %v388, 4
      %v394 = vshrl.u32 %v291, 16
      %v396 = vrot.slane %v394, 7
      %v397 = vshll.u32 %v291, 16
      %v399 = vor.u32 %v396, %v397
      %v400 = vsel %vm316, %v392, %v399
      %v401 = vrot.slane %v396, 4
      %v403 = vshrl.u32 %v292, 16
      %v405 = vrot.slane %v403, 7
      %v406 = vshll.u32 %v292, 16
      %v408 = vor.u32 %v405, %v406
      %v409 = vrot.slane %v405, 4
      %v411 = vshrl.u32 %v293, 16
      %v413 = vrot.slane %v411, 7
      %v414 = vshll.u32 %v293, 16
      %v416 = vor.u32 %v413, %v414
      %v417 = vsel %vm316, %v409, %v416
      %v418 = vrot.slane %v413, 4
      %v420 = vshrl.u32 %v294, 16
      %v422 = vrot.slane %v420, 7
      %v423 = vshll.u32 %v294, 16
      %v425 = vor.u32 %v422, %v423
      %v426 = vrot.slane %v422, 4
      %v428 = vshrl.u32 %v295, 16
      %v430 = vrot.slane %v428, 7
      %v431 = vshll.u32 %v295, 16
      %v433 = vor.u32 %v430, %v431
      %v434 = vsel %vm316, %v426, %v433
      %v435 = vrot.slane %v430, 4
      %v437 = vshrl.u32 %v296, 16
      %v439 = vrot.slane %v437, 7
      %v440 = vshll.u32 %v296, 16
      %v442 = vor.u32 %v439, %v440
      %v443 = vrot.slane %v439, 4
      %v445 = vshrl.u32 %v297, 16
      %v447 = vrot.slane %v445, 7
      %v448 = vshll.u32 %v297, 16
      %v450 = vor.u32 %v447, %v448
      %v451 = vsel %vm316, %v443, %v450
      %v452 = vrot.slane %v447, 4
      %v454 = vshrl.u32 %v298, 16
      %v456 = vrot.slane %v454, 7
      %v457 = vshll.u32 %v298, 16
      %v459 = vor.u32 %v456, %v457
      %v460 = vrot.slane %v456, 4
      %v462 = vshrl.u32 %v299, 16
      %v464 = vrot.slane %v462, 7
      %v465 = vshll.u32 %v299, 16
      %v467 = vor.u32 %v464, %v465
      %v468 = vsel %vm316, %v460, %v467
      %v469 = vrot.slane %v464, 4
      %v471 = vshrl.u32 %v300, 16
      %v473 = vrot.slane %v471, 7
      %v474 = vshll.u32 %v300, 16
      %v476 = vor.u32 %v473, %v474
      %v477 = vrot.slane %v473, 4
      %v479 = vshrl.u32 %v301, 16
      %v481 = vrot.slane %v479, 7
      %v482 = vshll.u32 %v301, 16
      %v484 = vor.u32 %v481, %v482
      %v485 = vsel %vm316, %v477, %v484
      %v486 = vrot.slane %v481, 4
      %v488 = vshrl.u32 %v302, 16
      %v490 = vrot.slane %v488, 7
      %v491 = vshll.u32 %v302, 16
      %v493 = vor.u32 %v490, %v491
      %v494 = vrot.slane %v490, 4
      %v496 = vshrl.u32 %v303, 16
      %v498 = vrot.slane %v496, 7
      %v499 = vshll.u32 %v303, 16
      %v501 = vor.u32 %v498, %v499
      %v502 = vsel %vm316, %v494, %v501
      %v503 = vrot.slane %v498, 4
      %v505 = vshrl.u32 %v304, 16
      %v507 = vrot.slane %v505, 7
      %v508 = vshll.u32 %v304, 16
      %v510 = vor.u32 %v507, %v508
      %v511 = vrot.slane %v507, 4
      %v513 = vshrl.u32 %v305, 16
      %v515 = vrot.slane %v513, 7
      %v516 = vshll.u32 %v305, 16
      %v518 = vor.u32 %v515, %v516
      %v519 = vsel %vm316, %v511, %v518
      %v520 = vrot.slane %v515, 4
      %v522 = vshrl.u32 %v306, 16
      %v524 = vrot.slane %v522, 7
      %v525 = vshll.u32 %v306, 16
      %v527 = vor.u32 %v524, %v525
      %v528 = vrot.slane %v524, 4
      %v530 = vshrl.u32 %v307, 16
      %v532 = vrot.slane %v530, 7
      %v533 = vshll.u32 %v307, 16
      %v535 = vor.u32 %v532, %v533
      %v536 = vsel %vm316, %v528, %v535
      %v537 = vrot.slane %v532, 4
      %v539 = vshrl.u32 %v308, 16
      %v541 = vrot.slane %v539, 7
      %v542 = vshll.u32 %v308, 16
      %v544 = vor.u32 %v541, %v542
      %v545 = vrot.slane %v541, 4
      %v547 = vshrl.u32 %v309, 16
      %v549 = vrot.slane %v547, 7
      %v550 = vshll.u32 %v309, 16
      %v552 = vor.u32 %v549, %v550
      %v553 = vsel %vm316, %v545, %v552
      %v554 = vrot.slane %v549, 4
      %v556 = vshrl.u32 %v310, 16
      %v558 = vrot.slane %v556, 7
      %v559 = vshll.u32 %v310, 16
      %v561 = vor.u32 %v558, %v559
      %v562 = vrot.slane %v558, 4
      %v564 = vshrl.u32 %v311, 16
      %v566 = vrot.slane %v564, 7
      %v567 = vshll.u32 %v311, 16
      %v569 = vor.u32 %v566, %v567
      %v570 = vsel %vm316, %v562, %v569
      %v571 = vrot.slane %v566, 4
      %v573 = vshrl.u32 %v312, 16
      %v575 = vrot.slane %v573, 7
      %v576 = vshll.u32 %v312, 16
      %v578 = vor.u32 %v575, %v576
      %v579 = vrot.slane %v575, 4
      %v581 = vshrl.u32 %v313, 16
      %v583 = vrot.slane %v581, 7
      %v584 = vshll.u32 %v313, 16
      %v586 = vor.u32 %v583, %v584
      %v587 = vsel %vm316, %v579, %v586
      %v588 = vrot.slane %v583, 4
      %s637 = scalar_lea.vmem [#allocation2], 12
      %vm638 = vcmask 27648
      %vm639 = vsmask.f32 7938
      %vm640 = vmand %vm638, %vm639
      %v641 = vld [vmem:[%s637] sm:$0xf]
      %v642 = vsel %vm640, %v323, %v641
      %643 = vst [vmem:[%s637] sm:$0xf] %v642
      %644 = vst.msk [vmem:[%s637 + $0x4] sm:$0xf] %vm226, %v332
      %vm645 = vcmask 24576
      %vm646 = vmand %vm645, %vm314
      %v647 = vld [vmem:[%s637 + $0x8] sm:$0x1]
      %v648 = vsel %vm646, %v333, %v647
      %649 = vst [vmem:[%s637 + $0x8] sm:$0x1] %v648
      %v650 = vld [vmem:[%s637 + $0xc] sm:$0xf]
      %v651 = vsel %vm640, %v340, %v650
      %652 = vst [vmem:[%s637 + $0xc] sm:$0xf] %v651
      %653 = vst.msk [vmem:[%s637 + $0x10] sm:$0xf] %vm226, %v349
      %v654 = vld [vmem:[%s637 + $0x14] sm:$0x1]
      %v655 = vsel %vm646, %v350, %v654
      %656 = vst [vmem:[%s637 + $0x14] sm:$0x1] %v655
      %v657 = vld [vmem:[%s637 + $0x18] sm:$0xf]
      %v658 = vsel %vm640, %v357, %v657
      %659 = vst [vmem:[%s637 + $0x18] sm:$0xf] %v658
      %660 = vst.msk [vmem:[%s637 + $0x1c] sm:$0xf] %vm226, %v366
      %v661 = vld [vmem:[%s637 + $0x20] sm:$0x1]
      %v662 = vsel %vm646, %v367, %v661
      %663 = vst [vmem:[%s637 + $0x20] sm:$0x1] %v662
      %v664 = vld [vmem:[%s637 + $0x24] sm:$0xf]
      %v665 = vsel %vm640, %v374, %v664
      %666 = vst [vmem:[%s637 + $0x24] sm:$0xf] %v665
      %667 = vst.msk [vmem:[%s637 + $0x28] sm:$0xf] %vm226, %v383
      %v668 = vld [vmem:[%s637 + $0x2c] sm:$0x1]
      %v669 = vsel %vm646, %v384, %v668
      %670 = vst [vmem:[%s637 + $0x2c] sm:$0x1] %v669
      %v671 = vld [vmem:[%s637 + $0x30] sm:$0xf]
      %v672 = vsel %vm640, %v391, %v671
      %673 = vst [vmem:[%s637 + $0x30] sm:$0xf] %v672
      %674 = vst.msk [vmem:[%s637 + $0x34] sm:$0xf] %vm226, %v400
      %v675 = vld [vmem:[%s637 + $0x38] sm:$0x1]
      %v676 = vsel %vm646, %v401, %v675
      %677 = vst [vmem:[%s637 + $0x38] sm:$0x1] %v676
      %v678 = vld [vmem:[%s637 + $0x3c] sm:$0xf]
      %v679 = vsel %vm640, %v408, %v678
      %680 = vst [vmem:[%s637 + $0x3c] sm:$0xf] %v679
      %681 = vst.msk [vmem:[%s637 + $0x40] sm:$0xf] %vm226, %v417
      %v682 = vld [vmem:[%s637 + $0x44] sm:$0x1]
      %v683 = vsel %vm646, %v418, %v682
      %684 = vst [vmem:[%s637 + $0x44] sm:$0x1] %v683
      %v685 = vld [vmem:[%s637 + $0x48] sm:$0xf]
      %v686 = vsel %vm640, %v425, %v685
      %687 = vst [vmem:[%s637 + $0x48] sm:$0xf] %v686
      %688 = vst.msk [vmem:[%s637 + $0x4c] sm:$0xf] %vm226, %v434
      %v689 = vld [vmem:[%s637 + $0x50] sm:$0x1]
      %v690 = vsel %vm646, %v435, %v689
      %691 = vst [vmem:[%s637 + $0x50] sm:$0x1] %v690
      %v692 = vld [vmem:[%s637 + $0x54] sm:$0xf]
      %v693 = vsel %vm640, %v442, %v692
      %694 = vst [vmem:[%s637 + $0x54] sm:$0xf] %v693
      %695 = vst.msk [vmem:[%s637 + $0x58] sm:$0xf] %vm226, %v451
      %v696 = vld [vmem:[%s637 + $0x5c] sm:$0x1]
      %v697 = vsel %vm646, %v452, %v696
      %698 = vst [vmem:[%s637 + $0x5c] sm:$0x1] %v697
      %v699 = vld [vmem:[%s637 + $0x60] sm:$0xf]
      %v700 = vsel %vm640, %v459, %v699
      %701 = vst [vmem:[%s637 + $0x60] sm:$0xf] %v700
      %702 = vst.msk [vmem:[%s637 + $0x64] sm:$0xf] %vm226, %v468
      %v703 = vld [vmem:[%s637 + $0x68] sm:$0x1]
      %v704 = vsel %vm646, %v469, %v703
      %705 = vst [vmem:[%s637 + $0x68] sm:$0x1] %v704
      %v706 = vld [vmem:[%s637 + $0x6c] sm:$0xf]
      %v707 = vsel %vm640, %v476, %v706
      %708 = vst [vmem:[%s637 + $0x6c] sm:$0xf] %v707
      %709 = vst.msk [vmem:[%s637 + $0x70] sm:$0xf] %vm226, %v485
      %v710 = vld [vmem:[%s637 + $0x74] sm:$0x1]
      %v711 = vsel %vm646, %v486, %v710
      %712 = vst [vmem:[%s637 + $0x74] sm:$0x1] %v711
      %v713 = vld [vmem:[%s637 + $0x78] sm:$0xf]
      %v714 = vsel %vm640, %v493, %v713
      %715 = vst [vmem:[%s637 + $0x78] sm:$0xf] %v714
      %716 = vst.msk [vmem:[%s637 + $0x7c] sm:$0xf] %vm226, %v502
      %v717 = vld [vmem:[%s637 + $0x80] sm:$0x1]
      %v718 = vsel %vm646, %v503, %v717
      %719 = vst [vmem:[%s637 + $0x80] sm:$0x1] %v718
      %v720 = vld [vmem:[%s637 + $0x84] sm:$0xf]
      %v721 = vsel %vm640, %v510, %v720
      %722 = vst [vmem:[%s637 + $0x84] sm:$0xf] %v721
      %723 = vst.msk [vmem:[%s637 + $0x88] sm:$0xf] %vm226, %v519
      %v724 = vld [vmem:[%s637 + $0x8c] sm:$0x1]
      %v725 = vsel %vm646, %v520, %v724
      %726 = vst [vmem:[%s637 + $0x8c] sm:$0x1] %v725
      %v727 = vld [vmem:[%s637 + $0x90] sm:$0xf]
      %v728 = vsel %vm640, %v527, %v727
      %729 = vst [vmem:[%s637 + $0x90] sm:$0xf] %v728
      %730 = vst.msk [vmem:[%s637 + $0x94] sm:$0xf] %vm226, %v536
      %v731 = vld [vmem:[%s637 + $0x98] sm:$0x1]
      %v732 = vsel %vm646, %v537, %v731
      %733 = vst [vmem:[%s637 + $0x98] sm:$0x1] %v732
      %v734 = vld [vmem:[%s637 + $0x9c] sm:$0xf]
      %v735 = vsel %vm640, %v544, %v734
      %736 = vst [vmem:[%s637 + $0x9c] sm:$0xf] %v735
      %737 = vst.msk [vmem:[%s637 + $0xa0] sm:$0xf] %vm226, %v553
      %v738 = vld [vmem:[%s637 + $0xa4] sm:$0x1]
      %v739 = vsel %vm646, %v554, %v738
      %740 = vst [vmem:[%s637 + $0xa4] sm:$0x1] %v739
      %v741 = vld [vmem:[%s637 + $0xa8] sm:$0xf]
      %v742 = vsel %vm640, %v561, %v741
      %743 = vst [vmem:[%s637 + $0xa8] sm:$0xf] %v742
      %744 = vst.msk [vmem:[%s637 + $0xac] sm:$0xf] %vm226, %v570
      %v745 = vld [vmem:[%s637 + $0xb0] sm:$0x1]
      %v746 = vsel %vm646, %v571, %v745
      %747 = vst [vmem:[%s637 + $0xb0] sm:$0x1] %v746
      %v748 = vld [vmem:[%s637 + $0xb4] sm:$0xf]
      %v749 = vsel %vm640, %v578, %v748
      %750 = vst [vmem:[%s637 + $0xb4] sm:$0xf] %v749
      %751 = vst.msk [vmem:[%s637 + $0xb8] sm:$0xf] %vm226, %v587
      %v752 = vld [vmem:[%s637 + $0xbc] sm:$0x1]
      %v753 = vsel %vm646, %v588, %v752
      %754 = vst [vmem:[%s637 + $0xbc] sm:$0x1] %v753
      %v755 = vld [vmem:[%s2] sm:$0x1]
      %v757 = vlaneseq
      %v758 = vshrl.u32 %v757, 7
      %v759 = vsub.s32 0, %v758
      %v760 = vrot.slane %v755, %v759
      %v762 = vld [vmem:[#allocation2] sm:$0xf]
      %v763 = vld [vmem:[#allocation2 + $0x4] sm:$0xf]
      %v764 = vld [vmem:[#allocation2 + $0xc] sm:$0xf]
      %v765 = vld [vmem:[#allocation2 + $0x10] sm:$0xf]
      %v766 = vld [vmem:[#allocation2 + $0x18] sm:$0xf]
      %v767 = vld [vmem:[#allocation2 + $0x1c] sm:$0xf]
      %v768 = vld [vmem:[#allocation2 + $0x24] sm:$0xf]
      %v769 = vld [vmem:[#allocation2 + $0x28] sm:$0xf]
      %v770 = vld [vmem:[#allocation2 + $0x30] sm:$0xf]
      %v771 = vld [vmem:[#allocation2 + $0x34] sm:$0xf]
      %v772 = vld [vmem:[#allocation2 + $0x3c] sm:$0xf]
      %v773 = vld [vmem:[#allocation2 + $0x40] sm:$0xf]
      %v774 = vld [vmem:[#allocation2 + $0x48] sm:$0xf]
      %v775 = vld [vmem:[#allocation2 + $0x4c] sm:$0xf]
      %v776 = vld [vmem:[#allocation2 + $0x54] sm:$0xf]
      %v777 = vld [vmem:[#allocation2 + $0x58] sm:$0xf]
      %v778 = vld [vmem:[#allocation2 + $0x60] sm:$0xf]
      %v779 = vld [vmem:[#allocation2 + $0x64] sm:$0xf]
      %v780 = vld [vmem:[#allocation2 + $0x6c] sm:$0xf]
      %v781 = vld [vmem:[#allocation2 + $0x70] sm:$0xf]
      %v782 = vld [vmem:[#allocation2 + $0x78] sm:$0xf]
      %v783 = vld [vmem:[#allocation2 + $0x7c] sm:$0xf]
      %v784 = vld [vmem:[#allocation2 + $0x84] sm:$0xf]
      %v785 = vld [vmem:[#allocation2 + $0x88] sm:$0xf]
      %v786 = vld [vmem:[#allocation2 + $0x90] sm:$0xf]
      %v787 = vld [vmem:[#allocation2 + $0x94] sm:$0xf]
      %v788 = vld [vmem:[#allocation2 + $0x9c] sm:$0xf]
      %v789 = vld [vmem:[#allocation2 + $0xa0] sm:$0xf]
      %v790 = vld [vmem:[#allocation2 + $0xa8] sm:$0xf]
      %v791 = vld [vmem:[#allocation2 + $0xac] sm:$0xf]
      %v792 = vld [vmem:[#allocation2 + $0xb4] sm:$0xf]
      %v793 = vld [vmem:[#allocation2 + $0xb8] sm:$0xf]
      %v794 = vld [vmem:[%s1] sm:$0x3]
      %v827 = vunpack.c.l.b16 %v762
      %v828 = vunpack.c.l.b16 %v763
      %v829 = vunpack.c.l.b16 %v764
      %v830 = vunpack.c.l.b16 %v765
      %v831 = vunpack.c.l.b16 %v766
      %v832 = vunpack.c.l.b16 %v767
      %v833 = vunpack.c.l.b16 %v768
      %v834 = vunpack.c.l.b16 %v769
      %v835 = vunpack.c.l.b16 %v770
      %v836 = vunpack.c.l.b16 %v771
      %v837 = vunpack.c.l.b16 %v772
      %v838 = vunpack.c.l.b16 %v773
      %v839 = vunpack.c.l.b16 %v774
      %v840 = vunpack.c.l.b16 %v775
      %v841 = vunpack.c.l.b16 %v776
      %v842 = vunpack.c.l.b16 %v777
      %v843 = vunpack.c.l.b16 %v778
      %v844 = vunpack.c.l.b16 %v779
      %v845 = vunpack.c.l.b16 %v780
      %v846 = vunpack.c.l.b16 %v781
      %v847 = vunpack.c.l.b16 %v782
      %v848 = vunpack.c.l.b16 %v783
      %v849 = vunpack.c.l.b16 %v784
      %v850 = vunpack.c.l.b16 %v785
      %v851 = vunpack.c.l.b16 %v786
      %v852 = vunpack.c.l.b16 %v787
      %v853 = vunpack.c.l.b16 %v788
      %v854 = vunpack.c.l.b16 %v789
      %v855 = vunpack.c.l.b16 %v790
      %v856 = vunpack.c.l.b16 %v791
      %v857 = vunpack.c.l.b16 %v792
      %v858 = vunpack.c.l.b16 %v793
      %v859 = vpack.c.b16 %v828, %v827
      %v860 = vpack.c.b16 %v830, %v829
      %v861 = vpack.c.b16 %v832, %v831
      %v862 = vpack.c.b16 %v834, %v833
      %v863 = vpack.c.b16 %v836, %v835
      %v864 = vpack.c.b16 %v838, %v837
      %v865 = vpack.c.b16 %v840, %v839
      %v866 = vpack.c.b16 %v842, %v841
      %v867 = vpack.c.b16 %v844, %v843
      %v868 = vpack.c.b16 %v846, %v845
      %v869 = vpack.c.b16 %v848, %v847
      %v870 = vpack.c.b16 %v850, %v849
      %v871 = vpack.c.b16 %v852, %v851
      %v872 = vpack.c.b16 %v854, %v853
      %v873 = vpack.c.b16 %v856, %v855
      %v874 = vpack.c.b16 %v858, %v857
      %vm875 = vcmask 31744
      %v877 = vsel %vm875, %v859, 0
      %v880 = vsel %vm875, %v860, 0
      %v883 = vsel %vm875, %v861, 0
      %v886 = vsel %vm875, %v862, 0
      %v889 = vsel %vm875, %v863, 0
      %v892 = vsel %vm875, %v864, 0
      %v895 = vsel %vm875, %v865, 0
      %v898 = vsel %vm875, %v866, 0
      %v901 = vsel %vm875, %v867, 0
      %v904 = vsel %vm875, %v868, 0
      %v907 = vsel %vm875, %v869, 0
      %v910 = vsel %vm875, %v870, 0
      %v913 = vsel %vm875, %v871, 0
      %v916 = vsel %vm875, %v872, 0
      %v919 = vsel %vm875, %v873, 0
      %v922 = vsel %vm875, %v874, 0
      %vm924 = vcmask 1041408
      %v926 = vsel %vm924, %v794, 0
      %928 = vmatprep.subr.bf16.mxu0 0
      %929 = vmatpush1.bf16.msra.mxu0 %v926
      %930 = vmatprep.subr.bf16.mxu0 0
      %931 = vmatpush1.bf16.msra.mxu0 0
      %932 = vmatprep.subr.bf16.mxu0 0
      %933 = vmatpush1.bf16.msra.mxu0 0
      %934 = vmatprep.subr.bf16.mxu0 0
      %935 = vmatpush1.bf16.msra.mxu0 0
      %936 = vmatprep.subr.bf16.mxu0 0
      %937 = vmatpush1.bf16.msra.mxu0 0
      %938 = vmatprep.subr.bf16.mxu0 0
      %939 = vmatpush1.bf16.msra.mxu0 0
      %940 = vmatprep.subr.bf16.mxu0 0
      %941 = vmatpush1.bf16.msra.mxu0 0
      %942 = vmatprep.subr.bf16.mxu0 0
      %943 = vmatpush1.bf16.msra.mxu0 0
      %944 = vmatprep.subr.bf16.mxu0 0
      %945 = vmatpush1.bf16.msra.mxu0 0
      %946 = vmatprep.subr.bf16.mxu0 0
      %947 = vmatpush1.bf16.msra.mxu0 0
      %948 = vmatprep.subr.bf16.mxu0 0
      %949 = vmatpush1.bf16.msra.mxu0 0
      %950 = vmatprep.subr.bf16.mxu0 0
      %951 = vmatpush1.bf16.msra.mxu0 0
      %952 = vmatprep.subr.bf16.mxu0 0
      %953 = vmatpush1.bf16.msra.mxu0 0
      %954 = vmatprep.subr.bf16.mxu0 0
      %955 = vmatpush1.bf16.msra.mxu0 0
      %956 = vmatprep.subr.bf16.mxu0 0
      %957 = vmatpush1.bf16.msra.mxu0 0
      %958 = vmatprep.subr.bf16.mxu0 0
      %959 = vmatpush1.bf16.msra.mxu0 0
      %960 = vmatprep.mubr.bf16.mxu0 0
      %961 = vmatmul.mubr.bf16.gmra.mrb[0].mxu0 %v877
      %v962 = vpop.f32.mrb[0].mxu0
      %v963 = vadd.f32 0.0, %v962
      %v964 = vpop.f32.mrb[0].mxu0
      %v965 = vpop.f32.mrb[0].mxu0
      %v966 = vadd.f32 0.0, %v965
      %v967 = vpop.f32.mrb[0].mxu0
      %968 = vmatprep.mubr.bf16.mxu0 0
      %969 = vmatmul.mubr.bf16.gmra.mrb[0].mxu0 %v880
      %v970 = vpop.f32.mrb[0].mxu0
      %v971 = vadd.f32 0.0, %v970
      %v972 = vpop.f32.mrb[0].mxu0
      %v973 = vpop.f32.mrb[0].mxu0
      %v974 = vadd.f32 0.0, %v973
      %v975 = vpop.f32.mrb[0].mxu0
      %976 = vmatprep.mubr.bf16.mxu0 0
      %977 = vmatmul.mubr.bf16.gmra.mrb[0].mxu0 %v883
      %v978 = vpop.f32.mrb[0].mxu0
      %v979 = vadd.f32 0.0, %v978
      %v980 = vpop.f32.mrb[0].mxu0
      %v981 = vpop.f32.mrb[0].mxu0
      %v982 = vadd.f32 0.0, %v981
      %v983 = vpop.f32.mrb[0].mxu0
      %984 = vmatprep.mubr.bf16.mxu0 0
      %985 = vmatmul.mubr.bf16.gmra.mrb[0].mxu0 %v886
      %v986 = vpop.f32.mrb[0].mxu0
      %v987 = vadd.f32 0.0, %v986
      %v988 = vpop.f32.mrb[0].mxu0
      %v989 = vpop.f32.mrb[0].mxu0
      %v990 = vadd.f32 0.0, %v989
      %v991 = vpop.f32.mrb[0].mxu0
      %992 = vmatprep.mubr.bf16.mxu0 0
      %993 = vmatmul.mubr.bf16.gmra.mrb[0].mxu0 %v889
      %v994 = vpop.f32.mrb[0].mxu0
      %v995 = vadd.f32 0.0, %v994
      %v996 = vpop.f32.mrb[0].mxu0
      %v997 = vpop.f32.mrb[0].mxu0
      %v998 = vadd.f32 0.0, %v997
      %v999 = vpop.f32.mrb[0].mxu0
      %1000 = vmatprep.mubr.bf16.mxu0 0
      %1001 = vmatmul.mubr.bf16.gmra.mrb[0].mxu0 %v892
      %v1002 = vpop.f32.mrb[0].mxu0
      %v1003 = vadd.f32 0.0, %v1002
      %v1004 = vpop.f32.mrb[0].mxu0
      %v1005 = vpop.f32.mrb[0].mxu0
      %v1006 = vadd.f32 0.0, %v1005
      %v1007 = vpop.f32.mrb[0].mxu0
      %1008 = vmatprep.mubr.bf16.mxu0 0
      %1009 = vmatmul.mubr.bf16.gmra.mrb[0].mxu0 %v895
      %v1010 = vpop.f32.mrb[0].mxu0
      %v1011 = vadd.f32 0.0, %v1010
      %v1012 = vpop.f32.mrb[0].mxu0
      %v1013 = vpop.f32.mrb[0].mxu0
      %v1014 = vadd.f32 0.0, %v1013
      %v1015 = vpop.f32.mrb[0].mxu0
      %1016 = vmatprep.mubr.bf16.mxu0 0
      %1017 = vmatmul.mubr.bf16.gmra.mrb[0].mxu0 %v898
      %v1018 = vpop.f32.mrb[0].mxu0
      %v1019 = vadd.f32 0.0, %v1018
      %v1020 = vpop.f32.mrb[0].mxu0
      %v1021 = vpop.f32.mrb[0].mxu0
      %v1022 = vadd.f32 0.0, %v1021
      %v1023 = vpop.f32.mrb[0].mxu0
      %1024 = vmatprep.mubr.bf16.mxu0 0
      %1025 = vmatmul.mubr.bf16.gmra.mrb[0].mxu0 %v901
      %v1026 = vpop.f32.mrb[0].mxu0
      %v1027 = vadd.f32 0.0, %v1026
      %v1028 = vpop.f32.mrb[0].mxu0
      %v1029 = vpop.f32.mrb[0].mxu0
      %v1030 = vadd.f32 0.0, %v1029
      %v1031 = vpop.f32.mrb[0].mxu0
      %1032 = vmatprep.mubr.bf16.mxu0 0
      %1033 = vmatmul.mubr.bf16.gmra.mrb[0].mxu0 %v904
      %v1034 = vpop.f32.mrb[0].mxu0
      %v1035 = vadd.f32 0.0, %v1034
      %v1036 = vpop.f32.mrb[0].mxu0
      %v1037 = vpop.f32.mrb[0].mxu0
      %v1038 = vadd.f32 0.0, %v1037
      %v1039 = vpop.f32.mrb[0].mxu0
      %1040 = vmatprep.mubr.bf16.mxu0 0
      %1041 = vmatmul.mubr.bf16.gmra.mrb[0].mxu0 %v907
      %v1042 = vpop.f32.mrb[0].mxu0
      %v1043 = vadd.f32 0.0, %v1042
      %v1044 = vpop.f32.mrb[0].mxu0
      %v1045 = vpop.f32.mrb[0].mxu0
      %v1046 = vadd.f32 0.0, %v1045
      %v1047 = vpop.f32.mrb[0].mxu0
      %1048 = vmatprep.mubr.bf16.mxu0 0
      %1049 = vmatmul.mubr.bf16.gmra.mrb[0].mxu0 %v910
      %v1050 = vpop.f32.mrb[0].mxu0
      %v1051 = vadd.f32 0.0, %v1050
      %v1052 = vpop.f32.mrb[0].mxu0
      %v1053 = vpop.f32.mrb[0].mxu0
      %v1054 = vadd.f32 0.0, %v1053
      %v1055 = vpop.f32.mrb[0].mxu0
      %1056 = vmatprep.mubr.bf16.mxu0 0
      %1057 = vmatmul.mubr.bf16.gmra.mrb[0].mxu0 %v913
      %v1058 = vpop.f32.mrb[0].mxu0
      %v1059 = vadd.f32 0.0, %v1058
      %v1060 = vpop.f32.mrb[0].mxu0
      %v1061 = vpop.f32.mrb[0].mxu0
      %v1062 = vadd.f32 0.0, %v1061
      %v1063 = vpop.f32.mrb[0].mxu0
      %1064 = vmatprep.mubr.bf16.mxu0 0
      %1065 = vmatmul.mubr.bf16.gmra.mrb[0].mxu0 %v916
      %v1066 = vpop.f32.mrb[0].mxu0
      %v1067 = vadd.f32 0.0, %v1066
      %v1068 = vpop.f32.mrb[0].mxu0
      %v1069 = vpop.f32.mrb[0].mxu0
      %v1070 = vadd.f32 0.0, %v1069
      %v1071 = vpop.f32.mrb[0].mxu0
      %1072 = vmatprep.mubr.bf16.mxu0 0
      %1073 = vmatmul.mubr.bf16.gmra.mrb[0].mxu0 %v919
      %v1074 = vpop.f32.mrb[0].mxu0
      %v1075 = vadd.f32 0.0, %v1074
      %v1076 = vpop.f32.mrb[0].mxu0
      %v1077 = vpop.f32.mrb[0].mxu0
      %v1078 = vadd.f32 0.0, %v1077
      %v1079 = vpop.f32.mrb[0].mxu0
      %1080 = vmatprep.mubr.bf16.mxu0 0
      %1081 = vmatmul.mubr.bf16.gmra.mrb[0].mxu0 %v922
      %v1082 = vpop.f32.mrb[0].mxu0
      %v1083 = vadd.f32 0.0, %v1082
      %v1084 = vpop.f32.mrb[0].mxu0
      %v1085 = vpop.f32.mrb[0].mxu0
      %v1086 = vadd.f32 0.0, %v1085
      %v1087 = vpop.f32.mrb[0].mxu0
      %1088 = vdwg.mxu0
      %v1089 = vadd.f32 %v760, %v963
      %v1090 = vadd.f32 %v760, %v966
      %v1091 = vadd.f32 %v760, %v971
      %v1092 = vadd.f32 %v760, %v974
      %v1093 = vadd.f32 %v760, %v979
      %v1094 = vadd.f32 %v760, %v982
      %v1095 = vadd.f32 %v760, %v987
      %v1096 = vadd.f32 %v760, %v990
      %v1097 = vadd.f32 %v760, %v995
      %v1098 = vadd.f32 %v760, %v998
      %v1099 = vadd.f32 %v760, %v1003
      %v1100 = vadd.f32 %v760, %v1006
      %v1101 = vadd.f32 %v760, %v1011
      %v1102 = vadd.f32 %v760, %v1014
      %v1103 = vadd.f32 %v760, %v1019
      %v1104 = vadd.f32 %v760, %v1022
      %v1105 = vadd.f32 %v760, %v1027
      %v1106 = vadd.f32 %v760, %v1030
      %v1107 = vadd.f32 %v760, %v1035
      %v1108 = vadd.f32 %v760, %v1038
      %v1109 = vadd.f32 %v760, %v1043
      %v1110 = vadd.f32 %v760, %v1046
      %v1111 = vadd.f32 %v760, %v1051
      %v1112 = vadd.f32 %v760, %v1054
      %v1113 = vadd.f32 %v760, %v1059
      %v1114 = vadd.f32 %v760, %v1062
      %v1115 = vadd.f32 %v760, %v1067
      %v1116 = vadd.f32 %v760, %v1070
      %v1117 = vadd.f32 %v760, %v1075
      %v1118 = vadd.f32 %v760, %v1078
      %v1119 = vadd.f32 %v760, %v1083
      %v1120 = vadd.f32 %v760, %v1086
      %v1121 = vld [vmem:[#allocation2] sm:$0xf]
      %v1122 = vld [vmem:[#allocation2 + $0x4] sm:$0xf]
      %v1123 = vld [vmem:[#allocation2 + $0x8] sm:$0x1]
      %v1124 = vld [vmem:[#allocation2 + $0xc] sm:$0xf]
      %v1125 = vld [vmem:[#allocation2 + $0x10] sm:$0xf]
      %v1126 = vld [vmem:[#allocation2 + $0x14] sm:$0x1]
      %v1127 = vld [vmem:[#allocation2 + $0x18] sm:$0xf]
      %v1128 = vld [vmem:[#allocation2 + $0x1c] sm:$0xf]
      %v1129 = vld [vmem:[#allocation2 + $0x20] sm:$0x1]
      %v1130 = vld [vmem:[#allocation2 + $0x24] sm:$0xf]
      %v1131 = vld [vmem:[#allocation2 + $0x28] sm:$0xf]
      %v1132 = vld [vmem:[#allocation2 + $0x2c] sm:$0x1]
      %v1133 = vld [vmem:[#allocation2 + $0x30] sm:$0xf]
      %v1134 = vld [vmem:[#allocation2 + $0x34] sm:$0xf]
      %v1135 = vld [vmem:[#allocation2 + $0x38] sm:$0x1]
      %v1136 = vld [vmem:[#allocation2 + $0x3c] sm:$0xf]
      %v1137 = vld [vmem:[#allocation2 + $0x40] sm:$0xf]
      %v1138 = vld [vmem:[#allocation2 + $0x44] sm:$0x1]
      %v1139 = vld [vmem:[#allocation2 + $0x48] sm:$0xf]
      %v1140 = vld [vmem:[#allocation2 + $0x4c] sm:$0xf]
      %v1141 = vld [vmem:[#allocation2 + $0x50] sm:$0x1]
      %v1142 = vld [vmem:[#allocation2 + $0x54] sm:$0xf]
      %v1143 = vld [vmem:[#allocation2 + $0x58] sm:$0xf]
      %v1144 = vld [vmem:[#allocation2 + $0x5c] sm:$0x1]
      %v1145 = vld [vmem:[#allocation2 + $0x60] sm:$0xf]
      %v1146 = vld [vmem:[#allocation2 + $0x64] sm:$0xf]
      %v1147 = vld [vmem:[#allocation2 + $0x68] sm:$0x1]
      %v1148 = vld [vmem:[#allocation2 + $0x6c] sm:$0xf]
      %v1149 = vld [vmem:[#allocation2 + $0x70] sm:$0xf]
      %v1150 = vld [vmem:[#allocation2 + $0x74] sm:$0x1]
      %v1151 = vld [vmem:[#allocation2 + $0x78] sm:$0xf]
      %v1152 = vld [vmem:[#allocation2 + $0x7c] sm:$0xf]
      %v1153 = vld [vmem:[#allocation2 + $0x80] sm:$0x1]
      %v1154 = vld [vmem:[#allocation2 + $0x84] sm:$0xf]
      %v1155 = vld [vmem:[#allocation2 + $0x88] sm:$0xf]
      %v1156 = vld [vmem:[#allocation2 + $0x8c] sm:$0x1]
      %v1157 = vld [vmem:[#allocation2 + $0x90] sm:$0xf]
      %v1158 = vld [vmem:[#allocation2 + $0x94] sm:$0xf]
      %v1159 = vld [vmem:[#allocation2 + $0x98] sm:$0x1]
      %v1160 = vld [vmem:[#allocation2 + $0x9c] sm:$0xf]
      %v1161 = vld [vmem:[#allocation2 + $0xa0] sm:$0xf]
      %v1162 = vld [vmem:[#allocation2 + $0xa4] sm:$0x1]
      %v1163 = vld [vmem:[#allocation2 + $0xa8] sm:$0xf]
      %v1164 = vld [vmem:[#allocation2 + $0xac] sm:$0xf]
      %v1165 = vld [vmem:[#allocation2 + $0xb0] sm:$0x1]
      %v1166 = vld [vmem:[#allocation2 + $0xb4] sm:$0xf]
      %v1167 = vld [vmem:[#allocation2 + $0xb8] sm:$0xf]
      %v1168 = vld [vmem:[#allocation2 + $0xbc] sm:$0x1]
      %vm1169 = vsmask.f32 3328
      %vm1170 = vsmask.f32 7440
      %vm1171 = vmor %vm1169, %vm1170
      %v1173 = vshrl.u32 %v1121, 16
      %v1175 = vrot.slane %v1173, 4
      %v1176 = vshll.u32 %v1121, 16
      %v1178 = vrot.slane %v1176, 5
      %v1179 = vor.u32 %v1175, %v1178
      %v1180 = vrot.slane %v1179, 4
      %v1182 = vshll.u32 %v1122, 16
      %v1184 = vrot.slane %v1182, 5
      %v1185 = vsel %vm1171, %v1180, %v1184
      %v1186 = vshrl.u32 %v1122, 16
      %v1188 = vrot.slane %v1186, 4
      %v1189 = vor.u32 %v1188, %v1184
      %v1190 = vrot.slane %v1189, 4
      %v1192 = vshll.u32 %v1123, 16
      %v1194 = vrot.slane %v1192, 5
      %v1195 = vsel %vm1171, %v1190, %v1194
      %v1197 = vshrl.u32 %v1124, 16
      %v1199 = vrot.slane %v1197, 4
      %v1200 = vshll.u32 %v1124, 16
      %v1202 = vrot.slane %v1200, 5
      %v1203 = vor.u32 %v1199, %v1202
      %v1204 = vrot.slane %v1203, 4
      %v1206 = vshll.u32 %v1125, 16
      %v1208 = vrot.slane %v1206, 5
      %v1209 = vsel %vm1171, %v1204, %v1208
      %v1210 = vshrl.u32 %v1125, 16
      %v1212 = vrot.slane %v1210, 4
      %v1213 = vor.u32 %v1212, %v1208
      %v1214 = vrot.slane %v1213, 4
      %v1216 = vshll.u32 %v1126, 16
      %v1218 = vrot.slane %v1216, 5
      %v1219 = vsel %vm1171, %v1214, %v1218
      %v1221 = vshrl.u32 %v1127, 16
      %v1223 = vrot.slane %v1221, 4
      %v1224 = vshll.u32 %v1127, 16
      %v1226 = vrot.slane %v1224, 5
      %v1227 = vor.u32 %v1223, %v1226
      %v1228 = vrot.slane %v1227, 4
      %v1230 = vshll.u32 %v1128, 16
      %v1232 = vrot.slane %v1230, 5
      %v1233 = vsel %vm1171, %v1228, %v1232
      %v1234 = vshrl.u32 %v1128, 16
      %v1236 = vrot.slane %v1234, 4
      %v1237 = vor.u32 %v1236, %v1232
      %v1238 = vrot.slane %v1237, 4
      %v1240 = vshll.u32 %v1129, 16
      %v1242 = vrot.slane %v1240, 5
      %v1243 = vsel %vm1171, %v1238, %v1242
      %v1245 = vshrl.u32 %v1130, 16
      %v1247 = vrot.slane %v1245, 4
      %v1248 = vshll.u32 %v1130, 16
      %v1250 = vrot.slane %v1248, 5
      %v1251 = vor.u32 %v1247, %v1250
      %v1252 = vrot.slane %v1251, 4
      %v1254 = vshll.u32 %v1131, 16
      %v1256 = vrot.slane %v1254, 5
      %v1257 = vsel %vm1171, %v1252, %v1256
      %v1258 = vshrl.u32 %v1131, 16
      %v1260 = vrot.slane %v1258, 4
      %v1261 = vor.u32 %v1260, %v1256
      %v1262 = vrot.slane %v1261, 4
      %v1264 = vshll.u32 %v1132, 16
      %v1266 = vrot.slane %v1264, 5
      %v1267 = vsel %vm1171, %v1262, %v1266
      %v1269 = vshrl.u32 %v1133, 16
      %v1271 = vrot.slane %v1269, 4
      %v1272 = vshll.u32 %v1133, 16
      %v1274 = vrot.slane %v1272, 5
      %v1275 = vor.u32 %v1271, %v1274
      %v1276 = vrot.slane %v1275, 4
      %v1278 = vshll.u32 %v1134, 16
      %v1280 = vrot.slane %v1278, 5
      %v1281 = vsel %vm1171, %v1276, %v1280
      %v1282 = vshrl.u32 %v1134, 16
      %v1284 = vrot.slane %v1282, 4
      %v1285 = vor.u32 %v1284, %v1280
      %v1286 = vrot.slane %v1285, 4
      %v1288 = vshll.u32 %v1135, 16
      %v1290 = vrot.slane %v1288, 5
      %v1291 = vsel %vm1171, %v1286, %v1290
      %v1293 = vshrl.u32 %v1136, 16
      %v1295 = vrot.slane %v1293, 4
      %v1296 = vshll.u32 %v1136, 16
      %v1298 = vrot.slane %v1296, 5
      %v1299 = vor.u32 %v1295, %v1298
      %v1300 = vrot.slane %v1299, 4
      %v1302 = vshll.u32 %v1137, 16
      %v1304 = vrot.slane %v1302, 5
      %v1305 = vsel %vm1171, %v1300, %v1304
      %v1306 = vshrl.u32 %v1137, 16
      %v1308 = vrot.slane %v1306, 4
      %v1309 = vor.u32 %v1308, %v1304
      %v1310 = vrot.slane %v1309, 4
      %v1312 = vshll.u32 %v1138, 16
      %v1314 = vrot.slane %v1312, 5
      %v1315 = vsel %vm1171, %v1310, %v1314
      %v1317 = vshrl.u32 %v1139, 16
      %v1319 = vrot.slane %v1317, 4
      %v1320 = vshll.u32 %v1139, 16
      %v1322 = vrot.slane %v1320, 5
      %v1323 = vor.u32 %v1319, %v1322
      %v1324 = vrot.slane %v1323, 4
      %v1326 = vshll.u32 %v1140, 16
      %v1328 = vrot.slane %v1326, 5
      %v1329 = vsel %vm1171, %v1324, %v1328
      %v1330 = vshrl.u32 %v1140, 16
      %v1332 = vrot.slane %v1330, 4
      %v1333 = vor.u32 %v1332, %v1328
      %v1334 = vrot.slane %v1333, 4
      %v1336 = vshll.u32 %v1141, 16
      %v1338 = vrot.slane %v1336, 5
      %v1339 = vsel %vm1171, %v1334, %v1338
      %v1341 = vshrl.u32 %v1142, 16
      %v1343 = vrot.slane %v1341, 4
      %v1344 = vshll.u32 %v1142, 16
      %v1346 = vrot.slane %v1344, 5
      %v1347 = vor.u32 %v1343, %v1346
      %v1348 = vrot.slane %v1347, 4
      %v1350 = vshll.u32 %v1143, 16
      %v1352 = vrot.slane %v1350, 5
      %v1353 = vsel %vm1171, %v1348, %v1352
      %v1354 = vshrl.u32 %v1143, 16
      %v1356 = vrot.slane %v1354, 4
      %v1357 = vor.u32 %v1356, %v1352
      %v1358 = vrot.slane %v1357, 4
      %v1360 = vshll.u32 %v1144, 16
      %v1362 = vrot.slane %v1360, 5
      %v1363 = vsel %vm1171, %v1358, %v1362
      %v1365 = vshrl.u32 %v1145, 16
      %v1367 = vrot.slane %v1365, 4
      %v1368 = vshll.u32 %v1145, 16
      %v1370 = vrot.slane %v1368, 5
      %v1371 = vor.u32 %v1367, %v1370
      %v1372 = vrot.slane %v1371, 4
      %v1374 = vshll.u32 %v1146, 16
      %v1376 = vrot.slane %v1374, 5
      %v1377 = vsel %vm1171, %v1372, %v1376
      %v1378 = vshrl.u32 %v1146, 16
      %v1380 = vrot.slane %v1378, 4
      %v1381 = vor.u32 %v1380, %v1376
      %v1382 = vrot.slane %v1381, 4
      %v1384 = vshll.u32 %v1147, 16
      %v1386 = vrot.slane %v1384, 5
      %v1387 = vsel %vm1171, %v1382, %v1386
      %v1389 = vshrl.u32 %v1148, 16
      %v1391 = vrot.slane %v1389, 4
      %v1392 = vshll.u32 %v1148, 16
      %v1394 = vrot.slane %v1392, 5
      %v1395 = vor.u32 %v1391, %v1394
      %v1396 = vrot.slane %v1395, 4
      %v1398 = vshll.u32 %v1149, 16
      %v1400 = vrot.slane %v1398, 5
      %v1401 = vsel %vm1171, %v1396, %v1400
      %v1402 = vshrl.u32 %v1149, 16
      %v1404 = vrot.slane %v1402, 4
      %v1405 = vor.u32 %v1404, %v1400
      %v1406 = vrot.slane %v1405, 4
      %v1408 = vshll.u32 %v1150, 16
      %v1410 = vrot.slane %v1408, 5
      %v1411 = vsel %vm1171, %v1406, %v1410
      %v1413 = vshrl.u32 %v1151, 16
      %v1415 = vrot.slane %v1413, 4
      %v1416 = vshll.u32 %v1151, 16
      %v1418 = vrot.slane %v1416, 5
      %v1419 = vor.u32 %v1415, %v1418
      %v1420 = vrot.slane %v1419, 4
      %v1422 = vshll.u32 %v1152, 16
      %v1424 = vrot.slane %v1422, 5
      %v1425 = vsel %vm1171, %v1420, %v1424
      %v1426 = vshrl.u32 %v1152, 16
      %v1428 = vrot.slane %v1426, 4
      %v1429 = vor.u32 %v1428, %v1424
      %v1430 = vrot.slane %v1429, 4
      %v1432 = vshll.u32 %v1153, 16
      %v1434 = vrot.slane %v1432, 5
      %v1435 = vsel %vm1171, %v1430, %v1434
      %v1437 = vshrl.u32 %v1154, 16
      %v1439 = vrot.slane %v1437, 4
      %v1440 = vshll.u32 %v1154, 16
      %v1442 = vrot.slane %v1440, 5
      %v1443 = vor.u32 %v1439, %v1442
      %v1444 = vrot.slane %v1443, 4
      %v1446 = vshll.u32 %v1155, 16
      %v1448 = vrot.slane %v1446, 5
      %v1449 = vsel %vm1171, %v1444, %v1448
      %v1450 = vshrl.u32 %v1155, 16
      %v1452 = vrot.slane %v1450, 4
      %v1453 = vor.u32 %v1452, %v1448
      %v1454 = vrot.slane %v1453, 4
      %v1456 = vshll.u32 %v1156, 16
      %v1458 = vrot.slane %v1456, 5
      %v1459 = vsel %vm1171, %v1454, %v1458
      %v1461 = vshrl.u32 %v1157, 16
      %v1463 = vrot.slane %v1461, 4
      %v1464 = vshll.u32 %v1157, 16
      %v1466 = vrot.slane %v1464, 5
      %v1467 = vor.u32 %v1463, %v1466
      %v1468 = vrot.slane %v1467, 4
      %v1470 = vshll.u32 %v1158, 16
      %v1472 = vrot.slane %v1470, 5
      %v1473 = vsel %vm1171, %v1468, %v1472
      %v1474 = vshrl.u32 %v1158, 16
      %v1476 = vrot.slane %v1474, 4
      %v1477 = vor.u32 %v1476, %v1472
      %v1478 = vrot.slane %v1477, 4
      %v1480 = vshll.u32 %v1159, 16
      %v1482 = vrot.slane %v1480, 5
      %v1483 = vsel %vm1171, %v1478, %v1482
      %v1485 = vshrl.u32 %v1160, 16
      %v1487 = vrot.slane %v1485, 4
      %v1488 = vshll.u32 %v1160, 16
      %v1490 = vrot.slane %v1488, 5
      %v1491 = vor.u32 %v1487, %v1490
      %v1492 = vrot.slane %v1491, 4
      %v1494 = vshll.u32 %v1161, 16
      %v1496 = vrot.slane %v1494, 5
      %v1497 = vsel %vm1171, %v1492, %v1496
      %v1498 = vshrl.u32 %v1161, 16
      %v1500 = vrot.slane %v1498, 4
      %v1501 = vor.u32 %v1500, %v1496
      %v1502 = vrot.slane %v1501, 4
      %v1504 = vshll.u32 %v1162, 16
      %v1506 = vrot.slane %v1504, 5
      %v1507 = vsel %vm1171, %v1502, %v1506
      %v1509 = vshrl.u32 %v1163, 16
      %v1511 = vrot.slane %v1509, 4
      %v1512 = vshll.u32 %v1163, 16
      %v1514 = vrot.slane %v1512, 5
      %v1515 = vor.u32 %v1511, %v1514
      %v1516 = vrot.slane %v1515, 4
      %v1518 = vshll.u32 %v1164, 16
      %v1520 = vrot.slane %v1518, 5
      %v1521 = vsel %vm1171, %v1516, %v1520
      %v1522 = vshrl.u32 %v1164, 16
      %v1524 = vrot.slane %v1522, 4
      %v1525 = vor.u32 %v1524, %v1520
      %v1526 = vrot.slane %v1525, 4
      %v1528 = vshll.u32 %v1165, 16
      %v1530 = vrot.slane %v1528, 5
      %v1531 = vsel %vm1171, %v1526, %v1530
      %v1533 = vshrl.u32 %v1166, 16
      %v1535 = vrot.slane %v1533, 4
      %v1536 = vshll.u32 %v1166, 16
      %v1538 = vrot.slane %v1536, 5
      %v1539 = vor.u32 %v1535, %v1538
      %v1540 = vrot.slane %v1539, 4
      %v1542 = vshll.u32 %v1167, 16
      %v1544 = vrot.slane %v1542, 5
      %v1545 = vsel %vm1171, %v1540, %v1544
      %v1546 = vshrl.u32 %v1167, 16
      %v1548 = vrot.slane %v1546, 4
      %v1549 = vor.u32 %v1548, %v1544
      %v1550 = vrot.slane %v1549, 4
      %v1552 = vshll.u32 %v1168, 16
      %v1554 = vrot.slane %v1552, 5
      %v1555 = vsel %vm1171, %v1550, %v1554
      %s1556 = scalar_lea.vmem %s1, 2
      %v1557 = vld [vmem:[%s1556] sm:$0x3]
      %v1558 = vunpack.c.l.b16 %v1185
      %v1559 = vunpack.c.l.b16 %v1195
      %v1560 = vunpack.c.l.b16 %v1209
      %v1561 = vunpack.c.l.b16 %v1219
      %v1562 = vunpack.c.l.b16 %v1233
      %v1563 = vunpack.c.l.b16 %v1243
      %v1564 = vunpack.c.l.b16 %v1257
      %v1565 = vunpack.c.l.b16 %v1267
      %v1566 = vunpack.c.l.b16 %v1281
      %v1567 = vunpack.c.l.b16 %v1291
      %v1568 = vunpack.c.l.b16 %v1305
      %v1569 = vunpack.c.l.b16 %v1315
      %v1570 = vunpack.c.l.b16 %v1329
      %v1571 = vunpack.c.l.b16 %v1339
      %v1572 = vunpack.c.l.b16 %v1353
      %v1573 = vunpack.c.l.b16 %v1363
      %v1574 = vunpack.c.l.b16 %v1377
      %v1575 = vunpack.c.l.b16 %v1387
      %v1576 = vunpack.c.l.b16 %v1401
      %v1577 = vunpack.c.l.b16 %v1411
      %v1578 = vunpack.c.l.b16 %v1425
      %v1579 = vunpack.c.l.b16 %v1435
      %v1580 = vunpack.c.l.b16 %v1449
      %v1581 = vunpack.c.l.b16 %v1459
      %v1582 = vunpack.c.l.b16 %v1473
      %v1583 = vunpack.c.l.b16 %v1483
      %v1584 = vunpack.c.l.b16 %v1497
      %v1585 = vunpack.c.l.b16 %v1507
      %v1586 = vunpack.c.l.b16 %v1521
      %v1587 = vunpack.c.l.b16 %v1531
      %v1588 = vunpack.c.l.b16 %v1545
      %v1589 = vunpack.c.l.b16 %v1555
      %v1590 = vpack.c.b16 %v1559, %v1558
      %v1591 = vpack.c.b16 %v1561, %v1560
      %v1592 = vpack.c.b16 %v1563, %v1562
      %v1593 = vpack.c.b16 %v1565, %v1564
      %v1594 = vpack.c.b16 %v1567, %v1566
      %v1595 = vpack.c.b16 %v1569, %v1568
      %v1596 = vpack.c.b16 %v1571, %v1570
      %v1597 = vpack.c.b16 %v1573, %v1572
      %v1598 = vpack.c.b16 %v1575, %v1574
      %v1599 = vpack.c.b16 %v1577, %v1576
      %v1600 = vpack.c.b16 %v1579, %v1578
      %v1601 = vpack.c.b16 %v1581, %v1580
      %v1602 = vpack.c.b16 %v1583, %v1582
      %v1603 = vpack.c.b16 %v1585, %v1584
      %v1604 = vpack.c.b16 %v1587, %v1586
      %v1605 = vpack.c.b16 %v1589, %v1588
      %v1607 = vsel %vm875, %v1590, 0
      %v1610 = vsel %vm875, %v1591, 0
      %v1613 = vsel %vm875, %v1592, 0
      %v1616 = vsel %vm875, %v1593, 0
      %v1619 = vsel %vm875, %v1594, 0
      %v1622 = vsel %vm875, %v1595, 0
      %v1625 = vsel %vm875, %v1596, 0
      %v1628 = vsel %vm875, %v1597, 0
      %v1631 = vsel %vm875, %v1598, 0
      %v1634 = vsel %vm875, %v1599, 0
      %v1637 = vsel %vm875, %v1600, 0
      %v1640 = vsel %vm875, %v1601, 0
      %v1643 = vsel %vm875, %v1602, 0
      %v1646 = vsel %vm875, %v1603, 0
      %v1649 = vsel %vm875, %v1604, 0
      %v1652 = vsel %vm875, %v1605, 0
      %v1655 = vsel %vm924, %v1557, 0
      %1657 = vmatprep.subr.bf16.mxu0 0
      %1658 = vmatpush1.bf16.msra.mxu0 %v1655
      %1659 = vmatprep.subr.bf16.mxu0 0
      %1660 = vmatpush1.bf16.msra.mxu0 0
      %1661 = vmatprep.subr.bf16.mxu0 0
      %1662 = vmatpush1.bf16.msra.mxu0 0
      %1663 = vmatprep.subr.bf16.mxu0 0
      %1664 = vmatpush1.bf16.msra.mxu0 0
      %1665 = vmatprep.subr.bf16.mxu0 0
      %1666 = vmatpush1.bf16.msra.mxu0 0
      %1667 = vmatprep.subr.bf16.mxu0 0
      %1668 = vmatpush1.bf16.msra.mxu0 0
      %1669 = vmatprep.subr.bf16.mxu0 0
      %1670 = vmatpush1.bf16.msra.mxu0 0
      %1671 = vmatprep.subr.bf16.mxu0 0
      %1672 = vmatpush1.bf16.msra.mxu0 0
      %1673 = vmatprep.subr.bf16.mxu0 0
      %1674 = vmatpush1.bf16.msra.mxu0 0
      %1675 = vmatprep.subr.bf16.mxu0 0
      %1676 = vmatpush1.bf16.msra.mxu0 0
      %1677 = vmatprep.subr.bf16.mxu0 0
      %1678 = vmatpush1.bf16.msra.mxu0 0
      %1679 = vmatprep.subr.bf16.mxu0 0
      %1680 = vmatpush1.bf16.msra.mxu0 0
      %1681 = vmatprep.subr.bf16.mxu0 0
      %1682 = vmatpush1.bf16.msra.mxu0 0
      %1683 = vmatprep.subr.bf16.mxu0 0
      %1684 = vmatpush1.bf16.msra.mxu0 0
      %1685 = vmatprep.subr.bf16.mxu0 0
      %1686 = vmatpush1.bf16.msra.mxu0 0
      %1687 = vmatprep.subr.bf16.mxu0 0
      %1688 = vmatpush1.bf16.msra.mxu0 0
      %1689 = vmatprep.mubr.bf16.mxu0 0
      %1690 = vmatmul.mubr.bf16.gmra.mrb[0].mxu0 %v1607
      %v1691 = vpop.f32.mrb[0].mxu0
      %v1692 = vadd.f32 0.0, %v1691
      %v1693 = vpop.f32.mrb[0].mxu0
      %v1694 = vpop.f32.mrb[0].mxu0
      %v1695 = vadd.f32 0.0, %v1694
      %v1696 = vpop.f32.mrb[0].mxu0
      %1697 = vmatprep.mubr.bf16.mxu0 0
      %1698 = vmatmul.mubr.bf16.gmra.mrb[0].mxu0 %v1610
      %v1699 = vpop.f32.mrb[0].mxu0
      %v1700 = vadd.f32 0.0, %v1699
      %v1701 = vpop.f32.mrb[0].mxu0
      %v1702 = vpop.f32.mrb[0].mxu0
      %v1703 = vadd.f32 0.0, %v1702
      %v1704 = vpop.f32.mrb[0].mxu0
      %1705 = vmatprep.mubr.bf16.mxu0 0
      %1706 = vmatmul.mubr.bf16.gmra.mrb[0].mxu0 %v1613
      %v1707 = vpop.f32.mrb[0].mxu0
      %v1708 = vadd.f32 0.0, %v1707
      %v1709 = vpop.f32.mrb[0].mxu0
      %v1710 = vpop.f32.mrb[0].mxu0
      %v1711 = vadd.f32 0.0, %v1710
      %v1712 = vpop.f32.mrb[0].mxu0
      %1713 = vmatprep.mubr.bf16.mxu0 0
      %1714 = vmatmul.mubr.bf16.gmra.mrb[0].mxu0 %v1616
      %v1715 = vpop.f32.mrb[0].mxu0
      %v1716 = vadd.f32 0.0, %v1715
      %v1717 = vpop.f32.mrb[0].mxu0
      %v1718 = vpop.f32.mrb[0].mxu0
      %v1719 = vadd.f32 0.0, %v1718
      %v1720 = vpop.f32.mrb[0].mxu0
      %1721 = vmatprep.mubr.bf16.mxu0 0
      %1722 = vmatmul.mubr.bf16.gmra.mrb[0].mxu0 %v1619
      %v1723 = vpop.f32.mrb[0].mxu0
      %v1724 = vadd.f32 0.0, %v1723
      %v1725 = vpop.f32.mrb[0].mxu0
      %v1726 = vpop.f32.mrb[0].mxu0
      %v1727 = vadd.f32 0.0, %v1726
      %v1728 = vpop.f32.mrb[0].mxu0
      %1729 = vmatprep.mubr.bf16.mxu0 0
      %1730 = vmatmul.mubr.bf16.gmra.mrb[0].mxu0 %v1622
      %v1731 = vpop.f32.mrb[0].mxu0
      %v1732 = vadd.f32 0.0, %v1731
      %v1733 = vpop.f32.mrb[0].mxu0
      %v1734 = vpop.f32.mrb[0].mxu0
      %v1735 = vadd.f32 0.0, %v1734
      %v1736 = vpop.f32.mrb[0].mxu0
      %1737 = vmatprep.mubr.bf16.mxu0 0
      %1738 = vmatmul.mubr.bf16.gmra.mrb[0].mxu0 %v1625
      %v1739 = vpop.f32.mrb[0].mxu0
      %v1740 = vadd.f32 0.0, %v1739
      %v1741 = vpop.f32.mrb[0].mxu0
      %v1742 = vpop.f32.mrb[0].mxu0
      %v1743 = vadd.f32 0.0, %v1742
      %v1744 = vpop.f32.mrb[0].mxu0
      %1745 = vmatprep.mubr.bf16.mxu0 0
      %1746 = vmatmul.mubr.bf16.gmra.mrb[0].mxu0 %v1628
      %v1747 = vpop.f32.mrb[0].mxu0
      %v1748 = vadd.f32 0.0, %v1747
      %v1749 = vpop.f32.mrb[0].mxu0
      %v1750 = vpop.f32.mrb[0].mxu0
      %v1751 = vadd.f32 0.0, %v1750
      %v1752 = vpop.f32.mrb[0].mxu0
      %1753 = vmatprep.mubr.bf16.mxu0 0
      %1754 = vmatmul.mubr.bf16.gmra.mrb[0].mxu0 %v1631
      %v1755 = vpop.f32.mrb[0].mxu0
      %v1756 = vadd.f32 0.0, %v1755
      %v1757 = vpop.f32.mrb[0].mxu0
      %v1758 = vpop.f32.mrb[0].mxu0
      %v1759 = vadd.f32 0.0, %v1758
      %v1760 = vpop.f32.mrb[0].mxu0
      %1761 = vmatprep.mubr.bf16.mxu0 0
      %1762 = vmatmul.mubr.bf16.gmra.mrb[0].mxu0 %v1634
      %v1763 = vpop.f32.mrb[0].mxu0
      %v1764 = vadd.f32 0.0, %v1763
      %v1765 = vpop.f32.mrb[0].mxu0
      %v1766 = vpop.f32.mrb[0].mxu0
      %v1767 = vadd.f32 0.0, %v1766
      %v1768 = vpop.f32.mrb[0].mxu0
      %1769 = vmatprep.mubr.bf16.mxu0 0
      %1770 = vmatmul.mubr.bf16.gmra.mrb[0].mxu0 %v1637
      %v1771 = vpop.f32.mrb[0].mxu0
      %v1772 = vadd.f32 0.0, %v1771
      %v1773 = vpop.f32.mrb[0].mxu0
      %v1774 = vpop.f32.mrb[0].mxu0
      %v1775 = vadd.f32 0.0, %v1774
      %v1776 = vpop.f32.mrb[0].mxu0
      %1777 = vmatprep.mubr.bf16.mxu0 0
      %1778 = vmatmul.mubr.bf16.gmra.mrb[0].mxu0 %v1640
      %v1779 = vpop.f32.mrb[0].mxu0
      %v1780 = vadd.f32 0.0, %v1779
      %v1781 = vpop.f32.mrb[0].mxu0
      %v1782 = vpop.f32.mrb[0].mxu0
      %v1783 = vadd.f32 0.0, %v1782
      %v1784 = vpop.f32.mrb[0].mxu0
      %1785 = vmatprep.mubr.bf16.mxu0 0
      %1786 = vmatmul.mubr.bf16.gmra.mrb[0].mxu0 %v1643
      %v1787 = vpop.f32.mrb[0].mxu0
      %v1788 = vadd.f32 0.0, %v1787
      %v1789 = vpop.f32.mrb[0].mxu0
      %v1790 = vpop.f32.mrb[0].mxu0
      %v1791 = vadd.f32 0.0, %v1790
      %v1792 = vpop.f32.mrb[0].mxu0
      %1793 = vmatprep.mubr.bf16.mxu0 0
      %1794 = vmatmul.mubr.bf16.gmra.mrb[0].mxu0 %v1646
      %v1795 = vpop.f32.mrb[0].mxu0
      %v1796 = vadd.f32 0.0, %v1795
      %v1797 = vpop.f32.mrb[0].mxu0
      %v1798 = vpop.f32.mrb[0].mxu0
      %v1799 = vadd.f32 0.0, %v1798
      %v1800 = vpop.f32.mrb[0].mxu0
      %1801 = vmatprep.mubr.bf16.mxu0 0
      %1802 = vmatmul.mubr.bf16.gmra.mrb[0].mxu0 %v1649
      %v1803 = vpop.f32.mrb[0].mxu0
      %v1804 = vadd.f32 0.0, %v1803
      %v1805 = vpop.f32.mrb[0].mxu0
      %v1806 = vpop.f32.mrb[0].mxu0
      %v1807 = vadd.f32 0.0, %v1806
      %v1808 = vpop.f32.mrb[0].mxu0
      %1809 = vmatprep.mubr.bf16.mxu0 0
      %1810 = vmatmul.mubr.bf16.gmra.mrb[0].mxu0 %v1652
      %v1811 = vpop.f32.mrb[0].mxu0
      %v1812 = vadd.f32 0.0, %v1811
      %v1813 = vpop.f32.mrb[0].mxu0
      %v1814 = vpop.f32.mrb[0].mxu0
      %v1815 = vadd.f32 0.0, %v1814
      %v1816 = vpop.f32.mrb[0].mxu0
      %1817 = vdwg.mxu0
      %v1818 = vadd.f32 %v1089, %v1692
      %v1819 = vadd.f32 %v1090, %v1695
      %v1820 = vadd.f32 %v1091, %v1700
      %v1821 = vadd.f32 %v1092, %v1703
      %v1822 = vadd.f32 %v1093, %v1708
      %v1823 = vadd.f32 %v1094, %v1711
      %v1824 = vadd.f32 %v1095, %v1716
      %v1825 = vadd.f32 %v1096, %v1719
      %v1826 = vadd.f32 %v1097, %v1724
      %v1827 = vadd.f32 %v1098, %v1727
      %v1828 = vadd.f32 %v1099, %v1732
      %v1829 = vadd.f32 %v1100, %v1735
      %v1830 = vadd.f32 %v1101, %v1740
      %v1831 = vadd.f32 %v1102, %v1743
      %v1832 = vadd.f32 %v1103, %v1748
      %v1833 = vadd.f32 %v1104, %v1751
      %v1834 = vadd.f32 %v1105, %v1756
      %v1835 = vadd.f32 %v1106, %v1759
      %v1836 = vadd.f32 %v1107, %v1764
      %v1837 = vadd.f32 %v1108, %v1767
      %v1838 = vadd.f32 %v1109, %v1772
      %v1839 = vadd.f32 %v1110, %v1775
      %v1840 = vadd.f32 %v1111, %v1780
      %v1841 = vadd.f32 %v1112, %v1783
      %v1842 = vadd.f32 %v1113, %v1788
      %v1843 = vadd.f32 %v1114, %v1791
      %v1844 = vadd.f32 %v1115, %v1796
      %v1845 = vadd.f32 %v1116, %v1799
      %v1846 = vadd.f32 %v1117, %v1804
      %v1847 = vadd.f32 %v1118, %v1807
      %v1848 = vadd.f32 %v1119, %v1812
      %v1849 = vadd.f32 %v1120, %v1815
      %v1850 = vld [vmem:[#allocation2] sm:$0xe]
      %v1851 = vld [vmem:[#allocation2 + $0xc] sm:$0xe]
      %v1852 = vld [vmem:[#allocation2 + $0x18] sm:$0xe]
      %v1853 = vld [vmem:[#allocation2 + $0x24] sm:$0xe]
      %v1854 = vld [vmem:[#allocation2 + $0x30] sm:$0xe]
      %v1855 = vld [vmem:[#allocation2 + $0x3c] sm:$0xe]
      %v1856 = vld [vmem:[#allocation2 + $0x48] sm:$0xe]
      %v1857 = vld [vmem:[#allocation2 + $0x54] sm:$0xe]
      %v1858 = vld [vmem:[#allocation2 + $0x60] sm:$0xe]
      %v1859 = vld [vmem:[#allocation2 + $0x6c] sm:$0xe]
      %v1860 = vld [vmem:[#allocation2 + $0x78] sm:$0xe]
      %v1861 = vld [vmem:[#allocation2 + $0x84] sm:$0xe]
      %v1862 = vld [vmem:[#allocation2 + $0x90] sm:$0xe]
      %v1863 = vld [vmem:[#allocation2 + $0x9c] sm:$0xe]
      %v1864 = vld [vmem:[#allocation2 + $0xa8] sm:$0xe]
      %v1865 = vld [vmem:[#allocation2 + $0xb4] sm:$0xe]
      %vm1914 = vcmask 1042432
      %vm1915 = vcmask 1046532
      %vm1916 = vmor %vm1914, %vm1915
      %v1917 = vrot.slane %v1850, 5
      %v1918 = vrot.slane %v1917, 4
      %v1919 = vrot.slane %v1122, 5
      %v1920 = vsel %vm1916, %v1918, %v1919
      %v1921 = vrot.slane %v1919, 4
      %v1922 = vrot.slane %v1123, 5
      %v1923 = vsel %vm1916, %v1921, %v1922
      %v1924 = vrot.slane %v1851, 5
      %v1925 = vrot.slane %v1924, 4
      %v1926 = vrot.slane %v1125, 5
      %v1927 = vsel %vm1916, %v1925, %v1926
      %v1928 = vrot.slane %v1926, 4
      %v1929 = vrot.slane %v1126, 5
      %v1930 = vsel %vm1916, %v1928, %v1929
      %v1931 = vrot.slane %v1852, 5
      %v1932 = vrot.slane %v1931, 4
      %v1933 = vrot.slane %v1128, 5
      %v1934 = vsel %vm1916, %v1932, %v1933
      %v1935 = vrot.slane %v1933, 4
      %v1936 = vrot.slane %v1129, 5
      %v1937 = vsel %vm1916, %v1935, %v1936
      %v1938 = vrot.slane %v1853, 5
      %v1939 = vrot.slane %v1938, 4
      %v1940 = vrot.slane %v1131, 5
      %v1941 = vsel %vm1916, %v1939, %v1940
      %v1942 = vrot.slane %v1940, 4
      %v1943 = vrot.slane %v1132, 5
      %v1944 = vsel %vm1916, %v1942, %v1943
      %v1945 = vrot.slane %v1854, 5
      %v1946 = vrot.slane %v1945, 4
      %v1947 = vrot.slane %v1134, 5
      %v1948 = vsel %vm1916, %v1946, %v1947
      %v1949 = vrot.slane %v1947, 4
      %v1950 = vrot.slane %v1135, 5
      %v1951 = vsel %vm1916, %v1949, %v1950
      %v1952 = vrot.slane %v1855, 5
      %v1953 = vrot.slane %v1952, 4
      %v1954 = vrot.slane %v1137, 5
      %v1955 = vsel %vm1916, %v1953, %v1954
      %v1956 = vrot.slane %v1954, 4
      %v1957 = vrot.slane %v1138, 5
      %v1958 = vsel %vm1916, %v1956, %v1957
      %v1959 = vrot.slane %v1856, 5
      %v1960 = vrot.slane %v1959, 4
      %v1961 = vrot.slane %v1140, 5
      %v1962 = vsel %vm1916, %v1960, %v1961
      %v1963 = vrot.slane %v1961, 4
      %v1964 = vrot.slane %v1141, 5
      %v1965 = vsel %vm1916, %v1963, %v1964
      %v1966 = vrot.slane %v1857, 5
      %v1967 = vrot.slane %v1966, 4
      %v1968 = vrot.slane %v1143, 5
      %v1969 = vsel %vm1916, %v1967, %v1968
      %v1970 = vrot.slane %v1968, 4
      %v1971 = vrot.slane %v1144, 5
      %v1972 = vsel %vm1916, %v1970, %v1971
      %v1973 = vrot.slane %v1858, 5
      %v1974 = vrot.slane %v1973, 4
      %v1975 = vrot.slane %v1146, 5
      %v1976 = vsel %vm1916, %v1974, %v1975
      %v1977 = vrot.slane %v1975, 4
      %v1978 = vrot.slane %v1147, 5
      %v1979 = vsel %vm1916, %v1977, %v1978
      %v1980 = vrot.slane %v1859, 5
      %v1981 = vrot.slane %v1980, 4
      %v1982 = vrot.slane %v1149, 5
      %v1983 = vsel %vm1916, %v1981, %v1982
      %v1984 = vrot.slane %v1982, 4
      %v1985 = vrot.slane %v1150, 5
      %v1986 = vsel %vm1916, %v1984, %v1985
      %v1987 = vrot.slane %v1860, 5
      %v1988 = vrot.slane %v1987, 4
      %v1989 = vrot.slane %v1152, 5
      %v1990 = vsel %vm1916, %v1988, %v1989
      %v1991 = vrot.slane %v1989, 4
      %v1992 = vrot.slane %v1153, 5
      %v1993 = vsel %vm1916, %v1991, %v1992
      %v1994 = vrot.slane %v1861, 5
      %v1995 = vrot.slane %v1994, 4
      %v1996 = vrot.slane %v1155, 5
      %v1997 = vsel %vm1916, %v1995, %v1996
      %v1998 = vrot.slane %v1996, 4
      %v1999 = vrot.slane %v1156, 5
      %v2000 = vsel %vm1916, %v1998, %v1999
      %v2001 = vrot.slane %v1862, 5
      %v2002 = vrot.slane %v2001, 4
      %v2003 = vrot.slane %v1158, 5
      %v2004 = vsel %vm1916, %v2002, %v2003
      %v2005 = vrot.slane %v2003, 4
      %v2006 = vrot.slane %v1159, 5
      %v2007 = vsel %vm1916, %v2005, %v2006
      %v2008 = vrot.slane %v1863, 5
      %v2009 = vrot.slane %v2008, 4
      %v2010 = vrot.slane %v1161, 5
      %v2011 = vsel %vm1916, %v2009, %v2010
      %v2012 = vrot.slane %v2010, 4
      %v2013 = vrot.slane %v1162, 5
      %v2014 = vsel %vm1916, %v2012, %v2013
      %v2015 = vrot.slane %v1864, 5
      %v2016 = vrot.slane %v2015, 4
      %v2017 = vrot.slane %v1164, 5
      %v2018 = vsel %vm1916, %v2016, %v2017
      %v2019 = vrot.slane %v2017, 4
      %v2020 = vrot.slane %v1165, 5
      %v2021 = vsel %vm1916, %v2019, %v2020
      %v2022 = vrot.slane %v1865, 5
      %v2023 = vrot.slane %v2022, 4
      %v2024 = vrot.slane %v1167, 5
      %v2025 = vsel %vm1916, %v2023, %v2024
      %v2026 = vrot.slane %v2024, 4
      %v2027 = vrot.slane %v1168, 5
      %v2028 = vsel %vm1916, %v2026, %v2027
      %s2029 = scalar_lea.vmem %s1, 4
      %v2030 = vld [vmem:[%s2029] sm:$0x3]
      %v2031 = vunpack.c.l.b16 %v1920
      %v2032 = vunpack.c.l.b16 %v1923
      %v2033 = vunpack.c.l.b16 %v1927
      %v2034 = vunpack.c.l.b16 %v1930
      %v2035 = vunpack.c.l.b16 %v1934
      %v2036 = vunpack.c.l.b16 %v1937
      %v2037 = vunpack.c.l.b16 %v1941
      %v2038 = vunpack.c.l.b16 %v1944
      %v2039 = vunpack.c.l.b16 %v1948
      %v2040 = vunpack.c.l.b16 %v1951
      %v2041 = vunpack.c.l.b16 %v1955
      %v2042 = vunpack.c.l.b16 %v1958
      %v2043 = vunpack.c.l.b16 %v1962
      %v2044 = vunpack.c.l.b16 %v1965
      %v2045 = vunpack.c.l.b16 %v1969
      %v2046 = vunpack.c.l.b16 %v1972
      %v2047 = vunpack.c.l.b16 %v1976
      %v2048 = vunpack.c.l.b16 %v1979
      %v2049 = vunpack.c.l.b16 %v1983
      %v2050 = vunpack.c.l.b16 %v1986
      %v2051 = vunpack.c.l.b16 %v1990
      %v2052 = vunpack.c.l.b16 %v1993
      %v2053 = vunpack.c.l.b16 %v1997
      %v2054 = vunpack.c.l.b16 %v2000
      %v2055 = vunpack.c.l.b16 %v2004
      %v2056 = vunpack.c.l.b16 %v2007
      %v2057 = vunpack.c.l.b16 %v2011
      %v2058 = vunpack.c.l.b16 %v2014
      %v2059 = vunpack.c.l.b16 %v2018
      %v2060 = vunpack.c.l.b16 %v2021
      %v2061 = vunpack.c.l.b16 %v2025
      %v2062 = vunpack.c.l.b16 %v2028
      %v2063 = vpack.c.b16 %v2032, %v2031
      %v2064 = vpack.c.b16 %v2034, %v2033
      %v2065 = vpack.c.b16 %v2036, %v2035
      %v2066 = vpack.c.b16 %v2038, %v2037
      %v2067 = vpack.c.b16 %v2040, %v2039
      %v2068 = vpack.c.b16 %v2042, %v2041
      %v2069 = vpack.c.b16 %v2044, %v2043
      %v2070 = vpack.c.b16 %v2046, %v2045
      %v2071 = vpack.c.b16 %v2048, %v2047
      %v2072 = vpack.c.b16 %v2050, %v2049
      %v2073 = vpack.c.b16 %v2052, %v2051
      %v2074 = vpack.c.b16 %v2054, %v2053
      %v2075 = vpack.c.b16 %v2056, %v2055
      %v2076 = vpack.c.b16 %v2058, %v2057
      %v2077 = vpack.c.b16 %v2060, %v2059
      %v2078 = vpack.c.b16 %v2062, %v2061
      %v2080 = vsel %vm875, %v2063, 0
      %v2083 = vsel %vm875, %v2064, 0
      %v2086 = vsel %vm875, %v2065, 0
      %v2089 = vsel %vm875, %v2066, 0
      %v2092 = vsel %vm875, %v2067, 0
      %v2095 = vsel %vm875, %v2068, 0
      %v2098 = vsel %vm875, %v2069, 0
      %v2101 = vsel %vm875, %v2070, 0
      %v2104 = vsel %vm875, %v2071, 0
      %v2107 = vsel %vm875, %v2072, 0
      %v2110 = vsel %vm875, %v2073, 0
      %v2113 = vsel %vm875, %v2074, 0
      %v2116 = vsel %vm875, %v2075, 0
      %v2119 = vsel %vm875, %v2076, 0
      %v2122 = vsel %vm875, %v2077, 0
      %v2125 = vsel %vm875, %v2078, 0
      %v2128 = vsel %vm924, %v2030, 0
      %2130 = vmatprep.subr.bf16.mxu0 0
      %2131 = vmatpush1.bf16.msra.mxu0 %v2128
      %2132 = vmatprep.subr.bf16.mxu0 0
      %2133 = vmatpush1.bf16.msra.mxu0 0
      %2134 = vmatprep.subr.bf16.mxu0 0
      %2135 = vmatpush1.bf16.msra.mxu0 0
      %2136 = vmatprep.subr.bf16.mxu0 0
      %2137 = vmatpush1.bf16.msra.mxu0 0
      %2138 = vmatprep.subr.bf16.mxu0 0
      %2139 = vmatpush1.bf16.msra.mxu0 0
      %2140 = vmatprep.subr.bf16.mxu0 0
      %2141 = vmatpush1.bf16.msra.mxu0 0
      %2142 = vmatprep.subr.bf16.mxu0 0
      %2143 = vmatpush1.bf16.msra.mxu0 0
      %2144 = vmatprep.subr.bf16.mxu0 0
      %2145 = vmatpush1.bf16.msra.mxu0 0
      %2146 = vmatprep.subr.bf16.mxu0 0
      %2147 = vmatpush1.bf16.msra.mxu0 0
      %2148 = vmatprep.subr.bf16.mxu0 0
      %2149 = vmatpush1.bf16.msra.mxu0 0
      %2150 = vmatprep.subr.bf16.mxu0 0
      %2151 = vmatpush1.bf16.msra.mxu0 0
      %2152 = vmatprep.subr.bf16.mxu0 0
      %2153 = vmatpush1.bf16.msra.mxu0 0
      %2154 = vmatprep.subr.bf16.mxu0 0
      %2155 = vmatpush1.bf16.msra.mxu0 0
      %2156 = vmatprep.subr.bf16.mxu0 0
      %2157 = vmatpush1.bf16.msra.mxu0 0
      %2158 = vmatprep.subr.bf16.mxu0 0
      %2159 = vmatpush1.bf16.msra.mxu0 0
      %2160 = vmatprep.subr.bf16.mxu0 0
      %2161 = vmatpush1.bf16.msra.mxu0 0
      %2162 = vmatprep.mubr.bf16.mxu0 0
      %2163 = vmatmul.mubr.bf16.gmra.mrb[0].mxu0 %v2080
      %v2164 = vpop.f32.mrb[0].mxu0
      %v2165 = vadd.f32 0.0, %v2164
      %v2166 = vpop.f32.mrb[0].mxu0
      %v2167 = vpop.f32.mrb[0].mxu0
      %v2168 = vadd.f32 0.0, %v2167
      %v2169 = vpop.f32.mrb[0].mxu0
      %2170 = vmatprep.mubr.bf16.mxu0 0
      %2171 = vmatmul.mubr.bf16.gmra.mrb[0].mxu0 %v2083
      %v2172 = vpop.f32.mrb[0].mxu0
      %v2173 = vadd.f32 0.0, %v2172
      %v2174 = vpop.f32.mrb[0].mxu0
      %v2175 = vpop.f32.mrb[0].mxu0
      %v2176 = vadd.f32 0.0, %v2175
      %v2177 = vpop.f32.mrb[0].mxu0
      %2178 = vmatprep.mubr.bf16.mxu0 0
      %2179 = vmatmul.mubr.bf16.gmra.mrb[0].mxu0 %v2086
      %v2180 = vpop.f32.mrb[0].mxu0
      %v2181 = vadd.f32 0.0, %v2180
      %v2182 = vpop.f32.mrb[0].mxu0
      %v2183 = vpop.f32.mrb[0].mxu0
      %v2184 = vadd.f32 0.0, %v2183
      %v2185 = vpop.f32.mrb[0].mxu0
      %2186 = vmatprep.mubr.bf16.mxu0 0
      %2187 = vmatmul.mubr.bf16.gmra.mrb[0].mxu0 %v2089
      %v2188 = vpop.f32.mrb[0].mxu0
      %v2189 = vadd.f32 0.0, %v2188
      %v2190 = vpop.f32.mrb[0].mxu0
      %v2191 = vpop.f32.mrb[0].mxu0
      %v2192 = vadd.f32 0.0, %v2191
      %v2193 = vpop.f32.mrb[0].mxu0
      %2194 = vmatprep.mubr.bf16.mxu0 0
      %2195 = vmatmul.mubr.bf16.gmra.mrb[0].mxu0 %v2092
      %v2196 = vpop.f32.mrb[0].mxu0
      %v2197 = vadd.f32 0.0, %v2196
      %v2198 = vpop.f32.mrb[0].mxu0
      %v2199 = vpop.f32.mrb[0].mxu0
      %v2200 = vadd.f32 0.0, %v2199
      %v2201 = vpop.f32.mrb[0].mxu0
      %2202 = vmatprep.mubr.bf16.mxu0 0
      %2203 = vmatmul.mubr.bf16.gmra.mrb[0].mxu0 %v2095
      %v2204 = vpop.f32.mrb[0].mxu0
      %v2205 = vadd.f32 0.0, %v2204
      %v2206 = vpop.f32.mrb[0].mxu0
      %v2207 = vpop.f32.mrb[0].mxu0
      %v2208 = vadd.f32 0.0, %v2207
      %v2209 = vpop.f32.mrb[0].mxu0
      %2210 = vmatprep.mubr.bf16.mxu0 0
      %2211 = vmatmul.mubr.bf16.gmra.mrb[0].mxu0 %v2098
      %v2212 = vpop.f32.mrb[0].mxu0
      %v2213 = vadd.f32 0.0, %v2212
      %v2214 = vpop.f32.mrb[0].mxu0
      %v2215 = vpop.f32.mrb[0].mxu0
      %v2216 = vadd.f32 0.0, %v2215
      %v2217 = vpop.f32.mrb[0].mxu0
      %2218 = vmatprep.mubr.bf16.mxu0 0
      %2219 = vmatmul.mubr.bf16.gmra.mrb[0].mxu0 %v2101
      %v2220 = vpop.f32.mrb[0].mxu0
      %v2221 = vadd.f32 0.0, %v2220
      %v2222 = vpop.f32.mrb[0].mxu0
      %v2223 = vpop.f32.mrb[0].mxu0
      %v2224 = vadd.f32 0.0, %v2223
      %v2225 = vpop.f32.mrb[0].mxu0
      %2226 = vmatprep.mubr.bf16.mxu0 0
      %2227 = vmatmul.mubr.bf16.gmra.mrb[0].mxu0 %v2104
      %v2228 = vpop.f32.mrb[0].mxu0
      %v2229 = vadd.f32 0.0, %v2228
      %v2230 = vpop.f32.mrb[0].mxu0
      %v2231 = vpop.f32.mrb[0].mxu0
      %v2232 = vadd.f32 0.0, %v2231
      %v2233 = vpop.f32.mrb[0].mxu0
      %2234 = vmatprep.mubr.bf16.mxu0 0
      %2235 = vmatmul.mubr.bf16.gmra.mrb[0].mxu0 %v2107
      %v2236 = vpop.f32.mrb[0].mxu0
      %v2237 = vadd.f32 0.0, %v2236
      %v2238 = vpop.f32.mrb[0].mxu0
      %v2239 = vpop.f32.mrb[0].mxu0
      %v2240 = vadd.f32 0.0, %v2239
      %v2241 = vpop.f32.mrb[0].mxu0
      %2242 = vmatprep.mubr.bf16.mxu0 0
      %2243 = vmatmul.mubr.bf16.gmra.mrb[0].mxu0 %v2110
      %v2244 = vpop.f32.mrb[0].mxu0
      %v2245 = vadd.f32 0.0, %v2244
      %v2246 = vpop.f32.mrb[0].mxu0
      %v2247 = vpop.f32.mrb[0].mxu0
      %v2248 = vadd.f32 0.0, %v2247
      %v2249 = vpop.f32.mrb[0].mxu0
      %2250 = vmatprep.mubr.bf16.mxu0 0
      %2251 = vmatmul.mubr.bf16.gmra.mrb[0].mxu0 %v2113
      %v2252 = vpop.f32.mrb[0].mxu0
      %v2253 = vadd.f32 0.0, %v2252
      %v2254 = vpop.f32.mrb[0].mxu0
      %v2255 = vpop.f32.mrb[0].mxu0
      %v2256 = vadd.f32 0.0, %v2255
      %v2257 = vpop.f32.mrb[0].mxu0
      %2258 = vmatprep.mubr.bf16.mxu0 0
      %2259 = vmatmul.mubr.bf16.gmra.mrb[0].mxu0 %v2116
      %v2260 = vpop.f32.mrb[0].mxu0
      %v2261 = vadd.f32 0.0, %v2260
      %v2262 = vpop.f32.mrb[0].mxu0
      %v2263 = vpop.f32.mrb[0].mxu0
      %v2264 = vadd.f32 0.0, %v2263
      %v2265 = vpop.f32.mrb[0].mxu0
      %2266 = vmatprep.mubr.bf16.mxu0 0
      %2267 = vmatmul.mubr.bf16.gmra.mrb[0].mxu0 %v2119
      %v2268 = vpop.f32.mrb[0].mxu0
      %v2269 = vadd.f32 0.0, %v2268
      %v2270 = vpop.f32.mrb[0].mxu0
      %v2271 = vpop.f32.mrb[0].mxu0
      %v2272 = vadd.f32 0.0, %v2271
      %v2273 = vpop.f32.mrb[0].mxu0
      %2274 = vmatprep.mubr.bf16.mxu0 0
      %2275 = vmatmul.mubr.bf16.gmra.mrb[0].mxu0 %v2122
      %v2276 = vpop.f32.mrb[0].mxu0
      %v2277 = vadd.f32 0.0, %v2276
      %v2278 = vpop.f32.mrb[0].mxu0
      %v2279 = vpop.f32.mrb[0].mxu0
      %v2280 = vadd.f32 0.0, %v2279
      %v2281 = vpop.f32.mrb[0].mxu0
      %2282 = vmatprep.mubr.bf16.mxu0 0
      %2283 = vmatmul.mubr.bf16.gmra.mrb[0].mxu0 %v2125
      %v2284 = vpop.f32.mrb[0].mxu0
      %v2285 = vadd.f32 0.0, %v2284
      %v2286 = vpop.f32.mrb[0].mxu0
      %v2287 = vpop.f32.mrb[0].mxu0
      %v2288 = vadd.f32 0.0, %v2287
      %v2289 = vpop.f32.mrb[0].mxu0
      %2290 = vdwg.mxu0
      %v2291 = vadd.f32 %v1818, %v2165
      %v2292 = vadd.f32 %v1819, %v2168
      %v2293 = vadd.f32 %v1820, %v2173
      %v2294 = vadd.f32 %v1821, %v2176
      %v2295 = vadd.f32 %v1822, %v2181
      %v2296 = vadd.f32 %v1823, %v2184
      %v2297 = vadd.f32 %v1824, %v2189
      %v2298 = vadd.f32 %v1825, %v2192
      %v2299 = vadd.f32 %v1826, %v2197
      %v2300 = vadd.f32 %v1827, %v2200
      %v2301 = vadd.f32 %v1828, %v2205
      %v2302 = vadd.f32 %v1829, %v2208
      %v2303 = vadd.f32 %v1830, %v2213
      %v2304 = vadd.f32 %v1831, %v2216
      %v2305 = vadd.f32 %v1832, %v2221
      %v2306 = vadd.f32 %v1833, %v2224
      %v2307 = vadd.f32 %v1834, %v2229
      %v2308 = vadd.f32 %v1835, %v2232
      %v2309 = vadd.f32 %v1836, %v2237
      %v2310 = vadd.f32 %v1837, %v2240
      %v2311 = vadd.f32 %v1838, %v2245
      %v2312 = vadd.f32 %v1839, %v2248
      %v2313 = vadd.f32 %v1840, %v2253
      %v2314 = vadd.f32 %v1841, %v2256
      %v2315 = vadd.f32 %v1842, %v2261
      %v2316 = vadd.f32 %v1843, %v2264
      %v2317 = vadd.f32 %v1844, %v2269
      %v2318 = vadd.f32 %v1845, %v2272
      %v2319 = vadd.f32 %v1846, %v2277
      %v2320 = vadd.f32 %v1847, %v2280
      %v2321 = vadd.f32 %v1848, %v2285
      %v2322 = vadd.f32 %v1849, %v2288
      %v2323 = vld [vmem:[%s637] sm:$0xf]
      %v2324 = vld [vmem:[%s637 + $0x4] sm:$0xf]
      %v2325 = vld [vmem:[%s637 + $0xc] sm:$0xf]
      %v2326 = vld [vmem:[%s637 + $0x10] sm:$0xf]
      %v2327 = vld [vmem:[%s637 + $0x18] sm:$0xf]
      %v2328 = vld [vmem:[%s637 + $0x1c] sm:$0xf]
      %v2329 = vld [vmem:[%s637 + $0x24] sm:$0xf]
      %v2330 = vld [vmem:[%s637 + $0x28] sm:$0xf]
      %v2331 = vld [vmem:[%s637 + $0x30] sm:$0xf]
      %v2332 = vld [vmem:[%s637 + $0x34] sm:$0xf]
      %v2333 = vld [vmem:[%s637 + $0x3c] sm:$0xf]
      %v2334 = vld [vmem:[%s637 + $0x40] sm:$0xf]
      %v2335 = vld [vmem:[%s637 + $0x48] sm:$0xf]
      %v2336 = vld [vmem:[%s637 + $0x4c] sm:$0xf]
      %v2337 = vld [vmem:[%s637 + $0x54] sm:$0xf]
      %v2338 = vld [vmem:[%s637 + $0x58] sm:$0xf]
      %v2339 = vld [vmem:[%s637 + $0x60] sm:$0xf]
      %v2340 = vld [vmem:[%s637 + $0x64] sm:$0xf]
      %v2341 = vld [vmem:[%s637 + $0x6c] sm:$0xf]
      %v2342 = vld [vmem:[%s637 + $0x70] sm:$0xf]
      %v2343 = vld [vmem:[%s637 + $0x78] sm:$0xf]
      %v2344 = vld [vmem:[%s637 + $0x7c] sm:$0xf]
      %v2345 = vld [vmem:[%s637 + $0x84] sm:$0xf]
      %v2346 = vld [vmem:[%s637 + $0x88] sm:$0xf]
      %v2347 = vld [vmem:[%s637 + $0x90] sm:$0xf]
      %v2348 = vld [vmem:[%s637 + $0x94] sm:$0xf]
      %v2349 = vld [vmem:[%s637 + $0x9c] sm:$0xf]
      %v2350 = vld [vmem:[%s637 + $0xa0] sm:$0xf]
      %v2351 = vld [vmem:[%s637 + $0xa8] sm:$0xf]
      %v2352 = vld [vmem:[%s637 + $0xac] sm:$0xf]
      %v2353 = vld [vmem:[%s637 + $0xb4] sm:$0xf]
      %v2354 = vld [vmem:[%s637 + $0xb8] sm:$0xf]
      %s2355 = scalar_lea.vmem %s1, 6
      %v2356 = vld [vmem:[%s2355] sm:$0x3]
      %v2389 = vunpack.c.l.b16 %v2323
      %v2390 = vunpack.c.l.b16 %v2324
      %v2391 = vunpack.c.l.b16 %v2325
      %v2392 = vunpack.c.l.b16 %v2326
      %v2393 = vunpack.c.l.b16 %v2327
      %v2394 = vunpack.c.l.b16 %v2328
      %v2395 = vunpack.c.l.b16 %v2329
      %v2396 = vunpack.c.l.b16 %v2330
      %v2397 = vunpack.c.l.b16 %v2331
      %v2398 = vunpack.c.l.b16 %v2332
      %v2399 = vunpack.c.l.b16 %v2333
      %v2400 = vunpack.c.l.b16 %v2334
      %v2401 = vunpack.c.l.b16 %v2335
      %v2402 = vunpack.c.l.b16 %v2336
      %v2403 = vunpack.c.l.b16 %v2337
      %v2404 = vunpack.c.l.b16 %v2338
      %v2405 = vunpack.c.l.b16 %v2339
      %v2406 = vunpack.c.l.b16 %v2340
      %v2407 = vunpack.c.l.b16 %v2341
      %v2408 = vunpack.c.l.b16 %v2342
      %v2409 = vunpack.c.l.b16 %v2343
      %v2410 = vunpack.c.l.b16 %v2344
      %v2411 = vunpack.c.l.b16 %v2345
      %v2412 = vunpack.c.l.b16 %v2346
      %v2413 = vunpack.c.l.b16 %v2347
      %v2414 = vunpack.c.l.b16 %v2348
      %v2415 = vunpack.c.l.b16 %v2349
      %v2416 = vunpack.c.l.b16 %v2350
      %v2417 = vunpack.c.l.b16 %v2351
      %v2418 = vunpack.c.l.b16 %v2352
      %v2419 = vunpack.c.l.b16 %v2353
      %v2420 = vunpack.c.l.b16 %v2354
      %v2421 = vpack.c.b16 %v2390, %v2389
      %v2422 = vpack.c.b16 %v2392, %v2391
      %v2423 = vpack.c.b16 %v2394, %v2393
      %v2424 = vpack.c.b16 %v2396, %v2395
      %v2425 = vpack.c.b16 %v2398, %v2397
      %v2426 = vpack.c.b16 %v2400, %v2399
      %v2427 = vpack.c.b16 %v2402, %v2401
      %v2428 = vpack.c.b16 %v2404, %v2403
      %v2429 = vpack.c.b16 %v2406, %v2405
      %v2430 = vpack.c.b16 %v2408, %v2407
      %v2431 = vpack.c.b16 %v2410, %v2409
      %v2432 = vpack.c.b16 %v2412, %v2411
      %v2433 = vpack.c.b16 %v2414, %v2413
      %v2434 = vpack.c.b16 %v2416, %v2415
      %v2435 = vpack.c.b16 %v2418, %v2417
      %v2436 = vpack.c.b16 %v2420, %v2419
      %v2438 = vsel %vm875, %v2421, 0
      %v2441 = vsel %vm875, %v2422, 0
      %v2444 = vsel %vm875, %v2423, 0
      %v2447 = vsel %vm875, %v2424, 0
      %v2450 = vsel %vm875, %v2425, 0
      %v2453 = vsel %vm875, %v2426, 0
      %v2456 = vsel %vm875, %v2427, 0
      %v2459 = vsel %vm875, %v2428, 0
      %v2462 = vsel %vm875, %v2429, 0
      %v2465 = vsel %vm875, %v2430, 0
      %v2468 = vsel %vm875, %v2431, 0
      %v2471 = vsel %vm875, %v2432, 0
      %v2474 = vsel %vm875, %v2433, 0
      %v2477 = vsel %vm875, %v2434, 0
      %v2480 = vsel %vm875, %v2435, 0
      %v2483 = vsel %vm875, %v2436, 0
      %v2486 = vsel %vm924, %v2356, 0
      %2488 = vmatprep.subr.bf16.mxu0 0
      %2489 = vmatpush1.bf16.msra.mxu0 %v2486
      %2490 = vmatprep.subr.bf16.mxu0 0
      %2491 = vmatpush1.bf16.msra.mxu0 0
      %2492 = vmatprep.subr.bf16.mxu0 0
      %2493 = vmatpush1.bf16.msra.mxu0 0
      %2494 = vmatprep.subr.bf16.mxu0 0
      %2495 = vmatpush1.bf16.msra.mxu0 0
      %2496 = vmatprep.subr.bf16.mxu0 0
      %2497 = vmatpush1.bf16.msra.mxu0 0
      %2498 = vmatprep.subr.bf16.mxu0 0
      %2499 = vmatpush1.bf16.msra.mxu0 0
      %2500 = vmatprep.subr.bf16.mxu0 0
      %2501 = vmatpush1.bf16.msra.mxu0 0
      %2502 = vmatprep.subr.bf16.mxu0 0
      %2503 = vmatpush1.bf16.msra.mxu0 0
      %2504 = vmatprep.subr.bf16.mxu0 0
      %2505 = vmatpush1.bf16.msra.mxu0 0
      %2506 = vmatprep.subr.bf16.mxu0 0
      %2507 = vmatpush1.bf16.msra.mxu0 0
      %2508 = vmatprep.subr.bf16.mxu0 0
      %2509 = vmatpush1.bf16.msra.mxu0 0
      %2510 = vmatprep.subr.bf16.mxu0 0
      %2511 = vmatpush1.bf16.msra.mxu0 0
      %2512 = vmatprep.subr.bf16.mxu0 0
      %2513 = vmatpush1.bf16.msra.mxu0 0
      %2514 = vmatprep.subr.bf16.mxu0 0
      %2515 = vmatpush1.bf16.msra.mxu0 0
      %2516 = vmatprep.subr.bf16.mxu0 0
      %2517 = vmatpush1.bf16.msra.mxu0 0
      %2518 = vmatprep.subr.bf16.mxu0 0
      %2519 = vmatpush1.bf16.msra.mxu0 0
      %2520 = vmatprep.mubr.bf16.mxu0 0
      %2521 = vmatmul.mubr.bf16.gmra.mrb[0].mxu0 %v2438
      %v2522 = vpop.f32.mrb[0].mxu0
      %v2523 = vadd.f32 0.0, %v2522
      %v2524 = vpop.f32.mrb[0].mxu0
      %v2525 = vpop.f32.mrb[0].mxu0
      %v2526 = vadd.f32 0.0, %v2525
      %v2527 = vpop.f32.mrb[0].mxu0
      %2528 = vmatprep.mubr.bf16.mxu0 0
      %2529 = vmatmul.mubr.bf16.gmra.mrb[0].mxu0 %v2441
      %v2530 = vpop.f32.mrb[0].mxu0
      %v2531 = vadd.f32 0.0, %v2530
      %v2532 = vpop.f32.mrb[0].mxu0
      %v2533 = vpop.f32.mrb[0].mxu0
      %v2534 = vadd.f32 0.0, %v2533
      %v2535 = vpop.f32.mrb[0].mxu0
      %2536 = vmatprep.mubr.bf16.mxu0 0
      %2537 = vmatmul.mubr.bf16.gmra.mrb[0].mxu0 %v2444
      %v2538 = vpop.f32.mrb[0].mxu0
      %v2539 = vadd.f32 0.0, %v2538
      %v2540 = vpop.f32.mrb[0].mxu0
      %v2541 = vpop.f32.mrb[0].mxu0
      %v2542 = vadd.f32 0.0, %v2541
      %v2543 = vpop.f32.mrb[0].mxu0
      %2544 = vmatprep.mubr.bf16.mxu0 0
      %2545 = vmatmul.mubr.bf16.gmra.mrb[0].mxu0 %v2447
      %v2546 = vpop.f32.mrb[0].mxu0
      %v2547 = vadd.f32 0.0, %v2546
      %v2548 = vpop.f32.mrb[0].mxu0
      %v2549 = vpop.f32.mrb[0].mxu0
      %v2550 = vadd.f32 0.0, %v2549
      %v2551 = vpop.f32.mrb[0].mxu0
      %2552 = vmatprep.mubr.bf16.mxu0 0
      %2553 = vmatmul.mubr.bf16.gmra.mrb[0].mxu0 %v2450
      %v2554 = vpop.f32.mrb[0].mxu0
      %v2555 = vadd.f32 0.0, %v2554
      %v2556 = vpop.f32.mrb[0].mxu0
      %v2557 = vpop.f32.mrb[0].mxu0
      %v2558 = vadd.f32 0.0, %v2557
      %v2559 = vpop.f32.mrb[0].mxu0
      %2560 = vmatprep.mubr.bf16.mxu0 0
      %2561 = vmatmul.mubr.bf16.gmra.mrb[0].mxu0 %v2453
      %v2562 = vpop.f32.mrb[0].mxu0
      %v2563 = vadd.f32 0.0, %v2562
      %v2564 = vpop.f32.mrb[0].mxu0
      %v2565 = vpop.f32.mrb[0].mxu0
      %v2566 = vadd.f32 0.0, %v2565
      %v2567 = vpop.f32.mrb[0].mxu0
      %2568 = vmatprep.mubr.bf16.mxu0 0
      %2569 = vmatmul.mubr.bf16.gmra.mrb[0].mxu0 %v2456
      %v2570 = vpop.f32.mrb[0].mxu0
      %v2571 = vadd.f32 0.0, %v2570
      %v2572 = vpop.f32.mrb[0].mxu0
      %v2573 = vpop.f32.mrb[0].mxu0
      %v2574 = vadd.f32 0.0, %v2573
      %v2575 = vpop.f32.mrb[0].mxu0
      %2576 = vmatprep.mubr.bf16.mxu0 0
      %2577 = vmatmul.mubr.bf16.gmra.mrb[0].mxu0 %v2459
      %v2578 = vpop.f32.mrb[0].mxu0
      %v2579 = vadd.f32 0.0, %v2578
      %v2580 = vpop.f32.mrb[0].mxu0
      %v2581 = vpop.f32.mrb[0].mxu0
      %v2582 = vadd.f32 0.0, %v2581
      %v2583 = vpop.f32.mrb[0].mxu0
      %2584 = vmatprep.mubr.bf16.mxu0 0
      %2585 = vmatmul.mubr.bf16.gmra.mrb[0].mxu0 %v2462
      %v2586 = vpop.f32.mrb[0].mxu0
      %v2587 = vadd.f32 0.0, %v2586
      %v2588 = vpop.f32.mrb[0].mxu0
      %v2589 = vpop.f32.mrb[0].mxu0
      %v2590 = vadd.f32 0.0, %v2589
      %v2591 = vpop.f32.mrb[0].mxu0
      %2592 = vmatprep.mubr.bf16.mxu0 0
      %2593 = vmatmul.mubr.bf16.gmra.mrb[0].mxu0 %v2465
      %v2594 = vpop.f32.mrb[0].mxu0
      %v2595 = vadd.f32 0.0, %v2594
      %v2596 = vpop.f32.mrb[0].mxu0
      %v2597 = vpop.f32.mrb[0].mxu0
      %v2598 = vadd.f32 0.0, %v2597
      %v2599 = vpop.f32.mrb[0].mxu0
      %2600 = vmatprep.mubr.bf16.mxu0 0
      %2601 = vmatmul.mubr.bf16.gmra.mrb[0].mxu0 %v2468
      %v2602 = vpop.f32.mrb[0].mxu0
      %v2603 = vadd.f32 0.0, %v2602
      %v2604 = vpop.f32.mrb[0].mxu0
      %v2605 = vpop.f32.mrb[0].mxu0
      %v2606 = vadd.f32 0.0, %v2605
      %v2607 = vpop.f32.mrb[0].mxu0
      %2608 = vmatprep.mubr.bf16.mxu0 0
      %2609 = vmatmul.mubr.bf16.gmra.mrb[0].mxu0 %v2471
      %v2610 = vpop.f32.mrb[0].mxu0
      %v2611 = vadd.f32 0.0, %v2610
      %v2612 = vpop.f32.mrb[0].mxu0
      %v2613 = vpop.f32.mrb[0].mxu0
      %v2614 = vadd.f32 0.0, %v2613
      %v2615 = vpop.f32.mrb[0].mxu0
      %2616 = vmatprep.mubr.bf16.mxu0 0
      %2617 = vmatmul.mubr.bf16.gmra.mrb[0].mxu0 %v2474
      %v2618 = vpop.f32.mrb[0].mxu0
      %v2619 = vadd.f32 0.0, %v2618
      %v2620 = vpop.f32.mrb[0].mxu0
      %v2621 = vpop.f32.mrb[0].mxu0
      %v2622 = vadd.f32 0.0, %v2621
      %v2623 = vpop.f32.mrb[0].mxu0
      %2624 = vmatprep.mubr.bf16.mxu0 0
      %2625 = vmatmul.mubr.bf16.gmra.mrb[0].mxu0 %v2477
      %v2626 = vpop.f32.mrb[0].mxu0
      %v2627 = vadd.f32 0.0, %v2626
      %v2628 = vpop.f32.mrb[0].mxu0
      %v2629 = vpop.f32.mrb[0].mxu0
      %v2630 = vadd.f32 0.0, %v2629
      %v2631 = vpop.f32.mrb[0].mxu0
      %2632 = vmatprep.mubr.bf16.mxu0 0
      %2633 = vmatmul.mubr.bf16.gmra.mrb[0].mxu0 %v2480
      %v2634 = vpop.f32.mrb[0].mxu0
      %v2635 = vadd.f32 0.0, %v2634
      %v2636 = vpop.f32.mrb[0].mxu0
      %v2637 = vpop.f32.mrb[0].mxu0
      %v2638 = vadd.f32 0.0, %v2637
      %v2639 = vpop.f32.mrb[0].mxu0
      %2640 = vmatprep.mubr.bf16.mxu0 0
      %2641 = vmatmul.mubr.bf16.gmra.mrb[0].mxu0 %v2483
      %v2642 = vpop.f32.mrb[0].mxu0
      %v2643 = vadd.f32 0.0, %v2642
      %v2644 = vpop.f32.mrb[0].mxu0
      %v2645 = vpop.f32.mrb[0].mxu0
      %v2646 = vadd.f32 0.0, %v2645
      %v2647 = vpop.f32.mrb[0].mxu0
      %2648 = vdwg.mxu0
      %v2649 = vadd.f32 %v2291, %v2523
      %v2650 = vadd.f32 %v2292, %v2526
      %v2651 = vadd.f32 %v2293, %v2531
      %v2652 = vadd.f32 %v2294, %v2534
      %v2653 = vadd.f32 %v2295, %v2539
      %v2654 = vadd.f32 %v2296, %v2542
      %v2655 = vadd.f32 %v2297, %v2547
      %v2656 = vadd.f32 %v2298, %v2550
      %v2657 = vadd.f32 %v2299, %v2555
      %v2658 = vadd.f32 %v2300, %v2558
      %v2659 = vadd.f32 %v2301, %v2563
      %v2660 = vadd.f32 %v2302, %v2566
      %v2661 = vadd.f32 %v2303, %v2571
      %v2662 = vadd.f32 %v2304, %v2574
      %v2663 = vadd.f32 %v2305, %v2579
      %v2664 = vadd.f32 %v2306, %v2582
      %v2665 = vadd.f32 %v2307, %v2587
      %v2666 = vadd.f32 %v2308, %v2590
      %v2667 = vadd.f32 %v2309, %v2595
      %v2668 = vadd.f32 %v2310, %v2598
      %v2669 = vadd.f32 %v2311, %v2603
      %v2670 = vadd.f32 %v2312, %v2606
      %v2671 = vadd.f32 %v2313, %v2611
      %v2672 = vadd.f32 %v2314, %v2614
      %v2673 = vadd.f32 %v2315, %v2619
      %v2674 = vadd.f32 %v2316, %v2622
      %v2675 = vadd.f32 %v2317, %v2627
      %v2676 = vadd.f32 %v2318, %v2630
      %v2677 = vadd.f32 %v2319, %v2635
      %v2678 = vadd.f32 %v2320, %v2638
      %v2679 = vadd.f32 %v2321, %v2643
      %v2680 = vadd.f32 %v2322, %v2646
      %v2681 = vld [vmem:[%s637] sm:$0xf]
      %v2682 = vld [vmem:[%s637 + $0x4] sm:$0xf]
      %v2683 = vld [vmem:[%s637 + $0x8] sm:$0x1]
      %v2684 = vld [vmem:[%s637 + $0xc] sm:$0xf]
      %v2685 = vld [vmem:[%s637 + $0x10] sm:$0xf]
      %v2686 = vld [vmem:[%s637 + $0x14] sm:$0x1]
      %v2687 = vld [vmem:[%s637 + $0x18] sm:$0xf]
      %v2688 = vld [vmem:[%s637 + $0x1c] sm:$0xf]
      %v2689 = vld [vmem:[%s637 + $0x20] sm:$0x1]
      %v2690 = vld [vmem:[%s637 + $0x24] sm:$0xf]
      %v2691 = vld [vmem:[%s637 + $0x28] sm:$0xf]
      %v2692 = vld [vmem:[%s637 + $0x2c] sm:$0x1]
      %v2693 = vld [vmem:[%s637 + $0x30] sm:$0xf]
      %v2694 = vld [vmem:[%s637 + $0x34] sm:$0xf]
      %v2695 = vld [vmem:[%s637 + $0x38] sm:$0x1]
      %v2696 = vld [vmem:[%s637 + $0x3c] sm:$0xf]
      %v2697 = vld [vmem:[%s637 + $0x40] sm:$0xf]
      %v2698 = vld [vmem:[%s637 + $0x44] sm:$0x1]
      %v2699 = vld [vmem:[%s637 + $0x48] sm:$0xf]
      %v2700 = vld [vmem:[%s637 + $0x4c] sm:$0xf]
      %v2701 = vld [vmem:[%s637 + $0x50] sm:$0x1]
      %v2702 = vld [vmem:[%s637 + $0x54] sm:$0xf]
      %v2703 = vld [vmem:[%s637 + $0x58] sm:$0xf]
      %v2704 = vld [vmem:[%s637 + $0x5c] sm:$0x1]
      %v2705 = vld [vmem:[%s637 + $0x60] sm:$0xf]
      %v2706 = vld [vmem:[%s637 + $0x64] sm:$0xf]
      %v2707 = vld [vmem:[%s637 + $0x68] sm:$0x1]
      %v2708 = vld [vmem:[%s637 + $0x6c] sm:$0xf]
      %v2709 = vld [vmem:[%s637 + $0x70] sm:$0xf]
      %v2710 = vld [vmem:[%s637 + $0x74] sm:$0x1]
      %v2711 = vld [vmem:[%s637 + $0x78] sm:$0xf]
      %v2712 = vld [vmem:[%s637 + $0x7c] sm:$0xf]
      %v2713 = vld [vmem:[%s637 + $0x80] sm:$0x1]
      %v2714 = vld [vmem:[%s637 + $0x84] sm:$0xf]
      %v2715 = vld [vmem:[%s637 + $0x88] sm:$0xf]
      %v2716 = vld [vmem:[%s637 + $0x8c] sm:$0x1]
      %v2717 = vld [vmem:[%s637 + $0x90] sm:$0xf]
      %v2718 = vld [vmem:[%s637 + $0x94] sm:$0xf]
      %v2719 = vld [vmem:[%s637 + $0x98] sm:$0x1]
      %v2720 = vld [vmem:[%s637 + $0x9c] sm:$0xf]
      %v2721 = vld [vmem:[%s637 + $0xa0] sm:$0xf]
      %v2722 = vld [vmem:[%s637 + $0xa4] sm:$0x1]
      %v2723 = vld [vmem:[%s637 + $0xa8] sm:$0xf]
      %v2724 = vld [vmem:[%s637 + $0xac] sm:$0xf]
      %v2725 = vld [vmem:[%s637 + $0xb0] sm:$0x1]
      %v2726 = vld [vmem:[%s637 + $0xb4] sm:$0xf]
      %v2727 = vld [vmem:[%s637 + $0xb8] sm:$0xf]
      %v2728 = vld [vmem:[%s637 + $0xbc] sm:$0x1]
      %v2730 = vshrl.u32 %v2681, 16
      %v2732 = vrot.slane %v2730, 4
      %v2733 = vshll.u32 %v2681, 16
      %v2735 = vrot.slane %v2733, 5
      %v2736 = vor.u32 %v2732, %v2735
      %v2737 = vrot.slane %v2736, 4
      %v2739 = vshll.u32 %v2682, 16
      %v2741 = vrot.slane %v2739, 5
      %v2742 = vsel %vm1171, %v2737, %v2741
      %v2743 = vshrl.u32 %v2682, 16
      %v2745 = vrot.slane %v2743, 4
      %v2746 = vor.u32 %v2745, %v2741
      %v2747 = vrot.slane %v2746, 4
      %v2749 = vshll.u32 %v2683, 16
      %v2751 = vrot.slane %v2749, 5
      %v2752 = vsel %vm1171, %v2747, %v2751
      %v2754 = vshrl.u32 %v2684, 16
      %v2756 = vrot.slane %v2754, 4
      %v2757 = vshll.u32 %v2684, 16
      %v2759 = vrot.slane %v2757, 5
      %v2760 = vor.u32 %v2756, %v2759
      %v2761 = vrot.slane %v2760, 4
      %v2763 = vshll.u32 %v2685, 16
      %v2765 = vrot.slane %v2763, 5
      %v2766 = vsel %vm1171, %v2761, %v2765
      %v2767 = vshrl.u32 %v2685, 16
      %v2769 = vrot.slane %v2767, 4
      %v2770 = vor.u32 %v2769, %v2765
      %v2771 = vrot.slane %v2770, 4
      %v2773 = vshll.u32 %v2686, 16
      %v2775 = vrot.slane %v2773, 5
      %v2776 = vsel %vm1171, %v2771, %v2775
      %v2778 = vshrl.u32 %v2687, 16
      %v2780 = vrot.slane %v2778, 4
      %v2781 = vshll.u32 %v2687, 16
      %v2783 = vrot.slane %v2781, 5
      %v2784 = vor.u32 %v2780, %v2783
      %v2785 = vrot.slane %v2784, 4
      %v2787 = vshll.u32 %v2688, 16
      %v2789 = vrot.slane %v2787, 5
      %v2790 = vsel %vm1171, %v2785, %v2789
      %v2791 = vshrl.u32 %v2688, 16
      %v2793 = vrot.slane %v2791, 4
      %v2794 = vor.u32 %v2793, %v2789
      %v2795 = vrot.slane %v2794, 4
      %v2797 = vshll.u32 %v2689, 16
      %v2799 = vrot.slane %v2797, 5
      %v2800 = vsel %vm1171, %v2795, %v2799
      %v2802 = vshrl.u32 %v2690, 16
      %v2804 = vrot.slane %v2802, 4
      %v2805 = vshll.u32 %v2690, 16
      %v2807 = vrot.slane %v2805, 5
      %v2808 = vor.u32 %v2804, %v2807
      %v2809 = vrot.slane %v2808, 4
      %v2811 = vshll.u32 %v2691, 16
      %v2813 = vrot.slane %v2811, 5
      %v2814 = vsel %vm1171, %v2809, %v2813
      %v2815 = vshrl.u32 %v2691, 16
      %v2817 = vrot.slane %v2815, 4
      %v2818 = vor.u32 %v2817, %v2813
      %v2819 = vrot.slane %v2818, 4
      %v2821 = vshll.u32 %v2692, 16
      %v2823 = vrot.slane %v2821, 5
      %v2824 = vsel %vm1171, %v2819, %v2823
      %v2826 = vshrl.u32 %v2693, 16
      %v2828 = vrot.slane %v2826, 4
      %v2829 = vshll.u32 %v2693, 16
      %v2831 = vrot.slane %v2829, 5
      %v2832 = vor.u32 %v2828, %v2831
      %v2833 = vrot.slane %v2832, 4
      %v2835 = vshll.u32 %v2694, 16
      %v2837 = vrot.slane %v2835, 5
      %v2838 = vsel %vm1171, %v2833, %v2837
      %v2839 = vshrl.u32 %v2694, 16
      %v2841 = vrot.slane %v2839, 4
      %v2842 = vor.u32 %v2841, %v2837
      %v2843 = vrot.slane %v2842, 4
      %v2845 = vshll.u32 %v2695, 16
      %v2847 = vrot.slane %v2845, 5
      %v2848 = vsel %vm1171, %v2843, %v2847
      %v2850 = vshrl.u32 %v2696, 16
      %v2852 = vrot.slane %v2850, 4
      %v2853 = vshll.u32 %v2696, 16
      %v2855 = vrot.slane %v2853, 5
      %v2856 = vor.u32 %v2852, %v2855
      %v2857 = vrot.slane %v2856, 4
      %v2859 = vshll.u32 %v2697, 16
      %v2861 = vrot.slane %v2859, 5
      %v2862 = vsel %vm1171, %v2857, %v2861
      %v2863 = vshrl.u32 %v2697, 16
      %v2865 = vrot.slane %v2863, 4
      %v2866 = vor.u32 %v2865, %v2861
      %v2867 = vrot.slane %v2866, 4
      %v2869 = vshll.u32 %v2698, 16
      %v2871 = vrot.slane %v2869, 5
      %v2872 = vsel %vm1171, %v2867, %v2871
      %v2874 = vshrl.u32 %v2699, 16
      %v2876 = vrot.slane %v2874, 4
      %v2877 = vshll.u32 %v2699, 16
      %v2879 = vrot.slane %v2877, 5
      %v2880 = vor.u32 %v2876, %v2879
      %v2881 = vrot.slane %v2880, 4
      %v2883 = vshll.u32 %v2700, 16
      %v2885 = vrot.slane %v2883, 5
      %v2886 = vsel %vm1171, %v2881, %v2885
      %v2887 = vshrl.u32 %v2700, 16
      %v2889 = vrot.slane %v2887, 4
      %v2890 = vor.u32 %v2889, %v2885
      %v2891 = vrot.slane %v2890, 4
      %v2893 = vshll.u32 %v2701, 16
      %v2895 = vrot.slane %v2893, 5
      %v2896 = vsel %vm1171, %v2891, %v2895
      %v2898 = vshrl.u32 %v2702, 16
      %v2900 = vrot.slane %v2898, 4
      %v2901 = vshll.u32 %v2702, 16
      %v2903 = vrot.slane %v2901, 5
      %v2904 = vor.u32 %v2900, %v2903
      %v2905 = vrot.slane %v2904, 4
      %v2907 = vshll.u32 %v2703, 16
      %v2909 = vrot.slane %v2907, 5
      %v2910 = vsel %vm1171, %v2905, %v2909
      %v2911 = vshrl.u32 %v2703, 16
      %v2913 = vrot.slane %v2911, 4
      %v2914 = vor.u32 %v2913, %v2909
      %v2915 = vrot.slane %v2914, 4
      %v2917 = vshll.u32 %v2704, 16
      %v2919 = vrot.slane %v2917, 5
      %v2920 = vsel %vm1171, %v2915, %v2919
      %v2922 = vshrl.u32 %v2705, 16
      %v2924 = vrot.slane %v2922, 4
      %v2925 = vshll.u32 %v2705, 16
      %v2927 = vrot.slane %v2925, 5
      %v2928 = vor.u32 %v2924, %v2927
      %v2929 = vrot.slane %v2928, 4
      %v2931 = vshll.u32 %v2706, 16
      %v2933 = vrot.slane %v2931, 5
      %v2934 = vsel %vm1171, %v2929, %v2933
      %v2935 = vshrl.u32 %v2706, 16
      %v2937 = vrot.slane %v2935, 4
      %v2938 = vor.u32 %v2937, %v2933
      %v2939 = vrot.slane %v2938, 4
      %v2941 = vshll.u32 %v2707, 16
      %v2943 = vrot.slane %v2941, 5
      %v2944 = vsel %vm1171, %v2939, %v2943
      %v2946 = vshrl.u32 %v2708, 16
      %v2948 = vrot.slane %v2946, 4
      %v2949 = vshll.u32 %v2708, 16
      %v2951 = vrot.slane %v2949, 5
      %v2952 = vor.u32 %v2948, %v2951
      %v2953 = vrot.slane %v2952, 4
      %v2955 = vshll.u32 %v2709, 16
      %v2957 = vrot.slane %v2955, 5
      %v2958 = vsel %vm1171, %v2953, %v2957
      %v2959 = vshrl.u32 %v2709, 16
      %v2961 = vrot.slane %v2959, 4
      %v2962 = vor.u32 %v2961, %v2957
      %v2963 = vrot.slane %v2962, 4
      %v2965 = vshll.u32 %v2710, 16
      %v2967 = vrot.slane %v2965, 5
      %v2968 = vsel %vm1171, %v2963, %v2967
      %v2970 = vshrl.u32 %v2711, 16
      %v2972 = vrot.slane %v2970, 4
      %v2973 = vshll.u32 %v2711, 16
      %v2975 = vrot.slane %v2973, 5
      %v2976 = vor.u32 %v2972, %v2975
      %v2977 = vrot.slane %v2976, 4
      %v2979 = vshll.u32 %v2712, 16
      %v2981 = vrot.slane %v2979, 5
      %v2982 = vsel %vm1171, %v2977, %v2981
      %v2983 = vshrl.u32 %v2712, 16
      %v2985 = vrot.slane %v2983, 4
      %v2986 = vor.u32 %v2985, %v2981
      %v2987 = vrot.slane %v2986, 4
      %v2989 = vshll.u32 %v2713, 16
      %v2991 = vrot.slane %v2989, 5
      %v2992 = vsel %vm1171, %v2987, %v2991
      %v2994 = vshrl.u32 %v2714, 16
      %v2996 = vrot.slane %v2994, 4
      %v2997 = vshll.u32 %v2714, 16
      %v2999 = vrot.slane %v2997, 5
      %v3000 = vor.u32 %v2996, %v2999
      %v3001 = vrot.slane %v3000, 4
      %v3003 = vshll.u32 %v2715, 16
      %v3005 = vrot.slane %v3003, 5
      %v3006 = vsel %vm1171, %v3001, %v3005
      %v3007 = vshrl.u32 %v2715, 16
      %v3009 = vrot.slane %v3007, 4
      %v3010 = vor.u32 %v3009, %v3005
      %v3011 = vrot.slane %v3010, 4
      %v3013 = vshll.u32 %v2716, 16
      %v3015 = vrot.slane %v3013, 5
      %v3016 = vsel %vm1171, %v3011, %v3015
      %v3018 = vshrl.u32 %v2717, 16
      %v3020 = vrot.slane %v3018, 4
      %v3021 = vshll.u32 %v2717, 16
      %v3023 = vrot.slane %v3021, 5
      %v3024 = vor.u32 %v3020, %v3023
      %v3025 = vrot.slane %v3024, 4
      %v3027 = vshll.u32 %v2718, 16
      %v3029 = vrot.slane %v3027, 5
      %v3030 = vsel %vm1171, %v3025, %v3029
      %v3031 = vshrl.u32 %v2718, 16
      %v3033 = vrot.slane %v3031, 4
      %v3034 = vor.u32 %v3033, %v3029
      %v3035 = vrot.slane %v3034, 4
      %v3037 = vshll.u32 %v2719, 16
      %v3039 = vrot.slane %v3037, 5
      %v3040 = vsel %vm1171, %v3035, %v3039
      %v3042 = vshrl.u32 %v2720, 16
      %v3044 = vrot.slane %v3042, 4
      %v3045 = vshll.u32 %v2720, 16
      %v3047 = vrot.slane %v3045, 5
      %v3048 = vor.u32 %v3044, %v3047
      %v3049 = vrot.slane %v3048, 4
      %v3051 = vshll.u32 %v2721, 16
      %v3053 = vrot.slane %v3051, 5
      %v3054 = vsel %vm1171, %v3049, %v3053
      %v3055 = vshrl.u32 %v2721, 16
      %v3057 = vrot.slane %v3055, 4
      %v3058 = vor.u32 %v3057, %v3053
      %v3059 = vrot.slane %v3058, 4
      %v3061 = vshll.u32 %v2722, 16
      %v3063 = vrot.slane %v3061, 5
      %v3064 = vsel %vm1171, %v3059, %v3063
      %v3066 = vshrl.u32 %v2723, 16
      %v3068 = vrot.slane %v3066, 4
      %v3069 = vshll.u32 %v2723, 16
      %v3071 = vrot.slane %v3069, 5
      %v3072 = vor.u32 %v3068, %v3071
      %v3073 = vrot.slane %v3072, 4
      %v3075 = vshll.u32 %v2724, 16
      %v3077 = vrot.slane %v3075, 5
      %v3078 = vsel %vm1171, %v3073, %v3077
      %v3079 = vshrl.u32 %v2724, 16
      %v3081 = vrot.slane %v3079, 4
      %v3082 = vor.u32 %v3081, %v3077
      %v3083 = vrot.slane %v3082, 4
      %v3085 = vshll.u32 %v2725, 16
      %v3087 = vrot.slane %v3085, 5
      %v3088 = vsel %vm1171, %v3083, %v3087
      %v3090 = vshrl.u32 %v2726, 16
      %v3092 = vrot.slane %v3090, 4
      %v3093 = vshll.u32 %v2726, 16
      %v3095 = vrot.slane %v3093, 5
      %v3096 = vor.u32 %v3092, %v3095
      %v3097 = vrot.slane %v3096, 4
      %v3099 = vshll.u32 %v2727, 16
      %v3101 = vrot.slane %v3099, 5
      %v3102 = vsel %vm1171, %v3097, %v3101
      %v3103 = vshrl.u32 %v2727, 16
      %v3105 = vrot.slane %v3103, 4
      %v3106 = vor.u32 %v3105, %v3101
      %v3107 = vrot.slane %v3106, 4
      %v3109 = vshll.u32 %v2728, 16
      %v3111 = vrot.slane %v3109, 5
      %v3112 = vsel %vm1171, %v3107, %v3111
      %s3113 = scalar_lea.vmem %s1, 8
      %v3114 = vld [vmem:[%s3113] sm:$0x3]
      %v3115 = vunpack.c.l.b16 %v2742
      %v3116 = vunpack.c.l.b16 %v2752
      %v3117 = vunpack.c.l.b16 %v2766
      %v3118 = vunpack.c.l.b16 %v2776
      %v3119 = vunpack.c.l.b16 %v2790
      %v3120 = vunpack.c.l.b16 %v2800
      %v3121 = vunpack.c.l.b16 %v2814
      %v3122 = vunpack.c.l.b16 %v2824
      %v3123 = vunpack.c.l.b16 %v2838
      %v3124 = vunpack.c.l.b16 %v2848
      %v3125 = vunpack.c.l.b16 %v2862
      %v3126 = vunpack.c.l.b16 %v2872
      %v3127 = vunpack.c.l.b16 %v2886
      %v3128 = vunpack.c.l.b16 %v2896
      %v3129 = vunpack.c.l.b16 %v2910
      %v3130 = vunpack.c.l.b16 %v2920
      %v3131 = vunpack.c.l.b16 %v2934
      %v3132 = vunpack.c.l.b16 %v2944
      %v3133 = vunpack.c.l.b16 %v2958
      %v3134 = vunpack.c.l.b16 %v2968
      %v3135 = vunpack.c.l.b16 %v2982
      %v3136 = vunpack.c.l.b16 %v2992
      %v3137 = vunpack.c.l.b16 %v3006
      %v3138 = vunpack.c.l.b16 %v3016
      %v3139 = vunpack.c.l.b16 %v3030
      %v3140 = vunpack.c.l.b16 %v3040
      %v3141 = vunpack.c.l.b16 %v3054
      %v3142 = vunpack.c.l.b16 %v3064
      %v3143 = vunpack.c.l.b16 %v3078
      %v3144 = vunpack.c.l.b16 %v3088
      %v3145 = vunpack.c.l.b16 %v3102
      %v3146 = vunpack.c.l.b16 %v3112
      %v3147 = vpack.c.b16 %v3116, %v3115
      %v3148 = vpack.c.b16 %v3118, %v3117
      %v3149 = vpack.c.b16 %v3120, %v3119
      %v3150 = vpack.c.b16 %v3122, %v3121
      %v3151 = vpack.c.b16 %v3124, %v3123
      %v3152 = vpack.c.b16 %v3126, %v3125
      %v3153 = vpack.c.b16 %v3128, %v3127
      %v3154 = vpack.c.b16 %v3130, %v3129
      %v3155 = vpack.c.b16 %v3132, %v3131
      %v3156 = vpack.c.b16 %v3134, %v3133
      %v3157 = vpack.c.b16 %v3136, %v3135
      %v3158 = vpack.c.b16 %v3138, %v3137
      %v3159 = vpack.c.b16 %v3140, %v3139
      %v3160 = vpack.c.b16 %v3142, %v3141
      %v3161 = vpack.c.b16 %v3144, %v3143
      %v3162 = vpack.c.b16 %v3146, %v3145
      %v3164 = vsel %vm875, %v3147, 0
      %v3167 = vsel %vm875, %v3148, 0
      %v3170 = vsel %vm875, %v3149, 0
      %v3173 = vsel %vm875, %v3150, 0
      %v3176 = vsel %vm875, %v3151, 0
      %v3179 = vsel %vm875, %v3152, 0
      %v3182 = vsel %vm875, %v3153, 0
      %v3185 = vsel %vm875, %v3154, 0
      %v3188 = vsel %vm875, %v3155, 0
      %v3191 = vsel %vm875, %v3156, 0
      %v3194 = vsel %vm875, %v3157, 0
      %v3197 = vsel %vm875, %v3158, 0
      %v3200 = vsel %vm875, %v3159, 0
      %v3203 = vsel %vm875, %v3160, 0
      %v3206 = vsel %vm875, %v3161, 0
      %v3209 = vsel %vm875, %v3162, 0
      %v3212 = vsel %vm924, %v3114, 0
      %3214 = vmatprep.subr.bf16.mxu0 0
      %3215 = vmatpush1.bf16.msra.mxu0 %v3212
      %3216 = vmatprep.subr.bf16.mxu0 0
      %3217 = vmatpush1.bf16.msra.mxu0 0
      %3218 = vmatprep.subr.bf16.mxu0 0
      %3219 = vmatpush1.bf16.msra.mxu0 0
      %3220 = vmatprep.subr.bf16.mxu0 0
      %3221 = vmatpush1.bf16.msra.mxu0 0
      %3222 = vmatprep.subr.bf16.mxu0 0
      %3223 = vmatpush1.bf16.msra.mxu0 0
      %3224 = vmatprep.subr.bf16.mxu0 0
      %3225 = vmatpush1.bf16.msra.mxu0 0
      %3226 = vmatprep.subr.bf16.mxu0 0
      %3227 = vmatpush1.bf16.msra.mxu0 0
      %3228 = vmatprep.subr.bf16.mxu0 0
      %3229 = vmatpush1.bf16.msra.mxu0 0
      %3230 = vmatprep.subr.bf16.mxu0 0
      %3231 = vmatpush1.bf16.msra.mxu0 0
      %3232 = vmatprep.subr.bf16.mxu0 0
      %3233 = vmatpush1.bf16.msra.mxu0 0
      %3234 = vmatprep.subr.bf16.mxu0 0
      %3235 = vmatpush1.bf16.msra.mxu0 0
      %3236 = vmatprep.subr.bf16.mxu0 0
      %3237 = vmatpush1.bf16.msra.mxu0 0
      %3238 = vmatprep.subr.bf16.mxu0 0
      %3239 = vmatpush1.bf16.msra.mxu0 0
      %3240 = vmatprep.subr.bf16.mxu0 0
      %3241 = vmatpush1.bf16.msra.mxu0 0
      %3242 = vmatprep.subr.bf16.mxu0 0
      %3243 = vmatpush1.bf16.msra.mxu0 0
      %3244 = vmatprep.subr.bf16.mxu0 0
      %3245 = vmatpush1.bf16.msra.mxu0 0
      %3246 = vmatprep.mubr.bf16.mxu0 0
      %3247 = vmatmul.mubr.bf16.gmra.mrb[0].mxu0 %v3164
      %v3248 = vpop.f32.mrb[0].mxu0
      %v3249 = vadd.f32 0.0, %v3248
      %v3250 = vpop.f32.mrb[0].mxu0
      %v3251 = vpop.f32.mrb[0].mxu0
      %v3252 = vadd.f32 0.0, %v3251
      %v3253 = vpop.f32.mrb[0].mxu0
      %3254 = vmatprep.mubr.bf16.mxu0 0
      %3255 = vmatmul.mubr.bf16.gmra.mrb[0].mxu0 %v3167
      %v3256 = vpop.f32.mrb[0].mxu0
      %v3257 = vadd.f32 0.0, %v3256
      %v3258 = vpop.f32.mrb[0].mxu0
      %v3259 = vpop.f32.mrb[0].mxu0
      %v3260 = vadd.f32 0.0, %v3259
      %v3261 = vpop.f32.mrb[0].mxu0
      %3262 = vmatprep.mubr.bf16.mxu0 0
      %3263 = vmatmul.mubr.bf16.gmra.mrb[0].mxu0 %v3170
      %v3264 = vpop.f32.mrb[0].mxu0
      %v3265 = vadd.f32 0.0, %v3264
      %v3266 = vpop.f32.mrb[0].mxu0
      %v3267 = vpop.f32.mrb[0].mxu0
      %v3268 = vadd.f32 0.0, %v3267
      %v3269 = vpop.f32.mrb[0].mxu0
      %3270 = vmatprep.mubr.bf16.mxu0 0
      %3271 = vmatmul.mubr.bf16.gmra.mrb[0].mxu0 %v3173
      %v3272 = vpop.f32.mrb[0].mxu0
      %v3273 = vadd.f32 0.0, %v3272
      %v3274 = vpop.f32.mrb[0].mxu0
      %v3275 = vpop.f32.mrb[0].mxu0
      %v3276 = vadd.f32 0.0, %v3275
      %v3277 = vpop.f32.mrb[0].mxu0
      %3278 = vmatprep.mubr.bf16.mxu0 0
      %3279 = vmatmul.mubr.bf16.gmra.mrb[0].mxu0 %v3176
      %v3280 = vpop.f32.mrb[0].mxu0
      %v3281 = vadd.f32 0.0, %v3280
      %v3282 = vpop.f32.mrb[0].mxu0
      %v3283 = vpop.f32.mrb[0].mxu0
      %v3284 = vadd.f32 0.0, %v3283
      %v3285 = vpop.f32.mrb[0].mxu0
      %3286 = vmatprep.mubr.bf16.mxu0 0
      %3287 = vmatmul.mubr.bf16.gmra.mrb[0].mxu0 %v3179
      %v3288 = vpop.f32.mrb[0].mxu0
      %v3289 = vadd.f32 0.0, %v3288
      %v3290 = vpop.f32.mrb[0].mxu0
      %v3291 = vpop.f32.mrb[0].mxu0
      %v3292 = vadd.f32 0.0, %v3291
      %v3293 = vpop.f32.mrb[0].mxu0
      %3294 = vmatprep.mubr.bf16.mxu0 0
      %3295 = vmatmul.mubr.bf16.gmra.mrb[0].mxu0 %v3182
      %v3296 = vpop.f32.mrb[0].mxu0
      %v3297 = vadd.f32 0.0, %v3296
      %v3298 = vpop.f32.mrb[0].mxu0
      %v3299 = vpop.f32.mrb[0].mxu0
      %v3300 = vadd.f32 0.0, %v3299
      %v3301 = vpop.f32.mrb[0].mxu0
      %3302 = vmatprep.mubr.bf16.mxu0 0
      %3303 = vmatmul.mubr.bf16.gmra.mrb[0].mxu0 %v3185
      %v3304 = vpop.f32.mrb[0].mxu0
      %v3305 = vadd.f32 0.0, %v3304
      %v3306 = vpop.f32.mrb[0].mxu0
      %v3307 = vpop.f32.mrb[0].mxu0
      %v3308 = vadd.f32 0.0, %v3307
      %v3309 = vpop.f32.mrb[0].mxu0
      %3310 = vmatprep.mubr.bf16.mxu0 0
      %3311 = vmatmul.mubr.bf16.gmra.mrb[0].mxu0 %v3188
      %v3312 = vpop.f32.mrb[0].mxu0
      %v3313 = vadd.f32 0.0, %v3312
      %v3314 = vpop.f32.mrb[0].mxu0
      %v3315 = vpop.f32.mrb[0].mxu0
      %v3316 = vadd.f32 0.0, %v3315
      %v3317 = vpop.f32.mrb[0].mxu0
      %3318 = vmatprep.mubr.bf16.mxu0 0
      %3319 = vmatmul.mubr.bf16.gmra.mrb[0].mxu0 %v3191
      %v3320 = vpop.f32.mrb[0].mxu0
      %v3321 = vadd.f32 0.0, %v3320
      %v3322 = vpop.f32.mrb[0].mxu0
      %v3323 = vpop.f32.mrb[0].mxu0
      %v3324 = vadd.f32 0.0, %v3323
      %v3325 = vpop.f32.mrb[0].mxu0
      %3326 = vmatprep.mubr.bf16.mxu0 0
      %3327 = vmatmul.mubr.bf16.gmra.mrb[0].mxu0 %v3194
      %v3328 = vpop.f32.mrb[0].mxu0
      %v3329 = vadd.f32 0.0, %v3328
      %v3330 = vpop.f32.mrb[0].mxu0
      %v3331 = vpop.f32.mrb[0].mxu0
      %v3332 = vadd.f32 0.0, %v3331
      %v3333 = vpop.f32.mrb[0].mxu0
      %3334 = vmatprep.mubr.bf16.mxu0 0
      %3335 = vmatmul.mubr.bf16.gmra.mrb[0].mxu0 %v3197
      %v3336 = vpop.f32.mrb[0].mxu0
      %v3337 = vadd.f32 0.0, %v3336
      %v3338 = vpop.f32.mrb[0].mxu0
      %v3339 = vpop.f32.mrb[0].mxu0
      %v3340 = vadd.f32 0.0, %v3339
      %v3341 = vpop.f32.mrb[0].mxu0
      %3342 = vmatprep.mubr.bf16.mxu0 0
      %3343 = vmatmul.mubr.bf16.gmra.mrb[0].mxu0 %v3200
      %v3344 = vpop.f32.mrb[0].mxu0
      %v3345 = vadd.f32 0.0, %v3344
      %v3346 = vpop.f32.mrb[0].mxu0
      %v3347 = vpop.f32.mrb[0].mxu0
      %v3348 = vadd.f32 0.0, %v3347
      %v3349 = vpop.f32.mrb[0].mxu0
      %3350 = vmatprep.mubr.bf16.mxu0 0
      %3351 = vmatmul.mubr.bf16.gmra.mrb[0].mxu0 %v3203
      %v3352 = vpop.f32.mrb[0].mxu0
      %v3353 = vadd.f32 0.0, %v3352
      %v3354 = vpop.f32.mrb[0].mxu0
      %v3355 = vpop.f32.mrb[0].mxu0
      %v3356 = vadd.f32 0.0, %v3355
      %v3357 = vpop.f32.mrb[0].mxu0
      %3358 = vmatprep.mubr.bf16.mxu0 0
      %3359 = vmatmul.mubr.bf16.gmra.mrb[0].mxu0 %v3206
      %v3360 = vpop.f32.mrb[0].mxu0
      %v3361 = vadd.f32 0.0, %v3360
      %v3362 = vpop.f32.mrb[0].mxu0
      %v3363 = vpop.f32.mrb[0].mxu0
      %v3364 = vadd.f32 0.0, %v3363
      %v3365 = vpop.f32.mrb[0].mxu0
      %3366 = vmatprep.mubr.bf16.mxu0 0
      %3367 = vmatmul.mubr.bf16.gmra.mrb[0].mxu0 %v3209
      %v3368 = vpop.f32.mrb[0].mxu0
      %v3369 = vadd.f32 0.0, %v3368
      %v3370 = vpop.f32.mrb[0].mxu0
      %v3371 = vpop.f32.mrb[0].mxu0
      %v3372 = vadd.f32 0.0, %v3371
      %v3373 = vpop.f32.mrb[0].mxu0
      %3374 = vdwg.mxu0
      %v3375 = vadd.f32 %v2649, %v3249
      %v3376 = vadd.f32 %v2650, %v3252
      %v3377 = vadd.f32 %v2651, %v3257
      %v3378 = vadd.f32 %v2652, %v3260
      %v3379 = vadd.f32 %v2653, %v3265
      %v3380 = vadd.f32 %v2654, %v3268
      %v3381 = vadd.f32 %v2655, %v3273
      %v3382 = vadd.f32 %v2656, %v3276
      %v3383 = vadd.f32 %v2657, %v3281
      %v3384 = vadd.f32 %v2658, %v3284
      %v3385 = vadd.f32 %v2659, %v3289
      %v3386 = vadd.f32 %v2660, %v3292
      %v3387 = vadd.f32 %v2661, %v3297
      %v3388 = vadd.f32 %v2662, %v3300
      %v3389 = vadd.f32 %v2663, %v3305
      %v3390 = vadd.f32 %v2664, %v3308
      %v3391 = vadd.f32 %v2665, %v3313
      %v3392 = vadd.f32 %v2666, %v3316
      %v3393 = vadd.f32 %v2667, %v3321
      %v3394 = vadd.f32 %v2668, %v3324
      %v3395 = vadd.f32 %v2669, %v3329
      %v3396 = vadd.f32 %v2670, %v3332
      %v3397 = vadd.f32 %v2671, %v3337
      %v3398 = vadd.f32 %v2672, %v3340
      %v3399 = vadd.f32 %v2673, %v3345
      %v3400 = vadd.f32 %v2674, %v3348
      %v3401 = vadd.f32 %v2675, %v3353
      %v3402 = vadd.f32 %v2676, %v3356
      %v3403 = vadd.f32 %v2677, %v3361
      %v3404 = vadd.f32 %v2678, %v3364
      %v3405 = vadd.f32 %v2679, %v3369
      %v3406 = vadd.f32 %v2680, %v3372
      %v3407 = vld [vmem:[%s637] sm:$0xe]
      %v3408 = vld [vmem:[%s637 + $0xc] sm:$0xe]
      %v3409 = vld [vmem:[%s637 + $0x18] sm:$0xe]
      %v3410 = vld [vmem:[%s637 + $0x24] sm:$0xe]
      %v3411 = vld [vmem:[%s637 + $0x30] sm:$0xe]
      %v3412 = vld [vmem:[%s637 + $0x3c] sm:$0xe]
      %v3413 = vld [vmem:[%s637 + $0x48] sm:$0xe]
      %v3414 = vld [vmem:[%s637 + $0x54] sm:$0xe]
      %v3415 = vld [vmem:[%s637 + $0x60] sm:$0xe]
      %v3416 = vld [vmem:[%s637 + $0x6c] sm:$0xe]
      %v3417 = vld [vmem:[%s637 + $0x78] sm:$0xe]
      %v3418 = vld [vmem:[%s637 + $0x84] sm:$0xe]
      %v3419 = vld [vmem:[%s637 + $0x90] sm:$0xe]
      %v3420 = vld [vmem:[%s637 + $0x9c] sm:$0xe]
      %v3421 = vld [vmem:[%s637 + $0xa8] sm:$0xe]
      %v3422 = vld [vmem:[%s637 + $0xb4] sm:$0xe]
      %v3471 = vrot.slane %v3407, 5
      %v3472 = vrot.slane %v3471, 4
      %v3473 = vrot.slane %v2682, 5
      %v3474 = vsel %vm1916, %v3472, %v3473
      %v3475 = vrot.slane %v3473, 4
      %v3476 = vrot.slane %v2683, 5
      %v3477 = vsel %vm1916, %v3475, %v3476
      %v3478 = vrot.slane %v3408, 5
      %v3479 = vrot.slane %v3478, 4
      %v3480 = vrot.slane %v2685, 5
      %v3481 = vsel %vm1916, %v3479, %v3480
      %v3482 = vrot.slane %v3480, 4
      %v3483 = vrot.slane %v2686, 5
      %v3484 = vsel %vm1916, %v3482, %v3483
      %v3485 = vrot.slane %v3409, 5
      %v3486 = vrot.slane %v3485, 4
      %v3487 = vrot.slane %v2688, 5
      %v3488 = vsel %vm1916, %v3486, %v3487
      %v3489 = vrot.slane %v3487, 4
      %v3490 = vrot.slane %v2689, 5
      %v3491 = vsel %vm1916, %v3489, %v3490
      %v3492 = vrot.slane %v3410, 5
      %v3493 = vrot.slane %v3492, 4
      %v3494 = vrot.slane %v2691, 5
      %v3495 = vsel %vm1916, %v3493, %v3494
      %v3496 = vrot.slane %v3494, 4
      %v3497 = vrot.slane %v2692, 5
      %v3498 = vsel %vm1916, %v3496, %v3497
      %v3499 = vrot.slane %v3411, 5
      %v3500 = vrot.slane %v3499, 4
      %v3501 = vrot.slane %v2694, 5
      %v3502 = vsel %vm1916, %v3500, %v3501
      %v3503 = vrot.slane %v3501, 4
      %v3504 = vrot.slane %v2695, 5
      %v3505 = vsel %vm1916, %v3503, %v3504
      %v3506 = vrot.slane %v3412, 5
      %v3507 = vrot.slane %v3506, 4
      %v3508 = vrot.slane %v2697, 5
      %v3509 = vsel %vm1916, %v3507, %v3508
      %v3510 = vrot.slane %v3508, 4
      %v3511 = vrot.slane %v2698, 5
      %v3512 = vsel %vm1916, %v3510, %v3511
      %v3513 = vrot.slane %v3413, 5
      %v3514 = vrot.slane %v3513, 4
      %v3515 = vrot.slane %v2700, 5
      %v3516 = vsel %vm1916, %v3514, %v3515
      %v3517 = vrot.slane %v3515, 4
      %v3518 = vrot.slane %v2701, 5
      %v3519 = vsel %vm1916, %v3517, %v3518
      %v3520 = vrot.slane %v3414, 5
      %v3521 = vrot.slane %v3520, 4
      %v3522 = vrot.slane %v2703, 5
      %v3523 = vsel %vm1916, %v3521, %v3522
      %v3524 = vrot.slane %v3522, 4
      %v3525 = vrot.slane %v2704, 5
      %v3526 = vsel %vm1916, %v3524, %v3525
      %v3527 = vrot.slane %v3415, 5
      %v3528 = vrot.slane %v3527, 4
      %v3529 = vrot.slane %v2706, 5
      %v3530 = vsel %vm1916, %v3528, %v3529
      %v3531 = vrot.slane %v3529, 4
      %v3532 = vrot.slane %v2707, 5
      %v3533 = vsel %vm1916, %v3531, %v3532
      %v3534 = vrot.slane %v3416, 5
      %v3535 = vrot.slane %v3534, 4
      %v3536 = vrot.slane %v2709, 5
      %v3537 = vsel %vm1916, %v3535, %v3536
      %v3538 = vrot.slane %v3536, 4
      %v3539 = vrot.slane %v2710, 5
      %v3540 = vsel %vm1916, %v3538, %v3539
      %v3541 = vrot.slane %v3417, 5
      %v3542 = vrot.slane %v3541, 4
      %v3543 = vrot.slane %v2712, 5
      %v3544 = vsel %vm1916, %v3542, %v3543
      %v3545 = vrot.slane %v3543, 4
      %v3546 = vrot.slane %v2713, 5
      %v3547 = vsel %vm1916, %v3545, %v3546
      %v3548 = vrot.slane %v3418, 5
      %v3549 = vrot.slane %v3548, 4
      %v3550 = vrot.slane %v2715, 5
      %v3551 = vsel %vm1916, %v3549, %v3550
      %v3552 = vrot.slane %v3550, 4
      %v3553 = vrot.slane %v2716, 5
      %v3554 = vsel %vm1916, %v3552, %v3553
      %v3555 = vrot.slane %v3419, 5
      %v3556 = vrot.slane %v3555, 4
      %v3557 = vrot.slane %v2718, 5
      %v3558 = vsel %vm1916, %v3556, %v3557
      %v3559 = vrot.slane %v3557, 4
      %v3560 = vrot.slane %v2719, 5
      %v3561 = vsel %vm1916, %v3559, %v3560
      %v3562 = vrot.slane %v3420, 5
      %v3563 = vrot.slane %v3562, 4
      %v3564 = vrot.slane %v2721, 5
      %v3565 = vsel %vm1916, %v3563, %v3564
      %v3566 = vrot.slane %v3564, 4
      %v3567 = vrot.slane %v2722, 5
      %v3568 = vsel %vm1916, %v3566, %v3567
      %v3569 = vrot.slane %v3421, 5
      %v3570 = vrot.slane %v3569, 4
      %v3571 = vrot.slane %v2724, 5
      %v3572 = vsel %vm1916, %v3570, %v3571
      %v3573 = vrot.slane %v3571, 4
      %v3574 = vrot.slane %v2725, 5
      %v3575 = vsel %vm1916, %v3573, %v3574
      %v3576 = vrot.slane %v3422, 5
      %v3577 = vrot.slane %v3576, 4
      %v3578 = vrot.slane %v2727, 5
      %v3579 = vsel %vm1916, %v3577, %v3578
      %v3580 = vrot.slane %v3578, 4
      %v3581 = vrot.slane %v2728, 5
      %v3582 = vsel %vm1916, %v3580, %v3581
      %s3583 = scalar_lea.vmem %s1, 10
      %v3584 = vld [vmem:[%s3583] sm:$0x3]
      %v3585 = vunpack.c.l.b16 %v3474
      %v3586 = vunpack.c.l.b16 %v3477
      %v3587 = vunpack.c.l.b16 %v3481
      %v3588 = vunpack.c.l.b16 %v3484
      %v3589 = vunpack.c.l.b16 %v3488
      %v3590 = vunpack.c.l.b16 %v3491
      %v3591 = vunpack.c.l.b16 %v3495
      %v3592 = vunpack.c.l.b16 %v3498
      %v3593 = vunpack.c.l.b16 %v3502
      %v3594 = vunpack.c.l.b16 %v3505
      %v3595 = vunpack.c.l.b16 %v3509
      %v3596 = vunpack.c.l.b16 %v3512
      %v3597 = vunpack.c.l.b16 %v3516
      %v3598 = vunpack.c.l.b16 %v3519
      %v3599 = vunpack.c.l.b16 %v3523
      %v3600 = vunpack.c.l.b16 %v3526
      %v3601 = vunpack.c.l.b16 %v3530
      %v3602 = vunpack.c.l.b16 %v3533
      %v3603 = vunpack.c.l.b16 %v3537
      %v3604 = vunpack.c.l.b16 %v3540
      %v3605 = vunpack.c.l.b16 %v3544
      %v3606 = vunpack.c.l.b16 %v3547
      %v3607 = vunpack.c.l.b16 %v3551
      %v3608 = vunpack.c.l.b16 %v3554
      %v3609 = vunpack.c.l.b16 %v3558
      %v3610 = vunpack.c.l.b16 %v3561
      %v3611 = vunpack.c.l.b16 %v3565
      %v3612 = vunpack.c.l.b16 %v3568
      %v3613 = vunpack.c.l.b16 %v3572
      %v3614 = vunpack.c.l.b16 %v3575
      %v3615 = vunpack.c.l.b16 %v3579
      %v3616 = vunpack.c.l.b16 %v3582
      %v3617 = vpack.c.b16 %v3586, %v3585
      %v3618 = vpack.c.b16 %v3588, %v3587
      %v3619 = vpack.c.b16 %v3590, %v3589
      %v3620 = vpack.c.b16 %v3592, %v3591
      %v3621 = vpack.c.b16 %v3594, %v3593
      %v3622 = vpack.c.b16 %v3596, %v3595
      %v3623 = vpack.c.b16 %v3598, %v3597
      %v3624 = vpack.c.b16 %v3600, %v3599
      %v3625 = vpack.c.b16 %v3602, %v3601
      %v3626 = vpack.c.b16 %v3604, %v3603
      %v3627 = vpack.c.b16 %v3606, %v3605
      %v3628 = vpack.c.b16 %v3608, %v3607
      %v3629 = vpack.c.b16 %v3610, %v3609
      %v3630 = vpack.c.b16 %v3612, %v3611
      %v3631 = vpack.c.b16 %v3614, %v3613
      %v3632 = vpack.c.b16 %v3616, %v3615
      %v3634 = vsel %vm875, %v3617, 0
      %v3637 = vsel %vm875, %v3618, 0
      %v3640 = vsel %vm875, %v3619, 0
      %v3643 = vsel %vm875, %v3620, 0
      %v3646 = vsel %vm875, %v3621, 0
      %v3649 = vsel %vm875, %v3622, 0
      %v3652 = vsel %vm875, %v3623, 0
      %v3655 = vsel %vm875, %v3624, 0
      %v3658 = vsel %vm875, %v3625, 0
      %v3661 = vsel %vm875, %v3626, 0
      %v3664 = vsel %vm875, %v3627, 0
      %v3667 = vsel %vm875, %v3628, 0
      %v3670 = vsel %vm875, %v3629, 0
      %v3673 = vsel %vm875, %v3630, 0
      %v3676 = vsel %vm875, %v3631, 0
      %v3679 = vsel %vm875, %v3632, 0
      %v3682 = vsel %vm924, %v3584, 0
      %3684 = vmatprep.subr.bf16.mxu0 0
      %3685 = vmatpush1.bf16.msra.mxu0 %v3682
      %3686 = vmatprep.subr.bf16.mxu0 0
      %3687 = vmatpush1.bf16.msra.mxu0 0
      %3688 = vmatprep.subr.bf16.mxu0 0
      %3689 = vmatpush1.bf16.msra.mxu0 0
      %3690 = vmatprep.subr.bf16.mxu0 0
      %3691 = vmatpush1.bf16.msra.mxu0 0
      %3692 = vmatprep.subr.bf16.mxu0 0
      %3693 = vmatpush1.bf16.msra.mxu0 0
      %3694 = vmatprep.subr.bf16.mxu0 0
      %3695 = vmatpush1.bf16.msra.mxu0 0
      %3696 = vmatprep.subr.bf16.mxu0 0
      %3697 = vmatpush1.bf16.msra.mxu0 0
      %3698 = vmatprep.subr.bf16.mxu0 0
      %3699 = vmatpush1.bf16.msra.mxu0 0
      %3700 = vmatprep.subr.bf16.mxu0 0
      %3701 = vmatpush1.bf16.msra.mxu0 0
      %3702 = vmatprep.subr.bf16.mxu0 0
      %3703 = vmatpush1.bf16.msra.mxu0 0
      %3704 = vmatprep.subr.bf16.mxu0 0
      %3705 = vmatpush1.bf16.msra.mxu0 0
      %3706 = vmatprep.subr.bf16.mxu0 0
      %3707 = vmatpush1.bf16.msra.mxu0 0
      %3708 = vmatprep.subr.bf16.mxu0 0
      %3709 = vmatpush1.bf16.msra.mxu0 0
      %3710 = vmatprep.subr.bf16.mxu0 0
      %3711 = vmatpush1.bf16.msra.mxu0 0
      %3712 = vmatprep.subr.bf16.mxu0 0
      %3713 = vmatpush1.bf16.msra.mxu0 0
      %3714 = vmatprep.subr.bf16.mxu0 0
      %3715 = vmatpush1.bf16.msra.mxu0 0
      %3716 = vmatprep.mubr.bf16.mxu0 0
      %3717 = vmatmul.mubr.bf16.gmra.mrb[0].mxu0 %v3634
      %v3718 = vpop.f32.mrb[0].mxu0
      %v3719 = vadd.f32 0.0, %v3718
      %v3720 = vpop.f32.mrb[0].mxu0
      %v3721 = vpop.f32.mrb[0].mxu0
      %v3722 = vadd.f32 0.0, %v3721
      %v3723 = vpop.f32.mrb[0].mxu0
      %3724 = vmatprep.mubr.bf16.mxu0 0
      %3725 = vmatmul.mubr.bf16.gmra.mrb[0].mxu0 %v3637
      %v3726 = vpop.f32.mrb[0].mxu0
      %v3727 = vadd.f32 0.0, %v3726
      %v3728 = vpop.f32.mrb[0].mxu0
      %v3729 = vpop.f32.mrb[0].mxu0
      %v3730 = vadd.f32 0.0, %v3729
      %v3731 = vpop.f32.mrb[0].mxu0
      %3732 = vmatprep.mubr.bf16.mxu0 0
      %3733 = vmatmul.mubr.bf16.gmra.mrb[0].mxu0 %v3640
      %v3734 = vpop.f32.mrb[0].mxu0
      %v3735 = vadd.f32 0.0, %v3734
      %v3736 = vpop.f32.mrb[0].mxu0
      %v3737 = vpop.f32.mrb[0].mxu0
      %v3738 = vadd.f32 0.0, %v3737
      %v3739 = vpop.f32.mrb[0].mxu0
      %3740 = vmatprep.mubr.bf16.mxu0 0
      %3741 = vmatmul.mubr.bf16.gmra.mrb[0].mxu0 %v3643
      %v3742 = vpop.f32.mrb[0].mxu0
      %v3743 = vadd.f32 0.0, %v3742
      %v3744 = vpop.f32.mrb[0].mxu0
      %v3745 = vpop.f32.mrb[0].mxu0
      %v3746 = vadd.f32 0.0, %v3745
      %v3747 = vpop.f32.mrb[0].mxu0
      %3748 = vmatprep.mubr.bf16.mxu0 0
      %3749 = vmatmul.mubr.bf16.gmra.mrb[0].mxu0 %v3646
      %v3750 = vpop.f32.mrb[0].mxu0
      %v3751 = vadd.f32 0.0, %v3750
      %v3752 = vpop.f32.mrb[0].mxu0
      %v3753 = vpop.f32.mrb[0].mxu0
      %v3754 = vadd.f32 0.0, %v3753
      %v3755 = vpop.f32.mrb[0].mxu0
      %3756 = vmatprep.mubr.bf16.mxu0 0
      %3757 = vmatmul.mubr.bf16.gmra.mrb[0].mxu0 %v3649
      %v3758 = vpop.f32.mrb[0].mxu0
      %v3759 = vadd.f32 0.0, %v3758
      %v3760 = vpop.f32.mrb[0].mxu0
      %v3761 = vpop.f32.mrb[0].mxu0
      %v3762 = vadd.f32 0.0, %v3761
      %v3763 = vpop.f32.mrb[0].mxu0
      %3764 = vmatprep.mubr.bf16.mxu0 0
      %3765 = vmatmul.mubr.bf16.gmra.mrb[0].mxu0 %v3652
      %v3766 = vpop.f32.mrb[0].mxu0
      %v3767 = vadd.f32 0.0, %v3766
      %v3768 = vpop.f32.mrb[0].mxu0
      %v3769 = vpop.f32.mrb[0].mxu0
      %v3770 = vadd.f32 0.0, %v3769
      %v3771 = vpop.f32.mrb[0].mxu0
      %3772 = vmatprep.mubr.bf16.mxu0 0
      %3773 = vmatmul.mubr.bf16.gmra.mrb[0].mxu0 %v3655
      %v3774 = vpop.f32.mrb[0].mxu0
      %v3775 = vadd.f32 0.0, %v3774
      %v3776 = vpop.f32.mrb[0].mxu0
      %v3777 = vpop.f32.mrb[0].mxu0
      %v3778 = vadd.f32 0.0, %v3777
      %v3779 = vpop.f32.mrb[0].mxu0
      %3780 = vmatprep.mubr.bf16.mxu0 0
      %3781 = vmatmul.mubr.bf16.gmra.mrb[0].mxu0 %v3658
      %v3782 = vpop.f32.mrb[0].mxu0
      %v3783 = vadd.f32 0.0, %v3782
      %v3784 = vpop.f32.mrb[0].mxu0
      %v3785 = vpop.f32.mrb[0].mxu0
      %v3786 = vadd.f32 0.0, %v3785
      %v3787 = vpop.f32.mrb[0].mxu0
      %3788 = vmatprep.mubr.bf16.mxu0 0
      %3789 = vmatmul.mubr.bf16.gmra.mrb[0].mxu0 %v3661
      %v3790 = vpop.f32.mrb[0].mxu0
      %v3791 = vadd.f32 0.0, %v3790
      %v3792 = vpop.f32.mrb[0].mxu0
      %v3793 = vpop.f32.mrb[0].mxu0
      %v3794 = vadd.f32 0.0, %v3793
      %v3795 = vpop.f32.mrb[0].mxu0
      %3796 = vmatprep.mubr.bf16.mxu0 0
      %3797 = vmatmul.mubr.bf16.gmra.mrb[0].mxu0 %v3664
      %v3798 = vpop.f32.mrb[0].mxu0
      %v3799 = vadd.f32 0.0, %v3798
      %v3800 = vpop.f32.mrb[0].mxu0
      %v3801 = vpop.f32.mrb[0].mxu0
      %v3802 = vadd.f32 0.0, %v3801
      %v3803 = vpop.f32.mrb[0].mxu0
      %3804 = vmatprep.mubr.bf16.mxu0 0
      %3805 = vmatmul.mubr.bf16.gmra.mrb[0].mxu0 %v3667
      %v3806 = vpop.f32.mrb[0].mxu0
      %v3807 = vadd.f32 0.0, %v3806
      %v3808 = vpop.f32.mrb[0].mxu0
      %v3809 = vpop.f32.mrb[0].mxu0
      %v3810 = vadd.f32 0.0, %v3809
      %v3811 = vpop.f32.mrb[0].mxu0
      %3812 = vmatprep.mubr.bf16.mxu0 0
      %3813 = vmatmul.mubr.bf16.gmra.mrb[0].mxu0 %v3670
      %v3814 = vpop.f32.mrb[0].mxu0
      %v3815 = vadd.f32 0.0, %v3814
      %v3816 = vpop.f32.mrb[0].mxu0
      %v3817 = vpop.f32.mrb[0].mxu0
      %v3818 = vadd.f32 0.0, %v3817
      %v3819 = vpop.f32.mrb[0].mxu0
      %3820 = vmatprep.mubr.bf16.mxu0 0
      %3821 = vmatmul.mubr.bf16.gmra.mrb[0].mxu0 %v3673
      %v3822 = vpop.f32.mrb[0].mxu0
      %v3823 = vadd.f32 0.0, %v3822
      %v3824 = vpop.f32.mrb[0].mxu0
      %v3825 = vpop.f32.mrb[0].mxu0
      %v3826 = vadd.f32 0.0, %v3825
      %v3827 = vpop.f32.mrb[0].mxu0
      %3828 = vmatprep.mubr.bf16.mxu0 0
      %3829 = vmatmul.mubr.bf16.gmra.mrb[0].mxu0 %v3676
      %v3830 = vpop.f32.mrb[0].mxu0
      %v3831 = vadd.f32 0.0, %v3830
      %v3832 = vpop.f32.mrb[0].mxu0
      %v3833 = vpop.f32.mrb[0].mxu0
      %v3834 = vadd.f32 0.0, %v3833
      %v3835 = vpop.f32.mrb[0].mxu0
      %3836 = vmatprep.mubr.bf16.mxu0 0
      %3837 = vmatmul.mubr.bf16.gmra.mrb[0].mxu0 %v3679
      %v3838 = vpop.f32.mrb[0].mxu0
      %v3839 = vadd.f32 0.0, %v3838
      %v3840 = vpop.f32.mrb[0].mxu0
      %v3841 = vpop.f32.mrb[0].mxu0
      %v3842 = vadd.f32 0.0, %v3841
      %v3843 = vpop.f32.mrb[0].mxu0
      %3844 = vdwg.mxu0
      %v3845 = vadd.f32 %v3375, %v3719
      %v3846 = vadd.f32 %v3376, %v3722
      %v3847 = vadd.f32 %v3377, %v3727
      %v3848 = vadd.f32 %v3378, %v3730
      %v3849 = vadd.f32 %v3379, %v3735
      %v3850 = vadd.f32 %v3380, %v3738
      %v3851 = vadd.f32 %v3381, %v3743
      %v3852 = vadd.f32 %v3382, %v3746
      %v3853 = vadd.f32 %v3383, %v3751
      %v3854 = vadd.f32 %v3384, %v3754
      %v3855 = vadd.f32 %v3385, %v3759
      %v3856 = vadd.f32 %v3386, %v3762
      %v3857 = vadd.f32 %v3387, %v3767
      %v3858 = vadd.f32 %v3388, %v3770
      %v3859 = vadd.f32 %v3389, %v3775
      %v3860 = vadd.f32 %v3390, %v3778
      %v3861 = vadd.f32 %v3391, %v3783
      %v3862 = vadd.f32 %v3392, %v3786
      %v3863 = vadd.f32 %v3393, %v3791
      %v3864 = vadd.f32 %v3394, %v3794
      %v3865 = vadd.f32 %v3395, %v3799
      %v3866 = vadd.f32 %v3396, %v3802
      %v3867 = vadd.f32 %v3397, %v3807
      %v3868 = vadd.f32 %v3398, %v3810
      %v3869 = vadd.f32 %v3399, %v3815
      %v3870 = vadd.f32 %v3400, %v3818
      %v3871 = vadd.f32 %v3401, %v3823
      %v3872 = vadd.f32 %v3402, %v3826
      %v3873 = vadd.f32 %v3403, %v3831
      %v3874 = vadd.f32 %v3404, %v3834
      %v3875 = vadd.f32 %v3405, %v3839
      %v3876 = vadd.f32 %v3406, %v3842
      %s3877 = scalar_lea.vmem [#allocation2], 24
      %v3878 = vld [vmem:[%s3877] sm:$0xf]
      %v3879 = vld [vmem:[%s3877 + $0x4] sm:$0xf]
      %v3880 = vld [vmem:[%s3877 + $0xc] sm:$0xf]
      %v3881 = vld [vmem:[%s3877 + $0x10] sm:$0xf]
      %v3882 = vld [vmem:[%s3877 + $0x18] sm:$0xf]
      %v3883 = vld [vmem:[%s3877 + $0x1c] sm:$0xf]
      %v3884 = vld [vmem:[%s3877 + $0x24] sm:$0xf]
      %v3885 = vld [vmem:[%s3877 + $0x28] sm:$0xf]
      %v3886 = vld [vmem:[%s3877 + $0x30] sm:$0xf]
      %v3887 = vld [vmem:[%s3877 + $0x34] sm:$0xf]
      %v3888 = vld [vmem:[%s3877 + $0x3c] sm:$0xf]
      %v3889 = vld [vmem:[%s3877 + $0x40] sm:$0xf]
      %v3890 = vld [vmem:[%s3877 + $0x48] sm:$0xf]
      %v3891 = vld [vmem:[%s3877 + $0x4c] sm:$0xf]
      %v3892 = vld [vmem:[%s3877 + $0x54] sm:$0xf]
      %v3893 = vld [vmem:[%s3877 + $0x58] sm:$0xf]
      %v3894 = vld [vmem:[%s3877 + $0x60] sm:$0xf]
      %v3895 = vld [vmem:[%s3877 + $0x64] sm:$0xf]
      %v3896 = vld [vmem:[%s3877 + $0x6c] sm:$0xf]
      %v3897 = vld [vmem:[%s3877 + $0x70] sm:$0xf]
      %v3898 = vld [vmem:[%s3877 + $0x78] sm:$0xf]
      %v3899 = vld [vmem:[%s3877 + $0x7c] sm:$0xf]
      %v3900 = vld [vmem:[%s3877 + $0x84] sm:$0xf]
      %v3901 = vld [vmem:[%s3877 + $0x88] sm:$0xf]
      %v3902 = vld [vmem:[%s3877 + $0x90] sm:$0xf]
      %v3903 = vld [vmem:[%s3877 + $0x94] sm:$0xf]
      %v3904 = vld [vmem:[%s3877 + $0x9c] sm:$0xf]
      %v3905 = vld [vmem:[%s3877 + $0xa0] sm:$0xf]
      %v3906 = vld [vmem:[%s3877 + $0xa8] sm:$0xf]
      %v3907 = vld [vmem:[%s3877 + $0xac] sm:$0xf]
      %v3908 = vld [vmem:[%s3877 + $0xb4] sm:$0xf]
      %v3909 = vld [vmem:[%s3877 + $0xb8] sm:$0xf]
      %s3910 = scalar_lea.vmem %s1, 12
      %v3911 = vld [vmem:[%s3910] sm:$0x3]
      %v3944 = vunpack.c.l.b16 %v3878
      %v3945 = vunpack.c.l.b16 %v3879
      %v3946 = vunpack.c.l.b16 %v3880
      %v3947 = vunpack.c.l.b16 %v3881
      %v3948 = vunpack.c.l.b16 %v3882
      %v3949 = vunpack.c.l.b16 %v3883
      %v3950 = vunpack.c.l.b16 %v3884
      %v3951 = vunpack.c.l.b16 %v3885
      %v3952 = vunpack.c.l.b16 %v3886
      %v3953 = vunpack.c.l.b16 %v3887
      %v3954 = vunpack.c.l.b16 %v3888
      %v3955 = vunpack.c.l.b16 %v3889
      %v3956 = vunpack.c.l.b16 %v3890
      %v3957 = vunpack.c.l.b16 %v3891
      %v3958 = vunpack.c.l.b16 %v3892
      %v3959 = vunpack.c.l.b16 %v3893
      %v3960 = vunpack.c.l.b16 %v3894
      %v3961 = vunpack.c.l.b16 %v3895
      %v3962 = vunpack.c.l.b16 %v3896
      %v3963 = vunpack.c.l.b16 %v3897
      %v3964 = vunpack.c.l.b16 %v3898
      %v3965 = vunpack.c.l.b16 %v3899
      %v3966 = vunpack.c.l.b16 %v3900
      %v3967 = vunpack.c.l.b16 %v3901
      %v3968 = vunpack.c.l.b16 %v3902
      %v3969 = vunpack.c.l.b16 %v3903
      %v3970 = vunpack.c.l.b16 %v3904
      %v3971 = vunpack.c.l.b16 %v3905
      %v3972 = vunpack.c.l.b16 %v3906
      %v3973 = vunpack.c.l.b16 %v3907
      %v3974 = vunpack.c.l.b16 %v3908
      %v3975 = vunpack.c.l.b16 %v3909
      %v3976 = vpack.c.b16 %v3945, %v3944
      %v3977 = vpack.c.b16 %v3947, %v3946
      %v3978 = vpack.c.b16 %v3949, %v3948
      %v3979 = vpack.c.b16 %v3951, %v3950
      %v3980 = vpack.c.b16 %v3953, %v3952
      %v3981 = vpack.c.b16 %v3955, %v3954
      %v3982 = vpack.c.b16 %v3957, %v3956
      %v3983 = vpack.c.b16 %v3959, %v3958
      %v3984 = vpack.c.b16 %v3961, %v3960
      %v3985 = vpack.c.b16 %v3963, %v3962
      %v3986 = vpack.c.b16 %v3965, %v3964
      %v3987 = vpack.c.b16 %v3967, %v3966
      %v3988 = vpack.c.b16 %v3969, %v3968
      %v3989 = vpack.c.b16 %v3971, %v3970
      %v3990 = vpack.c.b16 %v3973, %v3972
      %v3991 = vpack.c.b16 %v3975, %v3974
      %v3993 = vsel %vm875, %v3976, 0
      %v3996 = vsel %vm875, %v3977, 0
      %v3999 = vsel %vm875, %v3978, 0
      %v4002 = vsel %vm875, %v3979, 0
      %v4005 = vsel %vm875, %v3980, 0
      %v4008 = vsel %vm875, %v3981, 0
      %v4011 = vsel %vm875, %v3982, 0
      %v4014 = vsel %vm875, %v3983, 0
      %v4017 = vsel %vm875, %v3984, 0
      %v4020 = vsel %vm875, %v3985, 0
      %v4023 = vsel %vm875, %v3986, 0
      %v4026 = vsel %vm875, %v3987, 0
      %v4029 = vsel %vm875, %v3988, 0
      %v4032 = vsel %vm875, %v3989, 0
      %v4035 = vsel %vm875, %v3990, 0
      %v4038 = vsel %vm875, %v3991, 0
      %v4041 = vsel %vm924, %v3911, 0
      %4043 = vmatprep.subr.bf16.mxu0 0
      %4044 = vmatpush1.bf16.msra.mxu0 %v4041
      %4045 = vmatprep.subr.bf16.mxu0 0
      %4046 = vmatpush1.bf16.msra.mxu0 0
      %4047 = vmatprep.subr.bf16.mxu0 0
      %4048 = vmatpush1.bf16.msra.mxu0 0
      %4049 = vmatprep.subr.bf16.mxu0 0
      %4050 = vmatpush1.bf16.msra.mxu0 0
      %4051 = vmatprep.subr.bf16.mxu0 0
      %4052 = vmatpush1.bf16.msra.mxu0 0
      %4053 = vmatprep.subr.bf16.mxu0 0
      %4054 = vmatpush1.bf16.msra.mxu0 0
      %4055 = vmatprep.subr.bf16.mxu0 0
      %4056 = vmatpush1.bf16.msra.mxu0 0
      %4057 = vmatprep.subr.bf16.mxu0 0
      %4058 = vmatpush1.bf16.msra.mxu0 0
      %4059 = vmatprep.subr.bf16.mxu0 0
      %4060 = vmatpush1.bf16.msra.mxu0 0
      %4061 = vmatprep.subr.bf16.mxu0 0
      %4062 = vmatpush1.bf16.msra.mxu0 0
      %4063 = vmatprep.subr.bf16.mxu0 0
      %4064 = vmatpush1.bf16.msra.mxu0 0
      %4065 = vmatprep.subr.bf16.mxu0 0
      %4066 = vmatpush1.bf16.msra.mxu0 0
      %4067 = vmatprep.subr.bf16.mxu0 0
      %4068 = vmatpush1.bf16.msra.mxu0 0
      %4069 = vmatprep.subr.bf16.mxu0 0
      %4070 = vmatpush1.bf16.msra.mxu0 0
      %4071 = vmatprep.subr.bf16.mxu0 0
      %4072 = vmatpush1.bf16.msra.mxu0 0
      %4073 = vmatprep.subr.bf16.mxu0 0
      %4074 = vmatpush1.bf16.msra.mxu0 0
      %4075 = vmatprep.mubr.bf16.mxu0 0
      %4076 = vmatmul.mubr.bf16.gmra.mrb[0].mxu0 %v3993
      %v4077 = vpop.f32.mrb[0].mxu0
      %v4078 = vadd.f32 0.0, %v4077
      %v4079 = vpop.f32.mrb[0].mxu0
      %v4080 = vpop.f32.mrb[0].mxu0
      %v4081 = vadd.f32 0.0, %v4080
      %v4082 = vpop.f32.mrb[0].mxu0
      %4083 = vmatprep.mubr.bf16.mxu0 0
      %4084 = vmatmul.mubr.bf16.gmra.mrb[0].mxu0 %v3996
      %v4085 = vpop.f32.mrb[0].mxu0
      %v4086 = vadd.f32 0.0, %v4085
      %v4087 = vpop.f32.mrb[0].mxu0
      %v4088 = vpop.f32.mrb[0].mxu0
      %v4089 = vadd.f32 0.0, %v4088
      %v4090 = vpop.f32.mrb[0].mxu0
      %4091 = vmatprep.mubr.bf16.mxu0 0
      %4092 = vmatmul.mubr.bf16.gmra.mrb[0].mxu0 %v3999
      %v4093 = vpop.f32.mrb[0].mxu0
      %v4094 = vadd.f32 0.0, %v4093
      %v4095 = vpop.f32.mrb[0].mxu0
      %v4096 = vpop.f32.mrb[0].mxu0
      %v4097 = vadd.f32 0.0, %v4096
      %v4098 = vpop.f32.mrb[0].mxu0
      %4099 = vmatprep.mubr.bf16.mxu0 0
      %4100 = vmatmul.mubr.bf16.gmra.mrb[0].mxu0 %v4002
      %v4101 = vpop.f32.mrb[0].mxu0
      %v4102 = vadd.f32 0.0, %v4101
      %v4103 = vpop.f32.mrb[0].mxu0
      %v4104 = vpop.f32.mrb[0].mxu0
      %v4105 = vadd.f32 0.0, %v4104
      %v4106 = vpop.f32.mrb[0].mxu0
      %4107 = vmatprep.mubr.bf16.mxu0 0
      %4108 = vmatmul.mubr.bf16.gmra.mrb[0].mxu0 %v4005
      %v4109 = vpop.f32.mrb[0].mxu0
      %v4110 = vadd.f32 0.0, %v4109
      %v4111 = vpop.f32.mrb[0].mxu0
      %v4112 = vpop.f32.mrb[0].mxu0
      %v4113 = vadd.f32 0.0, %v4112
      %v4114 = vpop.f32.mrb[0].mxu0
      %4115 = vmatprep.mubr.bf16.mxu0 0
      %4116 = vmatmul.mubr.bf16.gmra.mrb[0].mxu0 %v4008
      %v4117 = vpop.f32.mrb[0].mxu0
      %v4118 = vadd.f32 0.0, %v4117
      %v4119 = vpop.f32.mrb[0].mxu0
      %v4120 = vpop.f32.mrb[0].mxu0
      %v4121 = vadd.f32 0.0, %v4120
      %v4122 = vpop.f32.mrb[0].mxu0
      %4123 = vmatprep.mubr.bf16.mxu0 0
      %4124 = vmatmul.mubr.bf16.gmra.mrb[0].mxu0 %v4011
      %v4125 = vpop.f32.mrb[0].mxu0
      %v4126 = vadd.f32 0.0, %v4125
      %v4127 = vpop.f32.mrb[0].mxu0
      %v4128 = vpop.f32.mrb[0].mxu0
      %v4129 = vadd.f32 0.0, %v4128
      %v4130 = vpop.f32.mrb[0].mxu0
      %4131 = vmatprep.mubr.bf16.mxu0 0
      %4132 = vmatmul.mubr.bf16.gmra.mrb[0].mxu0 %v4014
      %v4133 = vpop.f32.mrb[0].mxu0
      %v4134 = vadd.f32 0.0, %v4133
      %v4135 = vpop.f32.mrb[0].mxu0
      %v4136 = vpop.f32.mrb[0].mxu0
      %v4137 = vadd.f32 0.0, %v4136
      %v4138 = vpop.f32.mrb[0].mxu0
      %4139 = vmatprep.mubr.bf16.mxu0 0
      %4140 = vmatmul.mubr.bf16.gmra.mrb[0].mxu0 %v4017
      %v4141 = vpop.f32.mrb[0].mxu0
      %v4142 = vadd.f32 0.0, %v4141
      %v4143 = vpop.f32.mrb[0].mxu0
      %v4144 = vpop.f32.mrb[0].mxu0
      %v4145 = vadd.f32 0.0, %v4144
      %v4146 = vpop.f32.mrb[0].mxu0
      %4147 = vmatprep.mubr.bf16.mxu0 0
      %4148 = vmatmul.mubr.bf16.gmra.mrb[0].mxu0 %v4020
      %v4149 = vpop.f32.mrb[0].mxu0
      %v4150 = vadd.f32 0.0, %v4149
      %v4151 = vpop.f32.mrb[0].mxu0
      %v4152 = vpop.f32.mrb[0].mxu0
      %v4153 = vadd.f32 0.0, %v4152
      %v4154 = vpop.f32.mrb[0].mxu0
      %4155 = vmatprep.mubr.bf16.mxu0 0
      %4156 = vmatmul.mubr.bf16.gmra.mrb[0].mxu0 %v4023
      %v4157 = vpop.f32.mrb[0].mxu0
      %v4158 = vadd.f32 0.0, %v4157
      %v4159 = vpop.f32.mrb[0].mxu0
      %v4160 = vpop.f32.mrb[0].mxu0
      %v4161 = vadd.f32 0.0, %v4160
      %v4162 = vpop.f32.mrb[0].mxu0
      %4163 = vmatprep.mubr.bf16.mxu0 0
      %4164 = vmatmul.mubr.bf16.gmra.mrb[0].mxu0 %v4026
      %v4165 = vpop.f32.mrb[0].mxu0
      %v4166 = vadd.f32 0.0, %v4165
      %v4167 = vpop.f32.mrb[0].mxu0
      %v4168 = vpop.f32.mrb[0].mxu0
      %v4169 = vadd.f32 0.0, %v4168
      %v4170 = vpop.f32.mrb[0].mxu0
      %4171 = vmatprep.mubr.bf16.mxu0 0
      %4172 = vmatmul.mubr.bf16.gmra.mrb[0].mxu0 %v4029
      %v4173 = vpop.f32.mrb[0].mxu0
      %v4174 = vadd.f32 0.0, %v4173
      %v4175 = vpop.f32.mrb[0].mxu0
      %v4176 = vpop.f32.mrb[0].mxu0
      %v4177 = vadd.f32 0.0, %v4176
      %v4178 = vpop.f32.mrb[0].mxu0
      %4179 = vmatprep.mubr.bf16.mxu0 0
      %4180 = vmatmul.mubr.bf16.gmra.mrb[0].mxu0 %v4032
      %v4181 = vpop.f32.mrb[0].mxu0
      %v4182 = vadd.f32 0.0, %v4181
      %v4183 = vpop.f32.mrb[0].mxu0
      %v4184 = vpop.f32.mrb[0].mxu0
      %v4185 = vadd.f32 0.0, %v4184
      %v4186 = vpop.f32.mrb[0].mxu0
      %4187 = vmatprep.mubr.bf16.mxu0 0
      %4188 = vmatmul.mubr.bf16.gmra.mrb[0].mxu0 %v4035
      %v4189 = vpop.f32.mrb[0].mxu0
      %v4190 = vadd.f32 0.0, %v4189
      %v4191 = vpop.f32.mrb[0].mxu0
      %v4192 = vpop.f32.mrb[0].mxu0
      %v4193 = vadd.f32 0.0, %v4192
      %v4194 = vpop.f32.mrb[0].mxu0
      %4195 = vmatprep.mubr.bf16.mxu0 0
      %4196 = vmatmul.mubr.bf16.gmra.mrb[0].mxu0 %v4038
      %v4197 = vpop.f32.mrb[0].mxu0
      %v4198 = vadd.f32 0.0, %v4197
      %v4199 = vpop.f32.mrb[0].mxu0
      %v4200 = vpop.f32.mrb[0].mxu0
      %v4201 = vadd.f32 0.0, %v4200
      %v4202 = vpop.f32.mrb[0].mxu0
      %4203 = vdwg.mxu0
      %v4204 = vadd.f32 %v3845, %v4078
      %v4205 = vadd.f32 %v3846, %v4081
      %v4206 = vadd.f32 %v3847, %v4086
      %v4207 = vadd.f32 %v3848, %v4089
      %v4208 = vadd.f32 %v3849, %v4094
      %v4209 = vadd.f32 %v3850, %v4097
      %v4210 = vadd.f32 %v3851, %v4102
      %v4211 = vadd.f32 %v3852, %v4105
      %v4212 = vadd.f32 %v3853, %v4110
      %v4213 = vadd.f32 %v3854, %v4113
      %v4214 = vadd.f32 %v3855, %v4118
      %v4215 = vadd.f32 %v3856, %v4121
      %v4216 = vadd.f32 %v3857, %v4126
      %v4217 = vadd.f32 %v3858, %v4129
      %v4218 = vadd.f32 %v3859, %v4134
      %v4219 = vadd.f32 %v3860, %v4137
      %v4220 = vadd.f32 %v3861, %v4142
      %v4221 = vadd.f32 %v3862, %v4145
      %v4222 = vadd.f32 %v3863, %v4150
      %v4223 = vadd.f32 %v3864, %v4153
      %v4224 = vadd.f32 %v3865, %v4158
      %v4225 = vadd.f32 %v3866, %v4161
      %v4226 = vadd.f32 %v3867, %v4166
      %v4227 = vadd.f32 %v3868, %v4169
      %v4228 = vadd.f32 %v3869, %v4174
      %v4229 = vadd.f32 %v3870, %v4177
      %v4230 = vadd.f32 %v3871, %v4182
      %v4231 = vadd.f32 %v3872, %v4185
      %v4232 = vadd.f32 %v3873, %v4190
      %v4233 = vadd.f32 %v3874, %v4193
      %v4234 = vadd.f32 %v3875, %v4198
      %v4235 = vadd.f32 %v3876, %v4201
      %v4236 = vld [vmem:[%s3877] sm:$0xf]
      %v4237 = vld [vmem:[%s3877 + $0x4] sm:$0xf]
      %v4238 = vld [vmem:[%s3877 + $0x8] sm:$0x1]
      %v4239 = vld [vmem:[%s3877 + $0xc] sm:$0xf]
      %v4240 = vld [vmem:[%s3877 + $0x10] sm:$0xf]
      %v4241 = vld [vmem:[%s3877 + $0x14] sm:$0x1]
      %v4242 = vld [vmem:[%s3877 + $0x18] sm:$0xf]
      %v4243 = vld [vmem:[%s3877 + $0x1c] sm:$0xf]
      %v4244 = vld [vmem:[%s3877 + $0x20] sm:$0x1]
      %v4245 = vld [vmem:[%s3877 + $0x24] sm:$0xf]
      %v4246 = vld [vmem:[%s3877 + $0x28] sm:$0xf]
      %v4247 = vld [vmem:[%s3877 + $0x2c] sm:$0x1]
      %v4248 = vld [vmem:[%s3877 + $0x30] sm:$0xf]
      %v4249 = vld [vmem:[%s3877 + $0x34] sm:$0xf]
      %v4250 = vld [vmem:[%s3877 + $0x38] sm:$0x1]
      %v4251 = vld [vmem:[%s3877 + $0x3c] sm:$0xf]
      %v4252 = vld [vmem:[%s3877 + $0x40] sm:$0xf]
      %v4253 = vld [vmem:[%s3877 + $0x44] sm:$0x1]
      %v4254 = vld [vmem:[%s3877 + $0x48] sm:$0xf]
      %v4255 = vld [vmem:[%s3877 + $0x4c] sm:$0xf]
      %v4256 = vld [vmem:[%s3877 + $0x50] sm:$0x1]
      %v4257 = vld [vmem:[%s3877 + $0x54] sm:$0xf]
      %v4258 = vld [vmem:[%s3877 + $0x58] sm:$0xf]
      %v4259 = vld [vmem:[%s3877 + $0x5c] sm:$0x1]
      %v4260 = vld [vmem:[%s3877 + $0x60] sm:$0xf]
      %v4261 = vld [vmem:[%s3877 + $0x64] sm:$0xf]
      %v4262 = vld [vmem:[%s3877 + $0x68] sm:$0x1]
      %v4263 = vld [vmem:[%s3877 + $0x6c] sm:$0xf]
      %v4264 = vld [vmem:[%s3877 + $0x70] sm:$0xf]
      %v4265 = vld [vmem:[%s3877 + $0x74] sm:$0x1]
      %v4266 = vld [vmem:[%s3877 + $0x78] sm:$0xf]
      %v4267 = vld [vmem:[%s3877 + $0x7c] sm:$0xf]
      %v4268 = vld [vmem:[%s3877 + $0x80] sm:$0x1]
      %v4269 = vld [vmem:[%s3877 + $0x84] sm:$0xf]
      %v4270 = vld [vmem:[%s3877 + $0x88] sm:$0xf]
      %v4271 = vld [vmem:[%s3877 + $0x8c] sm:$0x1]
      %v4272 = vld [vmem:[%s3877 + $0x90] sm:$0xf]
      %v4273 = vld [vmem:[%s3877 + $0x94] sm:$0xf]
      %v4274 = vld [vmem:[%s3877 + $0x98] sm:$0x1]
      %v4275 = vld [vmem:[%s3877 + $0x9c] sm:$0xf]
      %v4276 = vld [vmem:[%s3877 + $0xa0] sm:$0xf]
      %v4277 = vld [vmem:[%s3877 + $0xa4] sm:$0x1]
      %v4278 = vld [vmem:[%s3877 + $0xa8] sm:$0xf]
      %v4279 = vld [vmem:[%s3877 + $0xac] sm:$0xf]
      %v4280 = vld [vmem:[%s3877 + $0xb0] sm:$0x1]
      %v4281 = vld [vmem:[%s3877 + $0xb4] sm:$0xf]
      %v4282 = vld [vmem:[%s3877 + $0xb8] sm:$0xf]
      %v4283 = vld [vmem:[%s3877 + $0xbc] sm:$0x1]
      %v4285 = vshrl.u32 %v4236, 16
      %v4287 = vrot.slane %v4285, 4
      %v4288 = vshll.u32 %v4236, 16
      %v4290 = vrot.slane %v4288, 5
      %v4291 = vor.u32 %v4287, %v4290
      %v4292 = vrot.slane %v4291, 4
      %v4294 = vshll.u32 %v4237, 16
      %v4296 = vrot.slane %v4294, 5
      %v4297 = vsel %vm1171, %v4292, %v4296
      %v4298 = vshrl.u32 %v4237, 16
      %v4300 = vrot.slane %v4298, 4
      %v4301 = vor.u32 %v4300, %v4296
      %v4302 = vrot.slane %v4301, 4
      %v4304 = vshll.u32 %v4238, 16
      %v4306 = vrot.slane %v4304, 5
      %v4307 = vsel %vm1171, %v4302, %v4306
      %v4309 = vshrl.u32 %v4239, 16
      %v4311 = vrot.slane %v4309, 4
      %v4312 = vshll.u32 %v4239, 16
      %v4314 = vrot.slane %v4312, 5
      %v4315 = vor.u32 %v4311, %v4314
      %v4316 = vrot.slane %v4315, 4
      %v4318 = vshll.u32 %v4240, 16
      %v4320 = vrot.slane %v4318, 5
      %v4321 = vsel %vm1171, %v4316, %v4320
      %v4322 = vshrl.u32 %v4240, 16
      %v4324 = vrot.slane %v4322, 4
      %v4325 = vor.u32 %v4324, %v4320
      %v4326 = vrot.slane %v4325, 4
      %v4328 = vshll.u32 %v4241, 16
      %v4330 = vrot.slane %v4328, 5
      %v4331 = vsel %vm1171, %v4326, %v4330
      %v4333 = vshrl.u32 %v4242, 16
      %v4335 = vrot.slane %v4333, 4
      %v4336 = vshll.u32 %v4242, 16
      %v4338 = vrot.slane %v4336, 5
      %v4339 = vor.u32 %v4335, %v4338
      %v4340 = vrot.slane %v4339, 4
      %v4342 = vshll.u32 %v4243, 16
      %v4344 = vrot.slane %v4342, 5
      %v4345 = vsel %vm1171, %v4340, %v4344
      %v4346 = vshrl.u32 %v4243, 16
      %v4348 = vrot.slane %v4346, 4
      %v4349 = vor.u32 %v4348, %v4344
      %v4350 = vrot.slane %v4349, 4
      %v4352 = vshll.u32 %v4244, 16
      %v4354 = vrot.slane %v4352, 5
      %v4355 = vsel %vm1171, %v4350, %v4354
      %v4357 = vshrl.u32 %v4245, 16
      %v4359 = vrot.slane %v4357, 4
      %v4360 = vshll.u32 %v4245, 16
      %v4362 = vrot.slane %v4360, 5
      %v4363 = vor.u32 %v4359, %v4362
      %v4364 = vrot.slane %v4363, 4
      %v4366 = vshll.u32 %v4246, 16
      %v4368 = vrot.slane %v4366, 5
      %v4369 = vsel %vm1171, %v4364, %v4368
      %v4370 = vshrl.u32 %v4246, 16
      %v4372 = vrot.slane %v4370, 4
      %v4373 = vor.u32 %v4372, %v4368
      %v4374 = vrot.slane %v4373, 4
      %v4376 = vshll.u32 %v4247, 16
      %v4378 = vrot.slane %v4376, 5
      %v4379 = vsel %vm1171, %v4374, %v4378
      %v4381 = vshrl.u32 %v4248, 16
      %v4383 = vrot.slane %v4381, 4
      %v4384 = vshll.u32 %v4248, 16
      %v4386 = vrot.slane %v4384, 5
      %v4387 = vor.u32 %v4383, %v4386
      %v4388 = vrot.slane %v4387, 4
      %v4390 = vshll.u32 %v4249, 16
      %v4392 = vrot.slane %v4390, 5
      %v4393 = vsel %vm1171, %v4388, %v4392
      %v4394 = vshrl.u32 %v4249, 16
      %v4396 = vrot.slane %v4394, 4
      %v4397 = vor.u32 %v4396, %v4392
      %v4398 = vrot.slane %v4397, 4
      %v4400 = vshll.u32 %v4250, 16
      %v4402 = vrot.slane %v4400, 5
      %v4403 = vsel %vm1171, %v4398, %v4402
      %v4405 = vshrl.u32 %v4251, 16
      %v4407 = vrot.slane %v4405, 4
      %v4408 = vshll.u32 %v4251, 16
      %v4410 = vrot.slane %v4408, 5
      %v4411 = vor.u32 %v4407, %v4410
      %v4412 = vrot.slane %v4411, 4
      %v4414 = vshll.u32 %v4252, 16
      %v4416 = vrot.slane %v4414, 5
      %v4417 = vsel %vm1171, %v4412, %v4416
      %v4418 = vshrl.u32 %v4252, 16
      %v4420 = vrot.slane %v4418, 4
      %v4421 = vor.u32 %v4420, %v4416
      %v4422 = vrot.slane %v4421, 4
      %v4424 = vshll.u32 %v4253, 16
      %v4426 = vrot.slane %v4424, 5
      %v4427 = vsel %vm1171, %v4422, %v4426
      %v4429 = vshrl.u32 %v4254, 16
      %v4431 = vrot.slane %v4429, 4
      %v4432 = vshll.u32 %v4254, 16
      %v4434 = vrot.slane %v4432, 5
      %v4435 = vor.u32 %v4431, %v4434
      %v4436 = vrot.slane %v4435, 4
      %v4438 = vshll.u32 %v4255, 16
      %v4440 = vrot.slane %v4438, 5
      %v4441 = vsel %vm1171, %v4436, %v4440
      %v4442 = vshrl.u32 %v4255, 16
      %v4444 = vrot.slane %v4442, 4
      %v4445 = vor.u32 %v4444, %v4440
      %v4446 = vrot.slane %v4445, 4
      %v4448 = vshll.u32 %v4256, 16
      %v4450 = vrot.slane %v4448, 5
      %v4451 = vsel %vm1171, %v4446, %v4450
      %v4453 = vshrl.u32 %v4257, 16
      %v4455 = vrot.slane %v4453, 4
      %v4456 = vshll.u32 %v4257, 16
      %v4458 = vrot.slane %v4456, 5
      %v4459 = vor.u32 %v4455, %v4458
      %v4460 = vrot.slane %v4459, 4
      %v4462 = vshll.u32 %v4258, 16
      %v4464 = vrot.slane %v4462, 5
      %v4465 = vsel %vm1171, %v4460, %v4464
      %v4466 = vshrl.u32 %v4258, 16
      %v4468 = vrot.slane %v4466, 4
      %v4469 = vor.u32 %v4468, %v4464
      %v4470 = vrot.slane %v4469, 4
      %v4472 = vshll.u32 %v4259, 16
      %v4474 = vrot.slane %v4472, 5
      %v4475 = vsel %vm1171, %v4470, %v4474
      %v4477 = vshrl.u32 %v4260, 16
      %v4479 = vrot.slane %v4477, 4
      %v4480 = vshll.u32 %v4260, 16
      %v4482 = vrot.slane %v4480, 5
      %v4483 = vor.u32 %v4479, %v4482
      %v4484 = vrot.slane %v4483, 4
      %v4486 = vshll.u32 %v4261, 16
      %v4488 = vrot.slane %v4486, 5
      %v4489 = vsel %vm1171, %v4484, %v4488
      %v4490 = vshrl.u32 %v4261, 16
      %v4492 = vrot.slane %v4490, 4
      %v4493 = vor.u32 %v4492, %v4488
      %v4494 = vrot.slane %v4493, 4
      %v4496 = vshll.u32 %v4262, 16
      %v4498 = vrot.slane %v4496, 5
      %v4499 = vsel %vm1171, %v4494, %v4498
      %v4501 = vshrl.u32 %v4263, 16
      %v4503 = vrot.slane %v4501, 4
      %v4504 = vshll.u32 %v4263, 16
      %v4506 = vrot.slane %v4504, 5
      %v4507 = vor.u32 %v4503, %v4506
      %v4508 = vrot.slane %v4507, 4
      %v4510 = vshll.u32 %v4264, 16
      %v4512 = vrot.slane %v4510, 5
      %v4513 = vsel %vm1171, %v4508, %v4512
      %v4514 = vshrl.u32 %v4264, 16
      %v4516 = vrot.slane %v4514, 4
      %v4517 = vor.u32 %v4516, %v4512
      %v4518 = vrot.slane %v4517, 4
      %v4520 = vshll.u32 %v4265, 16
      %v4522 = vrot.slane %v4520, 5
      %v4523 = vsel %vm1171, %v4518, %v4522
      %v4525 = vshrl.u32 %v4266, 16
      %v4527 = vrot.slane %v4525, 4
      %v4528 = vshll.u32 %v4266, 16
      %v4530 = vrot.slane %v4528, 5
      %v4531 = vor.u32 %v4527, %v4530
      %v4532 = vrot.slane %v4531, 4
      %v4534 = vshll.u32 %v4267, 16
      %v4536 = vrot.slane %v4534, 5
      %v4537 = vsel %vm1171, %v4532, %v4536
      %v4538 = vshrl.u32 %v4267, 16
      %v4540 = vrot.slane %v4538, 4
      %v4541 = vor.u32 %v4540, %v4536
      %v4542 = vrot.slane %v4541, 4
      %v4544 = vshll.u32 %v4268, 16
      %v4546 = vrot.slane %v4544, 5
      %v4547 = vsel %vm1171, %v4542, %v4546
      %v4549 = vshrl.u32 %v4269, 16
      %v4551 = vrot.slane %v4549, 4
      %v4552 = vshll.u32 %v4269, 16
      %v4554 = vrot.slane %v4552, 5
      %v4555 = vor.u32 %v4551, %v4554
      %v4556 = vrot.slane %v4555, 4
      %v4558 = vshll.u32 %v4270, 16
      %v4560 = vrot.slane %v4558, 5
      %v4561 = vsel %vm1171, %v4556, %v4560
      %v4562 = vshrl.u32 %v4270, 16
      %v4564 = vrot.slane %v4562, 4
      %v4565 = vor.u32 %v4564, %v4560
      %v4566 = vrot.slane %v4565, 4
      %v4568 = vshll.u32 %v4271, 16
      %v4570 = vrot.slane %v4568, 5
      %v4571 = vsel %vm1171, %v4566, %v4570
      %v4573 = vshrl.u32 %v4272, 16
      %v4575 = vrot.slane %v4573, 4
      %v4576 = vshll.u32 %v4272, 16
      %v4578 = vrot.slane %v4576, 5
      %v4579 = vor.u32 %v4575, %v4578
      %v4580 = vrot.slane %v4579, 4
      %v4582 = vshll.u32 %v4273, 16
      %v4584 = vrot.slane %v4582, 5
      %v4585 = vsel %vm1171, %v4580, %v4584
      %v4586 = vshrl.u32 %v4273, 16
      %v4588 = vrot.slane %v4586, 4
      %v4589 = vor.u32 %v4588, %v4584
      %v4590 = vrot.slane %v4589, 4
      %v4592 = vshll.u32 %v4274, 16
      %v4594 = vrot.slane %v4592, 5
      %v4595 = vsel %vm1171, %v4590, %v4594
      %v4597 = vshrl.u32 %v4275, 16
      %v4599 = vrot.slane %v4597, 4
      %v4600 = vshll.u32 %v4275, 16
      %v4602 = vrot.slane %v4600, 5
      %v4603 = vor.u32 %v4599, %v4602
      %v4604 = vrot.slane %v4603, 4
      %v4606 = vshll.u32 %v4276, 16
      %v4608 = vrot.slane %v4606, 5
      %v4609 = vsel %vm1171, %v4604, %v4608
      %v4610 = vshrl.u32 %v4276, 16
      %v4612 = vrot.slane %v4610, 4
      %v4613 = vor.u32 %v4612, %v4608
      %v4614 = vrot.slane %v4613, 4
      %v4616 = vshll.u32 %v4277, 16
      %v4618 = vrot.slane %v4616, 5
      %v4619 = vsel %vm1171, %v4614, %v4618
      %v4621 = vshrl.u32 %v4278, 16
      %v4623 = vrot.slane %v4621, 4
      %v4624 = vshll.u32 %v4278, 16
      %v4626 = vrot.slane %v4624, 5
      %v4627 = vor.u32 %v4623, %v4626
      %v4628 = vrot.slane %v4627, 4
      %v4630 = vshll.u32 %v4279, 16
      %v4632 = vrot.slane %v4630, 5
      %v4633 = vsel %vm1171, %v4628, %v4632
      %v4634 = vshrl.u32 %v4279, 16
      %v4636 = vrot.slane %v4634, 4
      %v4637 = vor.u32 %v4636, %v4632
      %v4638 = vrot.slane %v4637, 4
      %v4640 = vshll.u32 %v4280, 16
      %v4642 = vrot.slane %v4640, 5
      %v4643 = vsel %vm1171, %v4638, %v4642
      %v4645 = vshrl.u32 %v4281, 16
      %v4647 = vrot.slane %v4645, 4
      %v4648 = vshll.u32 %v4281, 16
      %v4650 = vrot.slane %v4648, 5
      %v4651 = vor.u32 %v4647, %v4650
      %v4652 = vrot.slane %v4651, 4
      %v4654 = vshll.u32 %v4282, 16
      %v4656 = vrot.slane %v4654, 5
      %v4657 = vsel %vm1171, %v4652, %v4656
      %v4658 = vshrl.u32 %v4282, 16
      %v4660 = vrot.slane %v4658, 4
      %v4661 = vor.u32 %v4660, %v4656
      %v4662 = vrot.slane %v4661, 4
      %v4664 = vshll.u32 %v4283, 16
      %v4666 = vrot.slane %v4664, 5
      %v4667 = vsel %vm1171, %v4662, %v4666
      %s4668 = scalar_lea.vmem %s1, 14
      %v4669 = vld [vmem:[%s4668] sm:$0x3]
      %v4670 = vunpack.c.l.b16 %v4297
      %v4671 = vunpack.c.l.b16 %v4307
      %v4672 = vunpack.c.l.b16 %v4321
      %v4673 = vunpack.c.l.b16 %v4331
      %v4674 = vunpack.c.l.b16 %v4345
      %v4675 = vunpack.c.l.b16 %v4355
      %v4676 = vunpack.c.l.b16 %v4369
      %v4677 = vunpack.c.l.b16 %v4379
      %v4678 = vunpack.c.l.b16 %v4393
      %v4679 = vunpack.c.l.b16 %v4403
      %v4680 = vunpack.c.l.b16 %v4417
      %v4681 = vunpack.c.l.b16 %v4427
      %v4682 = vunpack.c.l.b16 %v4441
      %v4683 = vunpack.c.l.b16 %v4451
      %v4684 = vunpack.c.l.b16 %v4465
      %v4685 = vunpack.c.l.b16 %v4475
      %v4686 = vunpack.c.l.b16 %v4489
      %v4687 = vunpack.c.l.b16 %v4499
      %v4688 = vunpack.c.l.b16 %v4513
      %v4689 = vunpack.c.l.b16 %v4523
      %v4690 = vunpack.c.l.b16 %v4537
      %v4691 = vunpack.c.l.b16 %v4547
      %v4692 = vunpack.c.l.b16 %v4561
      %v4693 = vunpack.c.l.b16 %v4571
      %v4694 = vunpack.c.l.b16 %v4585
      %v4695 = vunpack.c.l.b16 %v4595
      %v4696 = vunpack.c.l.b16 %v4609
      %v4697 = vunpack.c.l.b16 %v4619
      %v4698 = vunpack.c.l.b16 %v4633
      %v4699 = vunpack.c.l.b16 %v4643
      %v4700 = vunpack.c.l.b16 %v4657
      %v4701 = vunpack.c.l.b16 %v4667
      %v4702 = vpack.c.b16 %v4671, %v4670
      %v4703 = vpack.c.b16 %v4673, %v4672
      %v4704 = vpack.c.b16 %v4675, %v4674
      %v4705 = vpack.c.b16 %v4677, %v4676
      %v4706 = vpack.c.b16 %v4679, %v4678
      %v4707 = vpack.c.b16 %v4681, %v4680
      %v4708 = vpack.c.b16 %v4683, %v4682
      %v4709 = vpack.c.b16 %v4685, %v4684
      %v4710 = vpack.c.b16 %v4687, %v4686
      %v4711 = vpack.c.b16 %v4689, %v4688
      %v4712 = vpack.c.b16 %v4691, %v4690
      %v4713 = vpack.c.b16 %v4693, %v4692
      %v4714 = vpack.c.b16 %v4695, %v4694
      %v4715 = vpack.c.b16 %v4697, %v4696
      %v4716 = vpack.c.b16 %v4699, %v4698
      %v4717 = vpack.c.b16 %v4701, %v4700
      %v4719 = vsel %vm875, %v4702, 0
      %v4722 = vsel %vm875, %v4703, 0
      %v4725 = vsel %vm875, %v4704, 0
      %v4728 = vsel %vm875, %v4705, 0
      %v4731 = vsel %vm875, %v4706, 0
      %v4734 = vsel %vm875, %v4707, 0
      %v4737 = vsel %vm875, %v4708, 0
      %v4740 = vsel %vm875, %v4709, 0
      %v4743 = vsel %vm875, %v4710, 0
      %v4746 = vsel %vm875, %v4711, 0
      %v4749 = vsel %vm875, %v4712, 0
      %v4752 = vsel %vm875, %v4713, 0
      %v4755 = vsel %vm875, %v4714, 0
      %v4758 = vsel %vm875, %v4715, 0
      %v4761 = vsel %vm875, %v4716, 0
      %v4764 = vsel %vm875, %v4717, 0
      %v4767 = vsel %vm924, %v4669, 0
      %4769 = vmatprep.subr.bf16.mxu0 0
      %4770 = vmatpush1.bf16.msra.mxu0 %v4767
      %4771 = vmatprep.subr.bf16.mxu0 0
      %4772 = vmatpush1.bf16.msra.mxu0 0
      %4773 = vmatprep.subr.bf16.mxu0 0
      %4774 = vmatpush1.bf16.msra.mxu0 0
      %4775 = vmatprep.subr.bf16.mxu0 0
      %4776 = vmatpush1.bf16.msra.mxu0 0
      %4777 = vmatprep.subr.bf16.mxu0 0
      %4778 = vmatpush1.bf16.msra.mxu0 0
      %4779 = vmatprep.subr.bf16.mxu0 0
      %4780 = vmatpush1.bf16.msra.mxu0 0
      %4781 = vmatprep.subr.bf16.mxu0 0
      %4782 = vmatpush1.bf16.msra.mxu0 0
      %4783 = vmatprep.subr.bf16.mxu0 0
      %4784 = vmatpush1.bf16.msra.mxu0 0
      %4785 = vmatprep.subr.bf16.mxu0 0
      %4786 = vmatpush1.bf16.msra.mxu0 0
      %4787 = vmatprep.subr.bf16.mxu0 0
      %4788 = vmatpush1.bf16.msra.mxu0 0
      %4789 = vmatprep.subr.bf16.mxu0 0
      %4790 = vmatpush1.bf16.msra.mxu0 0
      %4791 = vmatprep.subr.bf16.mxu0 0
      %4792 = vmatpush1.bf16.msra.mxu0 0
      %4793 = vmatprep.subr.bf16.mxu0 0
      %4794 = vmatpush1.bf16.msra.mxu0 0
      %4795 = vmatprep.subr.bf16.mxu0 0
      %4796 = vmatpush1.bf16.msra.mxu0 0
      %4797 = vmatprep.subr.bf16.mxu0 0
      %4798 = vmatpush1.bf16.msra.mxu0 0
      %4799 = vmatprep.subr.bf16.mxu0 0
      %4800 = vmatpush1.bf16.msra.mxu0 0
      %4801 = vmatprep.mubr.bf16.mxu0 0
      %4802 = vmatmul.mubr.bf16.gmra.mrb[0].mxu0 %v4719
      %v4803 = vpop.f32.mrb[0].mxu0
      %v4804 = vadd.f32 0.0, %v4803
      %v4805 = vpop.f32.mrb[0].mxu0
      %v4806 = vpop.f32.mrb[0].mxu0
      %v4807 = vadd.f32 0.0, %v4806
      %v4808 = vpop.f32.mrb[0].mxu0
      %4809 = vmatprep.mubr.bf16.mxu0 0
      %4810 = vmatmul.mubr.bf16.gmra.mrb[0].mxu0 %v4722
      %v4811 = vpop.f32.mrb[0].mxu0
      %v4812 = vadd.f32 0.0, %v4811
      %v4813 = vpop.f32.mrb[0].mxu0
      %v4814 = vpop.f32.mrb[0].mxu0
      %v4815 = vadd.f32 0.0, %v4814
      %v4816 = vpop.f32.mrb[0].mxu0
      %4817 = vmatprep.mubr.bf16.mxu0 0
      %4818 = vmatmul.mubr.bf16.gmra.mrb[0].mxu0 %v4725
      %v4819 = vpop.f32.mrb[0].mxu0
      %v4820 = vadd.f32 0.0, %v4819
      %v4821 = vpop.f32.mrb[0].mxu0
      %v4822 = vpop.f32.mrb[0].mxu0
      %v4823 = vadd.f32 0.0, %v4822
      %v4824 = vpop.f32.mrb[0].mxu0
      %4825 = vmatprep.mubr.bf16.mxu0 0
      %4826 = vmatmul.mubr.bf16.gmra.mrb[0].mxu0 %v4728
      %v4827 = vpop.f32.mrb[0].mxu0
      %v4828 = vadd.f32 0.0, %v4827
      %v4829 = vpop.f32.mrb[0].mxu0
      %v4830 = vpop.f32.mrb[0].mxu0
      %v4831 = vadd.f32 0.0, %v4830
      %v4832 = vpop.f32.mrb[0].mxu0
      %4833 = vmatprep.mubr.bf16.mxu0 0
      %4834 = vmatmul.mubr.bf16.gmra.mrb[0].mxu0 %v4731
      %v4835 = vpop.f32.mrb[0].mxu0
      %v4836 = vadd.f32 0.0, %v4835
      %v4837 = vpop.f32.mrb[0].mxu0
      %v4838 = vpop.f32.mrb[0].mxu0
      %v4839 = vadd.f32 0.0, %v4838
      %v4840 = vpop.f32.mrb[0].mxu0
      %4841 = vmatprep.mubr.bf16.mxu0 0
      %4842 = vmatmul.mubr.bf16.gmra.mrb[0].mxu0 %v4734
      %v4843 = vpop.f32.mrb[0].mxu0
      %v4844 = vadd.f32 0.0, %v4843
      %v4845 = vpop.f32.mrb[0].mxu0
      %v4846 = vpop.f32.mrb[0].mxu0
      %v4847 = vadd.f32 0.0, %v4846
      %v4848 = vpop.f32.mrb[0].mxu0
      %4849 = vmatprep.mubr.bf16.mxu0 0
      %4850 = vmatmul.mubr.bf16.gmra.mrb[0].mxu0 %v4737
      %v4851 = vpop.f32.mrb[0].mxu0
      %v4852 = vadd.f32 0.0, %v4851
      %v4853 = vpop.f32.mrb[0].mxu0
      %v4854 = vpop.f32.mrb[0].mxu0
      %v4855 = vadd.f32 0.0, %v4854
      %v4856 = vpop.f32.mrb[0].mxu0
      %4857 = vmatprep.mubr.bf16.mxu0 0
      %4858 = vmatmul.mubr.bf16.gmra.mrb[0].mxu0 %v4740
      %v4859 = vpop.f32.mrb[0].mxu0
      %v4860 = vadd.f32 0.0, %v4859
      %v4861 = vpop.f32.mrb[0].mxu0
      %v4862 = vpop.f32.mrb[0].mxu0
      %v4863 = vadd.f32 0.0, %v4862
      %v4864 = vpop.f32.mrb[0].mxu0
      %4865 = vmatprep.mubr.bf16.mxu0 0
      %4866 = vmatmul.mubr.bf16.gmra.mrb[0].mxu0 %v4743
      %v4867 = vpop.f32.mrb[0].mxu0
      %v4868 = vadd.f32 0.0, %v4867
      %v4869 = vpop.f32.mrb[0].mxu0
      %v4870 = vpop.f32.mrb[0].mxu0
      %v4871 = vadd.f32 0.0, %v4870
      %v4872 = vpop.f32.mrb[0].mxu0
      %4873 = vmatprep.mubr.bf16.mxu0 0
      %4874 = vmatmul.mubr.bf16.gmra.mrb[0].mxu0 %v4746
      %v4875 = vpop.f32.mrb[0].mxu0
      %v4876 = vadd.f32 0.0, %v4875
      %v4877 = vpop.f32.mrb[0].mxu0
      %v4878 = vpop.f32.mrb[0].mxu0
      %v4879 = vadd.f32 0.0, %v4878
      %v4880 = vpop.f32.mrb[0].mxu0
      %4881 = vmatprep.mubr.bf16.mxu0 0
      %4882 = vmatmul.mubr.bf16.gmra.mrb[0].mxu0 %v4749
      %v4883 = vpop.f32.mrb[0].mxu0
      %v4884 = vadd.f32 0.0, %v4883
      %v4885 = vpop.f32.mrb[0].mxu0
      %v4886 = vpop.f32.mrb[0].mxu0
      %v4887 = vadd.f32 0.0, %v4886
      %v4888 = vpop.f32.mrb[0].mxu0
      %4889 = vmatprep.mubr.bf16.mxu0 0
      %4890 = vmatmul.mubr.bf16.gmra.mrb[0].mxu0 %v4752
      %v4891 = vpop.f32.mrb[0].mxu0
      %v4892 = vadd.f32 0.0, %v4891
      %v4893 = vpop.f32.mrb[0].mxu0
      %v4894 = vpop.f32.mrb[0].mxu0
      %v4895 = vadd.f32 0.0, %v4894
      %v4896 = vpop.f32.mrb[0].mxu0
      %4897 = vmatprep.mubr.bf16.mxu0 0
      %4898 = vmatmul.mubr.bf16.gmra.mrb[0].mxu0 %v4755
      %v4899 = vpop.f32.mrb[0].mxu0
      %v4900 = vadd.f32 0.0, %v4899
      %v4901 = vpop.f32.mrb[0].mxu0
      %v4902 = vpop.f32.mrb[0].mxu0
      %v4903 = vadd.f32 0.0, %v4902
      %v4904 = vpop.f32.mrb[0].mxu0
      %4905 = vmatprep.mubr.bf16.mxu0 0
      %4906 = vmatmul.mubr.bf16.gmra.mrb[0].mxu0 %v4758
      %v4907 = vpop.f32.mrb[0].mxu0
      %v4908 = vadd.f32 0.0, %v4907
      %v4909 = vpop.f32.mrb[0].mxu0
      %v4910 = vpop.f32.mrb[0].mxu0
      %v4911 = vadd.f32 0.0, %v4910
      %v4912 = vpop.f32.mrb[0].mxu0
      %4913 = vmatprep.mubr.bf16.mxu0 0
      %4914 = vmatmul.mubr.bf16.gmra.mrb[0].mxu0 %v4761
      %v4915 = vpop.f32.mrb[0].mxu0
      %v4916 = vadd.f32 0.0, %v4915
      %v4917 = vpop.f32.mrb[0].mxu0
      %v4918 = vpop.f32.mrb[0].mxu0
      %v4919 = vadd.f32 0.0, %v4918
      %v4920 = vpop.f32.mrb[0].mxu0
      %4921 = vmatprep.mubr.bf16.mxu0 0
      %4922 = vmatmul.mubr.bf16.gmra.mrb[0].mxu0 %v4764
      %v4923 = vpop.f32.mrb[0].mxu0
      %v4924 = vadd.f32 0.0, %v4923
      %v4925 = vpop.f32.mrb[0].mxu0
      %v4926 = vpop.f32.mrb[0].mxu0
      %v4927 = vadd.f32 0.0, %v4926
      %v4928 = vpop.f32.mrb[0].mxu0
      %4929 = vdwg.mxu0
      %v4930 = vadd.f32 %v4204, %v4804
      %v4931 = vadd.f32 %v4205, %v4807
      %v4932 = vadd.f32 %v4206, %v4812
      %v4933 = vadd.f32 %v4207, %v4815
      %v4934 = vadd.f32 %v4208, %v4820
      %v4935 = vadd.f32 %v4209, %v4823
      %v4936 = vadd.f32 %v4210, %v4828
      %v4937 = vadd.f32 %v4211, %v4831
      %v4938 = vadd.f32 %v4212, %v4836
      %v4939 = vadd.f32 %v4213, %v4839
      %v4940 = vadd.f32 %v4214, %v4844
      %v4941 = vadd.f32 %v4215, %v4847
      %v4942 = vadd.f32 %v4216, %v4852
      %v4943 = vadd.f32 %v4217, %v4855
      %v4944 = vadd.f32 %v4218, %v4860
      %v4945 = vadd.f32 %v4219, %v4863
      %v4946 = vadd.f32 %v4220, %v4868
      %v4947 = vadd.f32 %v4221, %v4871
      %v4948 = vadd.f32 %v4222, %v4876
      %v4949 = vadd.f32 %v4223, %v4879
      %v4950 = vadd.f32 %v4224, %v4884
      %v4951 = vadd.f32 %v4225, %v4887
      %v4952 = vadd.f32 %v4226, %v4892
      %v4953 = vadd.f32 %v4227, %v4895
      %v4954 = vadd.f32 %v4228, %v4900
      %v4955 = vadd.f32 %v4229, %v4903
      %v4956 = vadd.f32 %v4230, %v4908
      %v4957 = vadd.f32 %v4231, %v4911
      %v4958 = vadd.f32 %v4232, %v4916
      %v4959 = vadd.f32 %v4233, %v4919
      %v4960 = vadd.f32 %v4234, %v4924
      %v4961 = vadd.f32 %v4235, %v4927
      %v4962 = vld [vmem:[%s3877] sm:$0xe]
      %v4963 = vld [vmem:[%s3877 + $0xc] sm:$0xe]
      %v4964 = vld [vmem:[%s3877 + $0x18] sm:$0xe]
      %v4965 = vld [vmem:[%s3877 + $0x24] sm:$0xe]
      %v4966 = vld [vmem:[%s3877 + $0x30] sm:$0xe]
      %v4967 = vld [vmem:[%s3877 + $0x3c] sm:$0xe]
      %v4968 = vld [vmem:[%s3877 + $0x48] sm:$0xe]
      %v4969 = vld [vmem:[%s3877 + $0x54] sm:$0xe]
      %v4970 = vld [vmem:[%s3877 + $0x60] sm:$0xe]
      %v4971 = vld [vmem:[%s3877 + $0x6c] sm:$0xe]
      %v4972 = vld [vmem:[%s3877 + $0x78] sm:$0xe]
      %v4973 = vld [vmem:[%s3877 + $0x84] sm:$0xe]
      %v4974 = vld [vmem:[%s3877 + $0x90] sm:$0xe]
      %v4975 = vld [vmem:[%s3877 + $0x9c] sm:$0xe]
      %v4976 = vld [vmem:[%s3877 + $0xa8] sm:$0xe]
      %v4977 = vld [vmem:[%s3877 + $0xb4] sm:$0xe]
      %v5026 = vrot.slane %v4962, 5
      %v5027 = vrot.slane %v5026, 4
      %v5028 = vrot.slane %v4237, 5
      %v5029 = vsel %vm1916, %v5027, %v5028
      %v5030 = vrot.slane %v5028, 4
      %v5031 = vrot.slane %v4238, 5
      %v5032 = vsel %vm1916, %v5030, %v5031
      %v5033 = vrot.slane %v4963, 5
      %v5034 = vrot.slane %v5033, 4
      %v5035 = vrot.slane %v4240, 5
      %v5036 = vsel %vm1916, %v5034, %v5035
      %v5037 = vrot.slane %v5035, 4
      %v5038 = vrot.slane %v4241, 5
      %v5039 = vsel %vm1916, %v5037, %v5038
      %v5040 = vrot.slane %v4964, 5
      %v5041 = vrot.slane %v5040, 4
      %v5042 = vrot.slane %v4243, 5
      %v5043 = vsel %vm1916, %v5041, %v5042
      %v5044 = vrot.slane %v5042, 4
      %v5045 = vrot.slane %v4244, 5
      %v5046 = vsel %vm1916, %v5044, %v5045
      %v5047 = vrot.slane %v4965, 5
      %v5048 = vrot.slane %v5047, 4
      %v5049 = vrot.slane %v4246, 5
      %v5050 = vsel %vm1916, %v5048, %v5049
      %v5051 = vrot.slane %v5049, 4
      %v5052 = vrot.slane %v4247, 5
      %v5053 = vsel %vm1916, %v5051, %v5052
      %v5054 = vrot.slane %v4966, 5
      %v5055 = vrot.slane %v5054, 4
      %v5056 = vrot.slane %v4249, 5
      %v5057 = vsel %vm1916, %v5055, %v5056
      %v5058 = vrot.slane %v5056, 4
      %v5059 = vrot.slane %v4250, 5
      %v5060 = vsel %vm1916, %v5058, %v5059
      %v5061 = vrot.slane %v4967, 5
      %v5062 = vrot.slane %v5061, 4
      %v5063 = vrot.slane %v4252, 5
      %v5064 = vsel %vm1916, %v5062, %v5063
      %v5065 = vrot.slane %v5063, 4
      %v5066 = vrot.slane %v4253, 5
      %v5067 = vsel %vm1916, %v5065, %v5066
      %v5068 = vrot.slane %v4968, 5
      %v5069 = vrot.slane %v5068, 4
      %v5070 = vrot.slane %v4255, 5
      %v5071 = vsel %vm1916, %v5069, %v5070
      %v5072 = vrot.slane %v5070, 4
      %v5073 = vrot.slane %v4256, 5
      %v5074 = vsel %vm1916, %v5072, %v5073
      %v5075 = vrot.slane %v4969, 5
      %v5076 = vrot.slane %v5075, 4
      %v5077 = vrot.slane %v4258, 5
      %v5078 = vsel %vm1916, %v5076, %v5077
      %v5079 = vrot.slane %v5077, 4
      %v5080 = vrot.slane %v4259, 5
      %v5081 = vsel %vm1916, %v5079, %v5080
      %v5082 = vrot.slane %v4970, 5
      %v5083 = vrot.slane %v5082, 4
      %v5084 = vrot.slane %v4261, 5
      %v5085 = vsel %vm1916, %v5083, %v5084
      %v5086 = vrot.slane %v5084, 4
      %v5087 = vrot.slane %v4262, 5
      %v5088 = vsel %vm1916, %v5086, %v5087
      %v5089 = vrot.slane %v4971, 5
      %v5090 = vrot.slane %v5089, 4
      %v5091 = vrot.slane %v4264, 5
      %v5092 = vsel %vm1916, %v5090, %v5091
      %v5093 = vrot.slane %v5091, 4
      %v5094 = vrot.slane %v4265, 5
      %v5095 = vsel %vm1916, %v5093, %v5094
      %v5096 = vrot.slane %v4972, 5
      %v5097 = vrot.slane %v5096, 4
      %v5098 = vrot.slane %v4267, 5
      %v5099 = vsel %vm1916, %v5097, %v5098
      %v5100 = vrot.slane %v5098, 4
      %v5101 = vrot.slane %v4268, 5
      %v5102 = vsel %vm1916, %v5100, %v5101
      %v5103 = vrot.slane %v4973, 5
      %v5104 = vrot.slane %v5103, 4
      %v5105 = vrot.slane %v4270, 5
      %v5106 = vsel %vm1916, %v5104, %v5105
      %v5107 = vrot.slane %v5105, 4
      %v5108 = vrot.slane %v4271, 5
      %v5109 = vsel %vm1916, %v5107, %v5108
      %v5110 = vrot.slane %v4974, 5
      %v5111 = vrot.slane %v5110, 4
      %v5112 = vrot.slane %v4273, 5
      %v5113 = vsel %vm1916, %v5111, %v5112
      %v5114 = vrot.slane %v5112, 4
      %v5115 = vrot.slane %v4274, 5
      %v5116 = vsel %vm1916, %v5114, %v5115
      %v5117 = vrot.slane %v4975, 5
      %v5118 = vrot.slane %v5117, 4
      %v5119 = vrot.slane %v4276, 5
      %v5120 = vsel %vm1916, %v5118, %v5119
      %v5121 = vrot.slane %v5119, 4
      %v5122 = vrot.slane %v4277, 5
      %v5123 = vsel %vm1916, %v5121, %v5122
      %v5124 = vrot.slane %v4976, 5
      %v5125 = vrot.slane %v5124, 4
      %v5126 = vrot.slane %v4279, 5
      %v5127 = vsel %vm1916, %v5125, %v5126
      %v5128 = vrot.slane %v5126, 4
      %v5129 = vrot.slane %v4280, 5
      %v5130 = vsel %vm1916, %v5128, %v5129
      %v5131 = vrot.slane %v4977, 5
      %v5132 = vrot.slane %v5131, 4
      %v5133 = vrot.slane %v4282, 5
      %v5134 = vsel %vm1916, %v5132, %v5133
      %v5135 = vrot.slane %v5133, 4
      %v5136 = vrot.slane %v4283, 5
      %v5137 = vsel %vm1916, %v5135, %v5136
      %s5138 = scalar_lea.vmem %s1, 16
      %v5139 = vld [vmem:[%s5138] sm:$0x3]
      %v5140 = vunpack.c.l.b16 %v5029
      %v5141 = vunpack.c.l.b16 %v5032
      %v5142 = vunpack.c.l.b16 %v5036
      %v5143 = vunpack.c.l.b16 %v5039
      %v5144 = vunpack.c.l.b16 %v5043
      %v5145 = vunpack.c.l.b16 %v5046
      %v5146 = vunpack.c.l.b16 %v5050
      %v5147 = vunpack.c.l.b16 %v5053
      %v5148 = vunpack.c.l.b16 %v5057
      %v5149 = vunpack.c.l.b16 %v5060
      %v5150 = vunpack.c.l.b16 %v5064
      %v5151 = vunpack.c.l.b16 %v5067
      %v5152 = vunpack.c.l.b16 %v5071
      %v5153 = vunpack.c.l.b16 %v5074
      %v5154 = vunpack.c.l.b16 %v5078
      %v5155 = vunpack.c.l.b16 %v5081
      %v5156 = vunpack.c.l.b16 %v5085
      %v5157 = vunpack.c.l.b16 %v5088
      %v5158 = vunpack.c.l.b16 %v5092
      %v5159 = vunpack.c.l.b16 %v5095
      %v5160 = vunpack.c.l.b16 %v5099
      %v5161 = vunpack.c.l.b16 %v5102
      %v5162 = vunpack.c.l.b16 %v5106
      %v5163 = vunpack.c.l.b16 %v5109
      %v5164 = vunpack.c.l.b16 %v5113
      %v5165 = vunpack.c.l.b16 %v5116
      %v5166 = vunpack.c.l.b16 %v5120
      %v5167 = vunpack.c.l.b16 %v5123
      %v5168 = vunpack.c.l.b16 %v5127
      %v5169 = vunpack.c.l.b16 %v5130
      %v5170 = vunpack.c.l.b16 %v5134
      %v5171 = vunpack.c.l.b16 %v5137
      %v5172 = vpack.c.b16 %v5141, %v5140
      %v5173 = vpack.c.b16 %v5143, %v5142
      %v5174 = vpack.c.b16 %v5145, %v5144
      %v5175 = vpack.c.b16 %v5147, %v5146
      %v5176 = vpack.c.b16 %v5149, %v5148
      %v5177 = vpack.c.b16 %v5151, %v5150
      %v5178 = vpack.c.b16 %v5153, %v5152
      %v5179 = vpack.c.b16 %v5155, %v5154
      %v5180 = vpack.c.b16 %v5157, %v5156
      %v5181 = vpack.c.b16 %v5159, %v5158
      %v5182 = vpack.c.b16 %v5161, %v5160
      %v5183 = vpack.c.b16 %v5163, %v5162
      %v5184 = vpack.c.b16 %v5165, %v5164
      %v5185 = vpack.c.b16 %v5167, %v5166
      %v5186 = vpack.c.b16 %v5169, %v5168
      %v5187 = vpack.c.b16 %v5171, %v5170
      %v5189 = vsel %vm875, %v5172, 0
      %v5192 = vsel %vm875, %v5173, 0
      %v5195 = vsel %vm875, %v5174, 0
      %v5198 = vsel %vm875, %v5175, 0
      %v5201 = vsel %vm875, %v5176, 0
      %v5204 = vsel %vm875, %v5177, 0
      %v5207 = vsel %vm875, %v5178, 0
      %v5210 = vsel %vm875, %v5179, 0
      %v5213 = vsel %vm875, %v5180, 0
      %v5216 = vsel %vm875, %v5181, 0
      %v5219 = vsel %vm875, %v5182, 0
      %v5222 = vsel %vm875, %v5183, 0
      %v5225 = vsel %vm875, %v5184, 0
      %v5228 = vsel %vm875, %v5185, 0
      %v5231 = vsel %vm875, %v5186, 0
      %v5234 = vsel %vm875, %v5187, 0
      %v5237 = vsel %vm924, %v5139, 0
      %5239 = vmatprep.subr.bf16.mxu0 0
      %5240 = vmatpush1.bf16.msra.mxu0 %v5237
      %5241 = vmatprep.subr.bf16.mxu0 0
      %5242 = vmatpush1.bf16.msra.mxu0 0
      %5243 = vmatprep.subr.bf16.mxu0 0
      %5244 = vmatpush1.bf16.msra.mxu0 0
      %5245 = vmatprep.subr.bf16.mxu0 0
      %5246 = vmatpush1.bf16.msra.mxu0 0
      %5247 = vmatprep.subr.bf16.mxu0 0
      %5248 = vmatpush1.bf16.msra.mxu0 0
      %5249 = vmatprep.subr.bf16.mxu0 0
      %5250 = vmatpush1.bf16.msra.mxu0 0
      %5251 = vmatprep.subr.bf16.mxu0 0
      %5252 = vmatpush1.bf16.msra.mxu0 0
      %5253 = vmatprep.subr.bf16.mxu0 0
      %5254 = vmatpush1.bf16.msra.mxu0 0
      %5255 = vmatprep.subr.bf16.mxu0 0
      %5256 = vmatpush1.bf16.msra.mxu0 0
      %5257 = vmatprep.subr.bf16.mxu0 0
      %5258 = vmatpush1.bf16.msra.mxu0 0
      %5259 = vmatprep.subr.bf16.mxu0 0
      %5260 = vmatpush1.bf16.msra.mxu0 0
      %5261 = vmatprep.subr.bf16.mxu0 0
      %5262 = vmatpush1.bf16.msra.mxu0 0
      %5263 = vmatprep.subr.bf16.mxu0 0
      %5264 = vmatpush1.bf16.msra.mxu0 0
      %5265 = vmatprep.subr.bf16.mxu0 0
      %5266 = vmatpush1.bf16.msra.mxu0 0
      %5267 = vmatprep.subr.bf16.mxu0 0
      %5268 = vmatpush1.bf16.msra.mxu0 0
      %5269 = vmatprep.subr.bf16.mxu0 0
      %5270 = vmatpush1.bf16.msra.mxu0 0
      %5271 = vmatprep.mubr.bf16.mxu0 0
      %5272 = vmatmul.mubr.bf16.gmra.mrb[0].mxu0 %v5189
      %v5273 = vpop.f32.mrb[0].mxu0
      %v5274 = vadd.f32 0.0, %v5273
      %v5275 = vpop.f32.mrb[0].mxu0
      %v5276 = vpop.f32.mrb[0].mxu0
      %v5277 = vadd.f32 0.0, %v5276
      %v5278 = vpop.f32.mrb[0].mxu0
      %5279 = vmatprep.mubr.bf16.mxu0 0
      %5280 = vmatmul.mubr.bf16.gmra.mrb[0].mxu0 %v5192
      %v5281 = vpop.f32.mrb[0].mxu0
      %v5282 = vadd.f32 0.0, %v5281
      %v5283 = vpop.f32.mrb[0].mxu0
      %v5284 = vpop.f32.mrb[0].mxu0
      %v5285 = vadd.f32 0.0, %v5284
      %v5286 = vpop.f32.mrb[0].mxu0
      %5287 = vmatprep.mubr.bf16.mxu0 0
      %5288 = vmatmul.mubr.bf16.gmra.mrb[0].mxu0 %v5195
      %v5289 = vpop.f32.mrb[0].mxu0
      %v5290 = vadd.f32 0.0, %v5289
      %v5291 = vpop.f32.mrb[0].mxu0
      %v5292 = vpop.f32.mrb[0].mxu0
      %v5293 = vadd.f32 0.0, %v5292
      %v5294 = vpop.f32.mrb[0].mxu0
      %5295 = vmatprep.mubr.bf16.mxu0 0
      %5296 = vmatmul.mubr.bf16.gmra.mrb[0].mxu0 %v5198
      %v5297 = vpop.f32.mrb[0].mxu0
      %v5298 = vadd.f32 0.0, %v5297
      %v5299 = vpop.f32.mrb[0].mxu0
      %v5300 = vpop.f32.mrb[0].mxu0
      %v5301 = vadd.f32 0.0, %v5300
      %v5302 = vpop.f32.mrb[0].mxu0
      %5303 = vmatprep.mubr.bf16.mxu0 0
      %5304 = vmatmul.mubr.bf16.gmra.mrb[0].mxu0 %v5201
      %v5305 = vpop.f32.mrb[0].mxu0
      %v5306 = vadd.f32 0.0, %v5305
      %v5307 = vpop.f32.mrb[0].mxu0
      %v5308 = vpop.f32.mrb[0].mxu0
      %v5309 = vadd.f32 0.0, %v5308
      %v5310 = vpop.f32.mrb[0].mxu0
      %5311 = vmatprep.mubr.bf16.mxu0 0
      %5312 = vmatmul.mubr.bf16.gmra.mrb[0].mxu0 %v5204
      %v5313 = vpop.f32.mrb[0].mxu0
      %v5314 = vadd.f32 0.0, %v5313
      %v5315 = vpop.f32.mrb[0].mxu0
      %v5316 = vpop.f32.mrb[0].mxu0
      %v5317 = vadd.f32 0.0, %v5316
      %v5318 = vpop.f32.mrb[0].mxu0
      %5319 = vmatprep.mubr.bf16.mxu0 0
      %5320 = vmatmul.mubr.bf16.gmra.mrb[0].mxu0 %v5207
      %v5321 = vpop.f32.mrb[0].mxu0
      %v5322 = vadd.f32 0.0, %v5321
      %v5323 = vpop.f32.mrb[0].mxu0
      %v5324 = vpop.f32.mrb[0].mxu0
      %v5325 = vadd.f32 0.0, %v5324
      %v5326 = vpop.f32.mrb[0].mxu0
      %5327 = vmatprep.mubr.bf16.mxu0 0
      %5328 = vmatmul.mubr.bf16.gmra.mrb[0].mxu0 %v5210
      %v5329 = vpop.f32.mrb[0].mxu0
      %v5330 = vadd.f32 0.0, %v5329
      %v5331 = vpop.f32.mrb[0].mxu0
      %v5332 = vpop.f32.mrb[0].mxu0
      %v5333 = vadd.f32 0.0, %v5332
      %v5334 = vpop.f32.mrb[0].mxu0
      %5335 = vmatprep.mubr.bf16.mxu0 0
      %5336 = vmatmul.mubr.bf16.gmra.mrb[0].mxu0 %v5213
      %v5337 = vpop.f32.mrb[0].mxu0
      %v5338 = vadd.f32 0.0, %v5337
      %v5339 = vpop.f32.mrb[0].mxu0
      %v5340 = vpop.f32.mrb[0].mxu0
      %v5341 = vadd.f32 0.0, %v5340
      %v5342 = vpop.f32.mrb[0].mxu0
      %5343 = vmatprep.mubr.bf16.mxu0 0
      %5344 = vmatmul.mubr.bf16.gmra.mrb[0].mxu0 %v5216
      %v5345 = vpop.f32.mrb[0].mxu0
      %v5346 = vadd.f32 0.0, %v5345
      %v5347 = vpop.f32.mrb[0].mxu0
      %v5348 = vpop.f32.mrb[0].mxu0
      %v5349 = vadd.f32 0.0, %v5348
      %v5350 = vpop.f32.mrb[0].mxu0
      %5351 = vmatprep.mubr.bf16.mxu0 0
      %5352 = vmatmul.mubr.bf16.gmra.mrb[0].mxu0 %v5219
      %v5353 = vpop.f32.mrb[0].mxu0
      %v5354 = vadd.f32 0.0, %v5353
      %v5355 = vpop.f32.mrb[0].mxu0
      %v5356 = vpop.f32.mrb[0].mxu0
      %v5357 = vadd.f32 0.0, %v5356
      %v5358 = vpop.f32.mrb[0].mxu0
      %5359 = vmatprep.mubr.bf16.mxu0 0
      %5360 = vmatmul.mubr.bf16.gmra.mrb[0].mxu0 %v5222
      %v5361 = vpop.f32.mrb[0].mxu0
      %v5362 = vadd.f32 0.0, %v5361
      %v5363 = vpop.f32.mrb[0].mxu0
      %v5364 = vpop.f32.mrb[0].mxu0
      %v5365 = vadd.f32 0.0, %v5364
      %v5366 = vpop.f32.mrb[0].mxu0
      %5367 = vmatprep.mubr.bf16.mxu0 0
      %5368 = vmatmul.mubr.bf16.gmra.mrb[0].mxu0 %v5225
      %v5369 = vpop.f32.mrb[0].mxu0
      %v5370 = vadd.f32 0.0, %v5369
      %v5371 = vpop.f32.mrb[0].mxu0
      %v5372 = vpop.f32.mrb[0].mxu0
      %v5373 = vadd.f32 0.0, %v5372
      %v5374 = vpop.f32.mrb[0].mxu0
      %5375 = vmatprep.mubr.bf16.mxu0 0
      %5376 = vmatmul.mubr.bf16.gmra.mrb[0].mxu0 %v5228
      %v5377 = vpop.f32.mrb[0].mxu0
      %v5378 = vadd.f32 0.0, %v5377
      %v5379 = vpop.f32.mrb[0].mxu0
      %v5380 = vpop.f32.mrb[0].mxu0
      %v5381 = vadd.f32 0.0, %v5380
      %v5382 = vpop.f32.mrb[0].mxu0
      %5383 = vmatprep.mubr.bf16.mxu0 0
      %5384 = vmatmul.mubr.bf16.gmra.mrb[0].mxu0 %v5231
      %v5385 = vpop.f32.mrb[0].mxu0
      %v5386 = vadd.f32 0.0, %v5385
      %v5387 = vpop.f32.mrb[0].mxu0
      %v5388 = vpop.f32.mrb[0].mxu0
      %v5389 = vadd.f32 0.0, %v5388
      %v5390 = vpop.f32.mrb[0].mxu0
      %5391 = vmatprep.mubr.bf16.mxu0 0
      %5392 = vmatmul.mubr.bf16.gmra.mrb[0].mxu0 %v5234
      %v5393 = vpop.f32.mrb[0].mxu0
      %v5394 = vadd.f32 0.0, %v5393
      %v5395 = vpop.f32.mrb[0].mxu0
      %v5396 = vpop.f32.mrb[0].mxu0
      %v5397 = vadd.f32 0.0, %v5396
      %v5398 = vpop.f32.mrb[0].mxu0
      %5399 = vdwg.mxu0
      %v5400 = vadd.f32 %v4930, %v5274
      %v5401 = vadd.f32 %v4931, %v5277
      %v5402 = vadd.f32 %v4932, %v5282
      %v5403 = vadd.f32 %v4933, %v5285
      %v5404 = vadd.f32 %v4934, %v5290
      %v5405 = vadd.f32 %v4935, %v5293
      %v5406 = vadd.f32 %v4936, %v5298
      %v5407 = vadd.f32 %v4937, %v5301
      %v5408 = vadd.f32 %v4938, %v5306
      %v5409 = vadd.f32 %v4939, %v5309
      %v5410 = vadd.f32 %v4940, %v5314
      %v5411 = vadd.f32 %v4941, %v5317
      %v5412 = vadd.f32 %v4942, %v5322
      %v5413 = vadd.f32 %v4943, %v5325
      %v5414 = vadd.f32 %v4944, %v5330
      %v5415 = vadd.f32 %v4945, %v5333
      %v5416 = vadd.f32 %v4946, %v5338
      %v5417 = vadd.f32 %v4947, %v5341
      %v5418 = vadd.f32 %v4948, %v5346
      %v5419 = vadd.f32 %v4949, %v5349
      %v5420 = vadd.f32 %v4950, %v5354
      %v5421 = vadd.f32 %v4951, %v5357
      %v5422 = vadd.f32 %v4952, %v5362
      %v5423 = vadd.f32 %v4953, %v5365
      %v5424 = vadd.f32 %v4954, %v5370
      %v5425 = vadd.f32 %v4955, %v5373
      %v5426 = vadd.f32 %v4956, %v5378
      %v5427 = vadd.f32 %v4957, %v5381
      %v5428 = vadd.f32 %v4958, %v5386
      %v5429 = vadd.f32 %v4959, %v5389
      %v5430 = vadd.f32 %v4960, %v5394
      %v5431 = vadd.f32 %v4961, %v5397
      %v5432 = vmax.f32 %v5400, 0.0
      %v5433 = vmax.f32 %v5401, 0.0
      %v5434 = vmax.f32 %v5402, 0.0
      %v5435 = vmax.f32 %v5403, 0.0
      %v5436 = vmax.f32 %v5404, 0.0
      %v5437 = vmax.f32 %v5405, 0.0
      %v5438 = vmax.f32 %v5406, 0.0
      %v5439 = vmax.f32 %v5407, 0.0
      %v5440 = vmax.f32 %v5408, 0.0
      %v5441 = vmax.f32 %v5409, 0.0
      %v5442 = vmax.f32 %v5410, 0.0
      %v5443 = vmax.f32 %v5411, 0.0
      %v5444 = vmax.f32 %v5412, 0.0
      %v5445 = vmax.f32 %v5413, 0.0
      %v5446 = vmax.f32 %v5414, 0.0
      %v5447 = vmax.f32 %v5415, 0.0
      %v5448 = vmax.f32 %v5416, 0.0
      %v5449 = vmax.f32 %v5417, 0.0
      %v5450 = vmax.f32 %v5418, 0.0
      %v5451 = vmax.f32 %v5419, 0.0
      %v5452 = vmax.f32 %v5420, 0.0
      %v5453 = vmax.f32 %v5421, 0.0
      %v5454 = vmax.f32 %v5422, 0.0
      %v5455 = vmax.f32 %v5423, 0.0
      %v5456 = vmax.f32 %v5424, 0.0
      %v5457 = vmax.f32 %v5425, 0.0
      %v5458 = vmax.f32 %v5426, 0.0
      %v5459 = vmax.f32 %v5427, 0.0
      %v5460 = vmax.f32 %v5428, 0.0
      %v5461 = vmax.f32 %v5429, 0.0
      %v5462 = vmax.f32 %v5430, 0.0
      %v5463 = vmax.f32 %v5431, 0.0
      %v5464 = vpack.c.bf16 %v5433, %v5432
      %v5465 = vpack.c.bf16 %v5435, %v5434
      %v5466 = vpack.c.bf16 %v5437, %v5436
      %v5467 = vpack.c.bf16 %v5439, %v5438
      %v5468 = vpack.c.bf16 %v5441, %v5440
      %v5469 = vpack.c.bf16 %v5443, %v5442
      %v5470 = vpack.c.bf16 %v5445, %v5444
      %v5471 = vpack.c.bf16 %v5447, %v5446
      %v5472 = vpack.c.bf16 %v5449, %v5448
      %v5473 = vpack.c.bf16 %v5451, %v5450
      %v5474 = vpack.c.bf16 %v5453, %v5452
      %v5475 = vpack.c.bf16 %v5455, %v5454
      %v5476 = vpack.c.bf16 %v5457, %v5456
      %v5477 = vpack.c.bf16 %v5459, %v5458
      %v5478 = vpack.c.bf16 %v5461, %v5460
      %v5479 = vpack.c.bf16 %v5463, %v5462
      %vm5480 = vcmask 60416
      %5481 = vst.msk [vmem:[#allocation3] sm:$0xf] %vm5480, 0
      %5482 = vst.msk [vmem:[#allocation3 + $0x4] sm:$0xf] %vm5480, 0
      %vm5483 = vcmask 57344
      %vm5484 = vmand %vm5483, %vm314
      %v5485 = vld [vmem:[#allocation3 + $0x8] sm:$0x1]
      %v5486 = vsel %vm5484, 0, %v5485
      %5487 = vst [vmem:[#allocation3 + $0x8] sm:$0x1] %v5486
      %5488 = vst.msk [vmem:[#allocation3 + $0xc] sm:$0xf] %vm5480, 0
      %5489 = vst.msk [vmem:[#allocation3 + $0x10] sm:$0xf] %vm5480, 0
      %v5490 = vld [vmem:[#allocation3 + $0x14] sm:$0x1]
      %v5491 = vsel %vm5484, 0, %v5490
      %5492 = vst [vmem:[#allocation3 + $0x14] sm:$0x1] %v5491
      %5493 = vst.msk [vmem:[#allocation3 + $0x18] sm:$0xf] %vm5480, 0
      %5494 = vst.msk [vmem:[#allocation3 + $0x1c] sm:$0xf] %vm5480, 0
      %v5495 = vld [vmem:[#allocation3 + $0x20] sm:$0x1]
      %v5496 = vsel %vm5484, 0, %v5495
      %5497 = vst [vmem:[#allocation3 + $0x20] sm:$0x1] %v5496
      %5498 = vst.msk [vmem:[#allocation3 + $0x24] sm:$0xf] %vm5480, 0
      %5499 = vst.msk [vmem:[#allocation3 + $0x28] sm:$0xf] %vm5480, 0
      %v5500 = vld [vmem:[#allocation3 + $0x2c] sm:$0x1]
      %v5501 = vsel %vm5484, 0, %v5500
      %5502 = vst [vmem:[#allocation3 + $0x2c] sm:$0x1] %v5501
      %5503 = vst.msk [vmem:[#allocation3 + $0x30] sm:$0xf] %vm5480, 0
      %5504 = vst.msk [vmem:[#allocation3 + $0x34] sm:$0xf] %vm5480, 0
      %v5505 = vld [vmem:[#allocation3 + $0x38] sm:$0x1]
      %v5506 = vsel %vm5484, 0, %v5505
      %5507 = vst [vmem:[#allocation3 + $0x38] sm:$0x1] %v5506
      %5508 = vst.msk [vmem:[#allocation3 + $0x3c] sm:$0xf] %vm5480, 0
      %5509 = vst.msk [vmem:[#allocation3 + $0x40] sm:$0xf] %vm5480, 0
      %v5510 = vld [vmem:[#allocation3 + $0x44] sm:$0x1]
      %v5511 = vsel %vm5484, 0, %v5510
      %5512 = vst [vmem:[#allocation3 + $0x44] sm:$0x1] %v5511
      %5513 = vst.msk [vmem:[#allocation3 + $0x48] sm:$0xf] %vm5480, 0
      %5514 = vst.msk [vmem:[#allocation3 + $0x4c] sm:$0xf] %vm5480, 0
      %v5515 = vld [vmem:[#allocation3 + $0x50] sm:$0x1]
      %v5516 = vsel %vm5484, 0, %v5515
      %5517 = vst [vmem:[#allocation3 + $0x50] sm:$0x1] %v5516
      %5518 = vst.msk [vmem:[#allocation3 + $0x54] sm:$0xf] %vm5480, 0
      %5519 = vst.msk [vmem:[#allocation3 + $0x58] sm:$0xf] %vm5480, 0
      %v5520 = vld [vmem:[#allocation3 + $0x5c] sm:$0x1]
      %v5521 = vsel %vm5484, 0, %v5520
      %5522 = vst [vmem:[#allocation3 + $0x5c] sm:$0x1] %v5521
      %5523 = vst.msk [vmem:[#allocation3 + $0x60] sm:$0xf] %vm5480, 0
      %5524 = vst.msk [vmem:[#allocation3 + $0x64] sm:$0xf] %vm5480, 0
      %v5525 = vld [vmem:[#allocation3 + $0x68] sm:$0x1]
      %v5526 = vsel %vm5484, 0, %v5525
      %5527 = vst [vmem:[#allocation3 + $0x68] sm:$0x1] %v5526
      %5528 = vst.msk [vmem:[#allocation3 + $0x6c] sm:$0xf] %vm5480, 0
      %5529 = vst.msk [vmem:[#allocation3 + $0x70] sm:$0xf] %vm5480, 0
      %v5530 = vld [vmem:[#allocation3 + $0x74] sm:$0x1]
      %v5531 = vsel %vm5484, 0, %v5530
      %5532 = vst [vmem:[#allocation3 + $0x74] sm:$0x1] %v5531
      %5533 = vst.msk [vmem:[#allocation3 + $0x78] sm:$0xf] %vm5480, 0
      %5534 = vst.msk [vmem:[#allocation3 + $0x7c] sm:$0xf] %vm5480, 0
      %v5535 = vld [vmem:[#allocation3 + $0x80] sm:$0x1]
      %v5536 = vsel %vm5484, 0, %v5535
      %5537 = vst [vmem:[#allocation3 + $0x80] sm:$0x1] %v5536
      %5538 = vst.msk [vmem:[#allocation3 + $0x84] sm:$0xf] %vm5480, 0
      %5539 = vst.msk [vmem:[#allocation3 + $0x88] sm:$0xf] %vm5480, 0
      %v5540 = vld [vmem:[#allocation3 + $0x8c] sm:$0x1]
      %v5541 = vsel %vm5484, 0, %v5540
      %5542 = vst [vmem:[#allocation3 + $0x8c] sm:$0x1] %v5541
      %5543 = vst.msk [vmem:[#allocation3 + $0x90] sm:$0xf] %vm5480, 0
      %5544 = vst.msk [vmem:[#allocation3 + $0x94] sm:$0xf] %vm5480, 0
      %v5545 = vld [vmem:[#allocation3 + $0x98] sm:$0x1]
      %v5546 = vsel %vm5484, 0, %v5545
      %5547 = vst [vmem:[#allocation3 + $0x98] sm:$0x1] %v5546
      %5548 = vst.msk [vmem:[#allocation3 + $0x9c] sm:$0xf] %vm5480, 0
      %5549 = vst.msk [vmem:[#allocation3 + $0xa0] sm:$0xf] %vm5480, 0
      %v5550 = vld [vmem:[#allocation3 + $0xa4] sm:$0x1]
      %v5551 = vsel %vm5484, 0, %v5550
      %5552 = vst [vmem:[#allocation3 + $0xa4] sm:$0x1] %v5551
      %5553 = vst.msk [vmem:[#allocation3 + $0xa8] sm:$0xf] %vm5480, 0
      %5554 = vst.msk [vmem:[#allocation3 + $0xac] sm:$0xf] %vm5480, 0
      %v5555 = vld [vmem:[#allocation3 + $0xb0] sm:$0x1]
      %v5556 = vsel %vm5484, 0, %v5555
      %5557 = vst [vmem:[#allocation3 + $0xb0] sm:$0x1] %v5556
      %5558 = vst.msk [vmem:[#allocation3 + $0xb4] sm:$0xf] %vm5480, 0
      %5559 = vst.msk [vmem:[#allocation3 + $0xb8] sm:$0xf] %vm5480, 0
      %v5560 = vld [vmem:[#allocation3 + $0xbc] sm:$0x1]
      %v5561 = vsel %vm5484, 0, %v5560
      %5562 = vst [vmem:[#allocation3 + $0xbc] sm:$0x1] %v5561
      %5563 = vst.msk [vmem:[#allocation3 + $0xc0] sm:$0xf] %vm5480, 0
      %5564 = vst.msk [vmem:[#allocation3 + $0xc4] sm:$0xf] %vm5480, 0
      %v5565 = vld [vmem:[#allocation3 + $0xc8] sm:$0x1]
      %v5566 = vsel %vm5484, 0, %v5565
      %5567 = vst [vmem:[#allocation3 + $0xc8] sm:$0x1] %v5566
      %v5584 = vunpack.c.l.b16 %v5464
      %v5585 = vunpack.c.h.b16 %v5464
      %v5586 = vunpack.c.l.b16 %v5465
      %v5587 = vunpack.c.h.b16 %v5465
      %v5588 = vunpack.c.l.b16 %v5466
      %v5589 = vunpack.c.h.b16 %v5466
      %v5590 = vunpack.c.l.b16 %v5467
      %v5591 = vunpack.c.h.b16 %v5467
      %v5592 = vunpack.c.l.b16 %v5468
      %v5593 = vunpack.c.h.b16 %v5468
      %v5594 = vunpack.c.l.b16 %v5469
      %v5595 = vunpack.c.h.b16 %v5469
      %v5596 = vunpack.c.l.b16 %v5470
      %v5597 = vunpack.c.h.b16 %v5470
      %v5598 = vunpack.c.l.b16 %v5471
      %v5599 = vunpack.c.h.b16 %v5471
      %v5600 = vunpack.c.l.b16 %v5472
      %v5601 = vunpack.c.h.b16 %v5472
      %v5602 = vunpack.c.l.b16 %v5473
      %v5603 = vunpack.c.h.b16 %v5473
      %v5604 = vunpack.c.l.b16 %v5474
      %v5605 = vunpack.c.h.b16 %v5474
      %v5606 = vunpack.c.l.b16 %v5475
      %v5607 = vunpack.c.h.b16 %v5475
      %v5608 = vunpack.c.l.b16 %v5476
      %v5609 = vunpack.c.h.b16 %v5476
      %v5610 = vunpack.c.l.b16 %v5477
      %v5611 = vunpack.c.h.b16 %v5477
      %v5612 = vunpack.c.l.b16 %v5478
      %v5613 = vunpack.c.h.b16 %v5478
      %v5614 = vunpack.c.l.b16 %v5479
      %v5615 = vunpack.c.h.b16 %v5479
      %v5616 = vpack.c.b16 %v5584, %v5584
      %v5617 = vpack.c.b16 %v5585, %v5585
      %v5618 = vpack.c.b16 %v5586, %v5586
      %v5619 = vpack.c.b16 %v5587, %v5587
      %v5620 = vpack.c.b16 %v5588, %v5588
      %v5621 = vpack.c.b16 %v5589, %v5589
      %v5622 = vpack.c.b16 %v5590, %v5590
      %v5623 = vpack.c.b16 %v5591, %v5591
      %v5624 = vpack.c.b16 %v5592, %v5592
      %v5625 = vpack.c.b16 %v5593, %v5593
      %v5626 = vpack.c.b16 %v5594, %v5594
      %v5627 = vpack.c.b16 %v5595, %v5595
      %v5628 = vpack.c.b16 %v5596, %v5596
      %v5629 = vpack.c.b16 %v5597, %v5597
      %v5630 = vpack.c.b16 %v5598, %v5598
      %v5631 = vpack.c.b16 %v5599, %v5599
      %v5632 = vpack.c.b16 %v5600, %v5600
      %v5633 = vpack.c.b16 %v5601, %v5601
      %v5634 = vpack.c.b16 %v5602, %v5602
      %v5635 = vpack.c.b16 %v5603, %v5603
      %v5636 = vpack.c.b16 %v5604, %v5604
      %v5637 = vpack.c.b16 %v5605, %v5605
      %v5638 = vpack.c.b16 %v5606, %v5606
      %v5639 = vpack.c.b16 %v5607, %v5607
      %v5640 = vpack.c.b16 %v5608, %v5608
      %v5641 = vpack.c.b16 %v5609, %v5609
      %v5642 = vpack.c.b16 %v5610, %v5610
      %v5643 = vpack.c.b16 %v5611, %v5611
      %v5644 = vpack.c.b16 %v5612, %v5612
      %v5645 = vpack.c.b16 %v5613, %v5613
      %v5646 = vpack.c.b16 %v5614, %v5614
      %v5647 = vpack.c.b16 %v5615, %v5615
      %5680 = vst.msk [vmem:[#allocation3] sm:$0xf] %vm5480, %v5616
      %5681 = vst.msk [vmem:[#allocation3 + $0x4] sm:$0xf] %vm5480, %v5617
      %5682 = vst.msk [vmem:[#allocation3 + $0xc] sm:$0xf] %vm5480, %v5618
      %5683 = vst.msk [vmem:[#allocation3 + $0x10] sm:$0xf] %vm5480, %v5619
      %5684 = vst.msk [vmem:[#allocation3 + $0x18] sm:$0xf] %vm5480, %v5620
      %5685 = vst.msk [vmem:[#allocation3 + $0x1c] sm:$0xf] %vm5480, %v5621
      %5686 = vst.msk [vmem:[#allocation3 + $0x24] sm:$0xf] %vm5480, %v5622
      %5687 = vst.msk [vmem:[#allocation3 + $0x28] sm:$0xf] %vm5480, %v5623
      %5688 = vst.msk [vmem:[#allocation3 + $0x30] sm:$0xf] %vm5480, %v5624
      %5689 = vst.msk [vmem:[#allocation3 + $0x34] sm:$0xf] %vm5480, %v5625
      %5690 = vst.msk [vmem:[#allocation3 + $0x3c] sm:$0xf] %vm5480, %v5626
      %5691 = vst.msk [vmem:[#allocation3 + $0x40] sm:$0xf] %vm5480, %v5627
      %5692 = vst.msk [vmem:[#allocation3 + $0x48] sm:$0xf] %vm5480, %v5628
      %5693 = vst.msk [vmem:[#allocation3 + $0x4c] sm:$0xf] %vm5480, %v5629
      %5694 = vst.msk [vmem:[#allocation3 + $0x54] sm:$0xf] %vm5480, %v5630
      %5695 = vst.msk [vmem:[#allocation3 + $0x58] sm:$0xf] %vm5480, %v5631
      %5696 = vst.msk [vmem:[#allocation3 + $0x60] sm:$0xf] %vm5480, %v5632
      %5697 = vst.msk [vmem:[#allocation3 + $0x64] sm:$0xf] %vm5480, %v5633
      %5698 = vst.msk [vmem:[#allocation3 + $0x6c] sm:$0xf] %vm5480, %v5634
      %5699 = vst.msk [vmem:[#allocation3 + $0x70] sm:$0xf] %vm5480, %v5635
      %5700 = vst.msk [vmem:[#allocation3 + $0x78] sm:$0xf] %vm5480, %v5636
      %5701 = vst.msk [vmem:[#allocation3 + $0x7c] sm:$0xf] %vm5480, %v5637
      %5702 = vst.msk [vmem:[#allocation3 + $0x84] sm:$0xf] %vm5480, %v5638
      %5703 = vst.msk [vmem:[#allocation3 + $0x88] sm:$0xf] %vm5480, %v5639
      %5704 = vst.msk [vmem:[#allocation3 + $0x90] sm:$0xf] %vm5480, %v5640
      %5705 = vst.msk [vmem:[#allocation3 + $0x94] sm:$0xf] %vm5480, %v5641
      %5706 = vst.msk [vmem:[#allocation3 + $0x9c] sm:$0xf] %vm5480, %v5642
      %5707 = vst.msk [vmem:[#allocation3 + $0xa0] sm:$0xf] %vm5480, %v5643
      %5708 = vst.msk [vmem:[#allocation3 + $0xa8] sm:$0xf] %vm5480, %v5644
      %5709 = vst.msk [vmem:[#allocation3 + $0xac] sm:$0xf] %vm5480, %v5645
      %5710 = vst.msk [vmem:[#allocation3 + $0xb4] sm:$0xf] %vm5480, %v5646
      %5711 = vst.msk [vmem:[#allocation3 + $0xb8] sm:$0xf] %vm5480, %v5647
      %v5712 = vld [vmem:[#allocation3] sm:$0xf]
      %v5713 = vld [vmem:[#allocation3 + $0x4] sm:$0xf]
      %v5714 = vld [vmem:[#allocation3 + $0xc] sm:$0xf]
      %v5715 = vld [vmem:[#allocation3 + $0x10] sm:$0xf]
      %v5716 = vld [vmem:[#allocation3 + $0x18] sm:$0xf]
      %v5717 = vld [vmem:[#allocation3 + $0x1c] sm:$0xf]
      %v5718 = vld [vmem:[#allocation3 + $0x24] sm:$0xf]
      %v5719 = vld [vmem:[#allocation3 + $0x28] sm:$0xf]
      %v5720 = vld [vmem:[#allocation3 + $0x30] sm:$0xf]
      %v5721 = vld [vmem:[#allocation3 + $0x34] sm:$0xf]
      %v5722 = vld [vmem:[#allocation3 + $0x3c] sm:$0xf]
      %v5723 = vld [vmem:[#allocation3 + $0x40] sm:$0xf]
      %v5724 = vld [vmem:[#allocation3 + $0x48] sm:$0xf]
      %v5725 = vld [vmem:[#allocation3 + $0x4c] sm:$0xf]
      %v5726 = vld [vmem:[#allocation3 + $0x54] sm:$0xf]
      %v5727 = vld [vmem:[#allocation3 + $0x58] sm:$0xf]
      %v5728 = vld [vmem:[#allocation3 + $0x60] sm:$0xf]
      %v5729 = vld [vmem:[#allocation3 + $0x64] sm:$0xf]
      %v5730 = vld [vmem:[#allocation3 + $0x6c] sm:$0xf]
      %v5731 = vld [vmem:[#allocation3 + $0x70] sm:$0xf]
      %v5732 = vld [vmem:[#allocation3 + $0x78] sm:$0xf]
      %v5733 = vld [vmem:[#allocation3 + $0x7c] sm:$0xf]
      %v5734 = vld [vmem:[#allocation3 + $0x84] sm:$0xf]
      %v5735 = vld [vmem:[#allocation3 + $0x88] sm:$0xf]
      %v5736 = vld [vmem:[#allocation3 + $0x90] sm:$0xf]
      %v5737 = vld [vmem:[#allocation3 + $0x94] sm:$0xf]
      %v5738 = vld [vmem:[#allocation3 + $0x9c] sm:$0xf]
      %v5739 = vld [vmem:[#allocation3 + $0xa0] sm:$0xf]
      %v5740 = vld [vmem:[#allocation3 + $0xa8] sm:$0xf]
      %v5741 = vld [vmem:[#allocation3 + $0xac] sm:$0xf]
      %v5742 = vld [vmem:[#allocation3 + $0xb4] sm:$0xf]
      %v5743 = vld [vmem:[#allocation3 + $0xb8] sm:$0xf]
      %v5744 = vld [vmem:[#allocation3 + $0x8] sm:$0x1]
      %v5745 = vld [vmem:[#allocation3 + $0x14] sm:$0x1]
      %v5746 = vld [vmem:[#allocation3 + $0x20] sm:$0x1]
      %v5747 = vld [vmem:[#allocation3 + $0x2c] sm:$0x1]
      %v5748 = vld [vmem:[#allocation3 + $0x38] sm:$0x1]
      %v5749 = vld [vmem:[#allocation3 + $0x44] sm:$0x1]
      %v5750 = vld [vmem:[#allocation3 + $0x50] sm:$0x1]
      %v5751 = vld [vmem:[#allocation3 + $0x5c] sm:$0x1]
      %v5752 = vld [vmem:[#allocation3 + $0x68] sm:$0x1]
      %v5753 = vld [vmem:[#allocation3 + $0x74] sm:$0x1]
      %v5754 = vld [vmem:[#allocation3 + $0x80] sm:$0x1]
      %v5755 = vld [vmem:[#allocation3 + $0x8c] sm:$0x1]
      %v5756 = vld [vmem:[#allocation3 + $0x98] sm:$0x1]
      %v5757 = vld [vmem:[#allocation3 + $0xa4] sm:$0x1]
      %v5758 = vld [vmem:[#allocation3 + $0xb0] sm:$0x1]
      %v5759 = vld [vmem:[#allocation3 + $0xbc] sm:$0x1]
      %v5761 = vshrl.u32 %v5712, 16
      %v5763 = vrot.slane %v5761, 4
      %v5764 = vshll.u32 %v5712, 16
      %v5766 = vrot.slane %v5764, 5
      %v5767 = vor.u32 %v5763, %v5766
      %v5768 = vrot.slane %v5767, 4
      %v5770 = vshll.u32 %v5713, 16
      %v5772 = vrot.slane %v5770, 5
      %v5773 = vsel %vm1171, %v5768, %v5772
      %v5774 = vshrl.u32 %v5713, 16
      %v5776 = vrot.slane %v5774, 4
      %v5777 = vor.u32 %v5776, %v5772
      %v5778 = vrot.slane %v5777, 4
      %v5780 = vshll.u32 %v5744, 16
      %v5782 = vrot.slane %v5780, 5
      %v5783 = vsel %vm1171, %v5778, %v5782
      %v5785 = vshrl.u32 %v5714, 16
      %v5787 = vrot.slane %v5785, 4
      %v5788 = vshll.u32 %v5714, 16
      %v5790 = vrot.slane %v5788, 5
      %v5791 = vor.u32 %v5787, %v5790
      %v5792 = vrot.slane %v5791, 4
      %v5794 = vshll.u32 %v5715, 16
      %v5796 = vrot.slane %v5794, 5
      %v5797 = vsel %vm1171, %v5792, %v5796
      %v5798 = vshrl.u32 %v5715, 16
      %v5800 = vrot.slane %v5798, 4
      %v5801 = vor.u32 %v5800, %v5796
      %v5802 = vrot.slane %v5801, 4
      %v5804 = vshll.u32 %v5745, 16
      %v5806 = vrot.slane %v5804, 5
      %v5807 = vsel %vm1171, %v5802, %v5806
      %v5809 = vshrl.u32 %v5716, 16
      %v5811 = vrot.slane %v5809, 4
      %v5812 = vshll.u32 %v5716, 16
      %v5814 = vrot.slane %v5812, 5
      %v5815 = vor.u32 %v5811, %v5814
      %v5816 = vrot.slane %v5815, 4
      %v5818 = vshll.u32 %v5717, 16
      %v5820 = vrot.slane %v5818, 5
      %v5821 = vsel %vm1171, %v5816, %v5820
      %v5822 = vshrl.u32 %v5717, 16
      %v5824 = vrot.slane %v5822, 4
      %v5825 = vor.u32 %v5824, %v5820
      %v5826 = vrot.slane %v5825, 4
      %v5828 = vshll.u32 %v5746, 16
      %v5830 = vrot.slane %v5828, 5
      %v5831 = vsel %vm1171, %v5826, %v5830
      %v5833 = vshrl.u32 %v5718, 16
      %v5835 = vrot.slane %v5833, 4
      %v5836 = vshll.u32 %v5718, 16
      %v5838 = vrot.slane %v5836, 5
      %v5839 = vor.u32 %v5835, %v5838
      %v5840 = vrot.slane %v5839, 4
      %v5842 = vshll.u32 %v5719, 16
      %v5844 = vrot.slane %v5842, 5
      %v5845 = vsel %vm1171, %v5840, %v5844
      %v5846 = vshrl.u32 %v5719, 16
      %v5848 = vrot.slane %v5846, 4
      %v5849 = vor.u32 %v5848, %v5844
      %v5850 = vrot.slane %v5849, 4
      %v5852 = vshll.u32 %v5747, 16
      %v5854 = vrot.slane %v5852, 5
      %v5855 = vsel %vm1171, %v5850, %v5854
      %v5857 = vshrl.u32 %v5720, 16
      %v5859 = vrot.slane %v5857, 4
      %v5860 = vshll.u32 %v5720, 16
      %v5862 = vrot.slane %v5860, 5
      %v5863 = vor.u32 %v5859, %v5862
      %v5864 = vrot.slane %v5863, 4
      %v5866 = vshll.u32 %v5721, 16
      %v5868 = vrot.slane %v5866, 5
      %v5869 = vsel %vm1171, %v5864, %v5868
      %v5870 = vshrl.u32 %v5721, 16
      %v5872 = vrot.slane %v5870, 4
      %v5873 = vor.u32 %v5872, %v5868
      %v5874 = vrot.slane %v5873, 4
      %v5876 = vshll.u32 %v5748, 16
      %v5878 = vrot.slane %v5876, 5
      %v5879 = vsel %vm1171, %v5874, %v5878
      %v5881 = vshrl.u32 %v5722, 16
      %v5883 = vrot.slane %v5881, 4
      %v5884 = vshll.u32 %v5722, 16
      %v5886 = vrot.slane %v5884, 5
      %v5887 = vor.u32 %v5883, %v5886
      %v5888 = vrot.slane %v5887, 4
      %v5890 = vshll.u32 %v5723, 16
      %v5892 = vrot.slane %v5890, 5
      %v5893 = vsel %vm1171, %v5888, %v5892
      %v5894 = vshrl.u32 %v5723, 16
      %v5896 = vrot.slane %v5894, 4
      %v5897 = vor.u32 %v5896, %v5892
      %v5898 = vrot.slane %v5897, 4
      %v5900 = vshll.u32 %v5749, 16
      %v5902 = vrot.slane %v5900, 5
      %v5903 = vsel %vm1171, %v5898, %v5902
      %v5905 = vshrl.u32 %v5724, 16
      %v5907 = vrot.slane %v5905, 4
      %v5908 = vshll.u32 %v5724, 16
      %v5910 = vrot.slane %v5908, 5
      %v5911 = vor.u32 %v5907, %v5910
      %v5912 = vrot.slane %v5911, 4
      %v5914 = vshll.u32 %v5725, 16
      %v5916 = vrot.slane %v5914, 5
      %v5917 = vsel %vm1171, %v5912, %v5916
      %v5918 = vshrl.u32 %v5725, 16
      %v5920 = vrot.slane %v5918, 4
      %v5921 = vor.u32 %v5920, %v5916
      %v5922 = vrot.slane %v5921, 4
      %v5924 = vshll.u32 %v5750, 16
      %v5926 = vrot.slane %v5924, 5
      %v5927 = vsel %vm1171, %v5922, %v5926
      %v5929 = vshrl.u32 %v5726, 16
      %v5931 = vrot.slane %v5929, 4
      %v5932 = vshll.u32 %v5726, 16
      %v5934 = vrot.slane %v5932, 5
      %v5935 = vor.u32 %v5931, %v5934
      %v5936 = vrot.slane %v5935, 4
      %v5938 = vshll.u32 %v5727, 16
      %v5940 = vrot.slane %v5938, 5
      %v5941 = vsel %vm1171, %v5936, %v5940
      %v5942 = vshrl.u32 %v5727, 16
      %v5944 = vrot.slane %v5942, 4
      %v5945 = vor.u32 %v5944, %v5940
      %v5946 = vrot.slane %v5945, 4
      %v5948 = vshll.u32 %v5751, 16
      %v5950 = vrot.slane %v5948, 5
      %v5951 = vsel %vm1171, %v5946, %v5950
      %v5953 = vshrl.u32 %v5728, 16
      %v5955 = vrot.slane %v5953, 4
      %v5956 = vshll.u32 %v5728, 16
      %v5958 = vrot.slane %v5956, 5
      %v5959 = vor.u32 %v5955, %v5958
      %v5960 = vrot.slane %v5959, 4
      %v5962 = vshll.u32 %v5729, 16
      %v5964 = vrot.slane %v5962, 5
      %v5965 = vsel %vm1171, %v5960, %v5964
      %v5966 = vshrl.u32 %v5729, 16
      %v5968 = vrot.slane %v5966, 4
      %v5969 = vor.u32 %v5968, %v5964
      %v5970 = vrot.slane %v5969, 4
      %v5972 = vshll.u32 %v5752, 16
      %v5974 = vrot.slane %v5972, 5
      %v5975 = vsel %vm1171, %v5970, %v5974
      %v5977 = vshrl.u32 %v5730, 16
      %v5979 = vrot.slane %v5977, 4
      %v5980 = vshll.u32 %v5730, 16
      %v5982 = vrot.slane %v5980, 5
      %v5983 = vor.u32 %v5979, %v5982
      %v5984 = vrot.slane %v5983, 4
      %v5986 = vshll.u32 %v5731, 16
      %v5988 = vrot.slane %v5986, 5
      %v5989 = vsel %vm1171, %v5984, %v5988
      %v5990 = vshrl.u32 %v5731, 16
      %v5992 = vrot.slane %v5990, 4
      %v5993 = vor.u32 %v5992, %v5988
      %v5994 = vrot.slane %v5993, 4
      %v5996 = vshll.u32 %v5753, 16
      %v5998 = vrot.slane %v5996, 5
      %v5999 = vsel %vm1171, %v5994, %v5998
      %v6001 = vshrl.u32 %v5732, 16
      %v6003 = vrot.slane %v6001, 4
      %v6004 = vshll.u32 %v5732, 16
      %v6006 = vrot.slane %v6004, 5
      %v6007 = vor.u32 %v6003, %v6006
      %v6008 = vrot.slane %v6007, 4
      %v6010 = vshll.u32 %v5733, 16
      %v6012 = vrot.slane %v6010, 5
      %v6013 = vsel %vm1171, %v6008, %v6012
      %v6014 = vshrl.u32 %v5733, 16
      %v6016 = vrot.slane %v6014, 4
      %v6017 = vor.u32 %v6016, %v6012
      %v6018 = vrot.slane %v6017, 4
      %v6020 = vshll.u32 %v5754, 16
      %v6022 = vrot.slane %v6020, 5
      %v6023 = vsel %vm1171, %v6018, %v6022
      %v6025 = vshrl.u32 %v5734, 16
      %v6027 = vrot.slane %v6025, 4
      %v6028 = vshll.u32 %v5734, 16
      %v6030 = vrot.slane %v6028, 5
      %v6031 = vor.u32 %v6027, %v6030
      %v6032 = vrot.slane %v6031, 4
      %v6034 = vshll.u32 %v5735, 16
      %v6036 = vrot.slane %v6034, 5
      %v6037 = vsel %vm1171, %v6032, %v6036
      %v6038 = vshrl.u32 %v5735, 16
      %v6040 = vrot.slane %v6038, 4
      %v6041 = vor.u32 %v6040, %v6036
      %v6042 = vrot.slane %v6041, 4
      %v6044 = vshll.u32 %v5755, 16
      %v6046 = vrot.slane %v6044, 5
      %v6047 = vsel %vm1171, %v6042, %v6046
      %v6049 = vshrl.u32 %v5736, 16
      %v6051 = vrot.slane %v6049, 4
      %v6052 = vshll.u32 %v5736, 16
      %v6054 = vrot.slane %v6052, 5
      %v6055 = vor.u32 %v6051, %v6054
      %v6056 = vrot.slane %v6055, 4
      %v6058 = vshll.u32 %v5737, 16
      %v6060 = vrot.slane %v6058, 5
      %v6061 = vsel %vm1171, %v6056, %v6060
      %v6062 = vshrl.u32 %v5737, 16
      %v6064 = vrot.slane %v6062, 4
      %v6065 = vor.u32 %v6064, %v6060
      %v6066 = vrot.slane %v6065, 4
      %v6068 = vshll.u32 %v5756, 16
      %v6070 = vrot.slane %v6068, 5
      %v6071 = vsel %vm1171, %v6066, %v6070
      %v6073 = vshrl.u32 %v5738, 16
      %v6075 = vrot.slane %v6073, 4
      %v6076 = vshll.u32 %v5738, 16
      %v6078 = vrot.slane %v6076, 5
      %v6079 = vor.u32 %v6075, %v6078
      %v6080 = vrot.slane %v6079, 4
      %v6082 = vshll.u32 %v5739, 16
      %v6084 = vrot.slane %v6082, 5
      %v6085 = vsel %vm1171, %v6080, %v6084
      %v6086 = vshrl.u32 %v5739, 16
      %v6088 = vrot.slane %v6086, 4
      %v6089 = vor.u32 %v6088, %v6084
      %v6090 = vrot.slane %v6089, 4
      %v6092 = vshll.u32 %v5757, 16
      %v6094 = vrot.slane %v6092, 5
      %v6095 = vsel %vm1171, %v6090, %v6094
      %v6097 = vshrl.u32 %v5740, 16
      %v6099 = vrot.slane %v6097, 4
      %v6100 = vshll.u32 %v5740, 16
      %v6102 = vrot.slane %v6100, 5
      %v6103 = vor.u32 %v6099, %v6102
      %v6104 = vrot.slane %v6103, 4
      %v6106 = vshll.u32 %v5741, 16
      %v6108 = vrot.slane %v6106, 5
      %v6109 = vsel %vm1171, %v6104, %v6108
      %v6110 = vshrl.u32 %v5741, 16
      %v6112 = vrot.slane %v6110, 4
      %v6113 = vor.u32 %v6112, %v6108
      %v6114 = vrot.slane %v6113, 4
      %v6116 = vshll.u32 %v5758, 16
      %v6118 = vrot.slane %v6116, 5
      %v6119 = vsel %vm1171, %v6114, %v6118
      %v6121 = vshrl.u32 %v5742, 16
      %v6123 = vrot.slane %v6121, 4
      %v6124 = vshll.u32 %v5742, 16
      %v6126 = vrot.slane %v6124, 5
      %v6127 = vor.u32 %v6123, %v6126
      %v6128 = vrot.slane %v6127, 4
      %v6130 = vshll.u32 %v5743, 16
      %v6132 = vrot.slane %v6130, 5
      %v6133 = vsel %vm1171, %v6128, %v6132
      %v6134 = vshrl.u32 %v5743, 16
      %v6136 = vrot.slane %v6134, 4
      %v6137 = vor.u32 %v6136, %v6132
      %v6138 = vrot.slane %v6137, 4
      %v6140 = vshll.u32 %v5759, 16
      %v6142 = vrot.slane %v6140, 5
      %v6143 = vsel %vm1171, %v6138, %v6142
      %s6144 = scalar_lea.vmem [#allocation3], 12
      %v6145 = vld [vmem:[%s6144] sm:$0xf]
      %v6146 = vld [vmem:[%s6144 + $0x4] sm:$0xf]
      %v6147 = vld [vmem:[%s6144 + $0xc] sm:$0xf]
      %v6148 = vld [vmem:[%s6144 + $0x10] sm:$0xf]
      %v6149 = vld [vmem:[%s6144 + $0x18] sm:$0xf]
      %v6150 = vld [vmem:[%s6144 + $0x1c] sm:$0xf]
      %v6151 = vld [vmem:[%s6144 + $0x24] sm:$0xf]
      %v6152 = vld [vmem:[%s6144 + $0x28] sm:$0xf]
      %v6153 = vld [vmem:[%s6144 + $0x30] sm:$0xf]
      %v6154 = vld [vmem:[%s6144 + $0x34] sm:$0xf]
      %v6155 = vld [vmem:[%s6144 + $0x3c] sm:$0xf]
      %v6156 = vld [vmem:[%s6144 + $0x40] sm:$0xf]
      %v6157 = vld [vmem:[%s6144 + $0x48] sm:$0xf]
      %v6158 = vld [vmem:[%s6144 + $0x4c] sm:$0xf]
      %v6159 = vld [vmem:[%s6144 + $0x54] sm:$0xf]
      %v6160 = vld [vmem:[%s6144 + $0x58] sm:$0xf]
      %v6161 = vld [vmem:[%s6144 + $0x60] sm:$0xf]
      %v6162 = vld [vmem:[%s6144 + $0x64] sm:$0xf]
      %v6163 = vld [vmem:[%s6144 + $0x6c] sm:$0xf]
      %v6164 = vld [vmem:[%s6144 + $0x70] sm:$0xf]
      %v6165 = vld [vmem:[%s6144 + $0x78] sm:$0xf]
      %v6166 = vld [vmem:[%s6144 + $0x7c] sm:$0xf]
      %v6167 = vld [vmem:[%s6144 + $0x84] sm:$0xf]
      %v6168 = vld [vmem:[%s6144 + $0x88] sm:$0xf]
      %v6169 = vld [vmem:[%s6144 + $0x90] sm:$0xf]
      %v6170 = vld [vmem:[%s6144 + $0x94] sm:$0xf]
      %v6171 = vld [vmem:[%s6144 + $0x9c] sm:$0xf]
      %v6172 = vld [vmem:[%s6144 + $0xa0] sm:$0xf]
      %v6173 = vld [vmem:[%s6144 + $0xa8] sm:$0xf]
      %v6174 = vld [vmem:[%s6144 + $0xac] sm:$0xf]
      %v6175 = vld [vmem:[%s6144 + $0xb4] sm:$0xf]
      %v6176 = vld [vmem:[%s6144 + $0xb8] sm:$0xf]
      %v6177 = vld [vmem:[%s6144 + $0x8] sm:$0x1]
      %v6178 = vld [vmem:[%s6144 + $0x14] sm:$0x1]
      %v6179 = vld [vmem:[%s6144 + $0x20] sm:$0x1]
      %v6180 = vld [vmem:[%s6144 + $0x2c] sm:$0x1]
      %v6181 = vld [vmem:[%s6144 + $0x38] sm:$0x1]
      %v6182 = vld [vmem:[%s6144 + $0x44] sm:$0x1]
      %v6183 = vld [vmem:[%s6144 + $0x50] sm:$0x1]
      %v6184 = vld [vmem:[%s6144 + $0x5c] sm:$0x1]
      %v6185 = vld [vmem:[%s6144 + $0x68] sm:$0x1]
      %v6186 = vld [vmem:[%s6144 + $0x74] sm:$0x1]
      %v6187 = vld [vmem:[%s6144 + $0x80] sm:$0x1]
      %v6188 = vld [vmem:[%s6144 + $0x8c] sm:$0x1]
      %v6189 = vld [vmem:[%s6144 + $0x98] sm:$0x1]
      %v6190 = vld [vmem:[%s6144 + $0xa4] sm:$0x1]
      %v6191 = vld [vmem:[%s6144 + $0xb0] sm:$0x1]
      %v6192 = vld [vmem:[%s6144 + $0xbc] sm:$0x1]
      %v6194 = vshrl.u32 %v6145, 16
      %v6196 = vrot.slane %v6194, 4
      %v6197 = vshll.u32 %v6145, 16
      %v6199 = vrot.slane %v6197, 5
      %v6200 = vor.u32 %v6196, %v6199
      %v6201 = vrot.slane %v6200, 4
      %v6203 = vshll.u32 %v6146, 16
      %v6205 = vrot.slane %v6203, 5
      %v6206 = vsel %vm1171, %v6201, %v6205
      %v6207 = vshrl.u32 %v6146, 16
      %v6209 = vrot.slane %v6207, 4
      %v6210 = vor.u32 %v6209, %v6205
      %v6211 = vrot.slane %v6210, 4
      %v6213 = vshll.u32 %v6177, 16
      %v6215 = vrot.slane %v6213, 5
      %v6216 = vsel %vm1171, %v6211, %v6215
      %v6218 = vshrl.u32 %v6147, 16
      %v6220 = vrot.slane %v6218, 4
      %v6221 = vshll.u32 %v6147, 16
      %v6223 = vrot.slane %v6221, 5
      %v6224 = vor.u32 %v6220, %v6223
      %v6225 = vrot.slane %v6224, 4
      %v6227 = vshll.u32 %v6148, 16
      %v6229 = vrot.slane %v6227, 5
      %v6230 = vsel %vm1171, %v6225, %v6229
      %v6231 = vshrl.u32 %v6148, 16
      %v6233 = vrot.slane %v6231, 4
      %v6234 = vor.u32 %v6233, %v6229
      %v6235 = vrot.slane %v6234, 4
      %v6237 = vshll.u32 %v6178, 16
      %v6239 = vrot.slane %v6237, 5
      %v6240 = vsel %vm1171, %v6235, %v6239
      %v6242 = vshrl.u32 %v6149, 16
      %v6244 = vrot.slane %v6242, 4
      %v6245 = vshll.u32 %v6149, 16
      %v6247 = vrot.slane %v6245, 5
      %v6248 = vor.u32 %v6244, %v6247
      %v6249 = vrot.slane %v6248, 4
      %v6251 = vshll.u32 %v6150, 16
      %v6253 = vrot.slane %v6251, 5
      %v6254 = vsel %vm1171, %v6249, %v6253
      %v6255 = vshrl.u32 %v6150, 16
      %v6257 = vrot.slane %v6255, 4
      %v6258 = vor.u32 %v6257, %v6253
      %v6259 = vrot.slane %v6258, 4
      %v6261 = vshll.u32 %v6179, 16
      %v6263 = vrot.slane %v6261, 5
      %v6264 = vsel %vm1171, %v6259, %v6263
      %v6266 = vshrl.u32 %v6151, 16
      %v6268 = vrot.slane %v6266, 4
      %v6269 = vshll.u32 %v6151, 16
      %v6271 = vrot.slane %v6269, 5
      %v6272 = vor.u32 %v6268, %v6271
      %v6273 = vrot.slane %v6272, 4
      %v6275 = vshll.u32 %v6152, 16
      %v6277 = vrot.slane %v6275, 5
      %v6278 = vsel %vm1171, %v6273, %v6277
      %v6279 = vshrl.u32 %v6152, 16
      %v6281 = vrot.slane %v6279, 4
      %v6282 = vor.u32 %v6281, %v6277
      %v6283 = vrot.slane %v6282, 4
      %v6285 = vshll.u32 %v6180, 16
      %v6287 = vrot.slane %v6285, 5
      %v6288 = vsel %vm1171, %v6283, %v6287
      %v6290 = vshrl.u32 %v6153, 16
      %v6292 = vrot.slane %v6290, 4
      %v6293 = vshll.u32 %v6153, 16
      %v6295 = vrot.slane %v6293, 5
      %v6296 = vor.u32 %v6292, %v6295
      %v6297 = vrot.slane %v6296, 4
      %v6299 = vshll.u32 %v6154, 16
      %v6301 = vrot.slane %v6299, 5
      %v6302 = vsel %vm1171, %v6297, %v6301
      %v6303 = vshrl.u32 %v6154, 16
      %v6305 = vrot.slane %v6303, 4
      %v6306 = vor.u32 %v6305, %v6301
      %v6307 = vrot.slane %v6306, 4
      %v6309 = vshll.u32 %v6181, 16
      %v6311 = vrot.slane %v6309, 5
      %v6312 = vsel %vm1171, %v6307, %v6311
      %v6314 = vshrl.u32 %v6155, 16
      %v6316 = vrot.slane %v6314, 4
      %v6317 = vshll.u32 %v6155, 16
      %v6319 = vrot.slane %v6317, 5
      %v6320 = vor.u32 %v6316, %v6319
      %v6321 = vrot.slane %v6320, 4
      %v6323 = vshll.u32 %v6156, 16
      %v6325 = vrot.slane %v6323, 5
      %v6326 = vsel %vm1171, %v6321, %v6325
      %v6327 = vshrl.u32 %v6156, 16
      %v6329 = vrot.slane %v6327, 4
      %v6330 = vor.u32 %v6329, %v6325
      %v6331 = vrot.slane %v6330, 4
      %v6333 = vshll.u32 %v6182, 16
      %v6335 = vrot.slane %v6333, 5
      %v6336 = vsel %vm1171, %v6331, %v6335
      %v6338 = vshrl.u32 %v6157, 16
      %v6340 = vrot.slane %v6338, 4
      %v6341 = vshll.u32 %v6157, 16
      %v6343 = vrot.slane %v6341, 5
      %v6344 = vor.u32 %v6340, %v6343
      %v6345 = vrot.slane %v6344, 4
      %v6347 = vshll.u32 %v6158, 16
      %v6349 = vrot.slane %v6347, 5
      %v6350 = vsel %vm1171, %v6345, %v6349
      %v6351 = vshrl.u32 %v6158, 16
      %v6353 = vrot.slane %v6351, 4
      %v6354 = vor.u32 %v6353, %v6349
      %v6355 = vrot.slane %v6354, 4
      %v6357 = vshll.u32 %v6183, 16
      %v6359 = vrot.slane %v6357, 5
      %v6360 = vsel %vm1171, %v6355, %v6359
      %v6362 = vshrl.u32 %v6159, 16
      %v6364 = vrot.slane %v6362, 4
      %v6365 = vshll.u32 %v6159, 16
      %v6367 = vrot.slane %v6365, 5
      %v6368 = vor.u32 %v6364, %v6367
      %v6369 = vrot.slane %v6368, 4
      %v6371 = vshll.u32 %v6160, 16
      %v6373 = vrot.slane %v6371, 5
      %v6374 = vsel %vm1171, %v6369, %v6373
      %v6375 = vshrl.u32 %v6160, 16
      %v6377 = vrot.slane %v6375, 4
      %v6378 = vor.u32 %v6377, %v6373
      %v6379 = vrot.slane %v6378, 4
      %v6381 = vshll.u32 %v6184, 16
      %v6383 = vrot.slane %v6381, 5
      %v6384 = vsel %vm1171, %v6379, %v6383
      %v6386 = vshrl.u32 %v6161, 16
      %v6388 = vrot.slane %v6386, 4
      %v6389 = vshll.u32 %v6161, 16
      %v6391 = vrot.slane %v6389, 5
      %v6392 = vor.u32 %v6388, %v6391
      %v6393 = vrot.slane %v6392, 4
      %v6395 = vshll.u32 %v6162, 16
      %v6397 = vrot.slane %v6395, 5
      %v6398 = vsel %vm1171, %v6393, %v6397
      %v6399 = vshrl.u32 %v6162, 16
      %v6401 = vrot.slane %v6399, 4
      %v6402 = vor.u32 %v6401, %v6397
      %v6403 = vrot.slane %v6402, 4
      %v6405 = vshll.u32 %v6185, 16
      %v6407 = vrot.slane %v6405, 5
      %v6408 = vsel %vm1171, %v6403, %v6407
      %v6410 = vshrl.u32 %v6163, 16
      %v6412 = vrot.slane %v6410, 4
      %v6413 = vshll.u32 %v6163, 16
      %v6415 = vrot.slane %v6413, 5
      %v6416 = vor.u32 %v6412, %v6415
      %v6417 = vrot.slane %v6416, 4
      %v6419 = vshll.u32 %v6164, 16
      %v6421 = vrot.slane %v6419, 5
      %v6422 = vsel %vm1171, %v6417, %v6421
      %v6423 = vshrl.u32 %v6164, 16
      %v6425 = vrot.slane %v6423, 4
      %v6426 = vor.u32 %v6425, %v6421
      %v6427 = vrot.slane %v6426, 4
      %v6429 = vshll.u32 %v6186, 16
      %v6431 = vrot.slane %v6429, 5
      %v6432 = vsel %vm1171, %v6427, %v6431
      %v6434 = vshrl.u32 %v6165, 16
      %v6436 = vrot.slane %v6434, 4
      %v6437 = vshll.u32 %v6165, 16
      %v6439 = vrot.slane %v6437, 5
      %v6440 = vor.u32 %v6436, %v6439
      %v6441 = vrot.slane %v6440, 4
      %v6443 = vshll.u32 %v6166, 16
      %v6445 = vrot.slane %v6443, 5
      %v6446 = vsel %vm1171, %v6441, %v6445
      %v6447 = vshrl.u32 %v6166, 16
      %v6449 = vrot.slane %v6447, 4
      %v6450 = vor.u32 %v6449, %v6445
      %v6451 = vrot.slane %v6450, 4
      %v6453 = vshll.u32 %v6187, 16
      %v6455 = vrot.slane %v6453, 5
      %v6456 = vsel %vm1171, %v6451, %v6455
      %v6458 = vshrl.u32 %v6167, 16
      %v6460 = vrot.slane %v6458, 4
      %v6461 = vshll.u32 %v6167, 16
      %v6463 = vrot.slane %v6461, 5
      %v6464 = vor.u32 %v6460, %v6463
      %v6465 = vrot.slane %v6464, 4
      %v6467 = vshll.u32 %v6168, 16
      %v6469 = vrot.slane %v6467, 5
      %v6470 = vsel %vm1171, %v6465, %v6469
      %v6471 = vshrl.u32 %v6168, 16
      %v6473 = vrot.slane %v6471, 4
      %v6474 = vor.u32 %v6473, %v6469
      %v6475 = vrot.slane %v6474, 4
      %v6477 = vshll.u32 %v6188, 16
      %v6479 = vrot.slane %v6477, 5
      %v6480 = vsel %vm1171, %v6475, %v6479
      %v6482 = vshrl.u32 %v6169, 16
      %v6484 = vrot.slane %v6482, 4
      %v6485 = vshll.u32 %v6169, 16
      %v6487 = vrot.slane %v6485, 5
      %v6488 = vor.u32 %v6484, %v6487
      %v6489 = vrot.slane %v6488, 4
      %v6491 = vshll.u32 %v6170, 16
      %v6493 = vrot.slane %v6491, 5
      %v6494 = vsel %vm1171, %v6489, %v6493
      %v6495 = vshrl.u32 %v6170, 16
      %v6497 = vrot.slane %v6495, 4
      %v6498 = vor.u32 %v6497, %v6493
      %v6499 = vrot.slane %v6498, 4
      %v6501 = vshll.u32 %v6189, 16
      %v6503 = vrot.slane %v6501, 5
      %v6504 = vsel %vm1171, %v6499, %v6503
      %v6506 = vshrl.u32 %v6171, 16
      %v6508 = vrot.slane %v6506, 4
      %v6509 = vshll.u32 %v6171, 16
      %v6511 = vrot.slane %v6509, 5
      %v6512 = vor.u32 %v6508, %v6511
      %v6513 = vrot.slane %v6512, 4
      %v6515 = vshll.u32 %v6172, 16
      %v6517 = vrot.slane %v6515, 5
      %v6518 = vsel %vm1171, %v6513, %v6517
      %v6519 = vshrl.u32 %v6172, 16
      %v6521 = vrot.slane %v6519, 4
      %v6522 = vor.u32 %v6521, %v6517
      %v6523 = vrot.slane %v6522, 4
      %v6525 = vshll.u32 %v6190, 16
      %v6527 = vrot.slane %v6525, 5
      %v6528 = vsel %vm1171, %v6523, %v6527
      %v6530 = vshrl.u32 %v6173, 16
      %v6532 = vrot.slane %v6530, 4
      %v6533 = vshll.u32 %v6173, 16
      %v6535 = vrot.slane %v6533, 5
      %v6536 = vor.u32 %v6532, %v6535
      %v6537 = vrot.slane %v6536, 4
      %v6539 = vshll.u32 %v6174, 16
      %v6541 = vrot.slane %v6539, 5
      %v6542 = vsel %vm1171, %v6537, %v6541
      %v6543 = vshrl.u32 %v6174, 16
      %v6545 = vrot.slane %v6543, 4
      %v6546 = vor.u32 %v6545, %v6541
      %v6547 = vrot.slane %v6546, 4
      %v6549 = vshll.u32 %v6191, 16
      %v6551 = vrot.slane %v6549, 5
      %v6552 = vsel %vm1171, %v6547, %v6551
      %v6554 = vshrl.u32 %v6175, 16
      %v6556 = vrot.slane %v6554, 4
      %v6557 = vshll.u32 %v6175, 16
      %v6559 = vrot.slane %v6557, 5
      %v6560 = vor.u32 %v6556, %v6559
      %v6561 = vrot.slane %v6560, 4
      %v6563 = vshll.u32 %v6176, 16
      %v6565 = vrot.slane %v6563, 5
      %v6566 = vsel %vm1171, %v6561, %v6565
      %v6567 = vshrl.u32 %v6176, 16
      %v6569 = vrot.slane %v6567, 4
      %v6570 = vor.u32 %v6569, %v6565
      %v6571 = vrot.slane %v6570, 4
      %v6573 = vshll.u32 %v6192, 16
      %v6575 = vrot.slane %v6573, 5
      %v6576 = vsel %vm1171, %v6571, %v6575
      %v6577 = vld [vmem:[%s4] sm:$0x1]
      %v6579 = vlaneseq
      %v6580 = vshrl.u32 %v6579, 7
      %v6581 = vsub.s32 0, %v6580
      %v6582 = vrot.slane %v6577, %v6581
      %s6584 = scalar_lea.vmem %s3, 16
      %v6585 = vld [vmem:[%s6584] sm:$0xf]
      %v6618 = vunpack.c.l.b16 %v5712
      %v6619 = vunpack.c.l.b16 %v5713
      %v6620 = vunpack.c.l.b16 %v5714
      %v6621 = vunpack.c.l.b16 %v5715
      %v6622 = vunpack.c.l.b16 %v5716
      %v6623 = vunpack.c.l.b16 %v5717
      %v6624 = vunpack.c.l.b16 %v5718
      %v6625 = vunpack.c.l.b16 %v5719
      %v6626 = vunpack.c.l.b16 %v5720
      %v6627 = vunpack.c.l.b16 %v5721
      %v6628 = vunpack.c.l.b16 %v5722
      %v6629 = vunpack.c.l.b16 %v5723
      %v6630 = vunpack.c.l.b16 %v5724
      %v6631 = vunpack.c.l.b16 %v5725
      %v6632 = vunpack.c.l.b16 %v5726
      %v6633 = vunpack.c.l.b16 %v5727
      %v6634 = vunpack.c.l.b16 %v5728
      %v6635 = vunpack.c.l.b16 %v5729
      %v6636 = vunpack.c.l.b16 %v5730
      %v6637 = vunpack.c.l.b16 %v5731
      %v6638 = vunpack.c.l.b16 %v5732
      %v6639 = vunpack.c.l.b16 %v5733
      %v6640 = vunpack.c.l.b16 %v5734
      %v6641 = vunpack.c.l.b16 %v5735
      %v6642 = vunpack.c.l.b16 %v5736
      %v6643 = vunpack.c.l.b16 %v5737
      %v6644 = vunpack.c.l.b16 %v5738
      %v6645 = vunpack.c.l.b16 %v5739
      %v6646 = vunpack.c.l.b16 %v5740
      %v6647 = vunpack.c.l.b16 %v5741
      %v6648 = vunpack.c.l.b16 %v5742
      %v6649 = vunpack.c.l.b16 %v5743
      %v6650 = vpack.c.b16 %v6619, %v6618
      %v6651 = vpack.c.b16 %v6621, %v6620
      %v6652 = vpack.c.b16 %v6623, %v6622
      %v6653 = vpack.c.b16 %v6625, %v6624
      %v6654 = vpack.c.b16 %v6627, %v6626
      %v6655 = vpack.c.b16 %v6629, %v6628
      %v6656 = vpack.c.b16 %v6631, %v6630
      %v6657 = vpack.c.b16 %v6633, %v6632
      %v6658 = vpack.c.b16 %v6635, %v6634
      %v6659 = vpack.c.b16 %v6637, %v6636
      %v6660 = vpack.c.b16 %v6639, %v6638
      %v6661 = vpack.c.b16 %v6641, %v6640
      %v6662 = vpack.c.b16 %v6643, %v6642
      %v6663 = vpack.c.b16 %v6645, %v6644
      %v6664 = vpack.c.b16 %v6647, %v6646
      %v6665 = vpack.c.b16 %v6649, %v6648
      %vm6666 = vcmask 64512
      %v6668 = vsel %vm6666, %v6650, 0
      %v6671 = vsel %vm6666, %v6651, 0
      %v6674 = vsel %vm6666, %v6652, 0
      %v6677 = vsel %vm6666, %v6653, 0
      %v6680 = vsel %vm6666, %v6654, 0
      %v6683 = vsel %vm6666, %v6655, 0
      %v6686 = vsel %vm6666, %v6656, 0
      %v6689 = vsel %vm6666, %v6657, 0
      %v6692 = vsel %vm6666, %v6658, 0
      %v6695 = vsel %vm6666, %v6659, 0
      %v6698 = vsel %vm6666, %v6660, 0
      %v6701 = vsel %vm6666, %v6661, 0
      %v6704 = vsel %vm6666, %v6662, 0
      %v6707 = vsel %vm6666, %v6663, 0
      %v6710 = vsel %vm6666, %v6664, 0
      %v6713 = vsel %vm6666, %v6665, 0
      %vm6715 = vcmask 1043456
      %v6717 = vsel %vm6715, %v6585, 0
      %6719 = vmatprep.subr.bf16.mxu0 0
      %6720 = vmatpush1.bf16.msra.mxu0 %v6717
      %6721 = vmatprep.subr.bf16.mxu0 0
      %6722 = vmatpush1.bf16.msra.mxu0 0
      %6723 = vmatprep.subr.bf16.mxu0 0
      %6724 = vmatpush1.bf16.msra.mxu0 0
      %6725 = vmatprep.subr.bf16.mxu0 0
      %6726 = vmatpush1.bf16.msra.mxu0 0
      %6727 = vmatprep.subr.bf16.mxu0 0
      %6728 = vmatpush1.bf16.msra.mxu0 0
      %6729 = vmatprep.subr.bf16.mxu0 0
      %6730 = vmatpush1.bf16.msra.mxu0 0
      %6731 = vmatprep.subr.bf16.mxu0 0
      %6732 = vmatpush1.bf16.msra.mxu0 0
      %6733 = vmatprep.subr.bf16.mxu0 0
      %6734 = vmatpush1.bf16.msra.mxu0 0
      %6735 = vmatprep.subr.bf16.mxu0 0
      %6736 = vmatpush1.bf16.msra.mxu0 0
      %6737 = vmatprep.subr.bf16.mxu0 0
      %6738 = vmatpush1.bf16.msra.mxu0 0
      %6739 = vmatprep.subr.bf16.mxu0 0
      %6740 = vmatpush1.bf16.msra.mxu0 0
      %6741 = vmatprep.subr.bf16.mxu0 0
      %6742 = vmatpush1.bf16.msra.mxu0 0
      %6743 = vmatprep.subr.bf16.mxu0 0
      %6744 = vmatpush1.bf16.msra.mxu0 0
      %6745 = vmatprep.subr.bf16.mxu0 0
      %6746 = vmatpush1.bf16.msra.mxu0 0
      %6747 = vmatprep.subr.bf16.mxu0 0
      %6748 = vmatpush1.bf16.msra.mxu0 0
      %6749 = vmatprep.subr.bf16.mxu0 0
      %6750 = vmatpush1.bf16.msra.mxu0 0
      %6751 = vmatprep.mubr.bf16.mxu0 0
      %6752 = vmatmul.mubr.bf16.gmra.mrb[0].mxu0 %v6668
      %v6753 = vpop.f32.mrb[0].mxu0
      %v6754 = vadd.f32 0.0, %v6753
      %v6755 = vpop.f32.mrb[0].mxu0
      %v6756 = vpop.f32.mrb[0].mxu0
      %v6757 = vadd.f32 0.0, %v6756
      %v6758 = vpop.f32.mrb[0].mxu0
      %6759 = vmatprep.mubr.bf16.mxu0 0
      %6760 = vmatmul.mubr.bf16.gmra.mrb[0].mxu0 %v6671
      %v6761 = vpop.f32.mrb[0].mxu0
      %v6762 = vadd.f32 0.0, %v6761
      %v6763 = vpop.f32.mrb[0].mxu0
      %v6764 = vpop.f32.mrb[0].mxu0
      %v6765 = vadd.f32 0.0, %v6764
      %v6766 = vpop.f32.mrb[0].mxu0
      %6767 = vmatprep.mubr.bf16.mxu0 0
      %6768 = vmatmul.mubr.bf16.gmra.mrb[0].mxu0 %v6674
      %v6769 = vpop.f32.mrb[0].mxu0
      %v6770 = vadd.f32 0.0, %v6769
      %v6771 = vpop.f32.mrb[0].mxu0
      %v6772 = vpop.f32.mrb[0].mxu0
      %v6773 = vadd.f32 0.0, %v6772
      %v6774 = vpop.f32.mrb[0].mxu0
      %6775 = vmatprep.mubr.bf16.mxu0 0
      %6776 = vmatmul.mubr.bf16.gmra.mrb[0].mxu0 %v6677
      %v6777 = vpop.f32.mrb[0].mxu0
      %v6778 = vadd.f32 0.0, %v6777
      %v6779 = vpop.f32.mrb[0].mxu0
      %v6780 = vpop.f32.mrb[0].mxu0
      %v6781 = vadd.f32 0.0, %v6780
      %v6782 = vpop.f32.mrb[0].mxu0
      %6783 = vmatprep.mubr.bf16.mxu0 0
      %6784 = vmatmul.mubr.bf16.gmra.mrb[0].mxu0 %v6680
      %v6785 = vpop.f32.mrb[0].mxu0
      %v6786 = vadd.f32 0.0, %v6785
      %v6787 = vpop.f32.mrb[0].mxu0
      %v6788 = vpop.f32.mrb[0].mxu0
      %v6789 = vadd.f32 0.0, %v6788
      %v6790 = vpop.f32.mrb[0].mxu0
      %6791 = vmatprep.mubr.bf16.mxu0 0
      %6792 = vmatmul.mubr.bf16.gmra.mrb[0].mxu0 %v6683
      %v6793 = vpop.f32.mrb[0].mxu0
      %v6794 = vadd.f32 0.0, %v6793
      %v6795 = vpop.f32.mrb[0].mxu0
      %v6796 = vpop.f32.mrb[0].mxu0
      %v6797 = vadd.f32 0.0, %v6796
      %v6798 = vpop.f32.mrb[0].mxu0
      %6799 = vmatprep.mubr.bf16.mxu0 0
      %6800 = vmatmul.mubr.bf16.gmra.mrb[0].mxu0 %v6686
      %v6801 = vpop.f32.mrb[0].mxu0
      %v6802 = vadd.f32 0.0, %v6801
      %v6803 = vpop.f32.mrb[0].mxu0
      %v6804 = vpop.f32.mrb[0].mxu0
      %v6805 = vadd.f32 0.0, %v6804
      %v6806 = vpop.f32.mrb[0].mxu0
      %6807 = vmatprep.mubr.bf16.mxu0 0
      %6808 = vmatmul.mubr.bf16.gmra.mrb[0].mxu0 %v6689
      %v6809 = vpop.f32.mrb[0].mxu0
      %v6810 = vadd.f32 0.0, %v6809
      %v6811 = vpop.f32.mrb[0].mxu0
      %v6812 = vpop.f32.mrb[0].mxu0
      %v6813 = vadd.f32 0.0, %v6812
      %v6814 = vpop.f32.mrb[0].mxu0
      %6815 = vmatprep.mubr.bf16.mxu0 0
      %6816 = vmatmul.mubr.bf16.gmra.mrb[0].mxu0 %v6692
      %v6817 = vpop.f32.mrb[0].mxu0
      %v6818 = vadd.f32 0.0, %v6817
      %v6819 = vpop.f32.mrb[0].mxu0
      %v6820 = vpop.f32.mrb[0].mxu0
      %v6821 = vadd.f32 0.0, %v6820
      %v6822 = vpop.f32.mrb[0].mxu0
      %6823 = vmatprep.mubr.bf16.mxu0 0
      %6824 = vmatmul.mubr.bf16.gmra.mrb[0].mxu0 %v6695
      %v6825 = vpop.f32.mrb[0].mxu0
      %v6826 = vadd.f32 0.0, %v6825
      %v6827 = vpop.f32.mrb[0].mxu0
      %v6828 = vpop.f32.mrb[0].mxu0
      %v6829 = vadd.f32 0.0, %v6828
      %v6830 = vpop.f32.mrb[0].mxu0
      %6831 = vmatprep.mubr.bf16.mxu0 0
      %6832 = vmatmul.mubr.bf16.gmra.mrb[0].mxu0 %v6698
      %v6833 = vpop.f32.mrb[0].mxu0
      %v6834 = vadd.f32 0.0, %v6833
      %v6835 = vpop.f32.mrb[0].mxu0
      %v6836 = vpop.f32.mrb[0].mxu0
      %v6837 = vadd.f32 0.0, %v6836
      %v6838 = vpop.f32.mrb[0].mxu0
      %6839 = vmatprep.mubr.bf16.mxu0 0
      %6840 = vmatmul.mubr.bf16.gmra.mrb[0].mxu0 %v6701
      %v6841 = vpop.f32.mrb[0].mxu0
      %v6842 = vadd.f32 0.0, %v6841
      %v6843 = vpop.f32.mrb[0].mxu0
      %v6844 = vpop.f32.mrb[0].mxu0
      %v6845 = vadd.f32 0.0, %v6844
      %v6846 = vpop.f32.mrb[0].mxu0
      %6847 = vmatprep.mubr.bf16.mxu0 0
      %6848 = vmatmul.mubr.bf16.gmra.mrb[0].mxu0 %v6704
      %v6849 = vpop.f32.mrb[0].mxu0
      %v6850 = vadd.f32 0.0, %v6849
      %v6851 = vpop.f32.mrb[0].mxu0
      %v6852 = vpop.f32.mrb[0].mxu0
      %v6853 = vadd.f32 0.0, %v6852
      %v6854 = vpop.f32.mrb[0].mxu0
      %6855 = vmatprep.mubr.bf16.mxu0 0
      %6856 = vmatmul.mubr.bf16.gmra.mrb[0].mxu0 %v6707
      %v6857 = vpop.f32.mrb[0].mxu0
      %v6858 = vadd.f32 0.0, %v6857
      %v6859 = vpop.f32.mrb[0].mxu0
      %v6860 = vpop.f32.mrb[0].mxu0
      %v6861 = vadd.f32 0.0, %v6860
      %v6862 = vpop.f32.mrb[0].mxu0
      %6863 = vmatprep.mubr.bf16.mxu0 0
      %6864 = vmatmul.mubr.bf16.gmra.mrb[0].mxu0 %v6710
      %v6865 = vpop.f32.mrb[0].mxu0
      %v6866 = vadd.f32 0.0, %v6865
      %v6867 = vpop.f32.mrb[0].mxu0
      %v6868 = vpop.f32.mrb[0].mxu0
      %v6869 = vadd.f32 0.0, %v6868
      %v6870 = vpop.f32.mrb[0].mxu0
      %6871 = vmatprep.mubr.bf16.mxu0 0
      %6872 = vmatmul.mubr.bf16.gmra.mrb[0].mxu0 %v6713
      %v6873 = vpop.f32.mrb[0].mxu0
      %v6874 = vadd.f32 0.0, %v6873
      %v6875 = vpop.f32.mrb[0].mxu0
      %v6876 = vpop.f32.mrb[0].mxu0
      %v6877 = vadd.f32 0.0, %v6876
      %v6878 = vpop.f32.mrb[0].mxu0
      %6879 = vdwg.mxu0
      %v6880 = vadd.f32 %v6582, %v6754
      %v6881 = vadd.f32 %v6582, %v6757
      %v6882 = vadd.f32 %v6582, %v6762
      %v6883 = vadd.f32 %v6582, %v6765
      %v6884 = vadd.f32 %v6582, %v6770
      %v6885 = vadd.f32 %v6582, %v6773
      %v6886 = vadd.f32 %v6582, %v6778
      %v6887 = vadd.f32 %v6582, %v6781
      %v6888 = vadd.f32 %v6582, %v6786
      %v6889 = vadd.f32 %v6582, %v6789
      %v6890 = vadd.f32 %v6582, %v6794
      %v6891 = vadd.f32 %v6582, %v6797
      %v6892 = vadd.f32 %v6582, %v6802
      %v6893 = vadd.f32 %v6582, %v6805
      %v6894 = vadd.f32 %v6582, %v6810
      %v6895 = vadd.f32 %v6582, %v6813
      %v6896 = vadd.f32 %v6582, %v6818
      %v6897 = vadd.f32 %v6582, %v6821
      %v6898 = vadd.f32 %v6582, %v6826
      %v6899 = vadd.f32 %v6582, %v6829
      %v6900 = vadd.f32 %v6582, %v6834
      %v6901 = vadd.f32 %v6582, %v6837
      %v6902 = vadd.f32 %v6582, %v6842
      %v6903 = vadd.f32 %v6582, %v6845
      %v6904 = vadd.f32 %v6582, %v6850
      %v6905 = vadd.f32 %v6582, %v6853
      %v6906 = vadd.f32 %v6582, %v6858
      %v6907 = vadd.f32 %v6582, %v6861
      %v6908 = vadd.f32 %v6582, %v6866
      %v6909 = vadd.f32 %v6582, %v6869
      %v6910 = vadd.f32 %v6582, %v6874
      %v6911 = vadd.f32 %v6582, %v6877
      %s6912 = scalar_lea.vmem %s3, 12
      %v6913 = vld [vmem:[%s6912] sm:$0xf]
      %v6914 = vunpack.c.l.b16 %v5773
      %v6915 = vunpack.c.l.b16 %v5783
      %v6916 = vunpack.c.l.b16 %v5797
      %v6917 = vunpack.c.l.b16 %v5807
      %v6918 = vunpack.c.l.b16 %v5821
      %v6919 = vunpack.c.l.b16 %v5831
      %v6920 = vunpack.c.l.b16 %v5845
      %v6921 = vunpack.c.l.b16 %v5855
      %v6922 = vunpack.c.l.b16 %v5869
      %v6923 = vunpack.c.l.b16 %v5879
      %v6924 = vunpack.c.l.b16 %v5893
      %v6925 = vunpack.c.l.b16 %v5903
      %v6926 = vunpack.c.l.b16 %v5917
      %v6927 = vunpack.c.l.b16 %v5927
      %v6928 = vunpack.c.l.b16 %v5941
      %v6929 = vunpack.c.l.b16 %v5951
      %v6930 = vunpack.c.l.b16 %v5965
      %v6931 = vunpack.c.l.b16 %v5975
      %v6932 = vunpack.c.l.b16 %v5989
      %v6933 = vunpack.c.l.b16 %v5999
      %v6934 = vunpack.c.l.b16 %v6013
      %v6935 = vunpack.c.l.b16 %v6023
      %v6936 = vunpack.c.l.b16 %v6037
      %v6937 = vunpack.c.l.b16 %v6047
      %v6938 = vunpack.c.l.b16 %v6061
      %v6939 = vunpack.c.l.b16 %v6071
      %v6940 = vunpack.c.l.b16 %v6085
      %v6941 = vunpack.c.l.b16 %v6095
      %v6942 = vunpack.c.l.b16 %v6109
      %v6943 = vunpack.c.l.b16 %v6119
      %v6944 = vunpack.c.l.b16 %v6133
      %v6945 = vunpack.c.l.b16 %v6143
      %v6946 = vpack.c.b16 %v6915, %v6914
      %v6947 = vpack.c.b16 %v6917, %v6916
      %v6948 = vpack.c.b16 %v6919, %v6918
      %v6949 = vpack.c.b16 %v6921, %v6920
      %v6950 = vpack.c.b16 %v6923, %v6922
      %v6951 = vpack.c.b16 %v6925, %v6924
      %v6952 = vpack.c.b16 %v6927, %v6926
      %v6953 = vpack.c.b16 %v6929, %v6928
      %v6954 = vpack.c.b16 %v6931, %v6930
      %v6955 = vpack.c.b16 %v6933, %v6932
      %v6956 = vpack.c.b16 %v6935, %v6934
      %v6957 = vpack.c.b16 %v6937, %v6936
      %v6958 = vpack.c.b16 %v6939, %v6938
      %v6959 = vpack.c.b16 %v6941, %v6940
      %v6960 = vpack.c.b16 %v6943, %v6942
      %v6961 = vpack.c.b16 %v6945, %v6944
      %v6963 = vsel %vm6666, %v6946, 0
      %v6966 = vsel %vm6666, %v6947, 0
      %v6969 = vsel %vm6666, %v6948, 0
      %v6972 = vsel %vm6666, %v6949, 0
      %v6975 = vsel %vm6666, %v6950, 0
      %v6978 = vsel %vm6666, %v6951, 0
      %v6981 = vsel %vm6666, %v6952, 0
      %v6984 = vsel %vm6666, %v6953, 0
      %v6987 = vsel %vm6666, %v6954, 0
      %v6990 = vsel %vm6666, %v6955, 0
      %v6993 = vsel %vm6666, %v6956, 0
      %v6996 = vsel %vm6666, %v6957, 0
      %v6999 = vsel %vm6666, %v6958, 0
      %v7002 = vsel %vm6666, %v6959, 0
      %v7005 = vsel %vm6666, %v6960, 0
      %v7008 = vsel %vm6666, %v6961, 0
      %v7011 = vsel %vm6715, %v6913, 0
      %7013 = vmatprep.subr.bf16.mxu0 0
      %7014 = vmatpush1.bf16.msra.mxu0 %v7011
      %7015 = vmatprep.subr.bf16.mxu0 0
      %7016 = vmatpush1.bf16.msra.mxu0 0
      %7017 = vmatprep.subr.bf16.mxu0 0
      %7018 = vmatpush1.bf16.msra.mxu0 0
      %7019 = vmatprep.subr.bf16.mxu0 0
      %7020 = vmatpush1.bf16.msra.mxu0 0
      %7021 = vmatprep.subr.bf16.mxu0 0
      %7022 = vmatpush1.bf16.msra.mxu0 0
      %7023 = vmatprep.subr.bf16.mxu0 0
      %7024 = vmatpush1.bf16.msra.mxu0 0
      %7025 = vmatprep.subr.bf16.mxu0 0
      %7026 = vmatpush1.bf16.msra.mxu0 0
      %7027 = vmatprep.subr.bf16.mxu0 0
      %7028 = vmatpush1.bf16.msra.mxu0 0
      %7029 = vmatprep.subr.bf16.mxu0 0
      %7030 = vmatpush1.bf16.msra.mxu0 0
      %7031 = vmatprep.subr.bf16.mxu0 0
      %7032 = vmatpush1.bf16.msra.mxu0 0
      %7033 = vmatprep.subr.bf16.mxu0 0
      %7034 = vmatpush1.bf16.msra.mxu0 0
      %7035 = vmatprep.subr.bf16.mxu0 0
      %7036 = vmatpush1.bf16.msra.mxu0 0
      %7037 = vmatprep.subr.bf16.mxu0 0
      %7038 = vmatpush1.bf16.msra.mxu0 0
      %7039 = vmatprep.subr.bf16.mxu0 0
      %7040 = vmatpush1.bf16.msra.mxu0 0
      %7041 = vmatprep.subr.bf16.mxu0 0
      %7042 = vmatpush1.bf16.msra.mxu0 0
      %7043 = vmatprep.subr.bf16.mxu0 0
      %7044 = vmatpush1.bf16.msra.mxu0 0
      %7045 = vmatprep.mubr.bf16.mxu0 0
      %7046 = vmatmul.mubr.bf16.gmra.mrb[0].mxu0 %v6963
      %v7047 = vpop.f32.mrb[0].mxu0
      %v7048 = vadd.f32 0.0, %v7047
      %v7049 = vpop.f32.mrb[0].mxu0
      %v7050 = vpop.f32.mrb[0].mxu0
      %v7051 = vadd.f32 0.0, %v7050
      %v7052 = vpop.f32.mrb[0].mxu0
      %7053 = vmatprep.mubr.bf16.mxu0 0
      %7054 = vmatmul.mubr.bf16.gmra.mrb[0].mxu0 %v6966
      %v7055 = vpop.f32.mrb[0].mxu0
      %v7056 = vadd.f32 0.0, %v7055
      %v7057 = vpop.f32.mrb[0].mxu0
      %v7058 = vpop.f32.mrb[0].mxu0
      %v7059 = vadd.f32 0.0, %v7058
      %v7060 = vpop.f32.mrb[0].mxu0
      %7061 = vmatprep.mubr.bf16.mxu0 0
      %7062 = vmatmul.mubr.bf16.gmra.mrb[0].mxu0 %v6969
      %v7063 = vpop.f32.mrb[0].mxu0
      %v7064 = vadd.f32 0.0, %v7063
      %v7065 = vpop.f32.mrb[0].mxu0
      %v7066 = vpop.f32.mrb[0].mxu0
      %v7067 = vadd.f32 0.0, %v7066
      %v7068 = vpop.f32.mrb[0].mxu0
      %7069 = vmatprep.mubr.bf16.mxu0 0
      %7070 = vmatmul.mubr.bf16.gmra.mrb[0].mxu0 %v6972
      %v7071 = vpop.f32.mrb[0].mxu0
      %v7072 = vadd.f32 0.0, %v7071
      %v7073 = vpop.f32.mrb[0].mxu0
      %v7074 = vpop.f32.mrb[0].mxu0
      %v7075 = vadd.f32 0.0, %v7074
      %v7076 = vpop.f32.mrb[0].mxu0
      %7077 = vmatprep.mubr.bf16.mxu0 0
      %7078 = vmatmul.mubr.bf16.gmra.mrb[0].mxu0 %v6975
      %v7079 = vpop.f32.mrb[0].mxu0
      %v7080 = vadd.f32 0.0, %v7079
      %v7081 = vpop.f32.mrb[0].mxu0
      %v7082 = vpop.f32.mrb[0].mxu0
      %v7083 = vadd.f32 0.0, %v7082
      %v7084 = vpop.f32.mrb[0].mxu0
      %7085 = vmatprep.mubr.bf16.mxu0 0
      %7086 = vmatmul.mubr.bf16.gmra.mrb[0].mxu0 %v6978
      %v7087 = vpop.f32.mrb[0].mxu0
      %v7088 = vadd.f32 0.0, %v7087
      %v7089 = vpop.f32.mrb[0].mxu0
      %v7090 = vpop.f32.mrb[0].mxu0
      %v7091 = vadd.f32 0.0, %v7090
      %v7092 = vpop.f32.mrb[0].mxu0
      %7093 = vmatprep.mubr.bf16.mxu0 0
      %7094 = vmatmul.mubr.bf16.gmra.mrb[0].mxu0 %v6981
      %v7095 = vpop.f32.mrb[0].mxu0
      %v7096 = vadd.f32 0.0, %v7095
      %v7097 = vpop.f32.mrb[0].mxu0
      %v7098 = vpop.f32.mrb[0].mxu0
      %v7099 = vadd.f32 0.0, %v7098
      %v7100 = vpop.f32.mrb[0].mxu0
      %7101 = vmatprep.mubr.bf16.mxu0 0
      %7102 = vmatmul.mubr.bf16.gmra.mrb[0].mxu0 %v6984
      %v7103 = vpop.f32.mrb[0].mxu0
      %v7104 = vadd.f32 0.0, %v7103
      %v7105 = vpop.f32.mrb[0].mxu0
      %v7106 = vpop.f32.mrb[0].mxu0
      %v7107 = vadd.f32 0.0, %v7106
      %v7108 = vpop.f32.mrb[0].mxu0
      %7109 = vmatprep.mubr.bf16.mxu0 0
      %7110 = vmatmul.mubr.bf16.gmra.mrb[0].mxu0 %v6987
      %v7111 = vpop.f32.mrb[0].mxu0
      %v7112 = vadd.f32 0.0, %v7111
      %v7113 = vpop.f32.mrb[0].mxu0
      %v7114 = vpop.f32.mrb[0].mxu0
      %v7115 = vadd.f32 0.0, %v7114
      %v7116 = vpop.f32.mrb[0].mxu0
      %7117 = vmatprep.mubr.bf16.mxu0 0
      %7118 = vmatmul.mubr.bf16.gmra.mrb[0].mxu0 %v6990
      %v7119 = vpop.f32.mrb[0].mxu0
      %v7120 = vadd.f32 0.0, %v7119
      %v7121 = vpop.f32.mrb[0].mxu0
      %v7122 = vpop.f32.mrb[0].mxu0
      %v7123 = vadd.f32 0.0, %v7122
      %v7124 = vpop.f32.mrb[0].mxu0
      %7125 = vmatprep.mubr.bf16.mxu0 0
      %7126 = vmatmul.mubr.bf16.gmra.mrb[0].mxu0 %v6993
      %v7127 = vpop.f32.mrb[0].mxu0
      %v7128 = vadd.f32 0.0, %v7127
      %v7129 = vpop.f32.mrb[0].mxu0
      %v7130 = vpop.f32.mrb[0].mxu0
      %v7131 = vadd.f32 0.0, %v7130
      %v7132 = vpop.f32.mrb[0].mxu0
      %7133 = vmatprep.mubr.bf16.mxu0 0
      %7134 = vmatmul.mubr.bf16.gmra.mrb[0].mxu0 %v6996
      %v7135 = vpop.f32.mrb[0].mxu0
      %v7136 = vadd.f32 0.0, %v7135
      %v7137 = vpop.f32.mrb[0].mxu0
      %v7138 = vpop.f32.mrb[0].mxu0
      %v7139 = vadd.f32 0.0, %v7138
      %v7140 = vpop.f32.mrb[0].mxu0
      %7141 = vmatprep.mubr.bf16.mxu0 0
      %7142 = vmatmul.mubr.bf16.gmra.mrb[0].mxu0 %v6999
      %v7143 = vpop.f32.mrb[0].mxu0
      %v7144 = vadd.f32 0.0, %v7143
      %v7145 = vpop.f32.mrb[0].mxu0
      %v7146 = vpop.f32.mrb[0].mxu0
      %v7147 = vadd.f32 0.0, %v7146
      %v7148 = vpop.f32.mrb[0].mxu0
      %7149 = vmatprep.mubr.bf16.mxu0 0
      %7150 = vmatmul.mubr.bf16.gmra.mrb[0].mxu0 %v7002
      %v7151 = vpop.f32.mrb[0].mxu0
      %v7152 = vadd.f32 0.0, %v7151
      %v7153 = vpop.f32.mrb[0].mxu0
      %v7154 = vpop.f32.mrb[0].mxu0
      %v7155 = vadd.f32 0.0, %v7154
      %v7156 = vpop.f32.mrb[0].mxu0
      %7157 = vmatprep.mubr.bf16.mxu0 0
      %7158 = vmatmul.mubr.bf16.gmra.mrb[0].mxu0 %v7005
      %v7159 = vpop.f32.mrb[0].mxu0
      %v7160 = vadd.f32 0.0, %v7159
      %v7161 = vpop.f32.mrb[0].mxu0
      %v7162 = vpop.f32.mrb[0].mxu0
      %v7163 = vadd.f32 0.0, %v7162
      %v7164 = vpop.f32.mrb[0].mxu0
      %7165 = vmatprep.mubr.bf16.mxu0 0
      %7166 = vmatmul.mubr.bf16.gmra.mrb[0].mxu0 %v7008
      %v7167 = vpop.f32.mrb[0].mxu0
      %v7168 = vadd.f32 0.0, %v7167
      %v7169 = vpop.f32.mrb[0].mxu0
      %v7170 = vpop.f32.mrb[0].mxu0
      %v7171 = vadd.f32 0.0, %v7170
      %v7172 = vpop.f32.mrb[0].mxu0
      %7173 = vdwg.mxu0
      %v7174 = vadd.f32 %v6582, %v7048
      %v7175 = vadd.f32 %v6582, %v7051
      %v7176 = vadd.f32 %v6582, %v7056
      %v7177 = vadd.f32 %v6582, %v7059
      %v7178 = vadd.f32 %v6582, %v7064
      %v7179 = vadd.f32 %v6582, %v7067
      %v7180 = vadd.f32 %v6582, %v7072
      %v7181 = vadd.f32 %v6582, %v7075
      %v7182 = vadd.f32 %v6582, %v7080
      %v7183 = vadd.f32 %v6582, %v7083
      %v7184 = vadd.f32 %v6582, %v7088
      %v7185 = vadd.f32 %v6582, %v7091
      %v7186 = vadd.f32 %v6582, %v7096
      %v7187 = vadd.f32 %v6582, %v7099
      %v7188 = vadd.f32 %v6582, %v7104
      %v7189 = vadd.f32 %v6582, %v7107
      %v7190 = vadd.f32 %v6582, %v7112
      %v7191 = vadd.f32 %v6582, %v7115
      %v7192 = vadd.f32 %v6582, %v7120
      %v7193 = vadd.f32 %v6582, %v7123
      %v7194 = vadd.f32 %v6582, %v7128
      %v7195 = vadd.f32 %v6582, %v7131
      %v7196 = vadd.f32 %v6582, %v7136
      %v7197 = vadd.f32 %v6582, %v7139
      %v7198 = vadd.f32 %v6582, %v7144
      %v7199 = vadd.f32 %v6582, %v7147
      %v7200 = vadd.f32 %v6582, %v7152
      %v7201 = vadd.f32 %v6582, %v7155
      %v7202 = vadd.f32 %v6582, %v7160
      %v7203 = vadd.f32 %v6582, %v7163
      %v7204 = vadd.f32 %v6582, %v7168
      %v7205 = vadd.f32 %v6582, %v7171
      %s7206 = scalar_lea.vmem %s3, 20
      %v7207 = vld [vmem:[%s7206] sm:$0xf]
      %v7209 = vsel %vm6715, %v7207, 0
      %7211 = vmatprep.subr.bf16.mxu0 0
      %7212 = vmatpush1.bf16.msra.mxu0 %v7209
      %7213 = vmatprep.subr.bf16.mxu0 0
      %7214 = vmatpush1.bf16.msra.mxu0 0
      %7215 = vmatprep.subr.bf16.mxu0 0
      %7216 = vmatpush1.bf16.msra.mxu0 0
      %7217 = vmatprep.subr.bf16.mxu0 0
      %7218 = vmatpush1.bf16.msra.mxu0 0
      %7219 = vmatprep.subr.bf16.mxu0 0
      %7220 = vmatpush1.bf16.msra.mxu0 0
      %7221 = vmatprep.subr.bf16.mxu0 0
      %7222 = vmatpush1.bf16.msra.mxu0 0
      %7223 = vmatprep.subr.bf16.mxu0 0
      %7224 = vmatpush1.bf16.msra.mxu0 0
      %7225 = vmatprep.subr.bf16.mxu0 0
      %7226 = vmatpush1.bf16.msra.mxu0 0
      %7227 = vmatprep.subr.bf16.mxu0 0
      %7228 = vmatpush1.bf16.msra.mxu0 0
      %7229 = vmatprep.subr.bf16.mxu0 0
      %7230 = vmatpush1.bf16.msra.mxu0 0
      %7231 = vmatprep.subr.bf16.mxu0 0
      %7232 = vmatpush1.bf16.msra.mxu0 0
      %7233 = vmatprep.subr.bf16.mxu0 0
      %7234 = vmatpush1.bf16.msra.mxu0 0
      %7235 = vmatprep.subr.bf16.mxu0 0
      %7236 = vmatpush1.bf16.msra.mxu0 0
      %7237 = vmatprep.subr.bf16.mxu0 0
      %7238 = vmatpush1.bf16.msra.mxu0 0
      %7239 = vmatprep.subr.bf16.mxu0 0
      %7240 = vmatpush1.bf16.msra.mxu0 0
      %7241 = vmatprep.subr.bf16.mxu0 0
      %7242 = vmatpush1.bf16.msra.mxu0 0
      %7243 = vmatprep.mubr.bf16.mxu0 0
      %7244 = vmatmul.mubr.bf16.gmra.mrb[0].mxu0 %v6668
      %v7245 = vpop.f32.mrb[0].mxu0
      %v7246 = vadd.f32 0.0, %v7245
      %v7247 = vpop.f32.mrb[0].mxu0
      %v7248 = vpop.f32.mrb[0].mxu0
      %v7249 = vadd.f32 0.0, %v7248
      %v7250 = vpop.f32.mrb[0].mxu0
      %7251 = vmatprep.mubr.bf16.mxu0 0
      %7252 = vmatmul.mubr.bf16.gmra.mrb[0].mxu0 %v6671
      %v7253 = vpop.f32.mrb[0].mxu0
      %v7254 = vadd.f32 0.0, %v7253
      %v7255 = vpop.f32.mrb[0].mxu0
      %v7256 = vpop.f32.mrb[0].mxu0
      %v7257 = vadd.f32 0.0, %v7256
      %v7258 = vpop.f32.mrb[0].mxu0
      %7259 = vmatprep.mubr.bf16.mxu0 0
      %7260 = vmatmul.mubr.bf16.gmra.mrb[0].mxu0 %v6674
      %v7261 = vpop.f32.mrb[0].mxu0
      %v7262 = vadd.f32 0.0, %v7261
      %v7263 = vpop.f32.mrb[0].mxu0
      %v7264 = vpop.f32.mrb[0].mxu0
      %v7265 = vadd.f32 0.0, %v7264
      %v7266 = vpop.f32.mrb[0].mxu0
      %7267 = vmatprep.mubr.bf16.mxu0 0
      %7268 = vmatmul.mubr.bf16.gmra.mrb[0].mxu0 %v6677
      %v7269 = vpop.f32.mrb[0].mxu0
      %v7270 = vadd.f32 0.0, %v7269
      %v7271 = vpop.f32.mrb[0].mxu0
      %v7272 = vpop.f32.mrb[0].mxu0
      %v7273 = vadd.f32 0.0, %v7272
      %v7274 = vpop.f32.mrb[0].mxu0
      %7275 = vmatprep.mubr.bf16.mxu0 0
      %7276 = vmatmul.mubr.bf16.gmra.mrb[0].mxu0 %v6680
      %v7277 = vpop.f32.mrb[0].mxu0
      %v7278 = vadd.f32 0.0, %v7277
      %v7279 = vpop.f32.mrb[0].mxu0
      %v7280 = vpop.f32.mrb[0].mxu0
      %v7281 = vadd.f32 0.0, %v7280
      %v7282 = vpop.f32.mrb[0].mxu0
      %7283 = vmatprep.mubr.bf16.mxu0 0
      %7284 = vmatmul.mubr.bf16.gmra.mrb[0].mxu0 %v6683
      %v7285 = vpop.f32.mrb[0].mxu0
      %v7286 = vadd.f32 0.0, %v7285
      %v7287 = vpop.f32.mrb[0].mxu0
      %v7288 = vpop.f32.mrb[0].mxu0
      %v7289 = vadd.f32 0.0, %v7288
      %v7290 = vpop.f32.mrb[0].mxu0
      %7291 = vmatprep.mubr.bf16.mxu0 0
      %7292 = vmatmul.mubr.bf16.gmra.mrb[0].mxu0 %v6686
      %v7293 = vpop.f32.mrb[0].mxu0
      %v7294 = vadd.f32 0.0, %v7293
      %v7295 = vpop.f32.mrb[0].mxu0
      %v7296 = vpop.f32.mrb[0].mxu0
      %v7297 = vadd.f32 0.0, %v7296
      %v7298 = vpop.f32.mrb[0].mxu0
      %7299 = vmatprep.mubr.bf16.mxu0 0
      %7300 = vmatmul.mubr.bf16.gmra.mrb[0].mxu0 %v6689
      %v7301 = vpop.f32.mrb[0].mxu0
      %v7302 = vadd.f32 0.0, %v7301
      %v7303 = vpop.f32.mrb[0].mxu0
      %v7304 = vpop.f32.mrb[0].mxu0
      %v7305 = vadd.f32 0.0, %v7304
      %v7306 = vpop.f32.mrb[0].mxu0
      %7307 = vmatprep.mubr.bf16.mxu0 0
      %7308 = vmatmul.mubr.bf16.gmra.mrb[0].mxu0 %v6692
      %v7309 = vpop.f32.mrb[0].mxu0
      %v7310 = vadd.f32 0.0, %v7309
      %v7311 = vpop.f32.mrb[0].mxu0
      %v7312 = vpop.f32.mrb[0].mxu0
      %v7313 = vadd.f32 0.0, %v7312
      %v7314 = vpop.f32.mrb[0].mxu0
      %7315 = vmatprep.mubr.bf16.mxu0 0
      %7316 = vmatmul.mubr.bf16.gmra.mrb[0].mxu0 %v6695
      %v7317 = vpop.f32.mrb[0].mxu0
      %v7318 = vadd.f32 0.0, %v7317
      %v7319 = vpop.f32.mrb[0].mxu0
      %v7320 = vpop.f32.mrb[0].mxu0
      %v7321 = vadd.f32 0.0, %v7320
      %v7322 = vpop.f32.mrb[0].mxu0
      %7323 = vmatprep.mubr.bf16.mxu0 0
      %7324 = vmatmul.mubr.bf16.gmra.mrb[0].mxu0 %v6698
      %v7325 = vpop.f32.mrb[0].mxu0
      %v7326 = vadd.f32 0.0, %v7325
      %v7327 = vpop.f32.mrb[0].mxu0
      %v7328 = vpop.f32.mrb[0].mxu0
      %v7329 = vadd.f32 0.0, %v7328
      %v7330 = vpop.f32.mrb[0].mxu0
      %7331 = vmatprep.mubr.bf16.mxu0 0
      %7332 = vmatmul.mubr.bf16.gmra.mrb[0].mxu0 %v6701
      %v7333 = vpop.f32.mrb[0].mxu0
      %v7334 = vadd.f32 0.0, %v7333
      %v7335 = vpop.f32.mrb[0].mxu0
      %v7336 = vpop.f32.mrb[0].mxu0
      %v7337 = vadd.f32 0.0, %v7336
      %v7338 = vpop.f32.mrb[0].mxu0
      %7339 = vmatprep.mubr.bf16.mxu0 0
      %7340 = vmatmul.mubr.bf16.gmra.mrb[0].mxu0 %v6704
      %v7341 = vpop.f32.mrb[0].mxu0
      %v7342 = vadd.f32 0.0, %v7341
      %v7343 = vpop.f32.mrb[0].mxu0
      %v7344 = vpop.f32.mrb[0].mxu0
      %v7345 = vadd.f32 0.0, %v7344
      %v7346 = vpop.f32.mrb[0].mxu0
      %7347 = vmatprep.mubr.bf16.mxu0 0
      %7348 = vmatmul.mubr.bf16.gmra.mrb[0].mxu0 %v6707
      %v7349 = vpop.f32.mrb[0].mxu0
      %v7350 = vadd.f32 0.0, %v7349
      %v7351 = vpop.f32.mrb[0].mxu0
      %v7352 = vpop.f32.mrb[0].mxu0
      %v7353 = vadd.f32 0.0, %v7352
      %v7354 = vpop.f32.mrb[0].mxu0
      %7355 = vmatprep.mubr.bf16.mxu0 0
      %7356 = vmatmul.mubr.bf16.gmra.mrb[0].mxu0 %v6710
      %v7357 = vpop.f32.mrb[0].mxu0
      %v7358 = vadd.f32 0.0, %v7357
      %v7359 = vpop.f32.mrb[0].mxu0
      %v7360 = vpop.f32.mrb[0].mxu0
      %v7361 = vadd.f32 0.0, %v7360
      %v7362 = vpop.f32.mrb[0].mxu0
      %7363 = vmatprep.mubr.bf16.mxu0 0
      %7364 = vmatmul.mubr.bf16.gmra.mrb[0].mxu0 %v6713
      %v7365 = vpop.f32.mrb[0].mxu0
      %v7366 = vadd.f32 0.0, %v7365
      %v7367 = vpop.f32.mrb[0].mxu0
      %v7368 = vpop.f32.mrb[0].mxu0
      %v7369 = vadd.f32 0.0, %v7368
      %v7370 = vpop.f32.mrb[0].mxu0
      %7371 = vdwg.mxu0
      %v7372 = vadd.f32 %v7174, %v7246
      %v7373 = vadd.f32 %v7175, %v7249
      %v7374 = vadd.f32 %v7176, %v7254
      %v7375 = vadd.f32 %v7177, %v7257
      %v7376 = vadd.f32 %v7178, %v7262
      %v7377 = vadd.f32 %v7179, %v7265
      %v7378 = vadd.f32 %v7180, %v7270
      %v7379 = vadd.f32 %v7181, %v7273
      %v7380 = vadd.f32 %v7182, %v7278
      %v7381 = vadd.f32 %v7183, %v7281
      %v7382 = vadd.f32 %v7184, %v7286
      %v7383 = vadd.f32 %v7185, %v7289
      %v7384 = vadd.f32 %v7186, %v7294
      %v7385 = vadd.f32 %v7187, %v7297
      %v7386 = vadd.f32 %v7188, %v7302
      %v7387 = vadd.f32 %v7189, %v7305
      %v7388 = vadd.f32 %v7190, %v7310
      %v7389 = vadd.f32 %v7191, %v7313
      %v7390 = vadd.f32 %v7192, %v7318
      %v7391 = vadd.f32 %v7193, %v7321
      %v7392 = vadd.f32 %v7194, %v7326
      %v7393 = vadd.f32 %v7195, %v7329
      %v7394 = vadd.f32 %v7196, %v7334
      %v7395 = vadd.f32 %v7197, %v7337
      %v7396 = vadd.f32 %v7198, %v7342
      %v7397 = vadd.f32 %v7199, %v7345
      %v7398 = vadd.f32 %v7200, %v7350
      %v7399 = vadd.f32 %v7201, %v7353
      %v7400 = vadd.f32 %v7202, %v7358
      %v7401 = vadd.f32 %v7203, %v7361
      %v7402 = vadd.f32 %v7204, %v7366
      %v7403 = vadd.f32 %v7205, %v7369
      %s7404 = scalar_lea.vmem %s3, 4
      %v7405 = vld [vmem:[%s7404] sm:$0xf]
      %v7438 = vunpack.c.l.b16 %v6145
      %v7439 = vunpack.c.l.b16 %v6146
      %v7440 = vunpack.c.l.b16 %v6147
      %v7441 = vunpack.c.l.b16 %v6148
      %v7442 = vunpack.c.l.b16 %v6149
      %v7443 = vunpack.c.l.b16 %v6150
      %v7444 = vunpack.c.l.b16 %v6151
      %v7445 = vunpack.c.l.b16 %v6152
      %v7446 = vunpack.c.l.b16 %v6153
      %v7447 = vunpack.c.l.b16 %v6154
      %v7448 = vunpack.c.l.b16 %v6155
      %v7449 = vunpack.c.l.b16 %v6156
      %v7450 = vunpack.c.l.b16 %v6157
      %v7451 = vunpack.c.l.b16 %v6158
      %v7452 = vunpack.c.l.b16 %v6159
      %v7453 = vunpack.c.l.b16 %v6160
      %v7454 = vunpack.c.l.b16 %v6161
      %v7455 = vunpack.c.l.b16 %v6162
      %v7456 = vunpack.c.l.b16 %v6163
      %v7457 = vunpack.c.l.b16 %v6164
      %v7458 = vunpack.c.l.b16 %v6165
      %v7459 = vunpack.c.l.b16 %v6166
      %v7460 = vunpack.c.l.b16 %v6167
      %v7461 = vunpack.c.l.b16 %v6168
      %v7462 = vunpack.c.l.b16 %v6169
      %v7463 = vunpack.c.l.b16 %v6170
      %v7464 = vunpack.c.l.b16 %v6171
      %v7465 = vunpack.c.l.b16 %v6172
      %v7466 = vunpack.c.l.b16 %v6173
      %v7467 = vunpack.c.l.b16 %v6174
      %v7468 = vunpack.c.l.b16 %v6175
      %v7469 = vunpack.c.l.b16 %v6176
      %v7470 = vpack.c.b16 %v7439, %v7438
      %v7471 = vpack.c.b16 %v7441, %v7440
      %v7472 = vpack.c.b16 %v7443, %v7442
      %v7473 = vpack.c.b16 %v7445, %v7444
      %v7474 = vpack.c.b16 %v7447, %v7446
      %v7475 = vpack.c.b16 %v7449, %v7448
      %v7476 = vpack.c.b16 %v7451, %v7450
      %v7477 = vpack.c.b16 %v7453, %v7452
      %v7478 = vpack.c.b16 %v7455, %v7454
      %v7479 = vpack.c.b16 %v7457, %v7456
      %v7480 = vpack.c.b16 %v7459, %v7458
      %v7481 = vpack.c.b16 %v7461, %v7460
      %v7482 = vpack.c.b16 %v7463, %v7462
      %v7483 = vpack.c.b16 %v7465, %v7464
      %v7484 = vpack.c.b16 %v7467, %v7466
      %v7485 = vpack.c.b16 %v7469, %v7468
      %v7487 = vsel %vm6666, %v7470, 0
      %v7490 = vsel %vm6666, %v7471, 0
      %v7493 = vsel %vm6666, %v7472, 0
      %v7496 = vsel %vm6666, %v7473, 0
      %v7499 = vsel %vm6666, %v7474, 0
      %v7502 = vsel %vm6666, %v7475, 0
      %v7505 = vsel %vm6666, %v7476, 0
      %v7508 = vsel %vm6666, %v7477, 0
      %v7511 = vsel %vm6666, %v7478, 0
      %v7514 = vsel %vm6666, %v7479, 0
      %v7517 = vsel %vm6666, %v7480, 0
      %v7520 = vsel %vm6666, %v7481, 0
      %v7523 = vsel %vm6666, %v7482, 0
      %v7526 = vsel %vm6666, %v7483, 0
      %v7529 = vsel %vm6666, %v7484, 0
      %v7532 = vsel %vm6666, %v7485, 0
      %v7535 = vsel %vm6715, %v7405, 0
      %7537 = vmatprep.subr.bf16.mxu0 0
      %7538 = vmatpush1.bf16.msra.mxu0 %v7535
      %7539 = vmatprep.subr.bf16.mxu0 0
      %7540 = vmatpush1.bf16.msra.mxu0 0
      %7541 = vmatprep.subr.bf16.mxu0 0
      %7542 = vmatpush1.bf16.msra.mxu0 0
      %7543 = vmatprep.subr.bf16.mxu0 0
      %7544 = vmatpush1.bf16.msra.mxu0 0
      %7545 = vmatprep.subr.bf16.mxu0 0
      %7546 = vmatpush1.bf16.msra.mxu0 0
      %7547 = vmatprep.subr.bf16.mxu0 0
      %7548 = vmatpush1.bf16.msra.mxu0 0
      %7549 = vmatprep.subr.bf16.mxu0 0
      %7550 = vmatpush1.bf16.msra.mxu0 0
      %7551 = vmatprep.subr.bf16.mxu0 0
      %7552 = vmatpush1.bf16.msra.mxu0 0
      %7553 = vmatprep.subr.bf16.mxu0 0
      %7554 = vmatpush1.bf16.msra.mxu0 0
      %7555 = vmatprep.subr.bf16.mxu0 0
      %7556 = vmatpush1.bf16.msra.mxu0 0
      %7557 = vmatprep.subr.bf16.mxu0 0
      %7558 = vmatpush1.bf16.msra.mxu0 0
      %7559 = vmatprep.subr.bf16.mxu0 0
      %7560 = vmatpush1.bf16.msra.mxu0 0
      %7561 = vmatprep.subr.bf16.mxu0 0
      %7562 = vmatpush1.bf16.msra.mxu0 0
      %7563 = vmatprep.subr.bf16.mxu0 0
      %7564 = vmatpush1.bf16.msra.mxu0 0
      %7565 = vmatprep.subr.bf16.mxu0 0
      %7566 = vmatpush1.bf16.msra.mxu0 0
      %7567 = vmatprep.subr.bf16.mxu0 0
      %7568 = vmatpush1.bf16.msra.mxu0 0
      %7569 = vmatprep.mubr.bf16.mxu0 0
      %7570 = vmatmul.mubr.bf16.gmra.mrb[0].mxu0 %v7487
      %v7571 = vpop.f32.mrb[0].mxu0
      %v7572 = vadd.f32 0.0, %v7571
      %v7573 = vpop.f32.mrb[0].mxu0
      %v7574 = vpop.f32.mrb[0].mxu0
      %v7575 = vadd.f32 0.0, %v7574
      %v7576 = vpop.f32.mrb[0].mxu0
      %7577 = vmatprep.mubr.bf16.mxu0 0
      %7578 = vmatmul.mubr.bf16.gmra.mrb[0].mxu0 %v7490
      %v7579 = vpop.f32.mrb[0].mxu0
      %v7580 = vadd.f32 0.0, %v7579
      %v7581 = vpop.f32.mrb[0].mxu0
      %v7582 = vpop.f32.mrb[0].mxu0
      %v7583 = vadd.f32 0.0, %v7582
      %v7584 = vpop.f32.mrb[0].mxu0
      %7585 = vmatprep.mubr.bf16.mxu0 0
      %7586 = vmatmul.mubr.bf16.gmra.mrb[0].mxu0 %v7493
      %v7587 = vpop.f32.mrb[0].mxu0
      %v7588 = vadd.f32 0.0, %v7587
      %v7589 = vpop.f32.mrb[0].mxu0
      %v7590 = vpop.f32.mrb[0].mxu0
      %v7591 = vadd.f32 0.0, %v7590
      %v7592 = vpop.f32.mrb[0].mxu0
      %7593 = vmatprep.mubr.bf16.mxu0 0
      %7594 = vmatmul.mubr.bf16.gmra.mrb[0].mxu0 %v7496
      %v7595 = vpop.f32.mrb[0].mxu0
      %v7596 = vadd.f32 0.0, %v7595
      %v7597 = vpop.f32.mrb[0].mxu0
      %v7598 = vpop.f32.mrb[0].mxu0
      %v7599 = vadd.f32 0.0, %v7598
      %v7600 = vpop.f32.mrb[0].mxu0
      %7601 = vmatprep.mubr.bf16.mxu0 0
      %7602 = vmatmul.mubr.bf16.gmra.mrb[0].mxu0 %v7499
      %v7603 = vpop.f32.mrb[0].mxu0
      %v7604 = vadd.f32 0.0, %v7603
      %v7605 = vpop.f32.mrb[0].mxu0
      %v7606 = vpop.f32.mrb[0].mxu0
      %v7607 = vadd.f32 0.0, %v7606
      %v7608 = vpop.f32.mrb[0].mxu0
      %7609 = vmatprep.mubr.bf16.mxu0 0
      %7610 = vmatmul.mubr.bf16.gmra.mrb[0].mxu0 %v7502
      %v7611 = vpop.f32.mrb[0].mxu0
      %v7612 = vadd.f32 0.0, %v7611
      %v7613 = vpop.f32.mrb[0].mxu0
      %v7614 = vpop.f32.mrb[0].mxu0
      %v7615 = vadd.f32 0.0, %v7614
      %v7616 = vpop.f32.mrb[0].mxu0
      %7617 = vmatprep.mubr.bf16.mxu0 0
      %7618 = vmatmul.mubr.bf16.gmra.mrb[0].mxu0 %v7505
      %v7619 = vpop.f32.mrb[0].mxu0
      %v7620 = vadd.f32 0.0, %v7619
      %v7621 = vpop.f32.mrb[0].mxu0
      %v7622 = vpop.f32.mrb[0].mxu0
      %v7623 = vadd.f32 0.0, %v7622
      %v7624 = vpop.f32.mrb[0].mxu0
      %7625 = vmatprep.mubr.bf16.mxu0 0
      %7626 = vmatmul.mubr.bf16.gmra.mrb[0].mxu0 %v7508
      %v7627 = vpop.f32.mrb[0].mxu0
      %v7628 = vadd.f32 0.0, %v7627
      %v7629 = vpop.f32.mrb[0].mxu0
      %v7630 = vpop.f32.mrb[0].mxu0
      %v7631 = vadd.f32 0.0, %v7630
      %v7632 = vpop.f32.mrb[0].mxu0
      %7633 = vmatprep.mubr.bf16.mxu0 0
      %7634 = vmatmul.mubr.bf16.gmra.mrb[0].mxu0 %v7511
      %v7635 = vpop.f32.mrb[0].mxu0
      %v7636 = vadd.f32 0.0, %v7635
      %v7637 = vpop.f32.mrb[0].mxu0
      %v7638 = vpop.f32.mrb[0].mxu0
      %v7639 = vadd.f32 0.0, %v7638
      %v7640 = vpop.f32.mrb[0].mxu0
      %7641 = vmatprep.mubr.bf16.mxu0 0
      %7642 = vmatmul.mubr.bf16.gmra.mrb[0].mxu0 %v7514
      %v7643 = vpop.f32.mrb[0].mxu0
      %v7644 = vadd.f32 0.0, %v7643
      %v7645 = vpop.f32.mrb[0].mxu0
      %v7646 = vpop.f32.mrb[0].mxu0
      %v7647 = vadd.f32 0.0, %v7646
      %v7648 = vpop.f32.mrb[0].mxu0
      %7649 = vmatprep.mubr.bf16.mxu0 0
      %7650 = vmatmul.mubr.bf16.gmra.mrb[0].mxu0 %v7517
      %v7651 = vpop.f32.mrb[0].mxu0
      %v7652 = vadd.f32 0.0, %v7651
      %v7653 = vpop.f32.mrb[0].mxu0
      %v7654 = vpop.f32.mrb[0].mxu0
      %v7655 = vadd.f32 0.0, %v7654
      %v7656 = vpop.f32.mrb[0].mxu0
      %7657 = vmatprep.mubr.bf16.mxu0 0
      %7658 = vmatmul.mubr.bf16.gmra.mrb[0].mxu0 %v7520
      %v7659 = vpop.f32.mrb[0].mxu0
      %v7660 = vadd.f32 0.0, %v7659
      %v7661 = vpop.f32.mrb[0].mxu0
      %v7662 = vpop.f32.mrb[0].mxu0
      %v7663 = vadd.f32 0.0, %v7662
      %v7664 = vpop.f32.mrb[0].mxu0
      %7665 = vmatprep.mubr.bf16.mxu0 0
      %7666 = vmatmul.mubr.bf16.gmra.mrb[0].mxu0 %v7523
      %v7667 = vpop.f32.mrb[0].mxu0
      %v7668 = vadd.f32 0.0, %v7667
      %v7669 = vpop.f32.mrb[0].mxu0
      %v7670 = vpop.f32.mrb[0].mxu0
      %v7671 = vadd.f32 0.0, %v7670
      %v7672 = vpop.f32.mrb[0].mxu0
      %7673 = vmatprep.mubr.bf16.mxu0 0
      %7674 = vmatmul.mubr.bf16.gmra.mrb[0].mxu0 %v7526
      %v7675 = vpop.f32.mrb[0].mxu0
      %v7676 = vadd.f32 0.0, %v7675
      %v7677 = vpop.f32.mrb[0].mxu0
      %v7678 = vpop.f32.mrb[0].mxu0
      %v7679 = vadd.f32 0.0, %v7678
      %v7680 = vpop.f32.mrb[0].mxu0
      %7681 = vmatprep.mubr.bf16.mxu0 0
      %7682 = vmatmul.mubr.bf16.gmra.mrb[0].mxu0 %v7529
      %v7683 = vpop.f32.mrb[0].mxu0
      %v7684 = vadd.f32 0.0, %v7683
      %v7685 = vpop.f32.mrb[0].mxu0
      %v7686 = vpop.f32.mrb[0].mxu0
      %v7687 = vadd.f32 0.0, %v7686
      %v7688 = vpop.f32.mrb[0].mxu0
      %7689 = vmatprep.mubr.bf16.mxu0 0
      %7690 = vmatmul.mubr.bf16.gmra.mrb[0].mxu0 %v7532
      %v7691 = vpop.f32.mrb[0].mxu0
      %v7692 = vadd.f32 0.0, %v7691
      %v7693 = vpop.f32.mrb[0].mxu0
      %v7694 = vpop.f32.mrb[0].mxu0
      %v7695 = vadd.f32 0.0, %v7694
      %v7696 = vpop.f32.mrb[0].mxu0
      %7697 = vdwg.mxu0
      %v7698 = vadd.f32 %v6582, %v7572
      %v7699 = vadd.f32 %v6582, %v7575
      %v7700 = vadd.f32 %v6582, %v7580
      %v7701 = vadd.f32 %v6582, %v7583
      %v7702 = vadd.f32 %v6582, %v7588
      %v7703 = vadd.f32 %v6582, %v7591
      %v7704 = vadd.f32 %v6582, %v7596
      %v7705 = vadd.f32 %v6582, %v7599
      %v7706 = vadd.f32 %v6582, %v7604
      %v7707 = vadd.f32 %v6582, %v7607
      %v7708 = vadd.f32 %v6582, %v7612
      %v7709 = vadd.f32 %v6582, %v7615
      %v7710 = vadd.f32 %v6582, %v7620
      %v7711 = vadd.f32 %v6582, %v7623
      %v7712 = vadd.f32 %v6582, %v7628
      %v7713 = vadd.f32 %v6582, %v7631
      %v7714 = vadd.f32 %v6582, %v7636
      %v7715 = vadd.f32 %v6582, %v7639
      %v7716 = vadd.f32 %v6582, %v7644
      %v7717 = vadd.f32 %v6582, %v7647
      %v7718 = vadd.f32 %v6582, %v7652
      %v7719 = vadd.f32 %v6582, %v7655
      %v7720 = vadd.f32 %v6582, %v7660
      %v7721 = vadd.f32 %v6582, %v7663
      %v7722 = vadd.f32 %v6582, %v7668
      %v7723 = vadd.f32 %v6582, %v7671
      %v7724 = vadd.f32 %v6582, %v7676
      %v7725 = vadd.f32 %v6582, %v7679
      %v7726 = vadd.f32 %v6582, %v7684
      %v7727 = vadd.f32 %v6582, %v7687
      %v7728 = vadd.f32 %v6582, %v7692
      %v7729 = vadd.f32 %v6582, %v7695
      %s7730 = scalar_lea.vmem %s3, 28
      %v7731 = vld [vmem:[%s7730] sm:$0xf]
      %v7733 = vsel %vm6715, %v7731, 0
      %7735 = vmatprep.subr.bf16.mxu0 0
      %7736 = vmatpush1.bf16.msra.mxu0 %v7733
      %7737 = vmatprep.subr.bf16.mxu0 0
      %7738 = vmatpush1.bf16.msra.mxu0 0
      %7739 = vmatprep.subr.bf16.mxu0 0
      %7740 = vmatpush1.bf16.msra.mxu0 0
      %7741 = vmatprep.subr.bf16.mxu0 0
      %7742 = vmatpush1.bf16.msra.mxu0 0
      %7743 = vmatprep.subr.bf16.mxu0 0
      %7744 = vmatpush1.bf16.msra.mxu0 0
      %7745 = vmatprep.subr.bf16.mxu0 0
      %7746 = vmatpush1.bf16.msra.mxu0 0
      %7747 = vmatprep.subr.bf16.mxu0 0
      %7748 = vmatpush1.bf16.msra.mxu0 0
      %7749 = vmatprep.subr.bf16.mxu0 0
      %7750 = vmatpush1.bf16.msra.mxu0 0
      %7751 = vmatprep.subr.bf16.mxu0 0
      %7752 = vmatpush1.bf16.msra.mxu0 0
      %7753 = vmatprep.subr.bf16.mxu0 0
      %7754 = vmatpush1.bf16.msra.mxu0 0
      %7755 = vmatprep.subr.bf16.mxu0 0
      %7756 = vmatpush1.bf16.msra.mxu0 0
      %7757 = vmatprep.subr.bf16.mxu0 0
      %7758 = vmatpush1.bf16.msra.mxu0 0
      %7759 = vmatprep.subr.bf16.mxu0 0
      %7760 = vmatpush1.bf16.msra.mxu0 0
      %7761 = vmatprep.subr.bf16.mxu0 0
      %7762 = vmatpush1.bf16.msra.mxu0 0
      %7763 = vmatprep.subr.bf16.mxu0 0
      %7764 = vmatpush1.bf16.msra.mxu0 0
      %7765 = vmatprep.subr.bf16.mxu0 0
      %7766 = vmatpush1.bf16.msra.mxu0 0
      %7767 = vmatprep.mubr.bf16.mxu0 0
      %7768 = vmatmul.mubr.bf16.gmra.mrb[0].mxu0 %v6668
      %v7769 = vpop.f32.mrb[0].mxu0
      %v7770 = vadd.f32 0.0, %v7769
      %v7771 = vpop.f32.mrb[0].mxu0
      %v7772 = vpop.f32.mrb[0].mxu0
      %v7773 = vadd.f32 0.0, %v7772
      %v7774 = vpop.f32.mrb[0].mxu0
      %7775 = vmatprep.mubr.bf16.mxu0 0
      %7776 = vmatmul.mubr.bf16.gmra.mrb[0].mxu0 %v6671
      %v7777 = vpop.f32.mrb[0].mxu0
      %v7778 = vadd.f32 0.0, %v7777
      %v7779 = vpop.f32.mrb[0].mxu0
      %v7780 = vpop.f32.mrb[0].mxu0
      %v7781 = vadd.f32 0.0, %v7780
      %v7782 = vpop.f32.mrb[0].mxu0
      %7783 = vmatprep.mubr.bf16.mxu0 0
      %7784 = vmatmul.mubr.bf16.gmra.mrb[0].mxu0 %v6674
      %v7785 = vpop.f32.mrb[0].mxu0
      %v7786 = vadd.f32 0.0, %v7785
      %v7787 = vpop.f32.mrb[0].mxu0
      %v7788 = vpop.f32.mrb[0].mxu0
      %v7789 = vadd.f32 0.0, %v7788
      %v7790 = vpop.f32.mrb[0].mxu0
      %7791 = vmatprep.mubr.bf16.mxu0 0
      %7792 = vmatmul.mubr.bf16.gmra.mrb[0].mxu0 %v6677
      %v7793 = vpop.f32.mrb[0].mxu0
      %v7794 = vadd.f32 0.0, %v7793
      %v7795 = vpop.f32.mrb[0].mxu0
      %v7796 = vpop.f32.mrb[0].mxu0
      %v7797 = vadd.f32 0.0, %v7796
      %v7798 = vpop.f32.mrb[0].mxu0
      %7799 = vmatprep.mubr.bf16.mxu0 0
      %7800 = vmatmul.mubr.bf16.gmra.mrb[0].mxu0 %v6680
      %v7801 = vpop.f32.mrb[0].mxu0
      %v7802 = vadd.f32 0.0, %v7801
      %v7803 = vpop.f32.mrb[0].mxu0
      %v7804 = vpop.f32.mrb[0].mxu0
      %v7805 = vadd.f32 0.0, %v7804
      %v7806 = vpop.f32.mrb[0].mxu0
      %7807 = vmatprep.mubr.bf16.mxu0 0
      %7808 = vmatmul.mubr.bf16.gmra.mrb[0].mxu0 %v6683
      %v7809 = vpop.f32.mrb[0].mxu0
      %v7810 = vadd.f32 0.0, %v7809
      %v7811 = vpop.f32.mrb[0].mxu0
      %v7812 = vpop.f32.mrb[0].mxu0
      %v7813 = vadd.f32 0.0, %v7812
      %v7814 = vpop.f32.mrb[0].mxu0
      %7815 = vmatprep.mubr.bf16.mxu0 0
      %7816 = vmatmul.mubr.bf16.gmra.mrb[0].mxu0 %v6686
      %v7817 = vpop.f32.mrb[0].mxu0
      %v7818 = vadd.f32 0.0, %v7817
      %v7819 = vpop.f32.mrb[0].mxu0
      %v7820 = vpop.f32.mrb[0].mxu0
      %v7821 = vadd.f32 0.0, %v7820
      %v7822 = vpop.f32.mrb[0].mxu0
      %7823 = vmatprep.mubr.bf16.mxu0 0
      %7824 = vmatmul.mubr.bf16.gmra.mrb[0].mxu0 %v6689
      %v7825 = vpop.f32.mrb[0].mxu0
      %v7826 = vadd.f32 0.0, %v7825
      %v7827 = vpop.f32.mrb[0].mxu0
      %v7828 = vpop.f32.mrb[0].mxu0
      %v7829 = vadd.f32 0.0, %v7828
      %v7830 = vpop.f32.mrb[0].mxu0
      %7831 = vmatprep.mubr.bf16.mxu0 0
      %7832 = vmatmul.mubr.bf16.gmra.mrb[0].mxu0 %v6692
      %v7833 = vpop.f32.mrb[0].mxu0
      %v7834 = vadd.f32 0.0, %v7833
      %v7835 = vpop.f32.mrb[0].mxu0
      %v7836 = vpop.f32.mrb[0].mxu0
      %v7837 = vadd.f32 0.0, %v7836
      %v7838 = vpop.f32.mrb[0].mxu0
      %7839 = vmatprep.mubr.bf16.mxu0 0
      %7840 = vmatmul.mubr.bf16.gmra.mrb[0].mxu0 %v6695
      %v7841 = vpop.f32.mrb[0].mxu0
      %v7842 = vadd.f32 0.0, %v7841
      %v7843 = vpop.f32.mrb[0].mxu0
      %v7844 = vpop.f32.mrb[0].mxu0
      %v7845 = vadd.f32 0.0, %v7844
      %v7846 = vpop.f32.mrb[0].mxu0
      %7847 = vmatprep.mubr.bf16.mxu0 0
      %7848 = vmatmul.mubr.bf16.gmra.mrb[0].mxu0 %v6698
      %v7849 = vpop.f32.mrb[0].mxu0
      %v7850 = vadd.f32 0.0, %v7849
      %v7851 = vpop.f32.mrb[0].mxu0
      %v7852 = vpop.f32.mrb[0].mxu0
      %v7853 = vadd.f32 0.0, %v7852
      %v7854 = vpop.f32.mrb[0].mxu0
      %7855 = vmatprep.mubr.bf16.mxu0 0
      %7856 = vmatmul.mubr.bf16.gmra.mrb[0].mxu0 %v6701
      %v7857 = vpop.f32.mrb[0].mxu0
      %v7858 = vadd.f32 0.0, %v7857
      %v7859 = vpop.f32.mrb[0].mxu0
      %v7860 = vpop.f32.mrb[0].mxu0
      %v7861 = vadd.f32 0.0, %v7860
      %v7862 = vpop.f32.mrb[0].mxu0
      %7863 = vmatprep.mubr.bf16.mxu0 0
      %7864 = vmatmul.mubr.bf16.gmra.mrb[0].mxu0 %v6704
      %v7865 = vpop.f32.mrb[0].mxu0
      %v7866 = vadd.f32 0.0, %v7865
      %v7867 = vpop.f32.mrb[0].mxu0
      %v7868 = vpop.f32.mrb[0].mxu0
      %v7869 = vadd.f32 0.0, %v7868
      %v7870 = vpop.f32.mrb[0].mxu0
      %7871 = vmatprep.mubr.bf16.mxu0 0
      %7872 = vmatmul.mubr.bf16.gmra.mrb[0].mxu0 %v6707
      %v7873 = vpop.f32.mrb[0].mxu0
      %v7874 = vadd.f32 0.0, %v7873
      %v7875 = vpop.f32.mrb[0].mxu0
      %v7876 = vpop.f32.mrb[0].mxu0
      %v7877 = vadd.f32 0.0, %v7876
      %v7878 = vpop.f32.mrb[0].mxu0
      %7879 = vmatprep.mubr.bf16.mxu0 0
      %7880 = vmatmul.mubr.bf16.gmra.mrb[0].mxu0 %v6710
      %v7881 = vpop.f32.mrb[0].mxu0
      %v7882 = vadd.f32 0.0, %v7881
      %v7883 = vpop.f32.mrb[0].mxu0
      %v7884 = vpop.f32.mrb[0].mxu0
      %v7885 = vadd.f32 0.0, %v7884
      %v7886 = vpop.f32.mrb[0].mxu0
      %7887 = vmatprep.mubr.bf16.mxu0 0
      %7888 = vmatmul.mubr.bf16.gmra.mrb[0].mxu0 %v6713
      %v7889 = vpop.f32.mrb[0].mxu0
      %v7890 = vadd.f32 0.0, %v7889
      %v7891 = vpop.f32.mrb[0].mxu0
      %v7892 = vpop.f32.mrb[0].mxu0
      %v7893 = vadd.f32 0.0, %v7892
      %v7894 = vpop.f32.mrb[0].mxu0
      %7895 = vdwg.mxu0
      %v7896 = vadd.f32 %v7698, %v7770
      %v7897 = vadd.f32 %v7699, %v7773
      %v7898 = vadd.f32 %v7700, %v7778
      %v7899 = vadd.f32 %v7701, %v7781
      %v7900 = vadd.f32 %v7702, %v7786
      %v7901 = vadd.f32 %v7703, %v7789
      %v7902 = vadd.f32 %v7704, %v7794
      %v7903 = vadd.f32 %v7705, %v7797
      %v7904 = vadd.f32 %v7706, %v7802
      %v7905 = vadd.f32 %v7707, %v7805
      %v7906 = vadd.f32 %v7708, %v7810
      %v7907 = vadd.f32 %v7709, %v7813
      %v7908 = vadd.f32 %v7710, %v7818
      %v7909 = vadd.f32 %v7711, %v7821
      %v7910 = vadd.f32 %v7712, %v7826
      %v7911 = vadd.f32 %v7713, %v7829
      %v7912 = vadd.f32 %v7714, %v7834
      %v7913 = vadd.f32 %v7715, %v7837
      %v7914 = vadd.f32 %v7716, %v7842
      %v7915 = vadd.f32 %v7717, %v7845
      %v7916 = vadd.f32 %v7718, %v7850
      %v7917 = vadd.f32 %v7719, %v7853
      %v7918 = vadd.f32 %v7720, %v7858
      %v7919 = vadd.f32 %v7721, %v7861
      %v7920 = vadd.f32 %v7722, %v7866
      %v7921 = vadd.f32 %v7723, %v7869
      %v7922 = vadd.f32 %v7724, %v7874
      %v7923 = vadd.f32 %v7725, %v7877
      %v7924 = vadd.f32 %v7726, %v7882
      %v7925 = vadd.f32 %v7727, %v7885
      %v7926 = vadd.f32 %v7728, %v7890
      %v7927 = vadd.f32 %v7729, %v7893
      %v7928 = vld [vmem:[%s3] sm:$0xf]
      %v7929 = vunpack.c.l.b16 %v6206
      %v7930 = vunpack.c.l.b16 %v6216
      %v7931 = vunpack.c.l.b16 %v6230
      %v7932 = vunpack.c.l.b16 %v6240
      %v7933 = vunpack.c.l.b16 %v6254
      %v7934 = vunpack.c.l.b16 %v6264
      %v7935 = vunpack.c.l.b16 %v6278
      %v7936 = vunpack.c.l.b16 %v6288
      %v7937 = vunpack.c.l.b16 %v6302
      %v7938 = vunpack.c.l.b16 %v6312
      %v7939 = vunpack.c.l.b16 %v6326
      %v7940 = vunpack.c.l.b16 %v6336
      %v7941 = vunpack.c.l.b16 %v6350
      %v7942 = vunpack.c.l.b16 %v6360
      %v7943 = vunpack.c.l.b16 %v6374
      %v7944 = vunpack.c.l.b16 %v6384
      %v7945 = vunpack.c.l.b16 %v6398
      %v7946 = vunpack.c.l.b16 %v6408
      %v7947 = vunpack.c.l.b16 %v6422
      %v7948 = vunpack.c.l.b16 %v6432
      %v7949 = vunpack.c.l.b16 %v6446
      %v7950 = vunpack.c.l.b16 %v6456
      %v7951 = vunpack.c.l.b16 %v6470
      %v7952 = vunpack.c.l.b16 %v6480
      %v7953 = vunpack.c.l.b16 %v6494
      %v7954 = vunpack.c.l.b16 %v6504
      %v7955 = vunpack.c.l.b16 %v6518
      %v7956 = vunpack.c.l.b16 %v6528
      %v7957 = vunpack.c.l.b16 %v6542
      %v7958 = vunpack.c.l.b16 %v6552
      %v7959 = vunpack.c.l.b16 %v6566
      %v7960 = vunpack.c.l.b16 %v6576
      %v7961 = vpack.c.b16 %v7930, %v7929
      %v7962 = vpack.c.b16 %v7932, %v7931
      %v7963 = vpack.c.b16 %v7934, %v7933
      %v7964 = vpack.c.b16 %v7936, %v7935
      %v7965 = vpack.c.b16 %v7938, %v7937
      %v7966 = vpack.c.b16 %v7940, %v7939
      %v7967 = vpack.c.b16 %v7942, %v7941
      %v7968 = vpack.c.b16 %v7944, %v7943
      %v7969 = vpack.c.b16 %v7946, %v7945
      %v7970 = vpack.c.b16 %v7948, %v7947
      %v7971 = vpack.c.b16 %v7950, %v7949
      %v7972 = vpack.c.b16 %v7952, %v7951
      %v7973 = vpack.c.b16 %v7954, %v7953
      %v7974 = vpack.c.b16 %v7956, %v7955
      %v7975 = vpack.c.b16 %v7958, %v7957
      %v7976 = vpack.c.b16 %v7960, %v7959
      %v7978 = vsel %vm6666, %v7961, 0
      %v7981 = vsel %vm6666, %v7962, 0
      %v7984 = vsel %vm6666, %v7963, 0
      %v7987 = vsel %vm6666, %v7964, 0
      %v7990 = vsel %vm6666, %v7965, 0
      %v7993 = vsel %vm6666, %v7966, 0
      %v7996 = vsel %vm6666, %v7967, 0
      %v7999 = vsel %vm6666, %v7968, 0
      %v8002 = vsel %vm6666, %v7969, 0
      %v8005 = vsel %vm6666, %v7970, 0
      %v8008 = vsel %vm6666, %v7971, 0
      %v8011 = vsel %vm6666, %v7972, 0
      %v8014 = vsel %vm6666, %v7973, 0
      %v8017 = vsel %vm6666, %v7974, 0
      %v8020 = vsel %vm6666, %v7975, 0
      %v8023 = vsel %vm6666, %v7976, 0
      %v8026 = vsel %vm6715, %v7928, 0
      %8028 = vmatprep.subr.bf16.mxu0 0
      %8029 = vmatpush1.bf16.msra.mxu0 %v8026
      %8030 = vmatprep.subr.bf16.mxu0 0
      %8031 = vmatpush1.bf16.msra.mxu0 0
      %8032 = vmatprep.subr.bf16.mxu0 0
      %8033 = vmatpush1.bf16.msra.mxu0 0
      %8034 = vmatprep.subr.bf16.mxu0 0
      %8035 = vmatpush1.bf16.msra.mxu0 0
      %8036 = vmatprep.subr.bf16.mxu0 0
      %8037 = vmatpush1.bf16.msra.mxu0 0
      %8038 = vmatprep.subr.bf16.mxu0 0
      %8039 = vmatpush1.bf16.msra.mxu0 0
      %8040 = vmatprep.subr.bf16.mxu0 0
      %8041 = vmatpush1.bf16.msra.mxu0 0
      %8042 = vmatprep.subr.bf16.mxu0 0
      %8043 = vmatpush1.bf16.msra.mxu0 0
      %8044 = vmatprep.subr.bf16.mxu0 0
      %8045 = vmatpush1.bf16.msra.mxu0 0
      %8046 = vmatprep.subr.bf16.mxu0 0
      %8047 = vmatpush1.bf16.msra.mxu0 0
      %8048 = vmatprep.subr.bf16.mxu0 0
      %8049 = vmatpush1.bf16.msra.mxu0 0
      %8050 = vmatprep.subr.bf16.mxu0 0
      %8051 = vmatpush1.bf16.msra.mxu0 0
      %8052 = vmatprep.subr.bf16.mxu0 0
      %8053 = vmatpush1.bf16.msra.mxu0 0
      %8054 = vmatprep.subr.bf16.mxu0 0
      %8055 = vmatpush1.bf16.msra.mxu0 0
      %8056 = vmatprep.subr.bf16.mxu0 0
      %8057 = vmatpush1.bf16.msra.mxu0 0
      %8058 = vmatprep.subr.bf16.mxu0 0
      %8059 = vmatpush1.bf16.msra.mxu0 0
      %8060 = vmatprep.mubr.bf16.mxu0 0
      %8061 = vmatmul.mubr.bf16.gmra.mrb[0].mxu0 %v7978
      %v8062 = vpop.f32.mrb[0].mxu0
      %v8063 = vadd.f32 0.0, %v8062
      %v8064 = vpop.f32.mrb[0].mxu0
      %v8065 = vpop.f32.mrb[0].mxu0
      %v8066 = vadd.f32 0.0, %v8065
      %v8067 = vpop.f32.mrb[0].mxu0
      %8068 = vmatprep.mubr.bf16.mxu0 0
      %8069 = vmatmul.mubr.bf16.gmra.mrb[0].mxu0 %v7981
      %v8070 = vpop.f32.mrb[0].mxu0
      %v8071 = vadd.f32 0.0, %v8070
      %v8072 = vpop.f32.mrb[0].mxu0
      %v8073 = vpop.f32.mrb[0].mxu0
      %v8074 = vadd.f32 0.0, %v8073
      %v8075 = vpop.f32.mrb[0].mxu0
      %8076 = vmatprep.mubr.bf16.mxu0 0
      %8077 = vmatmul.mubr.bf16.gmra.mrb[0].mxu0 %v7984
      %v8078 = vpop.f32.mrb[0].mxu0
      %v8079 = vadd.f32 0.0, %v8078
      %v8080 = vpop.f32.mrb[0].mxu0
      %v8081 = vpop.f32.mrb[0].mxu0
      %v8082 = vadd.f32 0.0, %v8081
      %v8083 = vpop.f32.mrb[0].mxu0
      %8084 = vmatprep.mubr.bf16.mxu0 0
      %8085 = vmatmul.mubr.bf16.gmra.mrb[0].mxu0 %v7987
      %v8086 = vpop.f32.mrb[0].mxu0
      %v8087 = vadd.f32 0.0, %v8086
      %v8088 = vpop.f32.mrb[0].mxu0
      %v8089 = vpop.f32.mrb[0].mxu0
      %v8090 = vadd.f32 0.0, %v8089
      %v8091 = vpop.f32.mrb[0].mxu0
      %8092 = vmatprep.mubr.bf16.mxu0 0
      %8093 = vmatmul.mubr.bf16.gmra.mrb[0].mxu0 %v7990
      %v8094 = vpop.f32.mrb[0].mxu0
      %v8095 = vadd.f32 0.0, %v8094
      %v8096 = vpop.f32.mrb[0].mxu0
      %v8097 = vpop.f32.mrb[0].mxu0
      %v8098 = vadd.f32 0.0, %v8097
      %v8099 = vpop.f32.mrb[0].mxu0
      %8100 = vmatprep.mubr.bf16.mxu0 0
      %8101 = vmatmul.mubr.bf16.gmra.mrb[0].mxu0 %v7993
      %v8102 = vpop.f32.mrb[0].mxu0
      %v8103 = vadd.f32 0.0, %v8102
      %v8104 = vpop.f32.mrb[0].mxu0
      %v8105 = vpop.f32.mrb[0].mxu0
      %v8106 = vadd.f32 0.0, %v8105
      %v8107 = vpop.f32.mrb[0].mxu0
      %8108 = vmatprep.mubr.bf16.mxu0 0
      %8109 = vmatmul.mubr.bf16.gmra.mrb[0].mxu0 %v7996
      %v8110 = vpop.f32.mrb[0].mxu0
      %v8111 = vadd.f32 0.0, %v8110
      %v8112 = vpop.f32.mrb[0].mxu0
      %v8113 = vpop.f32.mrb[0].mxu0
      %v8114 = vadd.f32 0.0, %v8113
      %v8115 = vpop.f32.mrb[0].mxu0
      %8116 = vmatprep.mubr.bf16.mxu0 0
      %8117 = vmatmul.mubr.bf16.gmra.mrb[0].mxu0 %v7999
      %v8118 = vpop.f32.mrb[0].mxu0
      %v8119 = vadd.f32 0.0, %v8118
      %v8120 = vpop.f32.mrb[0].mxu0
      %v8121 = vpop.f32.mrb[0].mxu0
      %v8122 = vadd.f32 0.0, %v8121
      %v8123 = vpop.f32.mrb[0].mxu0
      %8124 = vmatprep.mubr.bf16.mxu0 0
      %8125 = vmatmul.mubr.bf16.gmra.mrb[0].mxu0 %v8002
      %v8126 = vpop.f32.mrb[0].mxu0
      %v8127 = vadd.f32 0.0, %v8126
      %v8128 = vpop.f32.mrb[0].mxu0
      %v8129 = vpop.f32.mrb[0].mxu0
      %v8130 = vadd.f32 0.0, %v8129
      %v8131 = vpop.f32.mrb[0].mxu0
      %8132 = vmatprep.mubr.bf16.mxu0 0
      %8133 = vmatmul.mubr.bf16.gmra.mrb[0].mxu0 %v8005
      %v8134 = vpop.f32.mrb[0].mxu0
      %v8135 = vadd.f32 0.0, %v8134
      %v8136 = vpop.f32.mrb[0].mxu0
      %v8137 = vpop.f32.mrb[0].mxu0
      %v8138 = vadd.f32 0.0, %v8137
      %v8139 = vpop.f32.mrb[0].mxu0
      %8140 = vmatprep.mubr.bf16.mxu0 0
      %8141 = vmatmul.mubr.bf16.gmra.mrb[0].mxu0 %v8008
      %v8142 = vpop.f32.mrb[0].mxu0
      %v8143 = vadd.f32 0.0, %v8142
      %v8144 = vpop.f32.mrb[0].mxu0
      %v8145 = vpop.f32.mrb[0].mxu0
      %v8146 = vadd.f32 0.0, %v8145
      %v8147 = vpop.f32.mrb[0].mxu0
      %8148 = vmatprep.mubr.bf16.mxu0 0
      %8149 = vmatmul.mubr.bf16.gmra.mrb[0].mxu0 %v8011
      %v8150 = vpop.f32.mrb[0].mxu0
      %v8151 = vadd.f32 0.0, %v8150
      %v8152 = vpop.f32.mrb[0].mxu0
      %v8153 = vpop.f32.mrb[0].mxu0
      %v8154 = vadd.f32 0.0, %v8153
      %v8155 = vpop.f32.mrb[0].mxu0
      %8156 = vmatprep.mubr.bf16.mxu0 0
      %8157 = vmatmul.mubr.bf16.gmra.mrb[0].mxu0 %v8014
      %v8158 = vpop.f32.mrb[0].mxu0
      %v8159 = vadd.f32 0.0, %v8158
      %v8160 = vpop.f32.mrb[0].mxu0
      %v8161 = vpop.f32.mrb[0].mxu0
      %v8162 = vadd.f32 0.0, %v8161
      %v8163 = vpop.f32.mrb[0].mxu0
      %8164 = vmatprep.mubr.bf16.mxu0 0
      %8165 = vmatmul.mubr.bf16.gmra.mrb[0].mxu0 %v8017
      %v8166 = vpop.f32.mrb[0].mxu0
      %v8167 = vadd.f32 0.0, %v8166
      %v8168 = vpop.f32.mrb[0].mxu0
      %v8169 = vpop.f32.mrb[0].mxu0
      %v8170 = vadd.f32 0.0, %v8169
      %v8171 = vpop.f32.mrb[0].mxu0
      %8172 = vmatprep.mubr.bf16.mxu0 0
      %8173 = vmatmul.mubr.bf16.gmra.mrb[0].mxu0 %v8020
      %v8174 = vpop.f32.mrb[0].mxu0
      %v8175 = vadd.f32 0.0, %v8174
      %v8176 = vpop.f32.mrb[0].mxu0
      %v8177 = vpop.f32.mrb[0].mxu0
      %v8178 = vadd.f32 0.0, %v8177
      %v8179 = vpop.f32.mrb[0].mxu0
      %8180 = vmatprep.mubr.bf16.mxu0 0
      %8181 = vmatmul.mubr.bf16.gmra.mrb[0].mxu0 %v8023
      %v8182 = vpop.f32.mrb[0].mxu0
      %v8183 = vadd.f32 0.0, %v8182
      %v8184 = vpop.f32.mrb[0].mxu0
      %v8185 = vpop.f32.mrb[0].mxu0
      %v8186 = vadd.f32 0.0, %v8185
      %v8187 = vpop.f32.mrb[0].mxu0
      %8188 = vdwg.mxu0
      %v8189 = vadd.f32 %v6582, %v8063
      %v8190 = vadd.f32 %v6582, %v8066
      %v8191 = vadd.f32 %v6582, %v8071
      %v8192 = vadd.f32 %v6582, %v8074
      %v8193 = vadd.f32 %v6582, %v8079
      %v8194 = vadd.f32 %v6582, %v8082
      %v8195 = vadd.f32 %v6582, %v8087
      %v8196 = vadd.f32 %v6582, %v8090
      %v8197 = vadd.f32 %v6582, %v8095
      %v8198 = vadd.f32 %v6582, %v8098
      %v8199 = vadd.f32 %v6582, %v8103
      %v8200 = vadd.f32 %v6582, %v8106
      %v8201 = vadd.f32 %v6582, %v8111
      %v8202 = vadd.f32 %v6582, %v8114
      %v8203 = vadd.f32 %v6582, %v8119
      %v8204 = vadd.f32 %v6582, %v8122
      %v8205 = vadd.f32 %v6582, %v8127
      %v8206 = vadd.f32 %v6582, %v8130
      %v8207 = vadd.f32 %v6582, %v8135
      %v8208 = vadd.f32 %v6582, %v8138
      %v8209 = vadd.f32 %v6582, %v8143
      %v8210 = vadd.f32 %v6582, %v8146
      %v8211 = vadd.f32 %v6582, %v8151
      %v8212 = vadd.f32 %v6582, %v8154
      %v8213 = vadd.f32 %v6582, %v8159
      %v8214 = vadd.f32 %v6582, %v8162
      %v8215 = vadd.f32 %v6582, %v8167
      %v8216 = vadd.f32 %v6582, %v8170
      %v8217 = vadd.f32 %v6582, %v8175
      %v8218 = vadd.f32 %v6582, %v8178
      %v8219 = vadd.f32 %v6582, %v8183
      %v8220 = vadd.f32 %v6582, %v8186
      %s8221 = scalar_lea.vmem %s3, 8
      %v8222 = vld [vmem:[%s8221] sm:$0xf]
      %v8224 = vsel %vm6715, %v8222, 0
      %8226 = vmatprep.subr.bf16.mxu0 0
      %8227 = vmatpush1.bf16.msra.mxu0 %v8224
      %8228 = vmatprep.subr.bf16.mxu0 0
      %8229 = vmatpush1.bf16.msra.mxu0 0
      %8230 = vmatprep.subr.bf16.mxu0 0
      %8231 = vmatpush1.bf16.msra.mxu0 0
      %8232 = vmatprep.subr.bf16.mxu0 0
      %8233 = vmatpush1.bf16.msra.mxu0 0
      %8234 = vmatprep.subr.bf16.mxu0 0
      %8235 = vmatpush1.bf16.msra.mxu0 0
      %8236 = vmatprep.subr.bf16.mxu0 0
      %8237 = vmatpush1.bf16.msra.mxu0 0
      %8238 = vmatprep.subr.bf16.mxu0 0
      %8239 = vmatpush1.bf16.msra.mxu0 0
      %8240 = vmatprep.subr.bf16.mxu0 0
      %8241 = vmatpush1.bf16.msra.mxu0 0
      %8242 = vmatprep.subr.bf16.mxu0 0
      %8243 = vmatpush1.bf16.msra.mxu0 0
      %8244 = vmatprep.subr.bf16.mxu0 0
      %8245 = vmatpush1.bf16.msra.mxu0 0
      %8246 = vmatprep.subr.bf16.mxu0 0
      %8247 = vmatpush1.bf16.msra.mxu0 0
      %8248 = vmatprep.subr.bf16.mxu0 0
      %8249 = vmatpush1.bf16.msra.mxu0 0
      %8250 = vmatprep.subr.bf16.mxu0 0
      %8251 = vmatpush1.bf16.msra.mxu0 0
      %8252 = vmatprep.subr.bf16.mxu0 0
      %8253 = vmatpush1.bf16.msra.mxu0 0
      %8254 = vmatprep.subr.bf16.mxu0 0
      %8255 = vmatpush1.bf16.msra.mxu0 0
      %8256 = vmatprep.subr.bf16.mxu0 0
      %8257 = vmatpush1.bf16.msra.mxu0 0
      %8258 = vmatprep.mubr.bf16.mxu0 0
      %8259 = vmatmul.mubr.bf16.gmra.mrb[0].mxu0 %v7487
      %v8260 = vpop.f32.mrb[0].mxu0
      %v8261 = vadd.f32 0.0, %v8260
      %v8262 = vpop.f32.mrb[0].mxu0
      %v8263 = vpop.f32.mrb[0].mxu0
      %v8264 = vadd.f32 0.0, %v8263
      %v8265 = vpop.f32.mrb[0].mxu0
      %8266 = vmatprep.mubr.bf16.mxu0 0
      %8267 = vmatmul.mubr.bf16.gmra.mrb[0].mxu0 %v7490
      %v8268 = vpop.f32.mrb[0].mxu0
      %v8269 = vadd.f32 0.0, %v8268
      %v8270 = vpop.f32.mrb[0].mxu0
      %v8271 = vpop.f32.mrb[0].mxu0
      %v8272 = vadd.f32 0.0, %v8271
      %v8273 = vpop.f32.mrb[0].mxu0
      %8274 = vmatprep.mubr.bf16.mxu0 0
      %8275 = vmatmul.mubr.bf16.gmra.mrb[0].mxu0 %v7493
      %v8276 = vpop.f32.mrb[0].mxu0
      %v8277 = vadd.f32 0.0, %v8276
      %v8278 = vpop.f32.mrb[0].mxu0
      %v8279 = vpop.f32.mrb[0].mxu0
      %v8280 = vadd.f32 0.0, %v8279
      %v8281 = vpop.f32.mrb[0].mxu0
      %8282 = vmatprep.mubr.bf16.mxu0 0
      %8283 = vmatmul.mubr.bf16.gmra.mrb[0].mxu0 %v7496
      %v8284 = vpop.f32.mrb[0].mxu0
      %v8285 = vadd.f32 0.0, %v8284
      %v8286 = vpop.f32.mrb[0].mxu0
      %v8287 = vpop.f32.mrb[0].mxu0
      %v8288 = vadd.f32 0.0, %v8287
      %v8289 = vpop.f32.mrb[0].mxu0
      %8290 = vmatprep.mubr.bf16.mxu0 0
      %8291 = vmatmul.mubr.bf16.gmra.mrb[0].mxu0 %v7499
      %v8292 = vpop.f32.mrb[0].mxu0
      %v8293 = vadd.f32 0.0, %v8292
      %v8294 = vpop.f32.mrb[0].mxu0
      %v8295 = vpop.f32.mrb[0].mxu0
      %v8296 = vadd.f32 0.0, %v8295
      %v8297 = vpop.f32.mrb[0].mxu0
      %8298 = vmatprep.mubr.bf16.mxu0 0
      %8299 = vmatmul.mubr.bf16.gmra.mrb[0].mxu0 %v7502
      %v8300 = vpop.f32.mrb[0].mxu0
      %v8301 = vadd.f32 0.0, %v8300
      %v8302 = vpop.f32.mrb[0].mxu0
      %v8303 = vpop.f32.mrb[0].mxu0
      %v8304 = vadd.f32 0.0, %v8303
      %v8305 = vpop.f32.mrb[0].mxu0
      %8306 = vmatprep.mubr.bf16.mxu0 0
      %8307 = vmatmul.mubr.bf16.gmra.mrb[0].mxu0 %v7505
      %v8308 = vpop.f32.mrb[0].mxu0
      %v8309 = vadd.f32 0.0, %v8308
      %v8310 = vpop.f32.mrb[0].mxu0
      %v8311 = vpop.f32.mrb[0].mxu0
      %v8312 = vadd.f32 0.0, %v8311
      %v8313 = vpop.f32.mrb[0].mxu0
      %8314 = vmatprep.mubr.bf16.mxu0 0
      %8315 = vmatmul.mubr.bf16.gmra.mrb[0].mxu0 %v7508
      %v8316 = vpop.f32.mrb[0].mxu0
      %v8317 = vadd.f32 0.0, %v8316
      %v8318 = vpop.f32.mrb[0].mxu0
      %v8319 = vpop.f32.mrb[0].mxu0
      %v8320 = vadd.f32 0.0, %v8319
      %v8321 = vpop.f32.mrb[0].mxu0
      %8322 = vmatprep.mubr.bf16.mxu0 0
      %8323 = vmatmul.mubr.bf16.gmra.mrb[0].mxu0 %v7511
      %v8324 = vpop.f32.mrb[0].mxu0
      %v8325 = vadd.f32 0.0, %v8324
      %v8326 = vpop.f32.mrb[0].mxu0
      %v8327 = vpop.f32.mrb[0].mxu0
      %v8328 = vadd.f32 0.0, %v8327
      %v8329 = vpop.f32.mrb[0].mxu0
      %8330 = vmatprep.mubr.bf16.mxu0 0
      %8331 = vmatmul.mubr.bf16.gmra.mrb[0].mxu0 %v7514
      %v8332 = vpop.f32.mrb[0].mxu0
      %v8333 = vadd.f32 0.0, %v8332
      %v8334 = vpop.f32.mrb[0].mxu0
      %v8335 = vpop.f32.mrb[0].mxu0
      %v8336 = vadd.f32 0.0, %v8335
      %v8337 = vpop.f32.mrb[0].mxu0
      %8338 = vmatprep.mubr.bf16.mxu0 0
      %8339 = vmatmul.mubr.bf16.gmra.mrb[0].mxu0 %v7517
      %v8340 = vpop.f32.mrb[0].mxu0
      %v8341 = vadd.f32 0.0, %v8340
      %v8342 = vpop.f32.mrb[0].mxu0
      %v8343 = vpop.f32.mrb[0].mxu0
      %v8344 = vadd.f32 0.0, %v8343
      %v8345 = vpop.f32.mrb[0].mxu0
      %8346 = vmatprep.mubr.bf16.mxu0 0
      %8347 = vmatmul.mubr.bf16.gmra.mrb[0].mxu0 %v7520
      %v8348 = vpop.f32.mrb[0].mxu0
      %v8349 = vadd.f32 0.0, %v8348
      %v8350 = vpop.f32.mrb[0].mxu0
      %v8351 = vpop.f32.mrb[0].mxu0
      %v8352 = vadd.f32 0.0, %v8351
      %v8353 = vpop.f32.mrb[0].mxu0
      %8354 = vmatprep.mubr.bf16.mxu0 0
      %8355 = vmatmul.mubr.bf16.gmra.mrb[0].mxu0 %v7523
      %v8356 = vpop.f32.mrb[0].mxu0
      %v8357 = vadd.f32 0.0, %v8356
      %v8358 = vpop.f32.mrb[0].mxu0
      %v8359 = vpop.f32.mrb[0].mxu0
      %v8360 = vadd.f32 0.0, %v8359
      %v8361 = vpop.f32.mrb[0].mxu0
      %8362 = vmatprep.mubr.bf16.mxu0 0
      %8363 = vmatmul.mubr.bf16.gmra.mrb[0].mxu0 %v7526
      %v8364 = vpop.f32.mrb[0].mxu0
      %v8365 = vadd.f32 0.0, %v8364
      %v8366 = vpop.f32.mrb[0].mxu0
      %v8367 = vpop.f32.mrb[0].mxu0
      %v8368 = vadd.f32 0.0, %v8367
      %v8369 = vpop.f32.mrb[0].mxu0
      %8370 = vmatprep.mubr.bf16.mxu0 0
      %8371 = vmatmul.mubr.bf16.gmra.mrb[0].mxu0 %v7529
      %v8372 = vpop.f32.mrb[0].mxu0
      %v8373 = vadd.f32 0.0, %v8372
      %v8374 = vpop.f32.mrb[0].mxu0
      %v8375 = vpop.f32.mrb[0].mxu0
      %v8376 = vadd.f32 0.0, %v8375
      %v8377 = vpop.f32.mrb[0].mxu0
      %8378 = vmatprep.mubr.bf16.mxu0 0
      %8379 = vmatmul.mubr.bf16.gmra.mrb[0].mxu0 %v7532
      %v8380 = vpop.f32.mrb[0].mxu0
      %v8381 = vadd.f32 0.0, %v8380
      %v8382 = vpop.f32.mrb[0].mxu0
      %v8383 = vpop.f32.mrb[0].mxu0
      %v8384 = vadd.f32 0.0, %v8383
      %v8385 = vpop.f32.mrb[0].mxu0
      %8386 = vdwg.mxu0
      %v8387 = vadd.f32 %v8189, %v8261
      %v8388 = vadd.f32 %v8190, %v8264
      %v8389 = vadd.f32 %v8191, %v8269
      %v8390 = vadd.f32 %v8192, %v8272
      %v8391 = vadd.f32 %v8193, %v8277
      %v8392 = vadd.f32 %v8194, %v8280
      %v8393 = vadd.f32 %v8195, %v8285
      %v8394 = vadd.f32 %v8196, %v8288
      %v8395 = vadd.f32 %v8197, %v8293
      %v8396 = vadd.f32 %v8198, %v8296
      %v8397 = vadd.f32 %v8199, %v8301
      %v8398 = vadd.f32 %v8200, %v8304
      %v8399 = vadd.f32 %v8201, %v8309
      %v8400 = vadd.f32 %v8202, %v8312
      %v8401 = vadd.f32 %v8203, %v8317
      %v8402 = vadd.f32 %v8204, %v8320
      %v8403 = vadd.f32 %v8205, %v8325
      %v8404 = vadd.f32 %v8206, %v8328
      %v8405 = vadd.f32 %v8207, %v8333
      %v8406 = vadd.f32 %v8208, %v8336
      %v8407 = vadd.f32 %v8209, %v8341
      %v8408 = vadd.f32 %v8210, %v8344
      %v8409 = vadd.f32 %v8211, %v8349
      %v8410 = vadd.f32 %v8212, %v8352
      %v8411 = vadd.f32 %v8213, %v8357
      %v8412 = vadd.f32 %v8214, %v8360
      %v8413 = vadd.f32 %v8215, %v8365
      %v8414 = vadd.f32 %v8216, %v8368
      %v8415 = vadd.f32 %v8217, %v8373
      %v8416 = vadd.f32 %v8218, %v8376
      %v8417 = vadd.f32 %v8219, %v8381
      %v8418 = vadd.f32 %v8220, %v8384
      %s8419 = scalar_lea.vmem %s3, 24
      %v8420 = vld [vmem:[%s8419] sm:$0xf]
      %v8422 = vsel %vm6715, %v8420, 0
      %8424 = vmatprep.subr.bf16.mxu0 0
      %8425 = vmatpush1.bf16.msra.mxu0 %v8422
      %8426 = vmatprep.subr.bf16.mxu0 0
      %8427 = vmatpush1.bf16.msra.mxu0 0
      %8428 = vmatprep.subr.bf16.mxu0 0
      %8429 = vmatpush1.bf16.msra.mxu0 0
      %8430 = vmatprep.subr.bf16.mxu0 0
      %8431 = vmatpush1.bf16.msra.mxu0 0
      %8432 = vmatprep.subr.bf16.mxu0 0
      %8433 = vmatpush1.bf16.msra.mxu0 0
      %8434 = vmatprep.subr.bf16.mxu0 0
      %8435 = vmatpush1.bf16.msra.mxu0 0
      %8436 = vmatprep.subr.bf16.mxu0 0
      %8437 = vmatpush1.bf16.msra.mxu0 0
      %8438 = vmatprep.subr.bf16.mxu0 0
      %8439 = vmatpush1.bf16.msra.mxu0 0
      %8440 = vmatprep.subr.bf16.mxu0 0
      %8441 = vmatpush1.bf16.msra.mxu0 0
      %8442 = vmatprep.subr.bf16.mxu0 0
      %8443 = vmatpush1.bf16.msra.mxu0 0
      %8444 = vmatprep.subr.bf16.mxu0 0
      %8445 = vmatpush1.bf16.msra.mxu0 0
      %8446 = vmatprep.subr.bf16.mxu0 0
      %8447 = vmatpush1.bf16.msra.mxu0 0
      %8448 = vmatprep.subr.bf16.mxu0 0
      %8449 = vmatpush1.bf16.msra.mxu0 0
      %8450 = vmatprep.subr.bf16.mxu0 0
      %8451 = vmatpush1.bf16.msra.mxu0 0
      %8452 = vmatprep.subr.bf16.mxu0 0
      %8453 = vmatpush1.bf16.msra.mxu0 0
      %8454 = vmatprep.subr.bf16.mxu0 0
      %8455 = vmatpush1.bf16.msra.mxu0 0
      %8456 = vmatprep.mubr.bf16.mxu0 0
      %8457 = vmatmul.mubr.bf16.gmra.mrb[0].mxu0 %v6963
      %v8458 = vpop.f32.mrb[0].mxu0
      %v8459 = vadd.f32 0.0, %v8458
      %v8460 = vpop.f32.mrb[0].mxu0
      %v8461 = vpop.f32.mrb[0].mxu0
      %v8462 = vadd.f32 0.0, %v8461
      %v8463 = vpop.f32.mrb[0].mxu0
      %8464 = vmatprep.mubr.bf16.mxu0 0
      %8465 = vmatmul.mubr.bf16.gmra.mrb[0].mxu0 %v6966
      %v8466 = vpop.f32.mrb[0].mxu0
      %v8467 = vadd.f32 0.0, %v8466
      %v8468 = vpop.f32.mrb[0].mxu0
      %v8469 = vpop.f32.mrb[0].mxu0
      %v8470 = vadd.f32 0.0, %v8469
      %v8471 = vpop.f32.mrb[0].mxu0
      %8472 = vmatprep.mubr.bf16.mxu0 0
      %8473 = vmatmul.mubr.bf16.gmra.mrb[0].mxu0 %v6969
      %v8474 = vpop.f32.mrb[0].mxu0
      %v8475 = vadd.f32 0.0, %v8474
      %v8476 = vpop.f32.mrb[0].mxu0
      %v8477 = vpop.f32.mrb[0].mxu0
      %v8478 = vadd.f32 0.0, %v8477
      %v8479 = vpop.f32.mrb[0].mxu0
      %8480 = vmatprep.mubr.bf16.mxu0 0
      %8481 = vmatmul.mubr.bf16.gmra.mrb[0].mxu0 %v6972
      %v8482 = vpop.f32.mrb[0].mxu0
      %v8483 = vadd.f32 0.0, %v8482
      %v8484 = vpop.f32.mrb[0].mxu0
      %v8485 = vpop.f32.mrb[0].mxu0
      %v8486 = vadd.f32 0.0, %v8485
      %v8487 = vpop.f32.mrb[0].mxu0
      %8488 = vmatprep.mubr.bf16.mxu0 0
      %8489 = vmatmul.mubr.bf16.gmra.mrb[0].mxu0 %v6975
      %v8490 = vpop.f32.mrb[0].mxu0
      %v8491 = vadd.f32 0.0, %v8490
      %v8492 = vpop.f32.mrb[0].mxu0
      %v8493 = vpop.f32.mrb[0].mxu0
      %v8494 = vadd.f32 0.0, %v8493
      %v8495 = vpop.f32.mrb[0].mxu0
      %8496 = vmatprep.mubr.bf16.mxu0 0
      %8497 = vmatmul.mubr.bf16.gmra.mrb[0].mxu0 %v6978
      %v8498 = vpop.f32.mrb[0].mxu0
      %v8499 = vadd.f32 0.0, %v8498
      %v8500 = vpop.f32.mrb[0].mxu0
      %v8501 = vpop.f32.mrb[0].mxu0
      %v8502 = vadd.f32 0.0, %v8501
      %v8503 = vpop.f32.mrb[0].mxu0
      %8504 = vmatprep.mubr.bf16.mxu0 0
      %8505 = vmatmul.mubr.bf16.gmra.mrb[0].mxu0 %v6981
      %v8506 = vpop.f32.mrb[0].mxu0
      %v8507 = vadd.f32 0.0, %v8506
      %v8508 = vpop.f32.mrb[0].mxu0
      %v8509 = vpop.f32.mrb[0].mxu0
      %v8510 = vadd.f32 0.0, %v8509
      %v8511 = vpop.f32.mrb[0].mxu0
      %8512 = vmatprep.mubr.bf16.mxu0 0
      %8513 = vmatmul.mubr.bf16.gmra.mrb[0].mxu0 %v6984
      %v8514 = vpop.f32.mrb[0].mxu0
      %v8515 = vadd.f32 0.0, %v8514
      %v8516 = vpop.f32.mrb[0].mxu0
      %v8517 = vpop.f32.mrb[0].mxu0
      %v8518 = vadd.f32 0.0, %v8517
      %v8519 = vpop.f32.mrb[0].mxu0
      %8520 = vmatprep.mubr.bf16.mxu0 0
      %8521 = vmatmul.mubr.bf16.gmra.mrb[0].mxu0 %v6987
      %v8522 = vpop.f32.mrb[0].mxu0
      %v8523 = vadd.f32 0.0, %v8522
      %v8524 = vpop.f32.mrb[0].mxu0
      %v8525 = vpop.f32.mrb[0].mxu0
      %v8526 = vadd.f32 0.0, %v8525
      %v8527 = vpop.f32.mrb[0].mxu0
      %8528 = vmatprep.mubr.bf16.mxu0 0
      %8529 = vmatmul.mubr.bf16.gmra.mrb[0].mxu0 %v6990
      %v8530 = vpop.f32.mrb[0].mxu0
      %v8531 = vadd.f32 0.0, %v8530
      %v8532 = vpop.f32.mrb[0].mxu0
      %v8533 = vpop.f32.mrb[0].mxu0
      %v8534 = vadd.f32 0.0, %v8533
      %v8535 = vpop.f32.mrb[0].mxu0
      %8536 = vmatprep.mubr.bf16.mxu0 0
      %8537 = vmatmul.mubr.bf16.gmra.mrb[0].mxu0 %v6993
      %v8538 = vpop.f32.mrb[0].mxu0
      %v8539 = vadd.f32 0.0, %v8538
      %v8540 = vpop.f32.mrb[0].mxu0
      %v8541 = vpop.f32.mrb[0].mxu0
      %v8542 = vadd.f32 0.0, %v8541
      %v8543 = vpop.f32.mrb[0].mxu0
      %8544 = vmatprep.mubr.bf16.mxu0 0
      %8545 = vmatmul.mubr.bf16.gmra.mrb[0].mxu0 %v6996
      %v8546 = vpop.f32.mrb[0].mxu0
      %v8547 = vadd.f32 0.0, %v8546
      %v8548 = vpop.f32.mrb[0].mxu0
      %v8549 = vpop.f32.mrb[0].mxu0
      %v8550 = vadd.f32 0.0, %v8549
      %v8551 = vpop.f32.mrb[0].mxu0
      %8552 = vmatprep.mubr.bf16.mxu0 0
      %8553 = vmatmul.mubr.bf16.gmra.mrb[0].mxu0 %v6999
      %v8554 = vpop.f32.mrb[0].mxu0
      %v8555 = vadd.f32 0.0, %v8554
      %v8556 = vpop.f32.mrb[0].mxu0
      %v8557 = vpop.f32.mrb[0].mxu0
      %v8558 = vadd.f32 0.0, %v8557
      %v8559 = vpop.f32.mrb[0].mxu0
      %8560 = vmatprep.mubr.bf16.mxu0 0
      %8561 = vmatmul.mubr.bf16.gmra.mrb[0].mxu0 %v7002
      %v8562 = vpop.f32.mrb[0].mxu0
      %v8563 = vadd.f32 0.0, %v8562
      %v8564 = vpop.f32.mrb[0].mxu0
      %v8565 = vpop.f32.mrb[0].mxu0
      %v8566 = vadd.f32 0.0, %v8565
      %v8567 = vpop.f32.mrb[0].mxu0
      %8568 = vmatprep.mubr.bf16.mxu0 0
      %8569 = vmatmul.mubr.bf16.gmra.mrb[0].mxu0 %v7005
      %v8570 = vpop.f32.mrb[0].mxu0
      %v8571 = vadd.f32 0.0, %v8570
      %v8572 = vpop.f32.mrb[0].mxu0
      %v8573 = vpop.f32.mrb[0].mxu0
      %v8574 = vadd.f32 0.0, %v8573
      %v8575 = vpop.f32.mrb[0].mxu0
      %8576 = vmatprep.mubr.bf16.mxu0 0
      %8577 = vmatmul.mubr.bf16.gmra.mrb[0].mxu0 %v7008
      %v8578 = vpop.f32.mrb[0].mxu0
      %v8579 = vadd.f32 0.0, %v8578
      %v8580 = vpop.f32.mrb[0].mxu0
      %v8581 = vpop.f32.mrb[0].mxu0
      %v8582 = vadd.f32 0.0, %v8581
      %v8583 = vpop.f32.mrb[0].mxu0
      %8584 = vdwg.mxu0
      %v8585 = vadd.f32 %v8387, %v8459
      %v8586 = vadd.f32 %v8388, %v8462
      %v8587 = vadd.f32 %v8389, %v8467
      %v8588 = vadd.f32 %v8390, %v8470
      %v8589 = vadd.f32 %v8391, %v8475
      %v8590 = vadd.f32 %v8392, %v8478
      %v8591 = vadd.f32 %v8393, %v8483
      %v8592 = vadd.f32 %v8394, %v8486
      %v8593 = vadd.f32 %v8395, %v8491
      %v8594 = vadd.f32 %v8396, %v8494
      %v8595 = vadd.f32 %v8397, %v8499
      %v8596 = vadd.f32 %v8398, %v8502
      %v8597 = vadd.f32 %v8399, %v8507
      %v8598 = vadd.f32 %v8400, %v8510
      %v8599 = vadd.f32 %v8401, %v8515
      %v8600 = vadd.f32 %v8402, %v8518
      %v8601 = vadd.f32 %v8403, %v8523
      %v8602 = vadd.f32 %v8404, %v8526
      %v8603 = vadd.f32 %v8405, %v8531
      %v8604 = vadd.f32 %v8406, %v8534
      %v8605 = vadd.f32 %v8407, %v8539
      %v8606 = vadd.f32 %v8408, %v8542
      %v8607 = vadd.f32 %v8409, %v8547
      %v8608 = vadd.f32 %v8410, %v8550
      %v8609 = vadd.f32 %v8411, %v8555
      %v8610 = vadd.f32 %v8412, %v8558
      %v8611 = vadd.f32 %v8413, %v8563
      %v8612 = vadd.f32 %v8414, %v8566
      %v8613 = vadd.f32 %v8415, %v8571
      %v8614 = vadd.f32 %v8416, %v8574
      %v8615 = vadd.f32 %v8417, %v8579
      %v8616 = vadd.f32 %v8418, %v8582
      %s8617 = scalar_lea.vmem %s3, 32
      %v8618 = vld [vmem:[%s8617] sm:$0xf]
      %v8620 = vsel %vm6715, %v8618, 0
      %8622 = vmatprep.subr.bf16.mxu0 0
      %8623 = vmatpush1.bf16.msra.mxu0 %v8620
      %8624 = vmatprep.subr.bf16.mxu0 0
      %8625 = vmatpush1.bf16.msra.mxu0 0
      %8626 = vmatprep.subr.bf16.mxu0 0
      %8627 = vmatpush1.bf16.msra.mxu0 0
      %8628 = vmatprep.subr.bf16.mxu0 0
      %8629 = vmatpush1.bf16.msra.mxu0 0
      %8630 = vmatprep.subr.bf16.mxu0 0
      %8631 = vmatpush1.bf16.msra.mxu0 0
      %8632 = vmatprep.subr.bf16.mxu0 0
      %8633 = vmatpush1.bf16.msra.mxu0 0
      %8634 = vmatprep.subr.bf16.mxu0 0
      %8635 = vmatpush1.bf16.msra.mxu0 0
      %8636 = vmatprep.subr.bf16.mxu0 0
      %8637 = vmatpush1.bf16.msra.mxu0 0
      %8638 = vmatprep.subr.bf16.mxu0 0
      %8639 = vmatpush1.bf16.msra.mxu0 0
      %8640 = vmatprep.subr.bf16.mxu0 0
      %8641 = vmatpush1.bf16.msra.mxu0 0
      %8642 = vmatprep.subr.bf16.mxu0 0
      %8643 = vmatpush1.bf16.msra.mxu0 0
      %8644 = vmatprep.subr.bf16.mxu0 0
      %8645 = vmatpush1.bf16.msra.mxu0 0
      %8646 = vmatprep.subr.bf16.mxu0 0
      %8647 = vmatpush1.bf16.msra.mxu0 0
      %8648 = vmatprep.subr.bf16.mxu0 0
      %8649 = vmatpush1.bf16.msra.mxu0 0
      %8650 = vmatprep.subr.bf16.mxu0 0
      %8651 = vmatpush1.bf16.msra.mxu0 0
      %8652 = vmatprep.subr.bf16.mxu0 0
      %8653 = vmatpush1.bf16.msra.mxu0 0
      %8654 = vmatprep.mubr.bf16.mxu0 0
      %8655 = vmatmul.mubr.bf16.gmra.mrb[0].mxu0 %v6668
      %v8656 = vpop.f32.mrb[0].mxu0
      %v8657 = vadd.f32 0.0, %v8656
      %v8658 = vpop.f32.mrb[0].mxu0
      %v8659 = vpop.f32.mrb[0].mxu0
      %v8660 = vadd.f32 0.0, %v8659
      %v8661 = vpop.f32.mrb[0].mxu0
      %8662 = vmatprep.mubr.bf16.mxu0 0
      %8663 = vmatmul.mubr.bf16.gmra.mrb[0].mxu0 %v6671
      %v8664 = vpop.f32.mrb[0].mxu0
      %v8665 = vadd.f32 0.0, %v8664
      %v8666 = vpop.f32.mrb[0].mxu0
      %v8667 = vpop.f32.mrb[0].mxu0
      %v8668 = vadd.f32 0.0, %v8667
      %v8669 = vpop.f32.mrb[0].mxu0
      %8670 = vmatprep.mubr.bf16.mxu0 0
      %8671 = vmatmul.mubr.bf16.gmra.mrb[0].mxu0 %v6674
      %v8672 = vpop.f32.mrb[0].mxu0
      %v8673 = vadd.f32 0.0, %v8672
      %v8674 = vpop.f32.mrb[0].mxu0
      %v8675 = vpop.f32.mrb[0].mxu0
      %v8676 = vadd.f32 0.0, %v8675
      %v8677 = vpop.f32.mrb[0].mxu0
      %8678 = vmatprep.mubr.bf16.mxu0 0
      %8679 = vmatmul.mubr.bf16.gmra.mrb[0].mxu0 %v6677
      %v8680 = vpop.f32.mrb[0].mxu0
      %v8681 = vadd.f32 0.0, %v8680
      %v8682 = vpop.f32.mrb[0].mxu0
      %v8683 = vpop.f32.mrb[0].mxu0
      %v8684 = vadd.f32 0.0, %v8683
      %v8685 = vpop.f32.mrb[0].mxu0
      %8686 = vmatprep.mubr.bf16.mxu0 0
      %8687 = vmatmul.mubr.bf16.gmra.mrb[0].mxu0 %v6680
      %v8688 = vpop.f32.mrb[0].mxu0
      %v8689 = vadd.f32 0.0, %v8688
      %v8690 = vpop.f32.mrb[0].mxu0
      %v8691 = vpop.f32.mrb[0].mxu0
      %v8692 = vadd.f32 0.0, %v8691
      %v8693 = vpop.f32.mrb[0].mxu0
      %8694 = vmatprep.mubr.bf16.mxu0 0
      %8695 = vmatmul.mubr.bf16.gmra.mrb[0].mxu0 %v6683
      %v8696 = vpop.f32.mrb[0].mxu0
      %v8697 = vadd.f32 0.0, %v8696
      %v8698 = vpop.f32.mrb[0].mxu0
      %v8699 = vpop.f32.mrb[0].mxu0
      %v8700 = vadd.f32 0.0, %v8699
      %v8701 = vpop.f32.mrb[0].mxu0
      %8702 = vmatprep.mubr.bf16.mxu0 0
      %8703 = vmatmul.mubr.bf16.gmra.mrb[0].mxu0 %v6686
      %v8704 = vpop.f32.mrb[0].mxu0
      %v8705 = vadd.f32 0.0, %v8704
      %v8706 = vpop.f32.mrb[0].mxu0
      %v8707 = vpop.f32.mrb[0].mxu0
      %v8708 = vadd.f32 0.0, %v8707
      %v8709 = vpop.f32.mrb[0].mxu0
      %8710 = vmatprep.mubr.bf16.mxu0 0
      %8711 = vmatmul.mubr.bf16.gmra.mrb[0].mxu0 %v6689
      %v8712 = vpop.f32.mrb[0].mxu0
      %v8713 = vadd.f32 0.0, %v8712
      %v8714 = vpop.f32.mrb[0].mxu0
      %v8715 = vpop.f32.mrb[0].mxu0
      %v8716 = vadd.f32 0.0, %v8715
      %v8717 = vpop.f32.mrb[0].mxu0
      %8718 = vmatprep.mubr.bf16.mxu0 0
      %8719 = vmatmul.mubr.bf16.gmra.mrb[0].mxu0 %v6692
      %v8720 = vpop.f32.mrb[0].mxu0
      %v8721 = vadd.f32 0.0, %v8720
      %v8722 = vpop.f32.mrb[0].mxu0
      %v8723 = vpop.f32.mrb[0].mxu0
      %v8724 = vadd.f32 0.0, %v8723
      %v8725 = vpop.f32.mrb[0].mxu0
      %8726 = vmatprep.mubr.bf16.mxu0 0
      %8727 = vmatmul.mubr.bf16.gmra.mrb[0].mxu0 %v6695
      %v8728 = vpop.f32.mrb[0].mxu0
      %v8729 = vadd.f32 0.0, %v8728
      %v8730 = vpop.f32.mrb[0].mxu0
      %v8731 = vpop.f32.mrb[0].mxu0
      %v8732 = vadd.f32 0.0, %v8731
      %v8733 = vpop.f32.mrb[0].mxu0
      %8734 = vmatprep.mubr.bf16.mxu0 0
      %8735 = vmatmul.mubr.bf16.gmra.mrb[0].mxu0 %v6698
      %v8736 = vpop.f32.mrb[0].mxu0
      %v8737 = vadd.f32 0.0, %v8736
      %v8738 = vpop.f32.mrb[0].mxu0
      %v8739 = vpop.f32.mrb[0].mxu0
      %v8740 = vadd.f32 0.0, %v8739
      %v8741 = vpop.f32.mrb[0].mxu0
      %8742 = vmatprep.mubr.bf16.mxu0 0
      %8743 = vmatmul.mubr.bf16.gmra.mrb[0].mxu0 %v6701
      %v8744 = vpop.f32.mrb[0].mxu0
      %v8745 = vadd.f32 0.0, %v8744
      %v8746 = vpop.f32.mrb[0].mxu0
      %v8747 = vpop.f32.mrb[0].mxu0
      %v8748 = vadd.f32 0.0, %v8747
      %v8749 = vpop.f32.mrb[0].mxu0
      %8750 = vmatprep.mubr.bf16.mxu0 0
      %8751 = vmatmul.mubr.bf16.gmra.mrb[0].mxu0 %v6704
      %v8752 = vpop.f32.mrb[0].mxu0
      %v8753 = vadd.f32 0.0, %v8752
      %v8754 = vpop.f32.mrb[0].mxu0
      %v8755 = vpop.f32.mrb[0].mxu0
      %v8756 = vadd.f32 0.0, %v8755
      %v8757 = vpop.f32.mrb[0].mxu0
      %8758 = vmatprep.mubr.bf16.mxu0 0
      %8759 = vmatmul.mubr.bf16.gmra.mrb[0].mxu0 %v6707
      %v8760 = vpop.f32.mrb[0].mxu0
      %v8761 = vadd.f32 0.0, %v8760
      %v8762 = vpop.f32.mrb[0].mxu0
      %v8763 = vpop.f32.mrb[0].mxu0
      %v8764 = vadd.f32 0.0, %v8763
      %v8765 = vpop.f32.mrb[0].mxu0
      %8766 = vmatprep.mubr.bf16.mxu0 0
      %8767 = vmatmul.mubr.bf16.gmra.mrb[0].mxu0 %v6710
      %v8768 = vpop.f32.mrb[0].mxu0
      %v8769 = vadd.f32 0.0, %v8768
      %v8770 = vpop.f32.mrb[0].mxu0
      %v8771 = vpop.f32.mrb[0].mxu0
      %v8772 = vadd.f32 0.0, %v8771
      %v8773 = vpop.f32.mrb[0].mxu0
      %8774 = vmatprep.mubr.bf16.mxu0 0
      %8775 = vmatmul.mubr.bf16.gmra.mrb[0].mxu0 %v6713
      %v8776 = vpop.f32.mrb[0].mxu0
      %v8777 = vadd.f32 0.0, %v8776
      %v8778 = vpop.f32.mrb[0].mxu0
      %v8779 = vpop.f32.mrb[0].mxu0
      %v8780 = vadd.f32 0.0, %v8779
      %v8781 = vpop.f32.mrb[0].mxu0
      %8782 = vdwg.mxu0
      %v8783 = vadd.f32 %v8585, %v8657
      %v8784 = vadd.f32 %v8586, %v8660
      %v8785 = vadd.f32 %v8587, %v8665
      %v8786 = vadd.f32 %v8588, %v8668
      %v8787 = vadd.f32 %v8589, %v8673
      %v8788 = vadd.f32 %v8590, %v8676
      %v8789 = vadd.f32 %v8591, %v8681
      %v8790 = vadd.f32 %v8592, %v8684
      %v8791 = vadd.f32 %v8593, %v8689
      %v8792 = vadd.f32 %v8594, %v8692
      %v8793 = vadd.f32 %v8595, %v8697
      %v8794 = vadd.f32 %v8596, %v8700
      %v8795 = vadd.f32 %v8597, %v8705
      %v8796 = vadd.f32 %v8598, %v8708
      %v8797 = vadd.f32 %v8599, %v8713
      %v8798 = vadd.f32 %v8600, %v8716
      %v8799 = vadd.f32 %v8601, %v8721
      %v8800 = vadd.f32 %v8602, %v8724
      %v8801 = vadd.f32 %v8603, %v8729
      %v8802 = vadd.f32 %v8604, %v8732
      %v8803 = vadd.f32 %v8605, %v8737
      %v8804 = vadd.f32 %v8606, %v8740
      %v8805 = vadd.f32 %v8607, %v8745
      %v8806 = vadd.f32 %v8608, %v8748
      %v8807 = vadd.f32 %v8609, %v8753
      %v8808 = vadd.f32 %v8610, %v8756
      %v8809 = vadd.f32 %v8611, %v8761
      %v8810 = vadd.f32 %v8612, %v8764
      %v8811 = vadd.f32 %v8613, %v8769
      %v8812 = vadd.f32 %v8614, %v8772
      %v8813 = vadd.f32 %v8615, %v8777
      %v8814 = vadd.f32 %v8616, %v8780
      %v8815 = vmax.f32 %v6880, 0.0
      %v8816 = vmax.f32 %v6881, 0.0
      %v8817 = vmax.f32 %v6882, 0.0
      %v8818 = vmax.f32 %v6883, 0.0
      %v8819 = vmax.f32 %v6884, 0.0
      %v8820 = vmax.f32 %v6885, 0.0
      %v8821 = vmax.f32 %v6886, 0.0
      %v8822 = vmax.f32 %v6887, 0.0
      %v8823 = vmax.f32 %v6888, 0.0
      %v8824 = vmax.f32 %v6889, 0.0
      %v8825 = vmax.f32 %v6890, 0.0
      %v8826 = vmax.f32 %v6891, 0.0
      %v8827 = vmax.f32 %v6892, 0.0
      %v8828 = vmax.f32 %v6893, 0.0
      %v8829 = vmax.f32 %v6894, 0.0
      %v8830 = vmax.f32 %v6895, 0.0
      %v8831 = vmax.f32 %v6896, 0.0
      %v8832 = vmax.f32 %v6897, 0.0
      %v8833 = vmax.f32 %v6898, 0.0
      %v8834 = vmax.f32 %v6899, 0.0
      %v8835 = vmax.f32 %v6900, 0.0
      %v8836 = vmax.f32 %v6901, 0.0
      %v8837 = vmax.f32 %v6902, 0.0
      %v8838 = vmax.f32 %v6903, 0.0
      %v8839 = vmax.f32 %v6904, 0.0
      %v8840 = vmax.f32 %v6905, 0.0
      %v8841 = vmax.f32 %v6906, 0.0
      %v8842 = vmax.f32 %v6907, 0.0
      %v8843 = vmax.f32 %v6908, 0.0
      %v8844 = vmax.f32 %v6909, 0.0
      %v8845 = vmax.f32 %v6910, 0.0
      %v8846 = vmax.f32 %v6911, 0.0
      %8847 = vxpose.xlu0.b32.start [1/16] %v8815, 128
      %8848 = vxpose.xlu0.b32.cont [2/16] %v8816, 128
      %8849 = vxpose.xlu0.b32.cont [3/16] %v8817, 128
      %8850 = vxpose.xlu0.b32.cont [4/16] %v8818, 128
      %8851 = vxpose.xlu0.b32.cont [5/16] %v8819, 128
      %8852 = vxpose.xlu0.b32.cont [6/16] %v8820, 128
      %8853 = vxpose.xlu0.b32.cont [7/16] %v8821, 128
      %8854 = vxpose.xlu0.b32.cont [8/16] %v8822, 128
      %8855 = vxpose.xlu0.b32.cont [9/16] %v8823, 128
      %8856 = vxpose.xlu0.b32.cont [10/16] %v8824, 128
      %8857 = vxpose.xlu0.b32.cont [11/16] %v8825, 128
      %8858 = vxpose.xlu0.b32.cont [12/16] %v8826, 128
      %8859 = vxpose.xlu0.b32.cont [13/16] %v8827, 128
      %8860 = vxpose.xlu0.b32.cont [14/16] %v8828, 128
      %8861 = vxpose.xlu0.b32.cont [15/16] %v8829, 128
      %8862 = vxpose.xlu0.b32.end [16/16] %v8830, 128
      %v8863 = vpop.trf.xlu0
      %v8864 = vpop.trf.xlu0
      %v8865 = vpop.trf.xlu0
      %v8866 = vpop.trf.xlu0
      %v8867 = vpop.trf.xlu0
      %v8868 = vpop.trf.xlu0
      %v8869 = vpop.trf.xlu0
      %v8870 = vpop.trf.xlu0
      %v8871 = vpop.trf.xlu0
      %v8872 = vpop.trf.xlu0
      %v8873 = vpop.trf.xlu0
      %v8874 = vpop.trf.xlu0
      %v8875 = vpop.trf.xlu0
      %v8876 = vpop.trf.xlu0
      %v8877 = vpop.trf.xlu0
      %v8878 = vpop.trf.xlu0
      %8879 = vxpose.xlu0.b32.start [1/16] %v8831, 128
      %8880 = vxpose.xlu0.b32.cont [2/16] %v8832, 128
      %8881 = vxpose.xlu0.b32.cont [3/16] %v8833, 128
      %8882 = vxpose.xlu0.b32.cont [4/16] %v8834, 128
      %8883 = vxpose.xlu0.b32.cont [5/16] %v8835, 128
      %8884 = vxpose.xlu0.b32.cont [6/16] %v8836, 128
      %8885 = vxpose.xlu0.b32.cont [7/16] %v8837, 128
      %8886 = vxpose.xlu0.b32.cont [8/16] %v8838, 128
      %8887 = vxpose.xlu0.b32.cont [9/16] %v8839, 128
      %8888 = vxpose.xlu0.b32.cont [10/16] %v8840, 128
      %8889 = vxpose.xlu0.b32.cont [11/16] %v8841, 128
      %8890 = vxpose.xlu0.b32.cont [12/16] %v8842, 128
      %8891 = vxpose.xlu0.b32.cont [13/16] %v8843, 128
      %8892 = vxpose.xlu0.b32.cont [14/16] %v8844, 128
      %8893 = vxpose.xlu0.b32.cont [15/16] %v8845, 128
      %8894 = vxpose.xlu0.b32.end [16/16] %v8846, 128
      %v8895 = vpop.trf.xlu0
      %v8896 = vpop.trf.xlu0
      %v8897 = vpop.trf.xlu0
      %v8898 = vpop.trf.xlu0
      %v8899 = vpop.trf.xlu0
      %v8900 = vpop.trf.xlu0
      %v8901 = vpop.trf.xlu0
      %v8902 = vpop.trf.xlu0
      %v8903 = vpop.trf.xlu0
      %v8904 = vpop.trf.xlu0
      %v8905 = vpop.trf.xlu0
      %v8906 = vpop.trf.xlu0
      %v8907 = vpop.trf.xlu0
      %v8908 = vpop.trf.xlu0
      %v8909 = vpop.trf.xlu0
      %v8910 = vpop.trf.xlu0
      %8911 = vst [vmem:[%s224] sm:$0x3f] %v8863
      %8912 = vst [vmem:[%s224 + $0x8] sm:$0x3f] %v8895
      %v8913 = vmax.f32 %v7372, 0.0
      %v8914 = vmax.f32 %v7373, 0.0
      %v8915 = vmax.f32 %v7374, 0.0
      %v8916 = vmax.f32 %v7375, 0.0
      %v8917 = vmax.f32 %v7376, 0.0
      %v8918 = vmax.f32 %v7377, 0.0
      %v8919 = vmax.f32 %v7378, 0.0
      %v8920 = vmax.f32 %v7379, 0.0
      %v8921 = vmax.f32 %v7380, 0.0
      %v8922 = vmax.f32 %v7381, 0.0
      %v8923 = vmax.f32 %v7382, 0.0
      %v8924 = vmax.f32 %v7383, 0.0
      %v8925 = vmax.f32 %v7384, 0.0
      %v8926 = vmax.f32 %v7385, 0.0
      %v8927 = vmax.f32 %v7386, 0.0
      %v8928 = vmax.f32 %v7387, 0.0
      %v8929 = vmax.f32 %v7388, 0.0
      %v8930 = vmax.f32 %v7389, 0.0
      %v8931 = vmax.f32 %v7390, 0.0
      %v8932 = vmax.f32 %v7391, 0.0
      %v8933 = vmax.f32 %v7392, 0.0
      %v8934 = vmax.f32 %v7393, 0.0
      %v8935 = vmax.f32 %v7394, 0.0
      %v8936 = vmax.f32 %v7395, 0.0
      %v8937 = vmax.f32 %v7396, 0.0
      %v8938 = vmax.f32 %v7397, 0.0
      %v8939 = vmax.f32 %v7398, 0.0
      %v8940 = vmax.f32 %v7399, 0.0
      %v8941 = vmax.f32 %v7400, 0.0
      %v8942 = vmax.f32 %v7401, 0.0
      %v8943 = vmax.f32 %v7402, 0.0
      %v8944 = vmax.f32 %v7403, 0.0
      %8945 = vxpose.xlu0.b32.start [1/16] %v8913, 128
      %8946 = vxpose.xlu0.b32.cont [2/16] %v8914, 128
      %8947 = vxpose.xlu0.b32.cont [3/16] %v8915, 128
      %8948 = vxpose.xlu0.b32.cont [4/16] %v8916, 128
      %8949 = vxpose.xlu0.b32.cont [5/16] %v8917, 128
      %8950 = vxpose.xlu0.b32.cont [6/16] %v8918, 128
      %8951 = vxpose.xlu0.b32.cont [7/16] %v8919, 128
      %8952 = vxpose.xlu0.b32.cont [8/16] %v8920, 128
      %8953 = vxpose.xlu0.b32.cont [9/16] %v8921, 128
      %8954 = vxpose.xlu0.b32.cont [10/16] %v8922, 128
      %8955 = vxpose.xlu0.b32.cont [11/16] %v8923, 128
      %8956 = vxpose.xlu0.b32.cont [12/16] %v8924, 128
      %8957 = vxpose.xlu0.b32.cont [13/16] %v8925, 128
      %8958 = vxpose.xlu0.b32.cont [14/16] %v8926, 128
      %8959 = vxpose.xlu0.b32.cont [15/16] %v8927, 128
      %8960 = vxpose.xlu0.b32.end [16/16] %v8928, 128
      %v8961 = vpop.trf.xlu0
      %v8962 = vpop.trf.xlu0
      %v8963 = vpop.trf.xlu0
      %v8964 = vpop.trf.xlu0
      %v8965 = vpop.trf.xlu0
      %v8966 = vpop.trf.xlu0
      %v8967 = vpop.trf.xlu0
      %v8968 = vpop.trf.xlu0
      %v8969 = vpop.trf.xlu0
      %v8970 = vpop.trf.xlu0
      %v8971 = vpop.trf.xlu0
      %v8972 = vpop.trf.xlu0
      %v8973 = vpop.trf.xlu0
      %v8974 = vpop.trf.xlu0
      %v8975 = vpop.trf.xlu0
      %v8976 = vpop.trf.xlu0
      %8977 = vxpose.xlu0.b32.start [1/16] %v8929, 128
      %8978 = vxpose.xlu0.b32.cont [2/16] %v8930, 128
      %8979 = vxpose.xlu0.b32.cont [3/16] %v8931, 128
      %8980 = vxpose.xlu0.b32.cont [4/16] %v8932, 128
      %8981 = vxpose.xlu0.b32.cont [5/16] %v8933, 128
      %8982 = vxpose.xlu0.b32.cont [6/16] %v8934, 128
      %8983 = vxpose.xlu0.b32.cont [7/16] %v8935, 128
      %8984 = vxpose.xlu0.b32.cont [8/16] %v8936, 128
      %8985 = vxpose.xlu0.b32.cont [9/16] %v8937, 128
      %8986 = vxpose.xlu0.b32.cont [10/16] %v8938, 128
      %8987 = vxpose.xlu0.b32.cont [11/16] %v8939, 128
      %8988 = vxpose.xlu0.b32.cont [12/16] %v8940, 128
      %8989 = vxpose.xlu0.b32.cont [13/16] %v8941, 128
      %8990 = vxpose.xlu0.b32.cont [14/16] %v8942, 128
      %8991 = vxpose.xlu0.b32.cont [15/16] %v8943, 128
      %8992 = vxpose.xlu0.b32.end [16/16] %v8944, 128
      %v8993 = vpop.trf.xlu0
      %v8994 = vpop.trf.xlu0
      %v8995 = vpop.trf.xlu0
      %v8996 = vpop.trf.xlu0
      %v8997 = vpop.trf.xlu0
      %v8998 = vpop.trf.xlu0
      %v8999 = vpop.trf.xlu0
      %v9000 = vpop.trf.xlu0
      %v9001 = vpop.trf.xlu0
      %v9002 = vpop.trf.xlu0
      %v9003 = vpop.trf.xlu0
      %v9004 = vpop.trf.xlu0
      %v9005 = vpop.trf.xlu0
      %v9006 = vpop.trf.xlu0
      %v9007 = vpop.trf.xlu0
      %v9008 = vpop.trf.xlu0
      %s9009 = scalar_lea.vmem %s224, 16
      %9010 = vst [vmem:[%s9009] sm:$0x3f] %v8961
      %9011 = vst [vmem:[%s9009 + $0x8] sm:$0x3f] %v8993
      %v9012 = vmax.f32 %v7896, 0.0
      %v9013 = vmax.f32 %v7897, 0.0
      %v9014 = vmax.f32 %v7898, 0.0
      %v9015 = vmax.f32 %v7899, 0.0
      %v9016 = vmax.f32 %v7900, 0.0
      %v9017 = vmax.f32 %v7901, 0.0
      %v9018 = vmax.f32 %v7902, 0.0
      %v9019 = vmax.f32 %v7903, 0.0
      %v9020 = vmax.f32 %v7904, 0.0
      %v9021 = vmax.f32 %v7905, 0.0
      %v9022 = vmax.f32 %v7906, 0.0
      %v9023 = vmax.f32 %v7907, 0.0
      %v9024 = vmax.f32 %v7908, 0.0
      %v9025 = vmax.f32 %v7909, 0.0
      %v9026 = vmax.f32 %v7910, 0.0
      %v9027 = vmax.f32 %v7911, 0.0
      %v9028 = vmax.f32 %v7912, 0.0
      %v9029 = vmax.f32 %v7913, 0.0
      %v9030 = vmax.f32 %v7914, 0.0
      %v9031 = vmax.f32 %v7915, 0.0
      %v9032 = vmax.f32 %v7916, 0.0
      %v9033 = vmax.f32 %v7917, 0.0
      %v9034 = vmax.f32 %v7918, 0.0
      %v9035 = vmax.f32 %v7919, 0.0
      %v9036 = vmax.f32 %v7920, 0.0
      %v9037 = vmax.f32 %v7921, 0.0
      %v9038 = vmax.f32 %v7922, 0.0
      %v9039 = vmax.f32 %v7923, 0.0
      %v9040 = vmax.f32 %v7924, 0.0
      %v9041 = vmax.f32 %v7925, 0.0
      %v9042 = vmax.f32 %v7926, 0.0
      %v9043 = vmax.f32 %v7927, 0.0
      %9044 = vxpose.xlu0.b32.start [1/16] %v9012, 128
      %9045 = vxpose.xlu0.b32.cont [2/16] %v9013, 128
      %9046 = vxpose.xlu0.b32.cont [3/16] %v9014, 128
      %9047 = vxpose.xlu0.b32.cont [4/16] %v9015, 128
      %9048 = vxpose.xlu0.b32.cont [5/16] %v9016, 128
      %9049 = vxpose.xlu0.b32.cont [6/16] %v9017, 128
      %9050 = vxpose.xlu0.b32.cont [7/16] %v9018, 128
      %9051 = vxpose.xlu0.b32.cont [8/16] %v9019, 128
      %9052 = vxpose.xlu0.b32.cont [9/16] %v9020, 128
      %9053 = vxpose.xlu0.b32.cont [10/16] %v9021, 128
      %9054 = vxpose.xlu0.b32.cont [11/16] %v9022, 128
      %9055 = vxpose.xlu0.b32.cont [12/16] %v9023, 128
      %9056 = vxpose.xlu0.b32.cont [13/16] %v9024, 128
      %9057 = vxpose.xlu0.b32.cont [14/16] %v9025, 128
      %9058 = vxpose.xlu0.b32.cont [15/16] %v9026, 128
      %9059 = vxpose.xlu0.b32.end [16/16] %v9027, 128
      %v9060 = vpop.trf.xlu0
      %v9061 = vpop.trf.xlu0
      %v9062 = vpop.trf.xlu0
      %v9063 = vpop.trf.xlu0
      %v9064 = vpop.trf.xlu0
      %v9065 = vpop.trf.xlu0
      %v9066 = vpop.trf.xlu0
      %v9067 = vpop.trf.xlu0
      %v9068 = vpop.trf.xlu0
      %v9069 = vpop.trf.xlu0
      %v9070 = vpop.trf.xlu0
      %v9071 = vpop.trf.xlu0
      %v9072 = vpop.trf.xlu0
      %v9073 = vpop.trf.xlu0
      %v9074 = vpop.trf.xlu0
      %v9075 = vpop.trf.xlu0
      %9076 = vxpose.xlu0.b32.start [1/16] %v9028, 128
      %9077 = vxpose.xlu0.b32.cont [2/16] %v9029, 128
      %9078 = vxpose.xlu0.b32.cont [3/16] %v9030, 128
      %9079 = vxpose.xlu0.b32.cont [4/16] %v9031, 128
      %9080 = vxpose.xlu0.b32.cont [5/16] %v9032, 128
      %9081 = vxpose.xlu0.b32.cont [6/16] %v9033, 128
      %9082 = vxpose.xlu0.b32.cont [7/16] %v9034, 128
      %9083 = vxpose.xlu0.b32.cont [8/16] %v9035, 128
      %9084 = vxpose.xlu0.b32.cont [9/16] %v9036, 128
      %9085 = vxpose.xlu0.b32.cont [10/16] %v9037, 128
      %9086 = vxpose.xlu0.b32.cont [11/16] %v9038, 128
      %9087 = vxpose.xlu0.b32.cont [12/16] %v9039, 128
      %9088 = vxpose.xlu0.b32.cont [13/16] %v9040, 128
      %9089 = vxpose.xlu0.b32.cont [14/16] %v9041, 128
      %9090 = vxpose.xlu0.b32.cont [15/16] %v9042, 128
      %9091 = vxpose.xlu0.b32.end [16/16] %v9043, 128
      %v9092 = vpop.trf.xlu0
      %v9093 = vpop.trf.xlu0
      %v9094 = vpop.trf.xlu0
      %v9095 = vpop.trf.xlu0
      %v9096 = vpop.trf.xlu0
      %v9097 = vpop.trf.xlu0
      %v9098 = vpop.trf.xlu0
      %v9099 = vpop.trf.xlu0
      %v9100 = vpop.trf.xlu0
      %v9101 = vpop.trf.xlu0
      %v9102 = vpop.trf.xlu0
      %v9103 = vpop.trf.xlu0
      %v9104 = vpop.trf.xlu0
      %v9105 = vpop.trf.xlu0
      %v9106 = vpop.trf.xlu0
      %v9107 = vpop.trf.xlu0
      %s9108 = scalar_lea.vmem %s224, 32
      %9109 = vst [vmem:[%s9108] sm:$0x3f] %v9060
      %9110 = vst [vmem:[%s9108 + $0x8] sm:$0x3f] %v9092
      %v9111 = vmax.f32 %v8783, 0.0
      %v9112 = vmax.f32 %v8784, 0.0
      %v9113 = vmax.f32 %v8785, 0.0
      %v9114 = vmax.f32 %v8786, 0.0
      %v9115 = vmax.f32 %v8787, 0.0
      %v9116 = vmax.f32 %v8788, 0.0
      %v9117 = vmax.f32 %v8789, 0.0
      %v9118 = vmax.f32 %v8790, 0.0
      %v9119 = vmax.f32 %v8791, 0.0
      %v9120 = vmax.f32 %v8792, 0.0
      %v9121 = vmax.f32 %v8793, 0.0
      %v9122 = vmax.f32 %v8794, 0.0
      %v9123 = vmax.f32 %v8795, 0.0
      %v9124 = vmax.f32 %v8796, 0.0
      %v9125 = vmax.f32 %v8797, 0.0
      %v9126 = vmax.f32 %v8798, 0.0
      %v9127 = vmax.f32 %v8799, 0.0
      %v9128 = vmax.f32 %v8800, 0.0
      %v9129 = vmax.f32 %v8801, 0.0
      %v9130 = vmax.f32 %v8802, 0.0
      %v9131 = vmax.f32 %v8803, 0.0
      %v9132 = vmax.f32 %v8804, 0.0
      %v9133 = vmax.f32 %v8805, 0.0
      %v9134 = vmax.f32 %v8806, 0.0
      %v9135 = vmax.f32 %v8807, 0.0
      %v9136 = vmax.f32 %v8808, 0.0
      %v9137 = vmax.f32 %v8809, 0.0
      %v9138 = vmax.f32 %v8810, 0.0
      %v9139 = vmax.f32 %v8811, 0.0
      %v9140 = vmax.f32 %v8812, 0.0
      %v9141 = vmax.f32 %v8813, 0.0
      %v9142 = vmax.f32 %v8814, 0.0
      %9143 = vxpose.xlu0.b32.start [1/16] %v9111, 128
      %9144 = vxpose.xlu0.b32.cont [2/16] %v9112, 128
      %9145 = vxpose.xlu0.b32.cont [3/16] %v9113, 128
      %9146 = vxpose.xlu0.b32.cont [4/16] %v9114, 128
      %9147 = vxpose.xlu0.b32.cont [5/16] %v9115, 128
      %9148 = vxpose.xlu0.b32.cont [6/16] %v9116, 128
      %9149 = vxpose.xlu0.b32.cont [7/16] %v9117, 128
      %9150 = vxpose.xlu0.b32.cont [8/16] %v9118, 128
      %9151 = vxpose.xlu0.b32.cont [9/16] %v9119, 128
      %9152 = vxpose.xlu0.b32.cont [10/16] %v9120, 128
      %9153 = vxpose.xlu0.b32.cont [11/16] %v9121, 128
      %9154 = vxpose.xlu0.b32.cont [12/16] %v9122, 128
      %9155 = vxpose.xlu0.b32.cont [13/16] %v9123, 128
      %9156 = vxpose.xlu0.b32.cont [14/16] %v9124, 128
      %9157 = vxpose.xlu0.b32.cont [15/16] %v9125, 128
      %9158 = vxpose.xlu0.b32.end [16/16] %v9126, 128
      %v9159 = vpop.trf.xlu0
      %v9160 = vpop.trf.xlu0
      %v9161 = vpop.trf.xlu0
      %v9162 = vpop.trf.xlu0
      %v9163 = vpop.trf.xlu0
      %v9164 = vpop.trf.xlu0
      %v9165 = vpop.trf.xlu0
      %v9166 = vpop.trf.xlu0
      %v9167 = vpop.trf.xlu0
      %v9168 = vpop.trf.xlu0
      %v9169 = vpop.trf.xlu0
      %v9170 = vpop.trf.xlu0
      %v9171 = vpop.trf.xlu0
      %v9172 = vpop.trf.xlu0
      %v9173 = vpop.trf.xlu0
      %v9174 = vpop.trf.xlu0
      %9175 = vxpose.xlu0.b32.start [1/16] %v9127, 128
      %9176 = vxpose.xlu0.b32.cont [2/16] %v9128, 128
      %9177 = vxpose.xlu0.b32.cont [3/16] %v9129, 128
      %9178 = vxpose.xlu0.b32.cont [4/16] %v9130, 128
      %9179 = vxpose.xlu0.b32.cont [5/16] %v9131, 128
      %9180 = vxpose.xlu0.b32.cont [6/16] %v9132, 128
      %9181 = vxpose.xlu0.b32.cont [7/16] %v9133, 128
      %9182 = vxpose.xlu0.b32.cont [8/16] %v9134, 128
      %9183 = vxpose.xlu0.b32.cont [9/16] %v9135, 128
      %9184 = vxpose.xlu0.b32.cont [10/16] %v9136, 128
      %9185 = vxpose.xlu0.b32.cont [11/16] %v9137, 128
      %9186 = vxpose.xlu0.b32.cont [12/16] %v9138, 128
      %9187 = vxpose.xlu0.b32.cont [13/16] %v9139, 128
      %9188 = vxpose.xlu0.b32.cont [14/16] %v9140, 128
      %9189 = vxpose.xlu0.b32.cont [15/16] %v9141, 128
      %9190 = vxpose.xlu0.b32.end [16/16] %v9142, 128
      %v9191 = vpop.trf.xlu0
      %v9192 = vpop.trf.xlu0
      %v9193 = vpop.trf.xlu0
      %v9194 = vpop.trf.xlu0
      %v9195 = vpop.trf.xlu0
      %v9196 = vpop.trf.xlu0
      %v9197 = vpop.trf.xlu0
      %v9198 = vpop.trf.xlu0
      %v9199 = vpop.trf.xlu0
      %v9200 = vpop.trf.xlu0
      %v9201 = vpop.trf.xlu0
      %v9202 = vpop.trf.xlu0
      %v9203 = vpop.trf.xlu0
      %v9204 = vpop.trf.xlu0
      %v9205 = vpop.trf.xlu0
      %v9206 = vpop.trf.xlu0
      %s9207 = scalar_lea.vmem %s224, 48
      %9208 = vst [vmem:[%s9207] sm:$0x3f] %v9159
      %9209 = vst [vmem:[%s9207 + $0x8] sm:$0x3f] %v9191
      %p9210 = scmp.lt.s32.totalorder %s16, 1
      %s9211 = scalar_select %p9210, %s16, 1
      %s9212 = smul.addr %s9211, 8
      %s9213 = smul.addr %s9212, 8
      %s9214 = scalar_lea.vmem %s5, %s9213
      // Predicated region
      $region41: #{unet_decoder_forward.1} parent=39 // pred_check
        %p9215 = pneg %p144
      $region42: #{unet_decoder_forward.1} parent=39 // pred_check_branch
        %9217 = sbr.rel (%p9215) target = $region44
      $region43: #{unet_decoder_forward.1} parent=39 // pred_region
        _
      $region44: #{unet_decoder_forward.1} parent=39 // pred_fallthru
        _
    $region40: #{unet_decoder_forward.1} parent=5 // pred_fallthru
      _
    %p9218 = scmp.le.s32.totalorder 2, %s11
    // Predicated region
    $region45: #{unet_decoder_forward.1} parent=5 // pred_check
      %p9219 = pneg %p9218
    $region46: #{unet_decoder_forward.1} parent=5 // pred_check_branch
      %9221 = sbr.rel (%p9219) target = $region48
    $region47: #{unet_decoder_forward.1} parent=5 // pred_region
      %s9222 = ssub.s32 %s11, 2
      // Predicated region
      $region49: #{unet_decoder_forward.1} parent=47 // pred_check
        %p9223 = pneg %p150
      $region50: #{unet_decoder_forward.1} parent=47 // pred_check_branch
        %9225 = sbr.rel (%p9223) target = $region52
      $region51: #{unet_decoder_forward.1} parent=47 // pred_region
        %p9226 = scmp.lt.s32.totalorder %s17, 1
        %s9227 = scalar_select %p9226, %s17, 1
        %s9228 = smul.addr %s9227, 8
        %s9229 = smul.addr %s9228, 8
        %s9230 = scalar_lea.vmem %s5, %s9229
      $region52: #{unet_decoder_forward.1} parent=47 // pred_fallthru
        _
    $region48: #{unet_decoder_forward.1} parent=5 // pred_fallthru
      _
  $region6: #{unet_decoder_forward.1} parent=0 // loop_footer
    %s15 = sadd.s32 1, %s11
  $region7: #{unet_decoder_forward.1} parent=0 // loop_footer_branch
    %10 = sbr.rel target = $region3
  $region8: #{unet_decoder_forward.1} parent=0 // loop_exit
    _

</llo_original>
